<compile_context>
chip_gen: v6e
topology: v6e:2x2x1
jax: 0.10.0
libtpu: 0.0.40
codegen_flags: <defaults>
</compile_context>

<pallas_src>
import functools

import numpy as np
import jax
import jax.numpy as jnp
from jax.experimental import pallas as pl
from jax.experimental.pallas import tpu as pltpu


# ----------------------------------------------------------------------------
# Fused kernel: entire conv stack, VMEM-resident intermediates.
# ----------------------------------------------------------------------------
def _fused_kernel(a0_ref, w0_ref, b0_ref,
                  sp1_ref, wc1_ref, sp2_ref, wc2_ref, sp3_ref, wc3_ref,
                  q_ref, gam_ref, bet_ref, wf_ref, bf_ref, o_ref,
                  *, n_images):
    eps = 1e-5
    slope = 0.2
    f32 = jnp.float32

    def leaky(v):
        return jnp.where(v >= 0, v, slope * v)

    # ---- layer 0: ONE im2col matmul (+bias, LeakyReLU, no BN) -----------------
    # a0: (P0, 16*N) wrapper-built im2col; w0: (16*N, N*C0) block-diag taps (f32).
    y = jnp.dot(a0_ref[...], w0_ref[...], preferred_element_type=f32) + b0_ref[...]
    y = leaky(y)                                                  # (P0, N*C)

    q = q_ref[...].astype(f32)          # (N*C, N*C) exact-0/1 per-channel reduce+bcast

    def conv_bn_act(y_prev, sp_ref, wc_ref, idx):
        """Conv k4 s2 p1 (pad folded into sp) + BatchNorm(batch stats) + LeakyReLU."""
        taps = sp_ref.shape[0]
        sp = sp_ref[...].astype(f32)                              # (16, P_l, P_prev) 0/1
        # 16 tiny gather dots (folded pad+stride+embed), lane-concat into one
        # im2col tile, then ONE fat block-diagonal weight matmul (K = 16*N*Cin).
        parts = [jnp.dot(sp[r], y_prev, preferred_element_type=f32)
                 for r in range(taps)]
        t = jnp.concatenate(parts, axis=1)                        # (P_l, 16*N*Cin)
        yc = jnp.dot(t, wc_ref[...].astype(f32),
                     preferred_element_type=f32)                  # (P_l, N*Cout)

        # BatchNorm with batch statistics (conv bias cancels exactly -> omitted).
        p_rows = yc.shape[0]
        cnt = float(n_images * p_rows)
        stats = jnp.concatenate(
            [jnp.sum(yc, axis=0, keepdims=True),
             jnp.sum(yc * yc, axis=0, keepdims=True)], axis=0)    # (2, N*C)
        stats = jnp.dot(stats, q, preferred_element_type=f32) / cnt   # fused reduce+bcast
        mean = stats[0:1, :]
        var = jnp.maximum(stats[1:2, :] - mean * mean, 0.0)       # clamp one-pass var
        g = gam_ref[idx:idx + 1, :]
        b = bet_ref[idx:idx + 1, :]
        return leaky((yc - mean) * jax.lax.rsqrt(var + eps) * g + b)

    y = conv_bn_act(y, sp1_ref, wc1_ref, 0)                       # (16, N*C)
    y = conv_bn_act(y, sp2_ref, wc2_ref, 1)                       # (4,  N*C)
    y = conv_bn_act(y, sp3_ref, wc3_ref, 2)                       # (1,  N*C)

    # ---- final 1x1 conv -> 1 channel per image --------------------------------
    out = jnp.dot(y, wf_ref[...], preferred_element_type=f32) + bf_ref[...]
    o_ref[...] = out.astype(o_ref.dtype)


def _full_spec(shape):
    nd = len(shape)
    return pl.BlockSpec(shape, lambda *_: (0,) * nd)


# ----------------------------------------------------------------------------
# Host-side constant builders (computed once, outside the jitted forward).
# ----------------------------------------------------------------------------
def _gather_matrix(h, w, kh=4, kw=4, stride=2, pad=1):
    oh = (h + 2 * pad - kh) // stride + 1
    ow = (w + 2 * pad - kw) // stride + 1
    hp, wp = h + 2 * pad, w + 2 * pad
    s = np.zeros((kh * kw, oh * ow, hp * wp), np.float32)
    for a in range(kh):
        for b in range(kw):
            r = a * kw + b
            for i in range(oh):
                for j in range(ow):
                    s[r, i * ow + j, (stride * i + a) * wp + (stride * j + b)] = 1.0
    return s, oh, ow


def _embed_matrix(oh, ow, pad=1):
    hp, wp = oh + 2 * pad, ow + 2 * pad
    e = np.zeros((hp * wp, oh * ow), np.float32)
    for i in range(oh):
        for j in range(ow):
            e[(i + pad) * wp + (j + pad), i * ow + j] = 1.0
    return e


def build_plan(params, n_images, h, w):
    """Pack geometry constants + weight-derived operands for the fused kernel."""
    convs, final = params[:-1], params[-1]
    assert len(convs) == 4, "fused kernel is specialized to hidden_layers of length 4"
    n = n_images
    bf16 = jnp.bfloat16

    # ---- layer 0: block-diag per-tap weights for the wrapper-side im2col ------
    w0 = np.asarray(convs[0]["w"], np.float32)                    # (C0, 1, 4, 4)
    c0, _, kh, kw = w0.shape
    w0taps = w0.reshape(c0, kh * kw).T                            # (16, C0): [r, c']
    w0big = np.kron(np.eye(n, dtype=np.float32), w0taps)          # (16*N, N*C0), 32 KB
    ch = (h + 2 - kh) // 2 + 1
    cw = (w + 2 - kw) // 2 + 1

    # ---- layers 1..3: folded (pad+gather) constants + stacked block-diag W ----
    sp_list, wc_list = [], []
    for layer in convs[1:]:
        wgt = np.asarray(layer["w"], np.float32)                  # (Cout, Cin, 4, 4)
        cout, cin, kh, kw = wgt.shape
        s_np, noh, now = _gather_matrix(ch, cw, kh, kw, layer["stride"], layer["pad"])
        e_np = _embed_matrix(ch, cw, layer["pad"])                # (padded_sp, ch*cw)
        sp = np.einsum("rps,sq->rpq", s_np, e_np)                 # (16, P_l, P_prev) 0/1
        sp_list.append(jnp.asarray(sp, bf16))                     # exact in bf16
        wr = np.transpose(wgt, (2, 3, 1, 0)).reshape(kh * kw, cin, cout)   # (16, Cin, Cout)
        eye_n = np.eye(n, dtype=np.float32)
        wc = np.concatenate([np.kron(eye_n, wr[r]) for r in range(kh * kw)], axis=0)
        wc_list.append(jnp.asarray(wc, bf16))                     # (16*N*Cin, N*Cout)
        ch, cw = noh, now

    bn_couts = {np.asarray(l["w"]).shape[0] for l in convs[1:]}
    assert len(bn_couts) == 1, "shared BN reduce matrix assumes equal BN widths"
    c_bn = bn_couts.pop()

    wf = np.asarray(final["w"], np.float32).reshape(1, -1)        # (1, Cin_final)
    plan = {
        "w0": jnp.asarray(w0big),                                             # f32
        "bias0": jnp.tile(jnp.asarray(convs[0]["b"]), n).reshape(1, n * c0),  # f32
        "sp": sp_list,                                                        # bf16 0/1
        "wc": wc_list,                                                        # bf16
        # per-channel reduce + broadcast across the (image, channel) column blocks
        "q": jnp.asarray(np.kron(np.ones((n, n), np.float32),
                                 np.eye(c_bn, dtype=np.float32)), bf16),      # bf16 0/1
        "gam": jnp.stack([jnp.tile(l["gamma"], n) for l in convs[1:]]),       # f32
        "bet": jnp.stack([jnp.tile(l["beta"], n) for l in convs[1:]]),        # f32
        "wf": jnp.asarray(np.kron(np.eye(n, dtype=np.float32), wf.T)),        # f32
        "bf": jnp.tile(jnp.asarray(final["b"]), n).reshape(1, n),             # f32
    }
    return plan


# ----------------------------------------------------------------------------
# Jitted forward: wrapper-side im2col, one pallas_call, reshape output.
# ----------------------------------------------------------------------------
def _patchgan_forward_impl(img, plan):
    # across_channels=False: fold channels into batch, single input channel.
    b, c, h, w = img.shape
    n = b * c
    kh = kw = 4
    oh = (h + 2 - kh) // 2 + 1
    ow = (w + 2 - kw) // 2 + 1

    # Layer-0 im2col built here (XLA gather on ~10 KB of real input) instead of a
    # 1.3 MB gather-constant + 32 matmuls inside the kernel.
    xpad = jnp.pad(img.reshape(n, h, w), ((0, 0), (1, 1), (1, 1)))
    ii = 2 * jnp.arange(oh)[:, None] + jnp.arange(kh)[None, :]          # (oh, kh)
    jj = 2 * jnp.arange(ow)[:, None] + jnp.arange(kw)[None, :]          # (ow, kw)
    patches = xpad[:, ii[:, None, :, None], jj[None, :, None, :]]       # (n, oh, ow, kh, kw)
    a0 = (patches.reshape(n, oh * ow, kh * kw)
          .transpose(1, 0, 2)
          .reshape(oh * ow, n * kh * kw)).astype(jnp.float32)           # (P0, 16*N)

    # Output spatial size after the remaining three stride-2 convs (static).
    sh, sw = oh, ow
    for _ in range(3):
        sh = (sh + 2 - kh) // 2 + 1
        sw = (sw + 2 - kw) // 2 + 1
    p3 = sh * sw

    inputs = [a0, plan["w0"], plan["bias0"],
              plan["sp"][0], plan["wc"][0],
              plan["sp"][1], plan["wc"][1],
              plan["sp"][2], plan["wc"][2],
              plan["q"], plan["gam"], plan["bet"],
              plan["wf"], plan["bf"]]
    out = pl.pallas_call(
        functools.partial(_fused_kernel, n_images=n),
        out_shape=jax.ShapeDtypeStruct((p3, n), jnp.float32),
        grid=(1,),
        in_specs=[_full_spec(v.shape) for v in inputs],
        out_specs=_full_spec((p3, n)),
        compiler_params=pltpu.CompilerParams(
            dimension_semantics=("arbitrary",),
            vmem_limit_bytes=32 * 1024 * 1024),
    )(*inputs)
    return out.T.reshape(b, c, sh, sw)


patchgan_forward = jax.jit(_patchgan_forward_impl)


# ----------------------------------------------------------------------------
# Parameter init (mirrors the PyTorch module structure).
# ----------------------------------------------------------------------------
def init_params(key, hidden_layers=(8, 8, 8, 8), in_channels=1):
    params = []
    in_c = in_channels
    for idx, out_c in enumerate(hidden_layers):
        key, kw_, kb_ = jax.random.split(key, 3)
        w = 0.1 * jax.random.normal(kw_, (out_c, in_c, 4, 4), jnp.float32)
        b = 0.1 * jax.random.normal(kb_, (out_c,), jnp.float32)
        if idx == 0:
            gamma = jnp.ones((out_c,), jnp.float32)
            beta = jnp.zeros((out_c,), jnp.float32)
            use_bn = False
        else:
            key, kg, kbt = jax.random.split(key, 3)
            gamma = 1.0 + 0.1 * jax.random.normal(kg, (out_c,), jnp.float32)
            beta = 0.1 * jax.random.normal(kbt, (out_c,), jnp.float32)
            use_bn = True
        params.append(dict(w=w, b=b, gamma=gamma, beta=beta, use_bn=use_bn,
                           stride=2, pad=1, use_act=True))
        in_c = out_c
    key, kw_, kb_ = jax.random.split(key, 3)
    w = 0.1 * jax.random.normal(kw_, (1, in_c, 1, 1), jnp.float32)
    b = 0.1 * jax.random.normal(kb_, (1,), jnp.float32)
    params.append(dict(w=w, b=b, gamma=jnp.ones((1,), jnp.float32),
                       beta=jnp.zeros((1,), jnp.float32),
                       use_bn=False, stride=1, pad=0, use_act=False))
    return params


# ----------------------------------------------------------------------------
# Pure-JAX reference (for correctness check)
# ----------------------------------------------------------------------------
def reference_forward(img, params, across_channels=False):
    b, c, h, w = img.shape
    x = img if across_channels else img.reshape(b * c, 1, h, w)
    for layer in params:
        wgt = layer["w"]
        x = jax.lax.conv_general_dilated(
            x, wgt, window_strides=(layer["stride"],) * 2,
            padding=[(layer["pad"], layer["pad"])] * 2,
            dimension_numbers=("NCHW", "OIHW", "NCHW"))
        x = x + layer["b"][None, :, None, None]
        if layer["use_bn"]:
            mean = jnp.mean(x, axis=(0, 2, 3), keepdims=True)
            var = jnp.mean(jnp.square(x - mean), axis=(0, 2, 3), keepdims=True)
            x = (x - mean) * jax.lax.rsqrt(var + 1e-5)
            x = x * layer["gamma"][None, :, None, None] + layer["beta"][None, :, None, None]
        if layer["use_act"]:
            x = jnp.where(x >= 0, x, 0.2 * x)
    return x if across_channels else x.reshape(b, c, *x.shape[2:])


# TODO(synk): __init__-time output-size probe/logging and generate_ground_truth are
# host-side utilities, not part of the forward hot path; not ported.

if __name__ == "__main__":
    key = jax.random.PRNGKey(0)
    kparam, kx = jax.random.split(key)
    params = init_params(kparam, hidden_layers=(8, 8, 8, 8), in_channels=1)

    # input_size ~ (4, 16, 16), batch=2 -> x: (2, 4, 16, 16), across_channels=False
    x = jax.random.normal(kx, (2, 4, 16, 16), jnp.float32)
    B, C, H, W = x.shape

    plan = build_plan(params, n_images=B * C, h=H, w=W)     # packed once, outside jit

    out = jax.block_until_ready(patchgan_forward(x, plan))
    ref = jax.block_until_ready(reference_forward(x, params, across_channels=False))

    assert out.shape == ref.shape == (2, 4, 1, 1), (out.shape, ref.shape)
    max_err = float(jnp.max(jnp.abs(out - ref)))
    assert jnp.allclose(out, ref, rtol=2e-2, atol=2e-2), max_err
    print("KERNEL_OK")
</pallas_src>

<mosaic_0001>
module attributes {stable_mosaic.version = 11 : i64} {
  func.func @_fused_kernel(%arg0: i32, %arg1: memref<64x128xf32, #tpu.memory_space<vmem>>, %arg2: memref<128x64xf32, #tpu.memory_space<vmem>>, %arg3: memref<1x64xf32, #tpu.memory_space<vmem>>, %arg4: memref<16x16x64xbf16, #tpu.memory_space<vmem>>, %arg5: memref<1024x64xbf16, #tpu.memory_space<vmem>>, %arg6: memref<16x4x16xbf16, #tpu.memory_space<vmem>>, %arg7: memref<1024x64xbf16, #tpu.memory_space<vmem>>, %arg8: memref<16x1x4xbf16, #tpu.memory_space<vmem>>, %arg9: memref<1024x64xbf16, #tpu.memory_space<vmem>>, %arg10: memref<64x64xbf16, #tpu.memory_space<vmem>>, %arg11: memref<3x64xf32, #tpu.memory_space<vmem>>, %arg12: memref<3x64xf32, #tpu.memory_space<vmem>>, %arg13: memref<64x8xf32, #tpu.memory_space<vmem>>, %arg14: memref<1x8xf32, #tpu.memory_space<vmem>>, %arg15: memref<1x8xf32, #tpu.memory_space<vmem>>) attributes {dimension_semantics = [#tpu.dimension_semantics<arbitrary>], iteration_bounds = array<i64: 1>, scalar_prefetch = 0 : i64, scratch_operands = 0 : i64, tpu.core_type = #tpu.core_type<tc>, window_params = [{pipeline_mode = #tpu.pipeline_mode<synchronous>, transform_indices = @transform_0, window_bounds = array<i64: 64, 128>}, {pipeline_mode = #tpu.pipeline_mode<synchronous>, transform_indices = @transform_1, window_bounds = array<i64: 128, 64>}, {pipeline_mode = #tpu.pipeline_mode<synchronous>, transform_indices = @transform_2, window_bounds = array<i64: 1, 64>}, {pipeline_mode = #tpu.pipeline_mode<synchronous>, transform_indices = @transform_3, window_bounds = array<i64: 16, 16, 64>}, {pipeline_mode = #tpu.pipeline_mode<synchronous>, transform_indices = @transform_4, window_bounds = array<i64: 1024, 64>}, {pipeline_mode = #tpu.pipeline_mode<synchronous>, transform_indices = @transform_5, window_bounds = array<i64: 16, 4, 16>}, {pipeline_mode = #tpu.pipeline_mode<synchronous>, transform_indices = @transform_6, window_bounds = array<i64: 1024, 64>}, {pipeline_mode = #tpu.pipeline_mode<synchronous>, transform_indices = @transform_7, window_bounds = array<i64: 16, 1, 4>}, {pipeline_mode = #tpu.pipeline_mode<synchronous>, transform_indices = @transform_8, window_bounds = array<i64: 1024, 64>}, {pipeline_mode = #tpu.pipeline_mode<synchronous>, transform_indices = @transform_9, window_bounds = array<i64: 64, 64>}, {pipeline_mode = #tpu.pipeline_mode<synchronous>, transform_indices = @transform_10, window_bounds = array<i64: 3, 64>}, {pipeline_mode = #tpu.pipeline_mode<synchronous>, transform_indices = @transform_11, window_bounds = array<i64: 3, 64>}, {pipeline_mode = #tpu.pipeline_mode<synchronous>, transform_indices = @transform_12, window_bounds = array<i64: 64, 8>}, {pipeline_mode = #tpu.pipeline_mode<synchronous>, transform_indices = @transform_13, window_bounds = array<i64: 1, 8>}, {pipeline_mode = #tpu.pipeline_mode<synchronous>, transform_indices = @transform_14, window_bounds = array<i64: 1, 8>}]} {
    %c0 = arith.constant 0 : index
    %c0_0 = arith.constant 0 : index
    %0 = vector.load %arg1[%c0, %c0_0] : memref<64x128xf32, #tpu.memory_space<vmem>>, vector<64x128xf32>
    %c0_1 = arith.constant 0 : index
    %c0_2 = arith.constant 0 : index
    %1 = vector.load %arg2[%c0_1, %c0_2] : memref<128x64xf32, #tpu.memory_space<vmem>>, vector<128x64xf32>
    %cst = arith.constant dense<0.000000e+00> : vector<64x64xf32>
    %2 = tpu.matmul %0, %1, %cst {dimension_numbers = #tpu.dot_dimension_numbers<[1], [0], [0], [1], [0, 0, 1, 1], [], []>} : vector<64x128xf32>, vector<128x64xf32>, vector<64x64xf32> -> vector<64x64xf32>
    %c0_3 = arith.constant 0 : index
    %c0_4 = arith.constant 0 : index
    %3 = vector.load %arg3[%c0_3, %c0_4] : memref<1x64xf32, #tpu.memory_space<vmem>>, vector<1x64xf32>
    %4 = vector.broadcast %3 : vector<1x64xf32> to vector<64x64xf32>
    %5 = arith.addf %2, %4 : vector<64x64xf32>
    %cst_5 = arith.constant 0.000000e+00 : f32
    %6 = vector.broadcast %cst_5 : f32 to vector<64x64xf32>
    %7 = arith.cmpf oge, %5, %6 : vector<64x64xf32>
    %cst_6 = arith.constant 2.000000e-01 : f32
    %8 = vector.broadcast %cst_6 : f32 to vector<64x64xf32>
    %9 = arith.mulf %8, %5 : vector<64x64xf32>
    %10 = arith.select %7, %5, %9 : vector<64x64xi1>, vector<64x64xf32>
    %c0_7 = arith.constant 0 : index
    %c0_8 = arith.constant 0 : index
    %11 = vector.load %arg10[%c0_7, %c0_8] : memref<64x64xbf16, #tpu.memory_space<vmem>>, vector<64x64xbf16>
    %12 = arith.extf %11 : vector<64x64xbf16> to vector<64x64xf32>
    %c0_9 = arith.constant 0 : index
    %c0_10 = arith.constant 0 : index
    %c0_11 = arith.constant 0 : index
    %13 = vector.load %arg4[%c0_9, %c0_10, %c0_11] : memref<16x16x64xbf16, #tpu.memory_space<vmem>>, vector<16x16x64xbf16>
    %14 = arith.extf %13 : vector<16x16x64xbf16> to vector<16x16x64xf32>
    %15 = vector.extract_strided_slice %14 {offsets = [0, 0, 0], sizes = [1, 16, 64], strides = [1, 1, 1]} : vector<16x16x64xf32> to vector<1x16x64xf32>
    %16 = vector.shape_cast %15 : vector<1x16x64xf32> to vector<16x64xf32>
    %cst_12 = arith.constant dense<0.000000e+00> : vector<16x64xf32>
    %17 = tpu.matmul %16, %10, %cst_12 {dimension_numbers = #tpu.dot_dimension_numbers<[1], [0], [0], [1], [0, 0, 1, 1], [], []>} : vector<16x64xf32>, vector<64x64xf32>, vector<16x64xf32> -> vector<16x64xf32>
    %18 = vector.extract_strided_slice %14 {offsets = [1, 0, 0], sizes = [1, 16, 64], strides = [1, 1, 1]} : vector<16x16x64xf32> to vector<1x16x64xf32>
    %19 = vector.shape_cast %18 : vector<1x16x64xf32> to vector<16x64xf32>
    %cst_13 = arith.constant dense<0.000000e+00> : vector<16x64xf32>
    %20 = tpu.matmul %19, %10, %cst_13 {dimension_numbers = #tpu.dot_dimension_numbers<[1], [0], [0], [1], [0, 0, 1, 1], [], []>} : vector<16x64xf32>, vector<64x64xf32>, vector<16x64xf32> -> vector<16x64xf32>
    %21 = vector.extract_strided_slice %14 {offsets = [2, 0, 0], sizes = [1, 16, 64], strides = [1, 1, 1]} : vector<16x16x64xf32> to vector<1x16x64xf32>
    %22 = vector.shape_cast %21 : vector<1x16x64xf32> to vector<16x64xf32>
    %cst_14 = arith.constant dense<0.000000e+00> : vector<16x64xf32>
    %23 = tpu.matmul %22, %10, %cst_14 {dimension_numbers = #tpu.dot_dimension_numbers<[1], [0], [0], [1], [0, 0, 1, 1], [], []>} : vector<16x64xf32>, vector<64x64xf32>, vector<16x64xf32> -> vector<16x64xf32>
    %24 = vector.extract_strided_slice %14 {offsets = [3, 0, 0], sizes = [1, 16, 64], strides = [1, 1, 1]} : vector<16x16x64xf32> to vector<1x16x64xf32>
    %25 = vector.shape_cast %24 : vector<1x16x64xf32> to vector<16x64xf32>
    %cst_15 = arith.constant dense<0.000000e+00> : vector<16x64xf32>
    %26 = tpu.matmul %25, %10, %cst_15 {dimension_numbers = #tpu.dot_dimension_numbers<[1], [0], [0], [1], [0, 0, 1, 1], [], []>} : vector<16x64xf32>, vector<64x64xf32>, vector<16x64xf32> -> vector<16x64xf32>
    %27 = vector.extract_strided_slice %14 {offsets = [4, 0, 0], sizes = [1, 16, 64], strides = [1, 1, 1]} : vector<16x16x64xf32> to vector<1x16x64xf32>
    %28 = vector.shape_cast %27 : vector<1x16x64xf32> to vector<16x64xf32>
    %cst_16 = arith.constant dense<0.000000e+00> : vector<16x64xf32>
    %29 = tpu.matmul %28, %10, %cst_16 {dimension_numbers = #tpu.dot_dimension_numbers<[1], [0], [0], [1], [0, 0, 1, 1], [], []>} : vector<16x64xf32>, vector<64x64xf32>, vector<16x64xf32> -> vector<16x64xf32>
    %30 = vector.extract_strided_slice %14 {offsets = [5, 0, 0], sizes = [1, 16, 64], strides = [1, 1, 1]} : vector<16x16x64xf32> to vector<1x16x64xf32>
    %31 = vector.shape_cast %30 : vector<1x16x64xf32> to vector<16x64xf32>
    %cst_17 = arith.constant dense<0.000000e+00> : vector<16x64xf32>
    %32 = tpu.matmul %31, %10, %cst_17 {dimension_numbers = #tpu.dot_dimension_numbers<[1], [0], [0], [1], [0, 0, 1, 1], [], []>} : vector<16x64xf32>, vector<64x64xf32>, vector<16x64xf32> -> vector<16x64xf32>
    %33 = vector.extract_strided_slice %14 {offsets = [6, 0, 0], sizes = [1, 16, 64], strides = [1, 1, 1]} : vector<16x16x64xf32> to vector<1x16x64xf32>
    %34 = vector.shape_cast %33 : vector<1x16x64xf32> to vector<16x64xf32>
    %cst_18 = arith.constant dense<0.000000e+00> : vector<16x64xf32>
    %35 = tpu.matmul %34, %10, %cst_18 {dimension_numbers = #tpu.dot_dimension_numbers<[1], [0], [0], [1], [0, 0, 1, 1], [], []>} : vector<16x64xf32>, vector<64x64xf32>, vector<16x64xf32> -> vector<16x64xf32>
    %36 = vector.extract_strided_slice %14 {offsets = [7, 0, 0], sizes = [1, 16, 64], strides = [1, 1, 1]} : vector<16x16x64xf32> to vector<1x16x64xf32>
    %37 = vector.shape_cast %36 : vector<1x16x64xf32> to vector<16x64xf32>
    %cst_19 = arith.constant dense<0.000000e+00> : vector<16x64xf32>
    %38 = tpu.matmul %37, %10, %cst_19 {dimension_numbers = #tpu.dot_dimension_numbers<[1], [0], [0], [1], [0, 0, 1, 1], [], []>} : vector<16x64xf32>, vector<64x64xf32>, vector<16x64xf32> -> vector<16x64xf32>
    %39 = vector.extract_strided_slice %14 {offsets = [8, 0, 0], sizes = [1, 16, 64], strides = [1, 1, 1]} : vector<16x16x64xf32> to vector<1x16x64xf32>
    %40 = vector.shape_cast %39 : vector<1x16x64xf32> to vector<16x64xf32>
    %cst_20 = arith.constant dense<0.000000e+00> : vector<16x64xf32>
    %41 = tpu.matmul %40, %10, %cst_20 {dimension_numbers = #tpu.dot_dimension_numbers<[1], [0], [0], [1], [0, 0, 1, 1], [], []>} : vector<16x64xf32>, vector<64x64xf32>, vector<16x64xf32> -> vector<16x64xf32>
    %42 = vector.extract_strided_slice %14 {offsets = [9, 0, 0], sizes = [1, 16, 64], strides = [1, 1, 1]} : vector<16x16x64xf32> to vector<1x16x64xf32>
    %43 = vector.shape_cast %42 : vector<1x16x64xf32> to vector<16x64xf32>
    %cst_21 = arith.constant dense<0.000000e+00> : vector<16x64xf32>
    %44 = tpu.matmul %43, %10, %cst_21 {dimension_numbers = #tpu.dot_dimension_numbers<[1], [0], [0], [1], [0, 0, 1, 1], [], []>} : vector<16x64xf32>, vector<64x64xf32>, vector<16x64xf32> -> vector<16x64xf32>
    %45 = vector.extract_strided_slice %14 {offsets = [10, 0, 0], sizes = [1, 16, 64], strides = [1, 1, 1]} : vector<16x16x64xf32> to vector<1x16x64xf32>
    %46 = vector.shape_cast %45 : vector<1x16x64xf32> to vector<16x64xf32>
    %cst_22 = arith.constant dense<0.000000e+00> : vector<16x64xf32>
    %47 = tpu.matmul %46, %10, %cst_22 {dimension_numbers = #tpu.dot_dimension_numbers<[1], [0], [0], [1], [0, 0, 1, 1], [], []>} : vector<16x64xf32>, vector<64x64xf32>, vector<16x64xf32> -> vector<16x64xf32>
    %48 = vector.extract_strided_slice %14 {offsets = [11, 0, 0], sizes = [1, 16, 64], strides = [1, 1, 1]} : vector<16x16x64xf32> to vector<1x16x64xf32>
    %49 = vector.shape_cast %48 : vector<1x16x64xf32> to vector<16x64xf32>
    %cst_23 = arith.constant dense<0.000000e+00> : vector<16x64xf32>
    %50 = tpu.matmul %49, %10, %cst_23 {dimension_numbers = #tpu.dot_dimension_numbers<[1], [0], [0], [1], [0, 0, 1, 1], [], []>} : vector<16x64xf32>, vector<64x64xf32>, vector<16x64xf32> -> vector<16x64xf32>
    %51 = vector.extract_strided_slice %14 {offsets = [12, 0, 0], sizes = [1, 16, 64], strides = [1, 1, 1]} : vector<16x16x64xf32> to vector<1x16x64xf32>
    %52 = vector.shape_cast %51 : vector<1x16x64xf32> to vector<16x64xf32>
    %cst_24 = arith.constant dense<0.000000e+00> : vector<16x64xf32>
    %53 = tpu.matmul %52, %10, %cst_24 {dimension_numbers = #tpu.dot_dimension_numbers<[1], [0], [0], [1], [0, 0, 1, 1], [], []>} : vector<16x64xf32>, vector<64x64xf32>, vector<16x64xf32> -> vector<16x64xf32>
    %54 = vector.extract_strided_slice %14 {offsets = [13, 0, 0], sizes = [1, 16, 64], strides = [1, 1, 1]} : vector<16x16x64xf32> to vector<1x16x64xf32>
    %55 = vector.shape_cast %54 : vector<1x16x64xf32> to vector<16x64xf32>
    %cst_25 = arith.constant dense<0.000000e+00> : vector<16x64xf32>
    %56 = tpu.matmul %55, %10, %cst_25 {dimension_numbers = #tpu.dot_dimension_numbers<[1], [0], [0], [1], [0, 0, 1, 1], [], []>} : vector<16x64xf32>, vector<64x64xf32>, vector<16x64xf32> -> vector<16x64xf32>
    %57 = vector.extract_strided_slice %14 {offsets = [14, 0, 0], sizes = [1, 16, 64], strides = [1, 1, 1]} : vector<16x16x64xf32> to vector<1x16x64xf32>
    %58 = vector.shape_cast %57 : vector<1x16x64xf32> to vector<16x64xf32>
    %cst_26 = arith.constant dense<0.000000e+00> : vector<16x64xf32>
    %59 = tpu.matmul %58, %10, %cst_26 {dimension_numbers = #tpu.dot_dimension_numbers<[1], [0], [0], [1], [0, 0, 1, 1], [], []>} : vector<16x64xf32>, vector<64x64xf32>, vector<16x64xf32> -> vector<16x64xf32>
    %60 = vector.extract_strided_slice %14 {offsets = [15, 0, 0], sizes = [1, 16, 64], strides = [1, 1, 1]} : vector<16x16x64xf32> to vector<1x16x64xf32>
    %61 = vector.shape_cast %60 : vector<1x16x64xf32> to vector<16x64xf32>
    %cst_27 = arith.constant dense<0.000000e+00> : vector<16x64xf32>
    %62 = tpu.matmul %61, %10, %cst_27 {dimension_numbers = #tpu.dot_dimension_numbers<[1], [0], [0], [1], [0, 0, 1, 1], [], []>} : vector<16x64xf32>, vector<64x64xf32>, vector<16x64xf32> -> vector<16x64xf32>
    %63 = tpu.concatenate %17, %20, %23, %26, %29, %32, %35, %38, %41, %44, %47, %50, %53, %56, %59, %62 in 1 : vector<16x64xf32>, vector<16x64xf32>, vector<16x64xf32>, vector<16x64xf32>, vector<16x64xf32>, vector<16x64xf32>, vector<16x64xf32>, vector<16x64xf32>, vector<16x64xf32>, vector<16x64xf32>, vector<16x64xf32>, vector<16x64xf32>, vector<16x64xf32>, vector<16x64xf32>, vector<16x64xf32>, vector<16x64xf32> -> vector<16x1024xf32>
    %c0_28 = arith.constant 0 : index
    %c0_29 = arith.constant 0 : index
    %64 = vector.load %arg5[%c0_28, %c0_29] : memref<1024x64xbf16, #tpu.memory_space<vmem>>, vector<1024x64xbf16>
    %65 = arith.extf %64 : vector<1024x64xbf16> to vector<1024x64xf32>
    %cst_30 = arith.constant dense<0.000000e+00> : vector<16x64xf32>
    %66 = tpu.matmul %63, %65, %cst_30 {dimension_numbers = #tpu.dot_dimension_numbers<[1], [0], [0], [1], [0, 0, 1, 1], [], []>} : vector<16x1024xf32>, vector<1024x64xf32>, vector<16x64xf32> -> vector<16x64xf32>
    %cst_31 = arith.constant dense<0.000000e+00> : vector<64xf32>
    %67 = vector.multi_reduction <add>, %66, %cst_31 [0] : vector<16x64xf32> to vector<64xf32>
    %68 = vector.shape_cast %67 : vector<64xf32> to vector<1x64xf32>
    %69 = arith.mulf %66, %66 : vector<16x64xf32>
    %cst_32 = arith.constant dense<0.000000e+00> : vector<64xf32>
    %70 = vector.multi_reduction <add>, %69, %cst_32 [0] : vector<16x64xf32> to vector<64xf32>
    %71 = vector.shape_cast %70 : vector<64xf32> to vector<1x64xf32>
    %72 = tpu.concatenate %68, %71 in 0 : vector<1x64xf32>, vector<1x64xf32> -> vector<2x64xf32>
    %cst_33 = arith.constant dense<0.000000e+00> : vector<2x64xf32>
    %73 = tpu.matmul %72, %12, %cst_33 {dimension_numbers = #tpu.dot_dimension_numbers<[1], [0], [0], [1], [0, 0, 1, 1], [], []>} : vector<2x64xf32>, vector<64x64xf32>, vector<2x64xf32> -> vector<2x64xf32>
    %cst_34 = arith.constant 1.280000e+02 : f32
    %74 = vector.broadcast %cst_34 : f32 to vector<2x64xf32>
    %75 = arith.divf %73, %74 : vector<2x64xf32>
    %76 = vector.extract_strided_slice %75 {offsets = [0, 0], sizes = [1, 64], strides = [1, 1]} : vector<2x64xf32> to vector<1x64xf32>
    %77 = vector.extract_strided_slice %75 {offsets = [1, 0], sizes = [1, 64], strides = [1, 1]} : vector<2x64xf32> to vector<1x64xf32>
    %78 = arith.mulf %76, %76 : vector<1x64xf32>
    %79 = arith.subf %77, %78 : vector<1x64xf32>
    %cst_35 = arith.constant 0.000000e+00 : f32
    %80 = vector.broadcast %cst_35 : f32 to vector<1x64xf32>
    %81 = arith.maximumf %79, %80 : vector<1x64xf32>
    %c0_36 = arith.constant 0 : index
    %c0_37 = arith.constant 0 : index
    %82 = vector.load %arg11[%c0_36, %c0_37] : memref<3x64xf32, #tpu.memory_space<vmem>>, vector<1x64xf32>
    %c0_38 = arith.constant 0 : index
    %c0_39 = arith.constant 0 : index
    %83 = vector.load %arg12[%c0_38, %c0_39] : memref<3x64xf32, #tpu.memory_space<vmem>>, vector<1x64xf32>
    %84 = vector.broadcast %76 : vector<1x64xf32> to vector<16x64xf32>
    %85 = arith.subf %66, %84 : vector<16x64xf32>
    %cst_40 = arith.constant 9.99999974E-6 : f32
    %86 = vector.broadcast %cst_40 : f32 to vector<1x64xf32>
    %87 = arith.addf %81, %86 : vector<1x64xf32>
    %88 = math.rsqrt %87 : vector<1x64xf32>
    %89 = vector.broadcast %88 : vector<1x64xf32> to vector<16x64xf32>
    %90 = arith.mulf %85, %89 : vector<16x64xf32>
    %91 = vector.broadcast %82 : vector<1x64xf32> to vector<16x64xf32>
    %92 = arith.mulf %90, %91 : vector<16x64xf32>
    %93 = vector.broadcast %83 : vector<1x64xf32> to vector<16x64xf32>
    %94 = arith.addf %92, %93 : vector<16x64xf32>
    %cst_41 = arith.constant 0.000000e+00 : f32
    %95 = vector.broadcast %cst_41 : f32 to vector<16x64xf32>
    %96 = arith.cmpf oge, %94, %95 : vector<16x64xf32>
    %cst_42 = arith.constant 2.000000e-01 : f32
    %97 = vector.broadcast %cst_42 : f32 to vector<16x64xf32>
    %98 = arith.mulf %97, %94 : vector<16x64xf32>
    %99 = arith.select %96, %94, %98 : vector<16x64xi1>, vector<16x64xf32>
    %c0_43 = arith.constant 0 : index
    %c0_44 = arith.constant 0 : index
    %c0_45 = arith.constant 0 : index
    %100 = vector.load %arg6[%c0_43, %c0_44, %c0_45] : memref<16x4x16xbf16, #tpu.memory_space<vmem>>, vector<16x4x16xbf16>
    %101 = arith.extf %100 : vector<16x4x16xbf16> to vector<16x4x16xf32>
    %102 = vector.extract_strided_slice %101 {offsets = [0, 0, 0], sizes = [1, 4, 16], strides = [1, 1, 1]} : vector<16x4x16xf32> to vector<1x4x16xf32>
    %103 = vector.shape_cast %102 : vector<1x4x16xf32> to vector<4x16xf32>
    %cst_46 = arith.constant dense<0.000000e+00> : vector<4x64xf32>
    %104 = tpu.matmul %103, %99, %cst_46 {dimension_numbers = #tpu.dot_dimension_numbers<[1], [0], [0], [1], [0, 0, 1, 1], [], []>} : vector<4x16xf32>, vector<16x64xf32>, vector<4x64xf32> -> vector<4x64xf32>
    %105 = vector.extract_strided_slice %101 {offsets = [1, 0, 0], sizes = [1, 4, 16], strides = [1, 1, 1]} : vector<16x4x16xf32> to vector<1x4x16xf32>
    %106 = vector.shape_cast %105 : vector<1x4x16xf32> to vector<4x16xf32>
    %cst_47 = arith.constant dense<0.000000e+00> : vector<4x64xf32>
    %107 = tpu.matmul %106, %99, %cst_47 {dimension_numbers = #tpu.dot_dimension_numbers<[1], [0], [0], [1], [0, 0, 1, 1], [], []>} : vector<4x16xf32>, vector<16x64xf32>, vector<4x64xf32> -> vector<4x64xf32>
    %108 = vector.extract_strided_slice %101 {offsets = [2, 0, 0], sizes = [1, 4, 16], strides = [1, 1, 1]} : vector<16x4x16xf32> to vector<1x4x16xf32>
    %109 = vector.shape_cast %108 : vector<1x4x16xf32> to vector<4x16xf32>
    %cst_48 = arith.constant dense<0.000000e+00> : vector<4x64xf32>
    %110 = tpu.matmul %109, %99, %cst_48 {dimension_numbers = #tpu.dot_dimension_numbers<[1], [0], [0], [1], [0, 0, 1, 1], [], []>} : vector<4x16xf32>, vector<16x64xf32>, vector<4x64xf32> -> vector<4x64xf32>
    %111 = vector.extract_strided_slice %101 {offsets = [3, 0, 0], sizes = [1, 4, 16], strides = [1, 1, 1]} : vector<16x4x16xf32> to vector<1x4x16xf32>
    %112 = vector.shape_cast %111 : vector<1x4x16xf32> to vector<4x16xf32>
    %cst_49 = arith.constant dense<0.000000e+00> : vector<4x64xf32>
    %113 = tpu.matmul %112, %99, %cst_49 {dimension_numbers = #tpu.dot_dimension_numbers<[1], [0], [0], [1], [0, 0, 1, 1], [], []>} : vector<4x16xf32>, vector<16x64xf32>, vector<4x64xf32> -> vector<4x64xf32>
    %114 = vector.extract_strided_slice %101 {offsets = [4, 0, 0], sizes = [1, 4, 16], strides = [1, 1, 1]} : vector<16x4x16xf32> to vector<1x4x16xf32>
    %115 = vector.shape_cast %114 : vector<1x4x16xf32> to vector<4x16xf32>
    %cst_50 = arith.constant dense<0.000000e+00> : vector<4x64xf32>
    %116 = tpu.matmul %115, %99, %cst_50 {dimension_numbers = #tpu.dot_dimension_numbers<[1], [0], [0], [1], [0, 0, 1, 1], [], []>} : vector<4x16xf32>, vector<16x64xf32>, vector<4x64xf32> -> vector<4x64xf32>
    %117 = vector.extract_strided_slice %101 {offsets = [5, 0, 0], sizes = [1, 4, 16], strides = [1, 1, 1]} : vector<16x4x16xf32> to vector<1x4x16xf32>
    %118 = vector.shape_cast %117 : vector<1x4x16xf32> to vector<4x16xf32>
    %cst_51 = arith.constant dense<0.000000e+00> : vector<4x64xf32>
    %119 = tpu.matmul %118, %99, %cst_51 {dimension_numbers = #tpu.dot_dimension_numbers<[1], [0], [0], [1], [0, 0, 1, 1], [], []>} : vector<4x16xf32>, vector<16x64xf32>, vector<4x64xf32> -> vector<4x64xf32>
    %120 = vector.extract_strided_slice %101 {offsets = [6, 0, 0], sizes = [1, 4, 16], strides = [1, 1, 1]} : vector<16x4x16xf32> to vector<1x4x16xf32>
    %121 = vector.shape_cast %120 : vector<1x4x16xf32> to vector<4x16xf32>
    %cst_52 = arith.constant dense<0.000000e+00> : vector<4x64xf32>
    %122 = tpu.matmul %121, %99, %cst_52 {dimension_numbers = #tpu.dot_dimension_numbers<[1], [0], [0], [1], [0, 0, 1, 1], [], []>} : vector<4x16xf32>, vector<16x64xf32>, vector<4x64xf32> -> vector<4x64xf32>
    %123 = vector.extract_strided_slice %101 {offsets = [7, 0, 0], sizes = [1, 4, 16], strides = [1, 1, 1]} : vector<16x4x16xf32> to vector<1x4x16xf32>
    %124 = vector.shape_cast %123 : vector<1x4x16xf32> to vector<4x16xf32>
    %cst_53 = arith.constant dense<0.000000e+00> : vector<4x64xf32>
    %125 = tpu.matmul %124, %99, %cst_53 {dimension_numbers = #tpu.dot_dimension_numbers<[1], [0], [0], [1], [0, 0, 1, 1], [], []>} : vector<4x16xf32>, vector<16x64xf32>, vector<4x64xf32> -> vector<4x64xf32>
    %126 = vector.extract_strided_slice %101 {offsets = [8, 0, 0], sizes = [1, 4, 16], strides = [1, 1, 1]} : vector<16x4x16xf32> to vector<1x4x16xf32>
    %127 = vector.shape_cast %126 : vector<1x4x16xf32> to vector<4x16xf32>
    %cst_54 = arith.constant dense<0.000000e+00> : vector<4x64xf32>
    %128 = tpu.matmul %127, %99, %cst_54 {dimension_numbers = #tpu.dot_dimension_numbers<[1], [0], [0], [1], [0, 0, 1, 1], [], []>} : vector<4x16xf32>, vector<16x64xf32>, vector<4x64xf32> -> vector<4x64xf32>
    %129 = vector.extract_strided_slice %101 {offsets = [9, 0, 0], sizes = [1, 4, 16], strides = [1, 1, 1]} : vector<16x4x16xf32> to vector<1x4x16xf32>
    %130 = vector.shape_cast %129 : vector<1x4x16xf32> to vector<4x16xf32>
    %cst_55 = arith.constant dense<0.000000e+00> : vector<4x64xf32>
    %131 = tpu.matmul %130, %99, %cst_55 {dimension_numbers = #tpu.dot_dimension_numbers<[1], [0], [0], [1], [0, 0, 1, 1], [], []>} : vector<4x16xf32>, vector<16x64xf32>, vector<4x64xf32> -> vector<4x64xf32>
    %132 = vector.extract_strided_slice %101 {offsets = [10, 0, 0], sizes = [1, 4, 16], strides = [1, 1, 1]} : vector<16x4x16xf32> to vector<1x4x16xf32>
    %133 = vector.shape_cast %132 : vector<1x4x16xf32> to vector<4x16xf32>
    %cst_56 = arith.constant dense<0.000000e+00> : vector<4x64xf32>
    %134 = tpu.matmul %133, %99, %cst_56 {dimension_numbers = #tpu.dot_dimension_numbers<[1], [0], [0], [1], [0, 0, 1, 1], [], []>} : vector<4x16xf32>, vector<16x64xf32>, vector<4x64xf32> -> vector<4x64xf32>
    %135 = vector.extract_strided_slice %101 {offsets = [11, 0, 0], sizes = [1, 4, 16], strides = [1, 1, 1]} : vector<16x4x16xf32> to vector<1x4x16xf32>
    %136 = vector.shape_cast %135 : vector<1x4x16xf32> to vector<4x16xf32>
    %cst_57 = arith.constant dense<0.000000e+00> : vector<4x64xf32>
    %137 = tpu.matmul %136, %99, %cst_57 {dimension_numbers = #tpu.dot_dimension_numbers<[1], [0], [0], [1], [0, 0, 1, 1], [], []>} : vector<4x16xf32>, vector<16x64xf32>, vector<4x64xf32> -> vector<4x64xf32>
    %138 = vector.extract_strided_slice %101 {offsets = [12, 0, 0], sizes = [1, 4, 16], strides = [1, 1, 1]} : vector<16x4x16xf32> to vector<1x4x16xf32>
    %139 = vector.shape_cast %138 : vector<1x4x16xf32> to vector<4x16xf32>
    %cst_58 = arith.constant dense<0.000000e+00> : vector<4x64xf32>
    %140 = tpu.matmul %139, %99, %cst_58 {dimension_numbers = #tpu.dot_dimension_numbers<[1], [0], [0], [1], [0, 0, 1, 1], [], []>} : vector<4x16xf32>, vector<16x64xf32>, vector<4x64xf32> -> vector<4x64xf32>
    %141 = vector.extract_strided_slice %101 {offsets = [13, 0, 0], sizes = [1, 4, 16], strides = [1, 1, 1]} : vector<16x4x16xf32> to vector<1x4x16xf32>
    %142 = vector.shape_cast %141 : vector<1x4x16xf32> to vector<4x16xf32>
    %cst_59 = arith.constant dense<0.000000e+00> : vector<4x64xf32>
    %143 = tpu.matmul %142, %99, %cst_59 {dimension_numbers = #tpu.dot_dimension_numbers<[1], [0], [0], [1], [0, 0, 1, 1], [], []>} : vector<4x16xf32>, vector<16x64xf32>, vector<4x64xf32> -> vector<4x64xf32>
    %144 = vector.extract_strided_slice %101 {offsets = [14, 0, 0], sizes = [1, 4, 16], strides = [1, 1, 1]} : vector<16x4x16xf32> to vector<1x4x16xf32>
    %145 = vector.shape_cast %144 : vector<1x4x16xf32> to vector<4x16xf32>
    %cst_60 = arith.constant dense<0.000000e+00> : vector<4x64xf32>
    %146 = tpu.matmul %145, %99, %cst_60 {dimension_numbers = #tpu.dot_dimension_numbers<[1], [0], [0], [1], [0, 0, 1, 1], [], []>} : vector<4x16xf32>, vector<16x64xf32>, vector<4x64xf32> -> vector<4x64xf32>
    %147 = vector.extract_strided_slice %101 {offsets = [15, 0, 0], sizes = [1, 4, 16], strides = [1, 1, 1]} : vector<16x4x16xf32> to vector<1x4x16xf32>
    %148 = vector.shape_cast %147 : vector<1x4x16xf32> to vector<4x16xf32>
    %cst_61 = arith.constant dense<0.000000e+00> : vector<4x64xf32>
    %149 = tpu.matmul %148, %99, %cst_61 {dimension_numbers = #tpu.dot_dimension_numbers<[1], [0], [0], [1], [0, 0, 1, 1], [], []>} : vector<4x16xf32>, vector<16x64xf32>, vector<4x64xf32> -> vector<4x64xf32>
    %150 = tpu.concatenate %104, %107, %110, %113, %116, %119, %122, %125, %128, %131, %134, %137, %140, %143, %146, %149 in 1 : vector<4x64xf32>, vector<4x64xf32>, vector<4x64xf32>, vector<4x64xf32>, vector<4x64xf32>, vector<4x64xf32>, vector<4x64xf32>, vector<4x64xf32>, vector<4x64xf32>, vector<4x64xf32>, vector<4x64xf32>, vector<4x64xf32>, vector<4x64xf32>, vector<4x64xf32>, vector<4x64xf32>, vector<4x64xf32> -> vector<4x1024xf32>
    %c0_62 = arith.constant 0 : index
    %c0_63 = arith.constant 0 : index
    %151 = vector.load %arg7[%c0_62, %c0_63] : memref<1024x64xbf16, #tpu.memory_space<vmem>>, vector<1024x64xbf16>
    %152 = arith.extf %151 : vector<1024x64xbf16> to vector<1024x64xf32>
    %cst_64 = arith.constant dense<0.000000e+00> : vector<4x64xf32>
    %153 = tpu.matmul %150, %152, %cst_64 {dimension_numbers = #tpu.dot_dimension_numbers<[1], [0], [0], [1], [0, 0, 1, 1], [], []>} : vector<4x1024xf32>, vector<1024x64xf32>, vector<4x64xf32> -> vector<4x64xf32>
    %cst_65 = arith.constant dense<0.000000e+00> : vector<64xf32>
    %154 = vector.multi_reduction <add>, %153, %cst_65 [0] : vector<4x64xf32> to vector<64xf32>
    %155 = vector.shape_cast %154 : vector<64xf32> to vector<1x64xf32>
    %156 = arith.mulf %153, %153 : vector<4x64xf32>
    %cst_66 = arith.constant dense<0.000000e+00> : vector<64xf32>
    %157 = vector.multi_reduction <add>, %156, %cst_66 [0] : vector<4x64xf32> to vector<64xf32>
    %158 = vector.shape_cast %157 : vector<64xf32> to vector<1x64xf32>
    %159 = tpu.concatenate %155, %158 in 0 : vector<1x64xf32>, vector<1x64xf32> -> vector<2x64xf32>
    %cst_67 = arith.constant dense<0.000000e+00> : vector<2x64xf32>
    %160 = tpu.matmul %159, %12, %cst_67 {dimension_numbers = #tpu.dot_dimension_numbers<[1], [0], [0], [1], [0, 0, 1, 1], [], []>} : vector<2x64xf32>, vector<64x64xf32>, vector<2x64xf32> -> vector<2x64xf32>
    %cst_68 = arith.constant 3.200000e+01 : f32
    %161 = vector.broadcast %cst_68 : f32 to vector<2x64xf32>
    %162 = arith.divf %160, %161 : vector<2x64xf32>
    %163 = vector.extract_strided_slice %162 {offsets = [0, 0], sizes = [1, 64], strides = [1, 1]} : vector<2x64xf32> to vector<1x64xf32>
    %164 = vector.extract_strided_slice %162 {offsets = [1, 0], sizes = [1, 64], strides = [1, 1]} : vector<2x64xf32> to vector<1x64xf32>
    %165 = arith.mulf %163, %163 : vector<1x64xf32>
    %166 = arith.subf %164, %165 : vector<1x64xf32>
    %cst_69 = arith.constant 0.000000e+00 : f32
    %167 = vector.broadcast %cst_69 : f32 to vector<1x64xf32>
    %168 = arith.maximumf %166, %167 : vector<1x64xf32>
    %c1 = arith.constant 1 : index
    %c0_70 = arith.constant 0 : index
    %169 = vector.load %arg11[%c1, %c0_70] : memref<3x64xf32, #tpu.memory_space<vmem>>, vector<1x64xf32>
    %c1_71 = arith.constant 1 : index
    %c0_72 = arith.constant 0 : index
    %170 = vector.load %arg12[%c1_71, %c0_72] : memref<3x64xf32, #tpu.memory_space<vmem>>, vector<1x64xf32>
    %171 = vector.broadcast %163 : vector<1x64xf32> to vector<4x64xf32>
    %172 = arith.subf %153, %171 : vector<4x64xf32>
    %cst_73 = arith.constant 9.99999974E-6 : f32
    %173 = vector.broadcast %cst_73 : f32 to vector<1x64xf32>
    %174 = arith.addf %168, %173 : vector<1x64xf32>
    %175 = math.rsqrt %174 : vector<1x64xf32>
    %176 = vector.broadcast %175 : vector<1x64xf32> to vector<4x64xf32>
    %177 = arith.mulf %172, %176 : vector<4x64xf32>
    %178 = vector.broadcast %169 : vector<1x64xf32> to vector<4x64xf32>
    %179 = arith.mulf %177, %178 : vector<4x64xf32>
    %180 = vector.broadcast %170 : vector<1x64xf32> to vector<4x64xf32>
    %181 = arith.addf %179, %180 : vector<4x64xf32>
    %cst_74 = arith.constant 0.000000e+00 : f32
    %182 = vector.broadcast %cst_74 : f32 to vector<4x64xf32>
    %183 = arith.cmpf oge, %181, %182 : vector<4x64xf32>
    %cst_75 = arith.constant 2.000000e-01 : f32
    %184 = vector.broadcast %cst_75 : f32 to vector<4x64xf32>
    %185 = arith.mulf %184, %181 : vector<4x64xf32>
    %186 = arith.select %183, %181, %185 : vector<4x64xi1>, vector<4x64xf32>
    %c0_76 = arith.constant 0 : index
    %c0_77 = arith.constant 0 : index
    %c0_78 = arith.constant 0 : index
    %187 = vector.load %arg8[%c0_76, %c0_77, %c0_78] : memref<16x1x4xbf16, #tpu.memory_space<vmem>>, vector<16x1x4xbf16>
    %188 = arith.extf %187 : vector<16x1x4xbf16> to vector<16x1x4xf32>
    %189 = vector.extract_strided_slice %188 {offsets = [0, 0, 0], sizes = [1, 1, 4], strides = [1, 1, 1]} : vector<16x1x4xf32> to vector<1x1x4xf32>
    %190 = vector.shape_cast %189 : vector<1x1x4xf32> to vector<1x4xf32>
    %cst_79 = arith.constant dense<0.000000e+00> : vector<1x64xf32>
    %191 = tpu.matmul %190, %186, %cst_79 {dimension_numbers = #tpu.dot_dimension_numbers<[1], [0], [0], [1], [0, 0, 1, 1], [], []>} : vector<1x4xf32>, vector<4x64xf32>, vector<1x64xf32> -> vector<1x64xf32>
    %192 = vector.extract_strided_slice %188 {offsets = [1, 0, 0], sizes = [1, 1, 4], strides = [1, 1, 1]} : vector<16x1x4xf32> to vector<1x1x4xf32>
    %193 = vector.shape_cast %192 : vector<1x1x4xf32> to vector<1x4xf32>
    %cst_80 = arith.constant dense<0.000000e+00> : vector<1x64xf32>
    %194 = tpu.matmul %193, %186, %cst_80 {dimension_numbers = #tpu.dot_dimension_numbers<[1], [0], [0], [1], [0, 0, 1, 1], [], []>} : vector<1x4xf32>, vector<4x64xf32>, vector<1x64xf32> -> vector<1x64xf32>
    %195 = vector.extract_strided_slice %188 {offsets = [2, 0, 0], sizes = [1, 1, 4], strides = [1, 1, 1]} : vector<16x1x4xf32> to vector<1x1x4xf32>
    %196 = vector.shape_cast %195 : vector<1x1x4xf32> to vector<1x4xf32>
    %cst_81 = arith.constant dense<0.000000e+00> : vector<1x64xf32>
    %197 = tpu.matmul %196, %186, %cst_81 {dimension_numbers = #tpu.dot_dimension_numbers<[1], [0], [0], [1], [0, 0, 1, 1], [], []>} : vector<1x4xf32>, vector<4x64xf32>, vector<1x64xf32> -> vector<1x64xf32>
    %198 = vector.extract_strided_slice %188 {offsets = [3, 0, 0], sizes = [1, 1, 4], strides = [1, 1, 1]} : vector<16x1x4xf32> to vector<1x1x4xf32>
    %199 = vector.shape_cast %198 : vector<1x1x4xf32> to vector<1x4xf32>
    %cst_82 = arith.constant dense<0.000000e+00> : vector<1x64xf32>
    %200 = tpu.matmul %199, %186, %cst_82 {dimension_numbers = #tpu.dot_dimension_numbers<[1], [0], [0], [1], [0, 0, 1, 1], [], []>} : vector<1x4xf32>, vector<4x64xf32>, vector<1x64xf32> -> vector<1x64xf32>
    %201 = vector.extract_strided_slice %188 {offsets = [4, 0, 0], sizes = [1, 1, 4], strides = [1, 1, 1]} : vector<16x1x4xf32> to vector<1x1x4xf32>
    %202 = vector.shape_cast %201 : vector<1x1x4xf32> to vector<1x4xf32>
    %cst_83 = arith.constant dense<0.000000e+00> : vector<1x64xf32>
    %203 = tpu.matmul %202, %186, %cst_83 {dimension_numbers = #tpu.dot_dimension_numbers<[1], [0], [0], [1], [0, 0, 1, 1], [], []>} : vector<1x4xf32>, vector<4x64xf32>, vector<1x64xf32> -> vector<1x64xf32>
    %204 = vector.extract_strided_slice %188 {offsets = [5, 0, 0], sizes = [1, 1, 4], strides = [1, 1, 1]} : vector<16x1x4xf32> to vector<1x1x4xf32>
    %205 = vector.shape_cast %204 : vector<1x1x4xf32> to vector<1x4xf32>
    %cst_84 = arith.constant dense<0.000000e+00> : vector<1x64xf32>
    %206 = tpu.matmul %205, %186, %cst_84 {dimension_numbers = #tpu.dot_dimension_numbers<[1], [0], [0], [1], [0, 0, 1, 1], [], []>} : vector<1x4xf32>, vector<4x64xf32>, vector<1x64xf32> -> vector<1x64xf32>
    %207 = vector.extract_strided_slice %188 {offsets = [6, 0, 0], sizes = [1, 1, 4], strides = [1, 1, 1]} : vector<16x1x4xf32> to vector<1x1x4xf32>
    %208 = vector.shape_cast %207 : vector<1x1x4xf32> to vector<1x4xf32>
    %cst_85 = arith.constant dense<0.000000e+00> : vector<1x64xf32>
    %209 = tpu.matmul %208, %186, %cst_85 {dimension_numbers = #tpu.dot_dimension_numbers<[1], [0], [0], [1], [0, 0, 1, 1], [], []>} : vector<1x4xf32>, vector<4x64xf32>, vector<1x64xf32> -> vector<1x64xf32>
    %210 = vector.extract_strided_slice %188 {offsets = [7, 0, 0], sizes = [1, 1, 4], strides = [1, 1, 1]} : vector<16x1x4xf32> to vector<1x1x4xf32>
    %211 = vector.shape_cast %210 : vector<1x1x4xf32> to vector<1x4xf32>
    %cst_86 = arith.constant dense<0.000000e+00> : vector<1x64xf32>
    %212 = tpu.matmul %211, %186, %cst_86 {dimension_numbers = #tpu.dot_dimension_numbers<[1], [0], [0], [1], [0, 0, 1, 1], [], []>} : vector<1x4xf32>, vector<4x64xf32>, vector<1x64xf32> -> vector<1x64xf32>
    %213 = vector.extract_strided_slice %188 {offsets = [8, 0, 0], sizes = [1, 1, 4], strides = [1, 1, 1]} : vector<16x1x4xf32> to vector<1x1x4xf32>
    %214 = vector.shape_cast %213 : vector<1x1x4xf32> to vector<1x4xf32>
    %cst_87 = arith.constant dense<0.000000e+00> : vector<1x64xf32>
    %215 = tpu.matmul %214, %186, %cst_87 {dimension_numbers = #tpu.dot_dimension_numbers<[1], [0], [0], [1], [0, 0, 1, 1], [], []>} : vector<1x4xf32>, vector<4x64xf32>, vector<1x64xf32> -> vector<1x64xf32>
    %216 = vector.extract_strided_slice %188 {offsets = [9, 0, 0], sizes = [1, 1, 4], strides = [1, 1, 1]} : vector<16x1x4xf32> to vector<1x1x4xf32>
    %217 = vector.shape_cast %216 : vector<1x1x4xf32> to vector<1x4xf32>
    %cst_88 = arith.constant dense<0.000000e+00> : vector<1x64xf32>
    %218 = tpu.matmul %217, %186, %cst_88 {dimension_numbers = #tpu.dot_dimension_numbers<[1], [0], [0], [1], [0, 0, 1, 1], [], []>} : vector<1x4xf32>, vector<4x64xf32>, vector<1x64xf32> -> vector<1x64xf32>
    %219 = vector.extract_strided_slice %188 {offsets = [10, 0, 0], sizes = [1, 1, 4], strides = [1, 1, 1]} : vector<16x1x4xf32> to vector<1x1x4xf32>
    %220 = vector.shape_cast %219 : vector<1x1x4xf32> to vector<1x4xf32>
    %cst_89 = arith.constant dense<0.000000e+00> : vector<1x64xf32>
    %221 = tpu.matmul %220, %186, %cst_89 {dimension_numbers = #tpu.dot_dimension_numbers<[1], [0], [0], [1], [0, 0, 1, 1], [], []>} : vector<1x4xf32>, vector<4x64xf32>, vector<1x64xf32> -> vector<1x64xf32>
    %222 = vector.extract_strided_slice %188 {offsets = [11, 0, 0], sizes = [1, 1, 4], strides = [1, 1, 1]} : vector<16x1x4xf32> to vector<1x1x4xf32>
    %223 = vector.shape_cast %222 : vector<1x1x4xf32> to vector<1x4xf32>
    %cst_90 = arith.constant dense<0.000000e+00> : vector<1x64xf32>
    %224 = tpu.matmul %223, %186, %cst_90 {dimension_numbers = #tpu.dot_dimension_numbers<[1], [0], [0], [1], [0, 0, 1, 1], [], []>} : vector<1x4xf32>, vector<4x64xf32>, vector<1x64xf32> -> vector<1x64xf32>
    %225 = vector.extract_strided_slice %188 {offsets = [12, 0, 0], sizes = [1, 1, 4], strides = [1, 1, 1]} : vector<16x1x4xf32> to vector<1x1x4xf32>
    %226 = vector.shape_cast %225 : vector<1x1x4xf32> to vector<1x4xf32>
    %cst_91 = arith.constant dense<0.000000e+00> : vector<1x64xf32>
    %227 = tpu.matmul %226, %186, %cst_91 {dimension_numbers = #tpu.dot_dimension_numbers<[1], [0], [0], [1], [0, 0, 1, 1], [], []>} : vector<1x4xf32>, vector<4x64xf32>, vector<1x64xf32> -> vector<1x64xf32>
    %228 = vector.extract_strided_slice %188 {offsets = [13, 0, 0], sizes = [1, 1, 4], strides = [1, 1, 1]} : vector<16x1x4xf32> to vector<1x1x4xf32>
    %229 = vector.shape_cast %228 : vector<1x1x4xf32> to vector<1x4xf32>
    %cst_92 = arith.constant dense<0.000000e+00> : vector<1x64xf32>
    %230 = tpu.matmul %229, %186, %cst_92 {dimension_numbers = #tpu.dot_dimension_numbers<[1], [0], [0], [1], [0, 0, 1, 1], [], []>} : vector<1x4xf32>, vector<4x64xf32>, vector<1x64xf32> -> vector<1x64xf32>
    %231 = vector.extract_strided_slice %188 {offsets = [14, 0, 0], sizes = [1, 1, 4], strides = [1, 1, 1]} : vector<16x1x4xf32> to vector<1x1x4xf32>
    %232 = vector.shape_cast %231 : vector<1x1x4xf32> to vector<1x4xf32>
    %cst_93 = arith.constant dense<0.000000e+00> : vector<1x64xf32>
    %233 = tpu.matmul %232, %186, %cst_93 {dimension_numbers = #tpu.dot_dimension_numbers<[1], [0], [0], [1], [0, 0, 1, 1], [], []>} : vector<1x4xf32>, vector<4x64xf32>, vector<1x64xf32> -> vector<1x64xf32>
    %234 = vector.extract_strided_slice %188 {offsets = [15, 0, 0], sizes = [1, 1, 4], strides = [1, 1, 1]} : vector<16x1x4xf32> to vector<1x1x4xf32>
    %235 = vector.shape_cast %234 : vector<1x1x4xf32> to vector<1x4xf32>
    %cst_94 = arith.constant dense<0.000000e+00> : vector<1x64xf32>
    %236 = tpu.matmul %235, %186, %cst_94 {dimension_numbers = #tpu.dot_dimension_numbers<[1], [0], [0], [1], [0, 0, 1, 1], [], []>} : vector<1x4xf32>, vector<4x64xf32>, vector<1x64xf32> -> vector<1x64xf32>
    %237 = tpu.concatenate %191, %194, %197, %200, %203, %206, %209, %212, %215, %218, %221, %224, %227, %230, %233, %236 in 1 : vector<1x64xf32>, vector<1x64xf32>, vector<1x64xf32>, vector<1x64xf32>, vector<1x64xf32>, vector<1x64xf32>, vector<1x64xf32>, vector<1x64xf32>, vector<1x64xf32>, vector<1x64xf32>, vector<1x64xf32>, vector<1x64xf32>, vector<1x64xf32>, vector<1x64xf32>, vector<1x64xf32>, vector<1x64xf32> -> vector<1x1024xf32>
    %c0_95 = arith.constant 0 : index
    %c0_96 = arith.constant 0 : index
    %238 = vector.load %arg9[%c0_95, %c0_96] : memref<1024x64xbf16, #tpu.memory_space<vmem>>, vector<1024x64xbf16>
    %239 = arith.extf %238 : vector<1024x64xbf16> to vector<1024x64xf32>
    %cst_97 = arith.constant dense<0.000000e+00> : vector<1x64xf32>
    %240 = tpu.matmul %237, %239, %cst_97 {dimension_numbers = #tpu.dot_dimension_numbers<[1], [0], [0], [1], [0, 0, 1, 1], [], []>} : vector<1x1024xf32>, vector<1024x64xf32>, vector<1x64xf32> -> vector<1x64xf32>
    %cst_98 = arith.constant dense<0.000000e+00> : vector<64xf32>
    %241 = vector.multi_reduction <add>, %240, %cst_98 [0] : vector<1x64xf32> to vector<64xf32>
    %242 = vector.shape_cast %241 : vector<64xf32> to vector<1x64xf32>
    %243 = arith.mulf %240, %240 : vector<1x64xf32>
    %cst_99 = arith.constant dense<0.000000e+00> : vector<64xf32>
    %244 = vector.multi_reduction <add>, %243, %cst_99 [0] : vector<1x64xf32> to vector<64xf32>
    %245 = vector.shape_cast %244 : vector<64xf32> to vector<1x64xf32>
    %246 = tpu.concatenate %242, %245 in 0 : vector<1x64xf32>, vector<1x64xf32> -> vector<2x64xf32>
    %cst_100 = arith.constant dense<0.000000e+00> : vector<2x64xf32>
    %247 = tpu.matmul %246, %12, %cst_100 {dimension_numbers = #tpu.dot_dimension_numbers<[1], [0], [0], [1], [0, 0, 1, 1], [], []>} : vector<2x64xf32>, vector<64x64xf32>, vector<2x64xf32> -> vector<2x64xf32>
    %cst_101 = arith.constant 8.000000e+00 : f32
    %248 = vector.broadcast %cst_101 : f32 to vector<2x64xf32>
    %249 = arith.divf %247, %248 : vector<2x64xf32>
    %250 = vector.extract_strided_slice %249 {offsets = [0, 0], sizes = [1, 64], strides = [1, 1]} : vector<2x64xf32> to vector<1x64xf32>
    %251 = vector.extract_strided_slice %249 {offsets = [1, 0], sizes = [1, 64], strides = [1, 1]} : vector<2x64xf32> to vector<1x64xf32>
    %252 = arith.mulf %250, %250 : vector<1x64xf32>
    %253 = arith.subf %251, %252 : vector<1x64xf32>
    %cst_102 = arith.constant 0.000000e+00 : f32
    %254 = vector.broadcast %cst_102 : f32 to vector<1x64xf32>
    %255 = arith.maximumf %253, %254 : vector<1x64xf32>
    %c2 = arith.constant 2 : index
    %c0_103 = arith.constant 0 : index
    %256 = vector.load %arg11[%c2, %c0_103] : memref<3x64xf32, #tpu.memory_space<vmem>>, vector<1x64xf32>
    %c2_104 = arith.constant 2 : index
    %c0_105 = arith.constant 0 : index
    %257 = vector.load %arg12[%c2_104, %c0_105] : memref<3x64xf32, #tpu.memory_space<vmem>>, vector<1x64xf32>
    %258 = arith.subf %240, %250 : vector<1x64xf32>
    %cst_106 = arith.constant 9.99999974E-6 : f32
    %259 = vector.broadcast %cst_106 : f32 to vector<1x64xf32>
    %260 = arith.addf %255, %259 : vector<1x64xf32>
    %261 = math.rsqrt %260 : vector<1x64xf32>
    %262 = arith.mulf %258, %261 : vector<1x64xf32>
    %263 = arith.mulf %262, %256 : vector<1x64xf32>
    %264 = arith.addf %263, %257 : vector<1x64xf32>
    %cst_107 = arith.constant 0.000000e+00 : f32
    %265 = vector.broadcast %cst_107 : f32 to vector<1x64xf32>
    %266 = arith.cmpf oge, %264, %265 : vector<1x64xf32>
    %cst_108 = arith.constant 2.000000e-01 : f32
    %267 = vector.broadcast %cst_108 : f32 to vector<1x64xf32>
    %268 = arith.mulf %267, %264 : vector<1x64xf32>
    %269 = arith.select %266, %264, %268 : vector<1x64xi1>, vector<1x64xf32>
    %c0_109 = arith.constant 0 : index
    %c0_110 = arith.constant 0 : index
    %270 = vector.load %arg13[%c0_109, %c0_110] : memref<64x8xf32, #tpu.memory_space<vmem>>, vector<64x8xf32>
    %cst_111 = arith.constant dense<0.000000e+00> : vector<1x8xf32>
    %271 = tpu.matmul %269, %270, %cst_111 {dimension_numbers = #tpu.dot_dimension_numbers<[1], [0], [0], [1], [0, 0, 1, 1], [], []>} : vector<1x64xf32>, vector<64x8xf32>, vector<1x8xf32> -> vector<1x8xf32>
    %c0_112 = arith.constant 0 : index
    %c0_113 = arith.constant 0 : index
    %272 = vector.load %arg14[%c0_112, %c0_113] : memref<1x8xf32, #tpu.memory_space<vmem>>, vector<1x8xf32>
    %273 = arith.addf %271, %272 : vector<1x8xf32>
    %c0_114 = arith.constant 0 : index
    %c0_115 = arith.constant 0 : index
    %274 = vector.load %arg15[%c0_114, %c0_115] : memref<1x8xf32, #tpu.memory_space<vmem>>, vector<1x8xf32>
    tpu.vector_store %arg15[%c0_114, %c0_115], %273 {strides = array<i32>} : memref<1x8xf32, #tpu.memory_space<vmem>>, vector<1x8xf32>,
    return
  }
  func.func @transform_0(%arg0: i32) -> (i32, i32) {
    %c0_i32 = arith.constant 0 : i32
    %c0_i32_0 = arith.constant 0 : i32
    %c0_i32_1 = arith.constant 0 : i32
    return %c0_i32, %c0_i32_0 : i32, i32
  }
  func.func @transform_1(%arg0: i32) -> (i32, i32) {
    %c0_i32 = arith.constant 0 : i32
    %c0_i32_0 = arith.constant 0 : i32
    %c0_i32_1 = arith.constant 0 : i32
    return %c0_i32, %c0_i32_0 : i32, i32
  }
  func.func @transform_2(%arg0: i32) -> (i32, i32) {
    %c0_i32 = arith.constant 0 : i32
    %c0_i32_0 = arith.constant 0 : i32
    %c0_i32_1 = arith.constant 0 : i32
    return %c0_i32, %c0_i32_0 : i32, i32
  }
  func.func @transform_3(%arg0: i32) -> (i32, i32, i32) {
    %c0_i32 = arith.constant 0 : i32
    %c0_i32_0 = arith.constant 0 : i32
    %c0_i32_1 = arith.constant 0 : i32
    %c0_i32_2 = arith.constant 0 : i32
    return %c0_i32, %c0_i32_0, %c0_i32_1 : i32, i32, i32
  }
  func.func @transform_4(%arg0: i32) -> (i32, i32) {
    %c0_i32 = arith.constant 0 : i32
    %c0_i32_0 = arith.constant 0 : i32
    %c0_i32_1 = arith.constant 0 : i32
    return %c0_i32, %c0_i32_0 : i32, i32
  }
  func.func @transform_5(%arg0: i32) -> (i32, i32, i32) {
    %c0_i32 = arith.constant 0 : i32
    %c0_i32_0 = arith.constant 0 : i32
    %c0_i32_1 = arith.constant 0 : i32
    %c0_i32_2 = arith.constant 0 : i32
    return %c0_i32, %c0_i32_0, %c0_i32_1 : i32, i32, i32
  }
  func.func @transform_6(%arg0: i32) -> (i32, i32) {
    %c0_i32 = arith.constant 0 : i32
    %c0_i32_0 = arith.constant 0 : i32
    %c0_i32_1 = arith.constant 0 : i32
    return %c0_i32, %c0_i32_0 : i32, i32
  }
  func.func @transform_7(%arg0: i32) -> (i32, i32, i32) {
    %c0_i32 = arith.constant 0 : i32
    %c0_i32_0 = arith.constant 0 : i32
    %c0_i32_1 = arith.constant 0 : i32
    %c0_i32_2 = arith.constant 0 : i32
    return %c0_i32, %c0_i32_0, %c0_i32_1 : i32, i32, i32
  }
  func.func @transform_8(%arg0: i32) -> (i32, i32) {
    %c0_i32 = arith.constant 0 : i32
    %c0_i32_0 = arith.constant 0 : i32
    %c0_i32_1 = arith.constant 0 : i32
    return %c0_i32, %c0_i32_0 : i32, i32
  }
  func.func @transform_9(%arg0: i32) -> (i32, i32) {
    %c0_i32 = arith.constant 0 : i32
    %c0_i32_0 = arith.constant 0 : i32
    %c0_i32_1 = arith.constant 0 : i32
    return %c0_i32, %c0_i32_0 : i32, i32
  }
  func.func @transform_10(%arg0: i32) -> (i32, i32) {
    %c0_i32 = arith.constant 0 : i32
    %c0_i32_0 = arith.constant 0 : i32
    %c0_i32_1 = arith.constant 0 : i32
    return %c0_i32, %c0_i32_0 : i32, i32
  }
  func.func @transform_11(%arg0: i32) -> (i32, i32) {
    %c0_i32 = arith.constant 0 : i32
    %c0_i32_0 = arith.constant 0 : i32
    %c0_i32_1 = arith.constant 0 : i32
    return %c0_i32, %c0_i32_0 : i32, i32
  }
  func.func @transform_12(%arg0: i32) -> (i32, i32) {
    %c0_i32 = arith.constant 0 : i32
    %c0_i32_0 = arith.constant 0 : i32
    %c0_i32_1 = arith.constant 0 : i32
    return %c0_i32, %c0_i32_0 : i32, i32
  }
  func.func @transform_13(%arg0: i32) -> (i32, i32) {
    %c0_i32 = arith.constant 0 : i32
    %c0_i32_0 = arith.constant 0 : i32
    %c0_i32_1 = arith.constant 0 : i32
    return %c0_i32, %c0_i32_0 : i32, i32
  }
  func.func @transform_14(%arg0: i32) -> (i32, i32) {
    %c0_i32 = arith.constant 0 : i32
    %c0_i32_0 = arith.constant 0 : i32
    %c0_i32_1 = arith.constant 0 : i32
    return %c0_i32, %c0_i32_0 : i32, i32
  }
}

</mosaic_0001>

<llo_original>
// kernel: _patchgan_forward_impl.1
$region0: #{_patchgan_forward_impl.1}
  #allocation0 [shape = 'u32[]', space=smem, size = 0x4, offset = 0x4, fixed_abs, tag = 'smem constant byte address 0x4 - core index']
  #allocation1 [shape = 'u32[144,128]{1,0:T(1,128)}', space=vmem, size = 0x12000, scoped, tag = 'internal scratch']
  %s0 = inlined_call_operand.vmem [shape: f32[64,128], index: 0, kind: input, shape index: {}]
  %s1 = inlined_call_operand.vmem [shape: f32[128,64], index: 1, kind: input, shape index: {}]
  %s2 = inlined_call_operand.vmem [shape: f32[1,64], index: 2, kind: input, shape index: {}]
  %s3 = inlined_call_operand.vmem [shape: bf16[16,16,64], index: 3, kind: input, shape index: {}]
  %s4 = inlined_call_operand.vmem [shape: bf16[1024,64], index: 4, kind: input, shape index: {}]
  %s5 = inlined_call_operand.vmem [shape: bf16[16,4,16], index: 5, kind: input, shape index: {}]
  %s6 = inlined_call_operand.vmem [shape: bf16[1024,64], index: 6, kind: input, shape index: {}]
  %s7 = inlined_call_operand.vmem [shape: bf16[16,1,4], index: 7, kind: input, shape index: {}]
  %s8 = inlined_call_operand.vmem [shape: bf16[1024,64], index: 8, kind: input, shape index: {}]
  %s9 = inlined_call_operand.vmem [shape: bf16[64,64], index: 9, kind: input, shape index: {}]
  %s10 = inlined_call_operand.vmem [shape: f32[3,64], index: 10, kind: input, shape index: {}]
  %s11 = inlined_call_operand.vmem [shape: f32[3,64], index: 11, kind: input, shape index: {}]
  %s12 = inlined_call_operand.vmem [shape: f32[64,8], index: 12, kind: input, shape index: {}]
  %s13 = inlined_call_operand.vmem [shape: f32[1,8], index: 13, kind: input, shape index: {}]
  %s14 = inlined_call_operand.vmem [shape: f32[1,8], index: 14, kind: output, shape index: {}]
  %s15 = sld [smem:[#allocation0]]
  $region66: #{_patchgan_forward_impl.1} parent=0
    _
  %s17 = ssub.s32 1, %s15
  %s18 = scalar_select 0, %s17, %s15
  // Predicated region
  $region2: #{_patchgan_forward_impl.1} parent=0 // pred_check
    _
  $region3: #{_patchgan_forward_impl.1} parent=0 // pred_check_branch
    %20 = sbr.rel (0) target = $region5
  $region4: #{_patchgan_forward_impl.1} parent=0 // pred_region
    _
  $region5: #{_patchgan_forward_impl.1} parent=0 // pred_fallthru
    _
  // Predicated region
  $region6: #{_patchgan_forward_impl.1} parent=0 // pred_check
    _
  $region7: #{_patchgan_forward_impl.1} parent=0 // pred_check_branch
    %22 = sbr.rel (0) target = $region9
  $region8: #{_patchgan_forward_impl.1} parent=0 // pred_region
    _
  $region9: #{_patchgan_forward_impl.1} parent=0 // pred_fallthru
    _
  // Predicated region
  $region10: #{_patchgan_forward_impl.1} parent=0 // pred_check
    _
  $region11: #{_patchgan_forward_impl.1} parent=0 // pred_check_branch
    %24 = sbr.rel (0) target = $region13
  $region12: #{_patchgan_forward_impl.1} parent=0 // pred_region
    _
  $region13: #{_patchgan_forward_impl.1} parent=0 // pred_fallthru
    _
  // Predicated region
  $region14: #{_patchgan_forward_impl.1} parent=0 // pred_check
    _
  $region15: #{_patchgan_forward_impl.1} parent=0 // pred_check_branch
    %26 = sbr.rel (0) target = $region17
  $region16: #{_patchgan_forward_impl.1} parent=0 // pred_region
    _
  $region17: #{_patchgan_forward_impl.1} parent=0 // pred_fallthru
    _
  // Predicated region
  $region18: #{_patchgan_forward_impl.1} parent=0 // pred_check
    _
  $region19: #{_patchgan_forward_impl.1} parent=0 // pred_check_branch
    %28 = sbr.rel (0) target = $region21
  $region20: #{_patchgan_forward_impl.1} parent=0 // pred_region
    _
  $region21: #{_patchgan_forward_impl.1} parent=0 // pred_fallthru
    _
  // Predicated region
  $region22: #{_patchgan_forward_impl.1} parent=0 // pred_check
    _
  $region23: #{_patchgan_forward_impl.1} parent=0 // pred_check_branch
    %30 = sbr.rel (0) target = $region25
  $region24: #{_patchgan_forward_impl.1} parent=0 // pred_region
    _
  $region25: #{_patchgan_forward_impl.1} parent=0 // pred_fallthru
    _
  // Predicated region
  $region26: #{_patchgan_forward_impl.1} parent=0 // pred_check
    _
  $region27: #{_patchgan_forward_impl.1} parent=0 // pred_check_branch
    %32 = sbr.rel (0) target = $region29
  $region28: #{_patchgan_forward_impl.1} parent=0 // pred_region
    _
  $region29: #{_patchgan_forward_impl.1} parent=0 // pred_fallthru
    _
  // Predicated region
  $region30: #{_patchgan_forward_impl.1} parent=0 // pred_check
    _
  $region31: #{_patchgan_forward_impl.1} parent=0 // pred_check_branch
    %34 = sbr.rel (0) target = $region33
  $region32: #{_patchgan_forward_impl.1} parent=0 // pred_region
    _
  $region33: #{_patchgan_forward_impl.1} parent=0 // pred_fallthru
    _
  // Predicated region
  $region34: #{_patchgan_forward_impl.1} parent=0 // pred_check
    _
  $region35: #{_patchgan_forward_impl.1} parent=0 // pred_check_branch
    %36 = sbr.rel (0) target = $region37
  $region36: #{_patchgan_forward_impl.1} parent=0 // pred_region
    _
  $region37: #{_patchgan_forward_impl.1} parent=0 // pred_fallthru
    _
  // Predicated region
  $region38: #{_patchgan_forward_impl.1} parent=0 // pred_check
    _
  $region39: #{_patchgan_forward_impl.1} parent=0 // pred_check_branch
    %38 = sbr.rel (0) target = $region41
  $region40: #{_patchgan_forward_impl.1} parent=0 // pred_region
    _
  $region41: #{_patchgan_forward_impl.1} parent=0 // pred_fallthru
    _
  // Predicated region
  $region42: #{_patchgan_forward_impl.1} parent=0 // pred_check
    _
  $region43: #{_patchgan_forward_impl.1} parent=0 // pred_check_branch
    %40 = sbr.rel (0) target = $region45
  $region44: #{_patchgan_forward_impl.1} parent=0 // pred_region
    _
  $region45: #{_patchgan_forward_impl.1} parent=0 // pred_fallthru
    _
  // Predicated region
  $region46: #{_patchgan_forward_impl.1} parent=0 // pred_check
    _
  $region47: #{_patchgan_forward_impl.1} parent=0 // pred_check_branch
    %42 = sbr.rel (0) target = $region49
  $region48: #{_patchgan_forward_impl.1} parent=0 // pred_region
    _
  $region49: #{_patchgan_forward_impl.1} parent=0 // pred_fallthru
    _
  // Predicated region
  $region50: #{_patchgan_forward_impl.1} parent=0 // pred_check
    _
  $region51: #{_patchgan_forward_impl.1} parent=0 // pred_check_branch
    %44 = sbr.rel (0) target = $region53
  $region52: #{_patchgan_forward_impl.1} parent=0 // pred_region
    _
  $region53: #{_patchgan_forward_impl.1} parent=0 // pred_fallthru
    _
  // Predicated region
  $region54: #{_patchgan_forward_impl.1} parent=0 // pred_check
    _
  $region55: #{_patchgan_forward_impl.1} parent=0 // pred_check_branch
    %46 = sbr.rel (0) target = $region57
  $region56: #{_patchgan_forward_impl.1} parent=0 // pred_region
    _
  $region57: #{_patchgan_forward_impl.1} parent=0 // pred_fallthru
    _
  %v47 = vld [vmem:[%s0] sm:$0xff]
  %v48 = vld [vmem:[%s0 + $0x8] sm:$0xff]
  %v49 = vld [vmem:[%s0 + $0x10] sm:$0xff]
  %v50 = vld [vmem:[%s0 + $0x18] sm:$0xff]
  %v51 = vld [vmem:[%s0 + $0x20] sm:$0xff]
  %v52 = vld [vmem:[%s0 + $0x28] sm:$0xff]
  %v53 = vld [vmem:[%s0 + $0x30] sm:$0xff]
  %v54 = vld [vmem:[%s0 + $0x38] sm:$0xff]
  %v55 = vld [vmem:[%s1] sm:$0xff]
  %v56 = vld [vmem:[%s1 + $0x8] sm:$0xff]
  %v57 = vld [vmem:[%s1 + $0x10] sm:$0xff]
  %v58 = vld [vmem:[%s1 + $0x18] sm:$0xff]
  %v59 = vld [vmem:[%s1 + $0x20] sm:$0xff]
  %v60 = vld [vmem:[%s1 + $0x28] sm:$0xff]
  %v61 = vld [vmem:[%s1 + $0x30] sm:$0xff]
  %v62 = vld [vmem:[%s1 + $0x38] sm:$0xff]
  %v63 = vld [vmem:[%s1 + $0x40] sm:$0xff]
  %v64 = vld [vmem:[%s1 + $0x48] sm:$0xff]
  %v65 = vld [vmem:[%s1 + $0x50] sm:$0xff]
  %v66 = vld [vmem:[%s1 + $0x58] sm:$0xff]
  %v67 = vld [vmem:[%s1 + $0x60] sm:$0xff]
  %v68 = vld [vmem:[%s1 + $0x68] sm:$0xff]
  %v69 = vld [vmem:[%s1 + $0x70] sm:$0xff]
  %v70 = vld [vmem:[%s1 + $0x78] sm:$0xff]
  %v71 = vld [vmem:[%s2] sm:$0x1]
  %v73 = vlaneseq
  %v74 = vshrl.u32 %v73, 7
  %v75 = vsub.s32 0, %v74
  %v76 = vrot.slane %v71, %v75
  %78 = vmatprep.subr.mxu0 0.0
  %79 = vmatpush1.msra.mxu0 %v70
  %80 = vmatprep.subr.mxu0 0.0
  %81 = vmatpush1.msra.mxu0 %v69
  %82 = vmatprep.subr.mxu0 0.0
  %83 = vmatpush1.msra.mxu0 %v68
  %84 = vmatprep.subr.mxu0 0.0
  %85 = vmatpush1.msra.mxu0 %v67
  %86 = vmatprep.subr.mxu0 0.0
  %87 = vmatpush1.msra.mxu0 %v66
  %88 = vmatprep.subr.mxu0 0.0
  %89 = vmatpush1.msra.mxu0 %v65
  %90 = vmatprep.subr.mxu0 0.0
  %91 = vmatpush1.msra.mxu0 %v64
  %92 = vmatprep.subr.mxu0 0.0
  %93 = vmatpush1.msra.mxu0 %v63
  %94 = vmatprep.subr.mxu0 0.0
  %95 = vmatpush1.msra.mxu0 %v62
  %96 = vmatprep.subr.mxu0 0.0
  %97 = vmatpush1.msra.mxu0 %v61
  %98 = vmatprep.subr.mxu0 0.0
  %99 = vmatpush1.msra.mxu0 %v60
  %100 = vmatprep.subr.mxu0 0.0
  %101 = vmatpush1.msra.mxu0 %v59
  %102 = vmatprep.subr.mxu0 0.0
  %103 = vmatpush1.msra.mxu0 %v58
  %104 = vmatprep.subr.mxu0 0.0
  %105 = vmatpush1.msra.mxu0 %v57
  %106 = vmatprep.subr.mxu0 0.0
  %107 = vmatpush1.msra.mxu0 %v56
  %108 = vmatprep.subr.mxu0 0.0
  %109 = vmatpush1.msra.mxu0 %v55
  %110 = vmatprep.subr.mxu0 0.0
  %111 = vmatpush2.msra.mxu0 0.0
  %112 = vmatprep.subr.mxu0 0.0
  %113 = vmatpush2.msra.mxu0 0.0
  %114 = vmatprep.subr.mxu0 0.0
  %115 = vmatpush2.msra.mxu0 0.0
  %116 = vmatprep.subr.mxu0 0.0
  %117 = vmatpush2.msra.mxu0 0.0
  %118 = vmatprep.subr.mxu0 0.0
  %119 = vmatpush2.msra.mxu0 0.0
  %120 = vmatprep.subr.mxu0 0.0
  %121 = vmatpush2.msra.mxu0 0.0
  %122 = vmatprep.subr.mxu0 0.0
  %123 = vmatpush2.msra.mxu0 0.0
  %124 = vmatprep.subr.mxu0 0.0
  %125 = vmatpush2.msra.mxu0 0.0
  %126 = vmatprep.subr.mxu0 0.0
  %127 = vmatpush2.msra.mxu0 0.0
  %128 = vmatprep.subr.mxu0 0.0
  %129 = vmatpush2.msra.mxu0 0.0
  %130 = vmatprep.subr.mxu0 0.0
  %131 = vmatpush2.msra.mxu0 0.0
  %132 = vmatprep.subr.mxu0 0.0
  %133 = vmatpush2.msra.mxu0 0.0
  %134 = vmatprep.subr.mxu0 0.0
  %135 = vmatpush2.msra.mxu0 0.0
  %136 = vmatprep.subr.mxu0 0.0
  %137 = vmatpush2.msra.mxu0 0.0
  %138 = vmatprep.subr.mxu0 0.0
  %139 = vmatpush2.msra.mxu0 0.0
  %140 = vmatprep.subr.mxu0 0.0
  %141 = vmatpush2.msra.mxu0 0.0
  %142 = vmatprep.mubr.f32.mxu0 0.0
  %143 = vmatmul.mubr.f32.gmra.mxu0 %v47
  %v144 = vpop.f32.mrf.mxu0
  %v145 = vadd.f32 %v76, %v144
  %v146 = vpop.f32.mrf.mxu0
  %147 = vmatprep.mubr.f32.mxu0 0.0
  %148 = vmatmul.mubr.f32.gmra.mxu0 %v48
  %v149 = vpop.f32.mrf.mxu0
  %v150 = vadd.f32 %v76, %v149
  %v151 = vpop.f32.mrf.mxu0
  %152 = vmatprep.mubr.f32.mxu0 0.0
  %153 = vmatmul.mubr.f32.gmra.mxu0 %v49
  %v154 = vpop.f32.mrf.mxu0
  %v155 = vadd.f32 %v76, %v154
  %v156 = vpop.f32.mrf.mxu0
  %157 = vmatprep.mubr.f32.mxu0 0.0
  %158 = vmatmul.mubr.f32.gmra.mxu0 %v50
  %v159 = vpop.f32.mrf.mxu0
  %v160 = vadd.f32 %v76, %v159
  %v161 = vpop.f32.mrf.mxu0
  %162 = vmatprep.mubr.f32.mxu0 0.0
  %163 = vmatmul.mubr.f32.gmra.mxu0 %v51
  %v164 = vpop.f32.mrf.mxu0
  %v165 = vadd.f32 %v76, %v164
  %v166 = vpop.f32.mrf.mxu0
  %167 = vmatprep.mubr.f32.mxu0 0.0
  %168 = vmatmul.mubr.f32.gmra.mxu0 %v52
  %v169 = vpop.f32.mrf.mxu0
  %v170 = vadd.f32 %v76, %v169
  %v171 = vpop.f32.mrf.mxu0
  %172 = vmatprep.mubr.f32.mxu0 0.0
  %173 = vmatmul.mubr.f32.gmra.mxu0 %v53
  %v174 = vpop.f32.mrf.mxu0
  %v175 = vadd.f32 %v76, %v174
  %v176 = vpop.f32.mrf.mxu0
  %177 = vmatprep.mubr.f32.mxu0 0.0
  %178 = vmatmul.mubr.f32.gmra.mxu0 %v54
  %v179 = vpop.f32.mrf.mxu0
  %v180 = vadd.f32 %v76, %v179
  %v181 = vpop.f32.mrf.mxu0
  %182 = vdwg.mxu0
  %vm183 = vcmp.ge.f32.partialorder %v145, 0.0
  %vm184 = vcmp.ge.f32.partialorder %v150, 0.0
  %vm185 = vcmp.ge.f32.partialorder %v155, 0.0
  %vm186 = vcmp.ge.f32.partialorder %v160, 0.0
  %vm187 = vcmp.ge.f32.partialorder %v165, 0.0
  %vm188 = vcmp.ge.f32.partialorder %v170, 0.0
  %vm189 = vcmp.ge.f32.partialorder %v175, 0.0
  %vm190 = vcmp.ge.f32.partialorder %v180, 0.0
  %v191 = vmul.f32 %v145, 0.2
  %v192 = vmul.f32 %v150, 0.2
  %v193 = vmul.f32 %v155, 0.2
  %v194 = vmul.f32 %v160, 0.2
  %v195 = vmul.f32 %v165, 0.2
  %v196 = vmul.f32 %v170, 0.2
  %v197 = vmul.f32 %v175, 0.2
  %v198 = vmul.f32 %v180, 0.2
  %v199 = vsel %vm183, %v145, %v191
  %v200 = vsel %vm184, %v150, %v192
  %v201 = vsel %vm185, %v155, %v193
  %v202 = vsel %vm186, %v160, %v194
  %v203 = vsel %vm187, %v165, %v195
  %v204 = vsel %vm188, %v170, %v196
  %v205 = vsel %vm189, %v175, %v197
  %v206 = vsel %vm190, %v180, %v198
  %v207 = vld [vmem:[%s9] sm:$0xf]
  %v208 = vld [vmem:[%s9 + $0x4] sm:$0xf]
  %v209 = vld [vmem:[%s9 + $0x8] sm:$0xf]
  %v210 = vld [vmem:[%s9 + $0xc] sm:$0xf]
  %v211 = vld [vmem:[%s9 + $0x10] sm:$0xf]
  %v212 = vld [vmem:[%s9 + $0x14] sm:$0xf]
  %v213 = vld [vmem:[%s9 + $0x18] sm:$0xf]
  %v214 = vld [vmem:[%s9 + $0x1c] sm:$0xf]
  %v215 = vunpack.c.l.bf16 %v207
  %v216 = vunpack.c.l.bf16 %v208
  %v217 = vunpack.c.l.bf16 %v209
  %v218 = vunpack.c.l.bf16 %v210
  %v219 = vunpack.c.l.bf16 %v211
  %v220 = vunpack.c.l.bf16 %v212
  %v221 = vunpack.c.l.bf16 %v213
  %v222 = vunpack.c.l.bf16 %v214
  %v223 = vld [vmem:[%s3] sm:$0xf]
  %v224 = vld [vmem:[%s3 + $0x4] sm:$0xf]
  %v225 = vld [vmem:[%s3 + $0x8] sm:$0xf]
  %v226 = vld [vmem:[%s3 + $0xc] sm:$0xf]
  %v227 = vld [vmem:[%s3 + $0x10] sm:$0xf]
  %v228 = vld [vmem:[%s3 + $0x14] sm:$0xf]
  %v229 = vld [vmem:[%s3 + $0x18] sm:$0xf]
  %v230 = vld [vmem:[%s3 + $0x1c] sm:$0xf]
  %v231 = vld [vmem:[%s3 + $0x20] sm:$0xf]
  %v232 = vld [vmem:[%s3 + $0x24] sm:$0xf]
  %v233 = vld [vmem:[%s3 + $0x28] sm:$0xf]
  %v234 = vld [vmem:[%s3 + $0x2c] sm:$0xf]
  %v235 = vld [vmem:[%s3 + $0x30] sm:$0xf]
  %v236 = vld [vmem:[%s3 + $0x34] sm:$0xf]
  %v237 = vld [vmem:[%s3 + $0x38] sm:$0xf]
  %v238 = vld [vmem:[%s3 + $0x3c] sm:$0xf]
  %v239 = vld [vmem:[%s3 + $0x40] sm:$0xf]
  %v240 = vld [vmem:[%s3 + $0x44] sm:$0xf]
  %v241 = vld [vmem:[%s3 + $0x48] sm:$0xf]
  %v242 = vld [vmem:[%s3 + $0x4c] sm:$0xf]
  %v243 = vld [vmem:[%s3 + $0x50] sm:$0xf]
  %v244 = vld [vmem:[%s3 + $0x54] sm:$0xf]
  %v245 = vld [vmem:[%s3 + $0x58] sm:$0xf]
  %v246 = vld [vmem:[%s3 + $0x5c] sm:$0xf]
  %v247 = vld [vmem:[%s3 + $0x60] sm:$0xf]
  %v248 = vld [vmem:[%s3 + $0x64] sm:$0xf]
  %v249 = vld [vmem:[%s3 + $0x68] sm:$0xf]
  %v250 = vld [vmem:[%s3 + $0x6c] sm:$0xf]
  %v251 = vld [vmem:[%s3 + $0x70] sm:$0xf]
  %v252 = vld [vmem:[%s3 + $0x74] sm:$0xf]
  %v253 = vld [vmem:[%s3 + $0x78] sm:$0xf]
  %v254 = vld [vmem:[%s3 + $0x7c] sm:$0xf]
  %v255 = vunpack.c.l.bf16 %v223
  %v256 = vunpack.c.l.bf16 %v224
  %v257 = vunpack.c.l.bf16 %v225
  %v258 = vunpack.c.l.bf16 %v226
  %v259 = vunpack.c.l.bf16 %v227
  %v260 = vunpack.c.l.bf16 %v228
  %v261 = vunpack.c.l.bf16 %v229
  %v262 = vunpack.c.l.bf16 %v230
  %v263 = vunpack.c.l.bf16 %v231
  %v264 = vunpack.c.l.bf16 %v232
  %v265 = vunpack.c.l.bf16 %v233
  %v266 = vunpack.c.l.bf16 %v234
  %v267 = vunpack.c.l.bf16 %v235
  %v268 = vunpack.c.l.bf16 %v236
  %v269 = vunpack.c.l.bf16 %v237
  %v270 = vunpack.c.l.bf16 %v238
  %v271 = vunpack.c.l.bf16 %v239
  %v272 = vunpack.c.l.bf16 %v240
  %v273 = vunpack.c.l.bf16 %v241
  %v274 = vunpack.c.l.bf16 %v242
  %v275 = vunpack.c.l.bf16 %v243
  %v276 = vunpack.c.l.bf16 %v244
  %v277 = vunpack.c.l.bf16 %v245
  %v278 = vunpack.c.l.bf16 %v246
  %v279 = vunpack.c.l.bf16 %v247
  %v280 = vunpack.c.l.bf16 %v248
  %v281 = vunpack.c.l.bf16 %v249
  %v282 = vunpack.c.l.bf16 %v250
  %v283 = vunpack.c.l.bf16 %v251
  %v284 = vunpack.c.l.bf16 %v252
  %v285 = vunpack.c.l.bf16 %v253
  %v286 = vunpack.c.l.bf16 %v254
  %vm287 = vcmask 523264
  %v289 = vsel %vm287, %v255, 0
  %v292 = vsel %vm287, %v256, 0
  %294 = vmatprep.subr.mxu0 0.0
  %295 = vmatpush1.msra.mxu0 0.0
  %296 = vmatprep.subr.mxu0 0.0
  %297 = vmatpush1.msra.mxu0 0.0
  %298 = vmatprep.subr.mxu0 0.0
  %299 = vmatpush1.msra.mxu0 0.0
  %300 = vmatprep.subr.mxu0 0.0
  %301 = vmatpush1.msra.mxu0 0.0
  %302 = vmatprep.subr.mxu0 0.0
  %303 = vmatpush1.msra.mxu0 0.0
  %304 = vmatprep.subr.mxu0 0.0
  %305 = vmatpush1.msra.mxu0 0.0
  %306 = vmatprep.subr.mxu0 0.0
  %307 = vmatpush1.msra.mxu0 0.0
  %308 = vmatprep.subr.mxu0 0.0
  %309 = vmatpush1.msra.mxu0 0.0
  %310 = vmatprep.subr.mxu0 0.0
  %311 = vmatpush1.msra.mxu0 %v206
  %312 = vmatprep.subr.mxu0 0.0
  %313 = vmatpush1.msra.mxu0 %v205
  %314 = vmatprep.subr.mxu0 0.0
  %315 = vmatpush1.msra.mxu0 %v204
  %316 = vmatprep.subr.mxu0 0.0
  %317 = vmatpush1.msra.mxu0 %v203
  %318 = vmatprep.subr.mxu0 0.0
  %319 = vmatpush1.msra.mxu0 %v202
  %320 = vmatprep.subr.mxu0 0.0
  %321 = vmatpush1.msra.mxu0 %v201
  %322 = vmatprep.subr.mxu0 0.0
  %323 = vmatpush1.msra.mxu0 %v200
  %324 = vmatprep.subr.mxu0 0.0
  %325 = vmatpush1.msra.mxu0 %v199
  %326 = vmatprep.subr.mxu0 0.0
  %327 = vmatpush2.msra.mxu0 0.0
  %328 = vmatprep.subr.mxu0 0.0
  %329 = vmatpush2.msra.mxu0 0.0
  %330 = vmatprep.subr.mxu0 0.0
  %331 = vmatpush2.msra.mxu0 0.0
  %332 = vmatprep.subr.mxu0 0.0
  %333 = vmatpush2.msra.mxu0 0.0
  %334 = vmatprep.subr.mxu0 0.0
  %335 = vmatpush2.msra.mxu0 0.0
  %336 = vmatprep.subr.mxu0 0.0
  %337 = vmatpush2.msra.mxu0 0.0
  %338 = vmatprep.subr.mxu0 0.0
  %339 = vmatpush2.msra.mxu0 0.0
  %340 = vmatprep.subr.mxu0 0.0
  %341 = vmatpush2.msra.mxu0 0.0
  %342 = vmatprep.subr.mxu0 0.0
  %343 = vmatpush2.msra.mxu0 0.0
  %344 = vmatprep.subr.mxu0 0.0
  %345 = vmatpush2.msra.mxu0 0.0
  %346 = vmatprep.subr.mxu0 0.0
  %347 = vmatpush2.msra.mxu0 0.0
  %348 = vmatprep.subr.mxu0 0.0
  %349 = vmatpush2.msra.mxu0 0.0
  %350 = vmatprep.subr.mxu0 0.0
  %351 = vmatpush2.msra.mxu0 0.0
  %352 = vmatprep.subr.mxu0 0.0
  %353 = vmatpush2.msra.mxu0 0.0
  %354 = vmatprep.subr.mxu0 0.0
  %355 = vmatpush2.msra.mxu0 0.0
  %356 = vmatprep.subr.mxu0 0.0
  %357 = vmatpush2.msra.mxu0 0.0
  %358 = vmatprep.mubr.f32.mxu0 0.0
  %359 = vmatmul.mubr.f32.gmra.mxu0 %v289
  %v360 = vpop.f32.mrf.mxu0
  %v361 = vadd.f32 0.0, %v360
  %v362 = vpop.f32.mrf.mxu0
  %363 = vmatprep.mubr.f32.mxu0 0.0
  %364 = vmatmul.mubr.f32.gmra.mxu0 %v292
  %v365 = vpop.f32.mrf.mxu0
  %v366 = vadd.f32 0.0, %v365
  %v367 = vpop.f32.mrf.mxu0
  %368 = vdwg.mxu0
  %v370 = vsel %vm287, %v257, 0
  %v373 = vsel %vm287, %v258, 0
  %375 = vmatprep.subr.mxu0 0.0
  %376 = vmatpush1.msra.mxu0 0.0
  %377 = vmatprep.subr.mxu0 0.0
  %378 = vmatpush1.msra.mxu0 0.0
  %379 = vmatprep.subr.mxu0 0.0
  %380 = vmatpush1.msra.mxu0 0.0
  %381 = vmatprep.subr.mxu0 0.0
  %382 = vmatpush1.msra.mxu0 0.0
  %383 = vmatprep.subr.mxu0 0.0
  %384 = vmatpush1.msra.mxu0 0.0
  %385 = vmatprep.subr.mxu0 0.0
  %386 = vmatpush1.msra.mxu0 0.0
  %387 = vmatprep.subr.mxu0 0.0
  %388 = vmatpush1.msra.mxu0 0.0
  %389 = vmatprep.subr.mxu0 0.0
  %390 = vmatpush1.msra.mxu0 0.0
  %391 = vmatprep.subr.mxu0 0.0
  %392 = vmatpush1.msra.mxu0 %v206
  %393 = vmatprep.subr.mxu0 0.0
  %394 = vmatpush1.msra.mxu0 %v205
  %395 = vmatprep.subr.mxu0 0.0
  %396 = vmatpush1.msra.mxu0 %v204
  %397 = vmatprep.subr.mxu0 0.0
  %398 = vmatpush1.msra.mxu0 %v203
  %399 = vmatprep.subr.mxu0 0.0
  %400 = vmatpush1.msra.mxu0 %v202
  %401 = vmatprep.subr.mxu0 0.0
  %402 = vmatpush1.msra.mxu0 %v201
  %403 = vmatprep.subr.mxu0 0.0
  %404 = vmatpush1.msra.mxu0 %v200
  %405 = vmatprep.subr.mxu0 0.0
  %406 = vmatpush1.msra.mxu0 %v199
  %407 = vmatprep.subr.mxu0 0.0
  %408 = vmatpush2.msra.mxu0 0.0
  %409 = vmatprep.subr.mxu0 0.0
  %410 = vmatpush2.msra.mxu0 0.0
  %411 = vmatprep.subr.mxu0 0.0
  %412 = vmatpush2.msra.mxu0 0.0
  %413 = vmatprep.subr.mxu0 0.0
  %414 = vmatpush2.msra.mxu0 0.0
  %415 = vmatprep.subr.mxu0 0.0
  %416 = vmatpush2.msra.mxu0 0.0
  %417 = vmatprep.subr.mxu0 0.0
  %418 = vmatpush2.msra.mxu0 0.0
  %419 = vmatprep.subr.mxu0 0.0
  %420 = vmatpush2.msra.mxu0 0.0
  %421 = vmatprep.subr.mxu0 0.0
  %422 = vmatpush2.msra.mxu0 0.0
  %423 = vmatprep.subr.mxu0 0.0
  %424 = vmatpush2.msra.mxu0 0.0
  %425 = vmatprep.subr.mxu0 0.0
  %426 = vmatpush2.msra.mxu0 0.0
  %427 = vmatprep.subr.mxu0 0.0
  %428 = vmatpush2.msra.mxu0 0.0
  %429 = vmatprep.subr.mxu0 0.0
  %430 = vmatpush2.msra.mxu0 0.0
  %431 = vmatprep.subr.mxu0 0.0
  %432 = vmatpush2.msra.mxu0 0.0
  %433 = vmatprep.subr.mxu0 0.0
  %434 = vmatpush2.msra.mxu0 0.0
  %435 = vmatprep.subr.mxu0 0.0
  %436 = vmatpush2.msra.mxu0 0.0
  %437 = vmatprep.subr.mxu0 0.0
  %438 = vmatpush2.msra.mxu0 0.0
  %439 = vmatprep.mubr.f32.mxu0 0.0
  %440 = vmatmul.mubr.f32.gmra.mxu0 %v370
  %v441 = vpop.f32.mrf.mxu0
  %v442 = vadd.f32 0.0, %v441
  %v443 = vpop.f32.mrf.mxu0
  %444 = vmatprep.mubr.f32.mxu0 0.0
  %445 = vmatmul.mubr.f32.gmra.mxu0 %v373
  %v446 = vpop.f32.mrf.mxu0
  %v447 = vadd.f32 0.0, %v446
  %v448 = vpop.f32.mrf.mxu0
  %449 = vdwg.mxu0
  %v451 = vsel %vm287, %v259, 0
  %v454 = vsel %vm287, %v260, 0
  %456 = vmatprep.subr.mxu0 0.0
  %457 = vmatpush1.msra.mxu0 0.0
  %458 = vmatprep.subr.mxu0 0.0
  %459 = vmatpush1.msra.mxu0 0.0
  %460 = vmatprep.subr.mxu0 0.0
  %461 = vmatpush1.msra.mxu0 0.0
  %462 = vmatprep.subr.mxu0 0.0
  %463 = vmatpush1.msra.mxu0 0.0
  %464 = vmatprep.subr.mxu0 0.0
  %465 = vmatpush1.msra.mxu0 0.0
  %466 = vmatprep.subr.mxu0 0.0
  %467 = vmatpush1.msra.mxu0 0.0
  %468 = vmatprep.subr.mxu0 0.0
  %469 = vmatpush1.msra.mxu0 0.0
  %470 = vmatprep.subr.mxu0 0.0
  %471 = vmatpush1.msra.mxu0 0.0
  %472 = vmatprep.subr.mxu0 0.0
  %473 = vmatpush1.msra.mxu0 %v206
  %474 = vmatprep.subr.mxu0 0.0
  %475 = vmatpush1.msra.mxu0 %v205
  %476 = vmatprep.subr.mxu0 0.0
  %477 = vmatpush1.msra.mxu0 %v204
  %478 = vmatprep.subr.mxu0 0.0
  %479 = vmatpush1.msra.mxu0 %v203
  %480 = vmatprep.subr.mxu0 0.0
  %481 = vmatpush1.msra.mxu0 %v202
  %482 = vmatprep.subr.mxu0 0.0
  %483 = vmatpush1.msra.mxu0 %v201
  %484 = vmatprep.subr.mxu0 0.0
  %485 = vmatpush1.msra.mxu0 %v200
  %486 = vmatprep.subr.mxu0 0.0
  %487 = vmatpush1.msra.mxu0 %v199
  %488 = vmatprep.subr.mxu0 0.0
  %489 = vmatpush2.msra.mxu0 0.0
  %490 = vmatprep.subr.mxu0 0.0
  %491 = vmatpush2.msra.mxu0 0.0
  %492 = vmatprep.subr.mxu0 0.0
  %493 = vmatpush2.msra.mxu0 0.0
  %494 = vmatprep.subr.mxu0 0.0
  %495 = vmatpush2.msra.mxu0 0.0
  %496 = vmatprep.subr.mxu0 0.0
  %497 = vmatpush2.msra.mxu0 0.0
  %498 = vmatprep.subr.mxu0 0.0
  %499 = vmatpush2.msra.mxu0 0.0
  %500 = vmatprep.subr.mxu0 0.0
  %501 = vmatpush2.msra.mxu0 0.0
  %502 = vmatprep.subr.mxu0 0.0
  %503 = vmatpush2.msra.mxu0 0.0
  %504 = vmatprep.subr.mxu0 0.0
  %505 = vmatpush2.msra.mxu0 0.0
  %506 = vmatprep.subr.mxu0 0.0
  %507 = vmatpush2.msra.mxu0 0.0
  %508 = vmatprep.subr.mxu0 0.0
  %509 = vmatpush2.msra.mxu0 0.0
  %510 = vmatprep.subr.mxu0 0.0
  %511 = vmatpush2.msra.mxu0 0.0
  %512 = vmatprep.subr.mxu0 0.0
  %513 = vmatpush2.msra.mxu0 0.0
  %514 = vmatprep.subr.mxu0 0.0
  %515 = vmatpush2.msra.mxu0 0.0
  %516 = vmatprep.subr.mxu0 0.0
  %517 = vmatpush2.msra.mxu0 0.0
  %518 = vmatprep.subr.mxu0 0.0
  %519 = vmatpush2.msra.mxu0 0.0
  %520 = vmatprep.mubr.f32.mxu0 0.0
  %521 = vmatmul.mubr.f32.gmra.mxu0 %v451
  %v522 = vpop.f32.mrf.mxu0
  %v523 = vadd.f32 0.0, %v522
  %v524 = vpop.f32.mrf.mxu0
  %525 = vmatprep.mubr.f32.mxu0 0.0
  %526 = vmatmul.mubr.f32.gmra.mxu0 %v454
  %v527 = vpop.f32.mrf.mxu0
  %v528 = vadd.f32 0.0, %v527
  %v529 = vpop.f32.mrf.mxu0
  %530 = vdwg.mxu0
  %v532 = vsel %vm287, %v261, 0
  %v535 = vsel %vm287, %v262, 0
  %537 = vmatprep.subr.mxu0 0.0
  %538 = vmatpush1.msra.mxu0 0.0
  %539 = vmatprep.subr.mxu0 0.0
  %540 = vmatpush1.msra.mxu0 0.0
  %541 = vmatprep.subr.mxu0 0.0
  %542 = vmatpush1.msra.mxu0 0.0
  %543 = vmatprep.subr.mxu0 0.0
  %544 = vmatpush1.msra.mxu0 0.0
  %545 = vmatprep.subr.mxu0 0.0
  %546 = vmatpush1.msra.mxu0 0.0
  %547 = vmatprep.subr.mxu0 0.0
  %548 = vmatpush1.msra.mxu0 0.0
  %549 = vmatprep.subr.mxu0 0.0
  %550 = vmatpush1.msra.mxu0 0.0
  %551 = vmatprep.subr.mxu0 0.0
  %552 = vmatpush1.msra.mxu0 0.0
  %553 = vmatprep.subr.mxu0 0.0
  %554 = vmatpush1.msra.mxu0 %v206
  %555 = vmatprep.subr.mxu0 0.0
  %556 = vmatpush1.msra.mxu0 %v205
  %557 = vmatprep.subr.mxu0 0.0
  %558 = vmatpush1.msra.mxu0 %v204
  %559 = vmatprep.subr.mxu0 0.0
  %560 = vmatpush1.msra.mxu0 %v203
  %561 = vmatprep.subr.mxu0 0.0
  %562 = vmatpush1.msra.mxu0 %v202
  %563 = vmatprep.subr.mxu0 0.0
  %564 = vmatpush1.msra.mxu0 %v201
  %565 = vmatprep.subr.mxu0 0.0
  %566 = vmatpush1.msra.mxu0 %v200
  %567 = vmatprep.subr.mxu0 0.0
  %568 = vmatpush1.msra.mxu0 %v199
  %569 = vmatprep.subr.mxu0 0.0
  %570 = vmatpush2.msra.mxu0 0.0
  %571 = vmatprep.subr.mxu0 0.0
  %572 = vmatpush2.msra.mxu0 0.0
  %573 = vmatprep.subr.mxu0 0.0
  %574 = vmatpush2.msra.mxu0 0.0
  %575 = vmatprep.subr.mxu0 0.0
  %576 = vmatpush2.msra.mxu0 0.0
  %577 = vmatprep.subr.mxu0 0.0
  %578 = vmatpush2.msra.mxu0 0.0
  %579 = vmatprep.subr.mxu0 0.0
  %580 = vmatpush2.msra.mxu0 0.0
  %581 = vmatprep.subr.mxu0 0.0
  %582 = vmatpush2.msra.mxu0 0.0
  %583 = vmatprep.subr.mxu0 0.0
  %584 = vmatpush2.msra.mxu0 0.0
  %585 = vmatprep.subr.mxu0 0.0
  %586 = vmatpush2.msra.mxu0 0.0
  %587 = vmatprep.subr.mxu0 0.0
  %588 = vmatpush2.msra.mxu0 0.0
  %589 = vmatprep.subr.mxu0 0.0
  %590 = vmatpush2.msra.mxu0 0.0
  %591 = vmatprep.subr.mxu0 0.0
  %592 = vmatpush2.msra.mxu0 0.0
  %593 = vmatprep.subr.mxu0 0.0
  %594 = vmatpush2.msra.mxu0 0.0
  %595 = vmatprep.subr.mxu0 0.0
  %596 = vmatpush2.msra.mxu0 0.0
  %597 = vmatprep.subr.mxu0 0.0
  %598 = vmatpush2.msra.mxu0 0.0
  %599 = vmatprep.subr.mxu0 0.0
  %600 = vmatpush2.msra.mxu0 0.0
  %601 = vmatprep.mubr.f32.mxu0 0.0
  %602 = vmatmul.mubr.f32.gmra.mxu0 %v532
  %v603 = vpop.f32.mrf.mxu0
  %v604 = vadd.f32 0.0, %v603
  %v605 = vpop.f32.mrf.mxu0
  %606 = vmatprep.mubr.f32.mxu0 0.0
  %607 = vmatmul.mubr.f32.gmra.mxu0 %v535
  %v608 = vpop.f32.mrf.mxu0
  %v609 = vadd.f32 0.0, %v608
  %v610 = vpop.f32.mrf.mxu0
  %611 = vdwg.mxu0
  %v613 = vsel %vm287, %v263, 0
  %v616 = vsel %vm287, %v264, 0
  %618 = vmatprep.subr.mxu0 0.0
  %619 = vmatpush1.msra.mxu0 0.0
  %620 = vmatprep.subr.mxu0 0.0
  %621 = vmatpush1.msra.mxu0 0.0
  %622 = vmatprep.subr.mxu0 0.0
  %623 = vmatpush1.msra.mxu0 0.0
  %624 = vmatprep.subr.mxu0 0.0
  %625 = vmatpush1.msra.mxu0 0.0
  %626 = vmatprep.subr.mxu0 0.0
  %627 = vmatpush1.msra.mxu0 0.0
  %628 = vmatprep.subr.mxu0 0.0
  %629 = vmatpush1.msra.mxu0 0.0
  %630 = vmatprep.subr.mxu0 0.0
  %631 = vmatpush1.msra.mxu0 0.0
  %632 = vmatprep.subr.mxu0 0.0
  %633 = vmatpush1.msra.mxu0 0.0
  %634 = vmatprep.subr.mxu0 0.0
  %635 = vmatpush1.msra.mxu0 %v206
  %636 = vmatprep.subr.mxu0 0.0
  %637 = vmatpush1.msra.mxu0 %v205
  %638 = vmatprep.subr.mxu0 0.0
  %639 = vmatpush1.msra.mxu0 %v204
  %640 = vmatprep.subr.mxu0 0.0
  %641 = vmatpush1.msra.mxu0 %v203
  %642 = vmatprep.subr.mxu0 0.0
  %643 = vmatpush1.msra.mxu0 %v202
  %644 = vmatprep.subr.mxu0 0.0
  %645 = vmatpush1.msra.mxu0 %v201
  %646 = vmatprep.subr.mxu0 0.0
  %647 = vmatpush1.msra.mxu0 %v200
  %648 = vmatprep.subr.mxu0 0.0
  %649 = vmatpush1.msra.mxu0 %v199
  %650 = vmatprep.subr.mxu0 0.0
  %651 = vmatpush2.msra.mxu0 0.0
  %652 = vmatprep.subr.mxu0 0.0
  %653 = vmatpush2.msra.mxu0 0.0
  %654 = vmatprep.subr.mxu0 0.0
  %655 = vmatpush2.msra.mxu0 0.0
  %656 = vmatprep.subr.mxu0 0.0
  %657 = vmatpush2.msra.mxu0 0.0
  %658 = vmatprep.subr.mxu0 0.0
  %659 = vmatpush2.msra.mxu0 0.0
  %660 = vmatprep.subr.mxu0 0.0
  %661 = vmatpush2.msra.mxu0 0.0
  %662 = vmatprep.subr.mxu0 0.0
  %663 = vmatpush2.msra.mxu0 0.0
  %664 = vmatprep.subr.mxu0 0.0
  %665 = vmatpush2.msra.mxu0 0.0
  %666 = vmatprep.subr.mxu0 0.0
  %667 = vmatpush2.msra.mxu0 0.0
  %668 = vmatprep.subr.mxu0 0.0
  %669 = vmatpush2.msra.mxu0 0.0
  %670 = vmatprep.subr.mxu0 0.0
  %671 = vmatpush2.msra.mxu0 0.0
  %672 = vmatprep.subr.mxu0 0.0
  %673 = vmatpush2.msra.mxu0 0.0
  %674 = vmatprep.subr.mxu0 0.0
  %675 = vmatpush2.msra.mxu0 0.0
  %676 = vmatprep.subr.mxu0 0.0
  %677 = vmatpush2.msra.mxu0 0.0
  %678 = vmatprep.subr.mxu0 0.0
  %679 = vmatpush2.msra.mxu0 0.0
  %680 = vmatprep.subr.mxu0 0.0
  %681 = vmatpush2.msra.mxu0 0.0
  %682 = vmatprep.mubr.f32.mxu0 0.0
  %683 = vmatmul.mubr.f32.gmra.mxu0 %v613
  %v684 = vpop.f32.mrf.mxu0
  %v685 = vadd.f32 0.0, %v684
  %v686 = vpop.f32.mrf.mxu0
  %687 = vmatprep.mubr.f32.mxu0 0.0
  %688 = vmatmul.mubr.f32.gmra.mxu0 %v616
  %v689 = vpop.f32.mrf.mxu0
  %v690 = vadd.f32 0.0, %v689
  %v691 = vpop.f32.mrf.mxu0
  %692 = vdwg.mxu0
  %v694 = vsel %vm287, %v265, 0
  %v697 = vsel %vm287, %v266, 0
  %699 = vmatprep.subr.mxu0 0.0
  %700 = vmatpush1.msra.mxu0 0.0
  %701 = vmatprep.subr.mxu0 0.0
  %702 = vmatpush1.msra.mxu0 0.0
  %703 = vmatprep.subr.mxu0 0.0
  %704 = vmatpush1.msra.mxu0 0.0
  %705 = vmatprep.subr.mxu0 0.0
  %706 = vmatpush1.msra.mxu0 0.0
  %707 = vmatprep.subr.mxu0 0.0
  %708 = vmatpush1.msra.mxu0 0.0
  %709 = vmatprep.subr.mxu0 0.0
  %710 = vmatpush1.msra.mxu0 0.0
  %711 = vmatprep.subr.mxu0 0.0
  %712 = vmatpush1.msra.mxu0 0.0
  %713 = vmatprep.subr.mxu0 0.0
  %714 = vmatpush1.msra.mxu0 0.0
  %715 = vmatprep.subr.mxu0 0.0
  %716 = vmatpush1.msra.mxu0 %v206
  %717 = vmatprep.subr.mxu0 0.0
  %718 = vmatpush1.msra.mxu0 %v205
  %719 = vmatprep.subr.mxu0 0.0
  %720 = vmatpush1.msra.mxu0 %v204
  %721 = vmatprep.subr.mxu0 0.0
  %722 = vmatpush1.msra.mxu0 %v203
  %723 = vmatprep.subr.mxu0 0.0
  %724 = vmatpush1.msra.mxu0 %v202
  %725 = vmatprep.subr.mxu0 0.0
  %726 = vmatpush1.msra.mxu0 %v201
  %727 = vmatprep.subr.mxu0 0.0
  %728 = vmatpush1.msra.mxu0 %v200
  %729 = vmatprep.subr.mxu0 0.0
  %730 = vmatpush1.msra.mxu0 %v199
  %731 = vmatprep.subr.mxu0 0.0
  %732 = vmatpush2.msra.mxu0 0.0
  %733 = vmatprep.subr.mxu0 0.0
  %734 = vmatpush2.msra.mxu0 0.0
  %735 = vmatprep.subr.mxu0 0.0
  %736 = vmatpush2.msra.mxu0 0.0
  %737 = vmatprep.subr.mxu0 0.0
  %738 = vmatpush2.msra.mxu0 0.0
  %739 = vmatprep.subr.mxu0 0.0
  %740 = vmatpush2.msra.mxu0 0.0
  %741 = vmatprep.subr.mxu0 0.0
  %742 = vmatpush2.msra.mxu0 0.0
  %743 = vmatprep.subr.mxu0 0.0
  %744 = vmatpush2.msra.mxu0 0.0
  %745 = vmatprep.subr.mxu0 0.0
  %746 = vmatpush2.msra.mxu0 0.0
  %747 = vmatprep.subr.mxu0 0.0
  %748 = vmatpush2.msra.mxu0 0.0
  %749 = vmatprep.subr.mxu0 0.0
  %750 = vmatpush2.msra.mxu0 0.0
  %751 = vmatprep.subr.mxu0 0.0
  %752 = vmatpush2.msra.mxu0 0.0
  %753 = vmatprep.subr.mxu0 0.0
  %754 = vmatpush2.msra.mxu0 0.0
  %755 = vmatprep.subr.mxu0 0.0
  %756 = vmatpush2.msra.mxu0 0.0
  %757 = vmatprep.subr.mxu0 0.0
  %758 = vmatpush2.msra.mxu0 0.0
  %759 = vmatprep.subr.mxu0 0.0
  %760 = vmatpush2.msra.mxu0 0.0
  %761 = vmatprep.subr.mxu0 0.0
  %762 = vmatpush2.msra.mxu0 0.0
  %763 = vmatprep.mubr.f32.mxu0 0.0
  %764 = vmatmul.mubr.f32.gmra.mxu0 %v694
  %v765 = vpop.f32.mrf.mxu0
  %v766 = vadd.f32 0.0, %v765
  %v767 = vpop.f32.mrf.mxu0
  %768 = vmatprep.mubr.f32.mxu0 0.0
  %769 = vmatmul.mubr.f32.gmra.mxu0 %v697
  %v770 = vpop.f32.mrf.mxu0
  %v771 = vadd.f32 0.0, %v770
  %v772 = vpop.f32.mrf.mxu0
  %773 = vdwg.mxu0
  %v775 = vsel %vm287, %v267, 0
  %v778 = vsel %vm287, %v268, 0
  %780 = vmatprep.subr.mxu0 0.0
  %781 = vmatpush1.msra.mxu0 0.0
  %782 = vmatprep.subr.mxu0 0.0
  %783 = vmatpush1.msra.mxu0 0.0
  %784 = vmatprep.subr.mxu0 0.0
  %785 = vmatpush1.msra.mxu0 0.0
  %786 = vmatprep.subr.mxu0 0.0
  %787 = vmatpush1.msra.mxu0 0.0
  %788 = vmatprep.subr.mxu0 0.0
  %789 = vmatpush1.msra.mxu0 0.0
  %790 = vmatprep.subr.mxu0 0.0
  %791 = vmatpush1.msra.mxu0 0.0
  %792 = vmatprep.subr.mxu0 0.0
  %793 = vmatpush1.msra.mxu0 0.0
  %794 = vmatprep.subr.mxu0 0.0
  %795 = vmatpush1.msra.mxu0 0.0
  %796 = vmatprep.subr.mxu0 0.0
  %797 = vmatpush1.msra.mxu0 %v206
  %798 = vmatprep.subr.mxu0 0.0
  %799 = vmatpush1.msra.mxu0 %v205
  %800 = vmatprep.subr.mxu0 0.0
  %801 = vmatpush1.msra.mxu0 %v204
  %802 = vmatprep.subr.mxu0 0.0
  %803 = vmatpush1.msra.mxu0 %v203
  %804 = vmatprep.subr.mxu0 0.0
  %805 = vmatpush1.msra.mxu0 %v202
  %806 = vmatprep.subr.mxu0 0.0
  %807 = vmatpush1.msra.mxu0 %v201
  %808 = vmatprep.subr.mxu0 0.0
  %809 = vmatpush1.msra.mxu0 %v200
  %810 = vmatprep.subr.mxu0 0.0
  %811 = vmatpush1.msra.mxu0 %v199
  %812 = vmatprep.subr.mxu0 0.0
  %813 = vmatpush2.msra.mxu0 0.0
  %814 = vmatprep.subr.mxu0 0.0
  %815 = vmatpush2.msra.mxu0 0.0
  %816 = vmatprep.subr.mxu0 0.0
  %817 = vmatpush2.msra.mxu0 0.0
  %818 = vmatprep.subr.mxu0 0.0
  %819 = vmatpush2.msra.mxu0 0.0
  %820 = vmatprep.subr.mxu0 0.0
  %821 = vmatpush2.msra.mxu0 0.0
  %822 = vmatprep.subr.mxu0 0.0
  %823 = vmatpush2.msra.mxu0 0.0
  %824 = vmatprep.subr.mxu0 0.0
  %825 = vmatpush2.msra.mxu0 0.0
  %826 = vmatprep.subr.mxu0 0.0
  %827 = vmatpush2.msra.mxu0 0.0
  %828 = vmatprep.subr.mxu0 0.0
  %829 = vmatpush2.msra.mxu0 0.0
  %830 = vmatprep.subr.mxu0 0.0
  %831 = vmatpush2.msra.mxu0 0.0
  %832 = vmatprep.subr.mxu0 0.0
  %833 = vmatpush2.msra.mxu0 0.0
  %834 = vmatprep.subr.mxu0 0.0
  %835 = vmatpush2.msra.mxu0 0.0
  %836 = vmatprep.subr.mxu0 0.0
  %837 = vmatpush2.msra.mxu0 0.0
  %838 = vmatprep.subr.mxu0 0.0
  %839 = vmatpush2.msra.mxu0 0.0
  %840 = vmatprep.subr.mxu0 0.0
  %841 = vmatpush2.msra.mxu0 0.0
  %842 = vmatprep.subr.mxu0 0.0
  %843 = vmatpush2.msra.mxu0 0.0
  %844 = vmatprep.mubr.f32.mxu0 0.0
  %845 = vmatmul.mubr.f32.gmra.mxu0 %v775
  %v846 = vpop.f32.mrf.mxu0
  %v847 = vadd.f32 0.0, %v846
  %v848 = vpop.f32.mrf.mxu0
  %849 = vmatprep.mubr.f32.mxu0 0.0
  %850 = vmatmul.mubr.f32.gmra.mxu0 %v778
  %v851 = vpop.f32.mrf.mxu0
  %v852 = vadd.f32 0.0, %v851
  %v853 = vpop.f32.mrf.mxu0
  %854 = vdwg.mxu0
  %v856 = vsel %vm287, %v269, 0
  %v859 = vsel %vm287, %v270, 0
  %861 = vmatprep.subr.mxu0 0.0
  %862 = vmatpush1.msra.mxu0 0.0
  %863 = vmatprep.subr.mxu0 0.0
  %864 = vmatpush1.msra.mxu0 0.0
  %865 = vmatprep.subr.mxu0 0.0
  %866 = vmatpush1.msra.mxu0 0.0
  %867 = vmatprep.subr.mxu0 0.0
  %868 = vmatpush1.msra.mxu0 0.0
  %869 = vmatprep.subr.mxu0 0.0
  %870 = vmatpush1.msra.mxu0 0.0
  %871 = vmatprep.subr.mxu0 0.0
  %872 = vmatpush1.msra.mxu0 0.0
  %873 = vmatprep.subr.mxu0 0.0
  %874 = vmatpush1.msra.mxu0 0.0
  %875 = vmatprep.subr.mxu0 0.0
  %876 = vmatpush1.msra.mxu0 0.0
  %877 = vmatprep.subr.mxu0 0.0
  %878 = vmatpush1.msra.mxu0 %v206
  %879 = vmatprep.subr.mxu0 0.0
  %880 = vmatpush1.msra.mxu0 %v205
  %881 = vmatprep.subr.mxu0 0.0
  %882 = vmatpush1.msra.mxu0 %v204
  %883 = vmatprep.subr.mxu0 0.0
  %884 = vmatpush1.msra.mxu0 %v203
  %885 = vmatprep.subr.mxu0 0.0
  %886 = vmatpush1.msra.mxu0 %v202
  %887 = vmatprep.subr.mxu0 0.0
  %888 = vmatpush1.msra.mxu0 %v201
  %889 = vmatprep.subr.mxu0 0.0
  %890 = vmatpush1.msra.mxu0 %v200
  %891 = vmatprep.subr.mxu0 0.0
  %892 = vmatpush1.msra.mxu0 %v199
  %893 = vmatprep.subr.mxu0 0.0
  %894 = vmatpush2.msra.mxu0 0.0
  %895 = vmatprep.subr.mxu0 0.0
  %896 = vmatpush2.msra.mxu0 0.0
  %897 = vmatprep.subr.mxu0 0.0
  %898 = vmatpush2.msra.mxu0 0.0
  %899 = vmatprep.subr.mxu0 0.0
  %900 = vmatpush2.msra.mxu0 0.0
  %901 = vmatprep.subr.mxu0 0.0
  %902 = vmatpush2.msra.mxu0 0.0
  %903 = vmatprep.subr.mxu0 0.0
  %904 = vmatpush2.msra.mxu0 0.0
  %905 = vmatprep.subr.mxu0 0.0
  %906 = vmatpush2.msra.mxu0 0.0
  %907 = vmatprep.subr.mxu0 0.0
  %908 = vmatpush2.msra.mxu0 0.0
  %909 = vmatprep.subr.mxu0 0.0
  %910 = vmatpush2.msra.mxu0 0.0
  %911 = vmatprep.subr.mxu0 0.0
  %912 = vmatpush2.msra.mxu0 0.0
  %913 = vmatprep.subr.mxu0 0.0
  %914 = vmatpush2.msra.mxu0 0.0
  %915 = vmatprep.subr.mxu0 0.0
  %916 = vmatpush2.msra.mxu0 0.0
  %917 = vmatprep.subr.mxu0 0.0
  %918 = vmatpush2.msra.mxu0 0.0
  %919 = vmatprep.subr.mxu0 0.0
  %920 = vmatpush2.msra.mxu0 0.0
  %921 = vmatprep.subr.mxu0 0.0
  %922 = vmatpush2.msra.mxu0 0.0
  %923 = vmatprep.subr.mxu0 0.0
  %924 = vmatpush2.msra.mxu0 0.0
  %925 = vmatprep.mubr.f32.mxu0 0.0
  %926 = vmatmul.mubr.f32.gmra.mxu0 %v856
  %v927 = vpop.f32.mrf.mxu0
  %v928 = vadd.f32 0.0, %v927
  %v929 = vpop.f32.mrf.mxu0
  %930 = vmatprep.mubr.f32.mxu0 0.0
  %931 = vmatmul.mubr.f32.gmra.mxu0 %v859
  %v932 = vpop.f32.mrf.mxu0
  %v933 = vadd.f32 0.0, %v932
  %v934 = vpop.f32.mrf.mxu0
  %935 = vdwg.mxu0
  %v937 = vsel %vm287, %v271, 0
  %v940 = vsel %vm287, %v272, 0
  %942 = vmatprep.subr.mxu0 0.0
  %943 = vmatpush1.msra.mxu0 0.0
  %944 = vmatprep.subr.mxu0 0.0
  %945 = vmatpush1.msra.mxu0 0.0
  %946 = vmatprep.subr.mxu0 0.0
  %947 = vmatpush1.msra.mxu0 0.0
  %948 = vmatprep.subr.mxu0 0.0
  %949 = vmatpush1.msra.mxu0 0.0
  %950 = vmatprep.subr.mxu0 0.0
  %951 = vmatpush1.msra.mxu0 0.0
  %952 = vmatprep.subr.mxu0 0.0
  %953 = vmatpush1.msra.mxu0 0.0
  %954 = vmatprep.subr.mxu0 0.0
  %955 = vmatpush1.msra.mxu0 0.0
  %956 = vmatprep.subr.mxu0 0.0
  %957 = vmatpush1.msra.mxu0 0.0
  %958 = vmatprep.subr.mxu0 0.0
  %959 = vmatpush1.msra.mxu0 %v206
  %960 = vmatprep.subr.mxu0 0.0
  %961 = vmatpush1.msra.mxu0 %v205
  %962 = vmatprep.subr.mxu0 0.0
  %963 = vmatpush1.msra.mxu0 %v204
  %964 = vmatprep.subr.mxu0 0.0
  %965 = vmatpush1.msra.mxu0 %v203
  %966 = vmatprep.subr.mxu0 0.0
  %967 = vmatpush1.msra.mxu0 %v202
  %968 = vmatprep.subr.mxu0 0.0
  %969 = vmatpush1.msra.mxu0 %v201
  %970 = vmatprep.subr.mxu0 0.0
  %971 = vmatpush1.msra.mxu0 %v200
  %972 = vmatprep.subr.mxu0 0.0
  %973 = vmatpush1.msra.mxu0 %v199
  %974 = vmatprep.subr.mxu0 0.0
  %975 = vmatpush2.msra.mxu0 0.0
  %976 = vmatprep.subr.mxu0 0.0
  %977 = vmatpush2.msra.mxu0 0.0
  %978 = vmatprep.subr.mxu0 0.0
  %979 = vmatpush2.msra.mxu0 0.0
  %980 = vmatprep.subr.mxu0 0.0
  %981 = vmatpush2.msra.mxu0 0.0
  %982 = vmatprep.subr.mxu0 0.0
  %983 = vmatpush2.msra.mxu0 0.0
  %984 = vmatprep.subr.mxu0 0.0
  %985 = vmatpush2.msra.mxu0 0.0
  %986 = vmatprep.subr.mxu0 0.0
  %987 = vmatpush2.msra.mxu0 0.0
  %988 = vmatprep.subr.mxu0 0.0
  %989 = vmatpush2.msra.mxu0 0.0
  %990 = vmatprep.subr.mxu0 0.0
  %991 = vmatpush2.msra.mxu0 0.0
  %992 = vmatprep.subr.mxu0 0.0
  %993 = vmatpush2.msra.mxu0 0.0
  %994 = vmatprep.subr.mxu0 0.0
  %995 = vmatpush2.msra.mxu0 0.0
  %996 = vmatprep.subr.mxu0 0.0
  %997 = vmatpush2.msra.mxu0 0.0
  %998 = vmatprep.subr.mxu0 0.0
  %999 = vmatpush2.msra.mxu0 0.0
  %1000 = vmatprep.subr.mxu0 0.0
  %1001 = vmatpush2.msra.mxu0 0.0
  %1002 = vmatprep.subr.mxu0 0.0
  %1003 = vmatpush2.msra.mxu0 0.0
  %1004 = vmatprep.subr.mxu0 0.0
  %1005 = vmatpush2.msra.mxu0 0.0
  %1006 = vmatprep.mubr.f32.mxu0 0.0
  %1007 = vmatmul.mubr.f32.gmra.mxu0 %v937
  %v1008 = vpop.f32.mrf.mxu0
  %v1009 = vadd.f32 0.0, %v1008
  %v1010 = vpop.f32.mrf.mxu0
  %1011 = vmatprep.mubr.f32.mxu0 0.0
  %1012 = vmatmul.mubr.f32.gmra.mxu0 %v940
  %v1013 = vpop.f32.mrf.mxu0
  %v1014 = vadd.f32 0.0, %v1013
  %v1015 = vpop.f32.mrf.mxu0
  %1016 = vdwg.mxu0
  %v1018 = vsel %vm287, %v273, 0
  %v1021 = vsel %vm287, %v274, 0
  %1023 = vmatprep.subr.mxu0 0.0
  %1024 = vmatpush1.msra.mxu0 0.0
  %1025 = vmatprep.subr.mxu0 0.0
  %1026 = vmatpush1.msra.mxu0 0.0
  %1027 = vmatprep.subr.mxu0 0.0
  %1028 = vmatpush1.msra.mxu0 0.0
  %1029 = vmatprep.subr.mxu0 0.0
  %1030 = vmatpush1.msra.mxu0 0.0
  %1031 = vmatprep.subr.mxu0 0.0
  %1032 = vmatpush1.msra.mxu0 0.0
  %1033 = vmatprep.subr.mxu0 0.0
  %1034 = vmatpush1.msra.mxu0 0.0
  %1035 = vmatprep.subr.mxu0 0.0
  %1036 = vmatpush1.msra.mxu0 0.0
  %1037 = vmatprep.subr.mxu0 0.0
  %1038 = vmatpush1.msra.mxu0 0.0
  %1039 = vmatprep.subr.mxu0 0.0
  %1040 = vmatpush1.msra.mxu0 %v206
  %1041 = vmatprep.subr.mxu0 0.0
  %1042 = vmatpush1.msra.mxu0 %v205
  %1043 = vmatprep.subr.mxu0 0.0
  %1044 = vmatpush1.msra.mxu0 %v204
  %1045 = vmatprep.subr.mxu0 0.0
  %1046 = vmatpush1.msra.mxu0 %v203
  %1047 = vmatprep.subr.mxu0 0.0
  %1048 = vmatpush1.msra.mxu0 %v202
  %1049 = vmatprep.subr.mxu0 0.0
  %1050 = vmatpush1.msra.mxu0 %v201
  %1051 = vmatprep.subr.mxu0 0.0
  %1052 = vmatpush1.msra.mxu0 %v200
  %1053 = vmatprep.subr.mxu0 0.0
  %1054 = vmatpush1.msra.mxu0 %v199
  %1055 = vmatprep.subr.mxu0 0.0
  %1056 = vmatpush2.msra.mxu0 0.0
  %1057 = vmatprep.subr.mxu0 0.0
  %1058 = vmatpush2.msra.mxu0 0.0
  %1059 = vmatprep.subr.mxu0 0.0
  %1060 = vmatpush2.msra.mxu0 0.0
  %1061 = vmatprep.subr.mxu0 0.0
  %1062 = vmatpush2.msra.mxu0 0.0
  %1063 = vmatprep.subr.mxu0 0.0
  %1064 = vmatpush2.msra.mxu0 0.0
  %1065 = vmatprep.subr.mxu0 0.0
  %1066 = vmatpush2.msra.mxu0 0.0
  %1067 = vmatprep.subr.mxu0 0.0
  %1068 = vmatpush2.msra.mxu0 0.0
  %1069 = vmatprep.subr.mxu0 0.0
  %1070 = vmatpush2.msra.mxu0 0.0
  %1071 = vmatprep.subr.mxu0 0.0
  %1072 = vmatpush2.msra.mxu0 0.0
  %1073 = vmatprep.subr.mxu0 0.0
  %1074 = vmatpush2.msra.mxu0 0.0
  %1075 = vmatprep.subr.mxu0 0.0
  %1076 = vmatpush2.msra.mxu0 0.0
  %1077 = vmatprep.subr.mxu0 0.0
  %1078 = vmatpush2.msra.mxu0 0.0
  %1079 = vmatprep.subr.mxu0 0.0
  %1080 = vmatpush2.msra.mxu0 0.0
  %1081 = vmatprep.subr.mxu0 0.0
  %1082 = vmatpush2.msra.mxu0 0.0
  %1083 = vmatprep.subr.mxu0 0.0
  %1084 = vmatpush2.msra.mxu0 0.0
  %1085 = vmatprep.subr.mxu0 0.0
  %1086 = vmatpush2.msra.mxu0 0.0
  %1087 = vmatprep.mubr.f32.mxu0 0.0
  %1088 = vmatmul.mubr.f32.gmra.mxu0 %v1018
  %v1089 = vpop.f32.mrf.mxu0
  %v1090 = vadd.f32 0.0, %v1089
  %v1091 = vpop.f32.mrf.mxu0
  %1092 = vmatprep.mubr.f32.mxu0 0.0
  %1093 = vmatmul.mubr.f32.gmra.mxu0 %v1021
  %v1094 = vpop.f32.mrf.mxu0
  %v1095 = vadd.f32 0.0, %v1094
  %v1096 = vpop.f32.mrf.mxu0
  %1097 = vdwg.mxu0
  %v1099 = vsel %vm287, %v275, 0
  %v1102 = vsel %vm287, %v276, 0
  %1104 = vmatprep.subr.mxu0 0.0
  %1105 = vmatpush1.msra.mxu0 0.0
  %1106 = vmatprep.subr.mxu0 0.0
  %1107 = vmatpush1.msra.mxu0 0.0
  %1108 = vmatprep.subr.mxu0 0.0
  %1109 = vmatpush1.msra.mxu0 0.0
  %1110 = vmatprep.subr.mxu0 0.0
  %1111 = vmatpush1.msra.mxu0 0.0
  %1112 = vmatprep.subr.mxu0 0.0
  %1113 = vmatpush1.msra.mxu0 0.0
  %1114 = vmatprep.subr.mxu0 0.0
  %1115 = vmatpush1.msra.mxu0 0.0
  %1116 = vmatprep.subr.mxu0 0.0
  %1117 = vmatpush1.msra.mxu0 0.0
  %1118 = vmatprep.subr.mxu0 0.0
  %1119 = vmatpush1.msra.mxu0 0.0
  %1120 = vmatprep.subr.mxu0 0.0
  %1121 = vmatpush1.msra.mxu0 %v206
  %1122 = vmatprep.subr.mxu0 0.0
  %1123 = vmatpush1.msra.mxu0 %v205
  %1124 = vmatprep.subr.mxu0 0.0
  %1125 = vmatpush1.msra.mxu0 %v204
  %1126 = vmatprep.subr.mxu0 0.0
  %1127 = vmatpush1.msra.mxu0 %v203
  %1128 = vmatprep.subr.mxu0 0.0
  %1129 = vmatpush1.msra.mxu0 %v202
  %1130 = vmatprep.subr.mxu0 0.0
  %1131 = vmatpush1.msra.mxu0 %v201
  %1132 = vmatprep.subr.mxu0 0.0
  %1133 = vmatpush1.msra.mxu0 %v200
  %1134 = vmatprep.subr.mxu0 0.0
  %1135 = vmatpush1.msra.mxu0 %v199
  %1136 = vmatprep.subr.mxu0 0.0
  %1137 = vmatpush2.msra.mxu0 0.0
  %1138 = vmatprep.subr.mxu0 0.0
  %1139 = vmatpush2.msra.mxu0 0.0
  %1140 = vmatprep.subr.mxu0 0.0
  %1141 = vmatpush2.msra.mxu0 0.0
  %1142 = vmatprep.subr.mxu0 0.0
  %1143 = vmatpush2.msra.mxu0 0.0
  %1144 = vmatprep.subr.mxu0 0.0
  %1145 = vmatpush2.msra.mxu0 0.0
  %1146 = vmatprep.subr.mxu0 0.0
  %1147 = vmatpush2.msra.mxu0 0.0
  %1148 = vmatprep.subr.mxu0 0.0
  %1149 = vmatpush2.msra.mxu0 0.0
  %1150 = vmatprep.subr.mxu0 0.0
  %1151 = vmatpush2.msra.mxu0 0.0
  %1152 = vmatprep.subr.mxu0 0.0
  %1153 = vmatpush2.msra.mxu0 0.0
  %1154 = vmatprep.subr.mxu0 0.0
  %1155 = vmatpush2.msra.mxu0 0.0
  %1156 = vmatprep.subr.mxu0 0.0
  %1157 = vmatpush2.msra.mxu0 0.0
  %1158 = vmatprep.subr.mxu0 0.0
  %1159 = vmatpush2.msra.mxu0 0.0
  %1160 = vmatprep.subr.mxu0 0.0
  %1161 = vmatpush2.msra.mxu0 0.0
  %1162 = vmatprep.subr.mxu0 0.0
  %1163 = vmatpush2.msra.mxu0 0.0
  %1164 = vmatprep.subr.mxu0 0.0
  %1165 = vmatpush2.msra.mxu0 0.0
  %1166 = vmatprep.subr.mxu0 0.0
  %1167 = vmatpush2.msra.mxu0 0.0
  %1168 = vmatprep.mubr.f32.mxu0 0.0
  %1169 = vmatmul.mubr.f32.gmra.mxu0 %v1099
  %v1170 = vpop.f32.mrf.mxu0
  %v1171 = vadd.f32 0.0, %v1170
  %v1172 = vpop.f32.mrf.mxu0
  %1173 = vmatprep.mubr.f32.mxu0 0.0
  %1174 = vmatmul.mubr.f32.gmra.mxu0 %v1102
  %v1175 = vpop.f32.mrf.mxu0
  %v1176 = vadd.f32 0.0, %v1175
  %v1177 = vpop.f32.mrf.mxu0
  %1178 = vdwg.mxu0
  %v1180 = vsel %vm287, %v277, 0
  %v1183 = vsel %vm287, %v278, 0
  %1185 = vmatprep.subr.mxu0 0.0
  %1186 = vmatpush1.msra.mxu0 0.0
  %1187 = vmatprep.subr.mxu0 0.0
  %1188 = vmatpush1.msra.mxu0 0.0
  %1189 = vmatprep.subr.mxu0 0.0
  %1190 = vmatpush1.msra.mxu0 0.0
  %1191 = vmatprep.subr.mxu0 0.0
  %1192 = vmatpush1.msra.mxu0 0.0
  %1193 = vmatprep.subr.mxu0 0.0
  %1194 = vmatpush1.msra.mxu0 0.0
  %1195 = vmatprep.subr.mxu0 0.0
  %1196 = vmatpush1.msra.mxu0 0.0
  %1197 = vmatprep.subr.mxu0 0.0
  %1198 = vmatpush1.msra.mxu0 0.0
  %1199 = vmatprep.subr.mxu0 0.0
  %1200 = vmatpush1.msra.mxu0 0.0
  %1201 = vmatprep.subr.mxu0 0.0
  %1202 = vmatpush1.msra.mxu0 %v206
  %1203 = vmatprep.subr.mxu0 0.0
  %1204 = vmatpush1.msra.mxu0 %v205
  %1205 = vmatprep.subr.mxu0 0.0
  %1206 = vmatpush1.msra.mxu0 %v204
  %1207 = vmatprep.subr.mxu0 0.0
  %1208 = vmatpush1.msra.mxu0 %v203
  %1209 = vmatprep.subr.mxu0 0.0
  %1210 = vmatpush1.msra.mxu0 %v202
  %1211 = vmatprep.subr.mxu0 0.0
  %1212 = vmatpush1.msra.mxu0 %v201
  %1213 = vmatprep.subr.mxu0 0.0
  %1214 = vmatpush1.msra.mxu0 %v200
  %1215 = vmatprep.subr.mxu0 0.0
  %1216 = vmatpush1.msra.mxu0 %v199
  %1217 = vmatprep.subr.mxu0 0.0
  %1218 = vmatpush2.msra.mxu0 0.0
  %1219 = vmatprep.subr.mxu0 0.0
  %1220 = vmatpush2.msra.mxu0 0.0
  %1221 = vmatprep.subr.mxu0 0.0
  %1222 = vmatpush2.msra.mxu0 0.0
  %1223 = vmatprep.subr.mxu0 0.0
  %1224 = vmatpush2.msra.mxu0 0.0
  %1225 = vmatprep.subr.mxu0 0.0
  %1226 = vmatpush2.msra.mxu0 0.0
  %1227 = vmatprep.subr.mxu0 0.0
  %1228 = vmatpush2.msra.mxu0 0.0
  %1229 = vmatprep.subr.mxu0 0.0
  %1230 = vmatpush2.msra.mxu0 0.0
  %1231 = vmatprep.subr.mxu0 0.0
  %1232 = vmatpush2.msra.mxu0 0.0
  %1233 = vmatprep.subr.mxu0 0.0
  %1234 = vmatpush2.msra.mxu0 0.0
  %1235 = vmatprep.subr.mxu0 0.0
  %1236 = vmatpush2.msra.mxu0 0.0
  %1237 = vmatprep.subr.mxu0 0.0
  %1238 = vmatpush2.msra.mxu0 0.0
  %1239 = vmatprep.subr.mxu0 0.0
  %1240 = vmatpush2.msra.mxu0 0.0
  %1241 = vmatprep.subr.mxu0 0.0
  %1242 = vmatpush2.msra.mxu0 0.0
  %1243 = vmatprep.subr.mxu0 0.0
  %1244 = vmatpush2.msra.mxu0 0.0
  %1245 = vmatprep.subr.mxu0 0.0
  %1246 = vmatpush2.msra.mxu0 0.0
  %1247 = vmatprep.subr.mxu0 0.0
  %1248 = vmatpush2.msra.mxu0 0.0
  %1249 = vmatprep.mubr.f32.mxu0 0.0
  %1250 = vmatmul.mubr.f32.gmra.mxu0 %v1180
  %v1251 = vpop.f32.mrf.mxu0
  %v1252 = vadd.f32 0.0, %v1251
  %v1253 = vpop.f32.mrf.mxu0
  %1254 = vmatprep.mubr.f32.mxu0 0.0
  %1255 = vmatmul.mubr.f32.gmra.mxu0 %v1183
  %v1256 = vpop.f32.mrf.mxu0
  %v1257 = vadd.f32 0.0, %v1256
  %v1258 = vpop.f32.mrf.mxu0
  %1259 = vdwg.mxu0
  %v1261 = vsel %vm287, %v279, 0
  %v1264 = vsel %vm287, %v280, 0
  %1266 = vmatprep.subr.mxu0 0.0
  %1267 = vmatpush1.msra.mxu0 0.0
  %1268 = vmatprep.subr.mxu0 0.0
  %1269 = vmatpush1.msra.mxu0 0.0
  %1270 = vmatprep.subr.mxu0 0.0
  %1271 = vmatpush1.msra.mxu0 0.0
  %1272 = vmatprep.subr.mxu0 0.0
  %1273 = vmatpush1.msra.mxu0 0.0
  %1274 = vmatprep.subr.mxu0 0.0
  %1275 = vmatpush1.msra.mxu0 0.0
  %1276 = vmatprep.subr.mxu0 0.0
  %1277 = vmatpush1.msra.mxu0 0.0
  %1278 = vmatprep.subr.mxu0 0.0
  %1279 = vmatpush1.msra.mxu0 0.0
  %1280 = vmatprep.subr.mxu0 0.0
  %1281 = vmatpush1.msra.mxu0 0.0
  %1282 = vmatprep.subr.mxu0 0.0
  %1283 = vmatpush1.msra.mxu0 %v206
  %1284 = vmatprep.subr.mxu0 0.0
  %1285 = vmatpush1.msra.mxu0 %v205
  %1286 = vmatprep.subr.mxu0 0.0
  %1287 = vmatpush1.msra.mxu0 %v204
  %1288 = vmatprep.subr.mxu0 0.0
  %1289 = vmatpush1.msra.mxu0 %v203
  %1290 = vmatprep.subr.mxu0 0.0
  %1291 = vmatpush1.msra.mxu0 %v202
  %1292 = vmatprep.subr.mxu0 0.0
  %1293 = vmatpush1.msra.mxu0 %v201
  %1294 = vmatprep.subr.mxu0 0.0
  %1295 = vmatpush1.msra.mxu0 %v200
  %1296 = vmatprep.subr.mxu0 0.0
  %1297 = vmatpush1.msra.mxu0 %v199
  %1298 = vmatprep.subr.mxu0 0.0
  %1299 = vmatpush2.msra.mxu0 0.0
  %1300 = vmatprep.subr.mxu0 0.0
  %1301 = vmatpush2.msra.mxu0 0.0
  %1302 = vmatprep.subr.mxu0 0.0
  %1303 = vmatpush2.msra.mxu0 0.0
  %1304 = vmatprep.subr.mxu0 0.0
  %1305 = vmatpush2.msra.mxu0 0.0
  %1306 = vmatprep.subr.mxu0 0.0
  %1307 = vmatpush2.msra.mxu0 0.0
  %1308 = vmatprep.subr.mxu0 0.0
  %1309 = vmatpush2.msra.mxu0 0.0
  %1310 = vmatprep.subr.mxu0 0.0
  %1311 = vmatpush2.msra.mxu0 0.0
  %1312 = vmatprep.subr.mxu0 0.0
  %1313 = vmatpush2.msra.mxu0 0.0
  %1314 = vmatprep.subr.mxu0 0.0
  %1315 = vmatpush2.msra.mxu0 0.0
  %1316 = vmatprep.subr.mxu0 0.0
  %1317 = vmatpush2.msra.mxu0 0.0
  %1318 = vmatprep.subr.mxu0 0.0
  %1319 = vmatpush2.msra.mxu0 0.0
  %1320 = vmatprep.subr.mxu0 0.0
  %1321 = vmatpush2.msra.mxu0 0.0
  %1322 = vmatprep.subr.mxu0 0.0
  %1323 = vmatpush2.msra.mxu0 0.0
  %1324 = vmatprep.subr.mxu0 0.0
  %1325 = vmatpush2.msra.mxu0 0.0
  %1326 = vmatprep.subr.mxu0 0.0
  %1327 = vmatpush2.msra.mxu0 0.0
  %1328 = vmatprep.subr.mxu0 0.0
  %1329 = vmatpush2.msra.mxu0 0.0
  %1330 = vmatprep.mubr.f32.mxu0 0.0
  %1331 = vmatmul.mubr.f32.gmra.mxu0 %v1261
  %v1332 = vpop.f32.mrf.mxu0
  %v1333 = vadd.f32 0.0, %v1332
  %v1334 = vpop.f32.mrf.mxu0
  %1335 = vmatprep.mubr.f32.mxu0 0.0
  %1336 = vmatmul.mubr.f32.gmra.mxu0 %v1264
  %v1337 = vpop.f32.mrf.mxu0
  %v1338 = vadd.f32 0.0, %v1337
  %v1339 = vpop.f32.mrf.mxu0
  %1340 = vdwg.mxu0
  %v1342 = vsel %vm287, %v281, 0
  %v1345 = vsel %vm287, %v282, 0
  %1347 = vmatprep.subr.mxu0 0.0
  %1348 = vmatpush1.msra.mxu0 0.0
  %1349 = vmatprep.subr.mxu0 0.0
  %1350 = vmatpush1.msra.mxu0 0.0
  %1351 = vmatprep.subr.mxu0 0.0
  %1352 = vmatpush1.msra.mxu0 0.0
  %1353 = vmatprep.subr.mxu0 0.0
  %1354 = vmatpush1.msra.mxu0 0.0
  %1355 = vmatprep.subr.mxu0 0.0
  %1356 = vmatpush1.msra.mxu0 0.0
  %1357 = vmatprep.subr.mxu0 0.0
  %1358 = vmatpush1.msra.mxu0 0.0
  %1359 = vmatprep.subr.mxu0 0.0
  %1360 = vmatpush1.msra.mxu0 0.0
  %1361 = vmatprep.subr.mxu0 0.0
  %1362 = vmatpush1.msra.mxu0 0.0
  %1363 = vmatprep.subr.mxu0 0.0
  %1364 = vmatpush1.msra.mxu0 %v206
  %1365 = vmatprep.subr.mxu0 0.0
  %1366 = vmatpush1.msra.mxu0 %v205
  %1367 = vmatprep.subr.mxu0 0.0
  %1368 = vmatpush1.msra.mxu0 %v204
  %1369 = vmatprep.subr.mxu0 0.0
  %1370 = vmatpush1.msra.mxu0 %v203
  %1371 = vmatprep.subr.mxu0 0.0
  %1372 = vmatpush1.msra.mxu0 %v202
  %1373 = vmatprep.subr.mxu0 0.0
  %1374 = vmatpush1.msra.mxu0 %v201
  %1375 = vmatprep.subr.mxu0 0.0
  %1376 = vmatpush1.msra.mxu0 %v200
  %1377 = vmatprep.subr.mxu0 0.0
  %1378 = vmatpush1.msra.mxu0 %v199
  %1379 = vmatprep.subr.mxu0 0.0
  %1380 = vmatpush2.msra.mxu0 0.0
  %1381 = vmatprep.subr.mxu0 0.0
  %1382 = vmatpush2.msra.mxu0 0.0
  %1383 = vmatprep.subr.mxu0 0.0
  %1384 = vmatpush2.msra.mxu0 0.0
  %1385 = vmatprep.subr.mxu0 0.0
  %1386 = vmatpush2.msra.mxu0 0.0
  %1387 = vmatprep.subr.mxu0 0.0
  %1388 = vmatpush2.msra.mxu0 0.0
  %1389 = vmatprep.subr.mxu0 0.0
  %1390 = vmatpush2.msra.mxu0 0.0
  %1391 = vmatprep.subr.mxu0 0.0
  %1392 = vmatpush2.msra.mxu0 0.0
  %1393 = vmatprep.subr.mxu0 0.0
  %1394 = vmatpush2.msra.mxu0 0.0
  %1395 = vmatprep.subr.mxu0 0.0
  %1396 = vmatpush2.msra.mxu0 0.0
  %1397 = vmatprep.subr.mxu0 0.0
  %1398 = vmatpush2.msra.mxu0 0.0
  %1399 = vmatprep.subr.mxu0 0.0
  %1400 = vmatpush2.msra.mxu0 0.0
  %1401 = vmatprep.subr.mxu0 0.0
  %1402 = vmatpush2.msra.mxu0 0.0
  %1403 = vmatprep.subr.mxu0 0.0
  %1404 = vmatpush2.msra.mxu0 0.0
  %1405 = vmatprep.subr.mxu0 0.0
  %1406 = vmatpush2.msra.mxu0 0.0
  %1407 = vmatprep.subr.mxu0 0.0
  %1408 = vmatpush2.msra.mxu0 0.0
  %1409 = vmatprep.subr.mxu0 0.0
  %1410 = vmatpush2.msra.mxu0 0.0
  %1411 = vmatprep.mubr.f32.mxu0 0.0
  %1412 = vmatmul.mubr.f32.gmra.mxu0 %v1342
  %v1413 = vpop.f32.mrf.mxu0
  %v1414 = vadd.f32 0.0, %v1413
  %v1415 = vpop.f32.mrf.mxu0
  %1416 = vmatprep.mubr.f32.mxu0 0.0
  %1417 = vmatmul.mubr.f32.gmra.mxu0 %v1345
  %v1418 = vpop.f32.mrf.mxu0
  %v1419 = vadd.f32 0.0, %v1418
  %v1420 = vpop.f32.mrf.mxu0
  %1421 = vdwg.mxu0
  %v1423 = vsel %vm287, %v283, 0
  %v1426 = vsel %vm287, %v284, 0
  %1428 = vmatprep.subr.mxu0 0.0
  %1429 = vmatpush1.msra.mxu0 0.0
  %1430 = vmatprep.subr.mxu0 0.0
  %1431 = vmatpush1.msra.mxu0 0.0
  %1432 = vmatprep.subr.mxu0 0.0
  %1433 = vmatpush1.msra.mxu0 0.0
  %1434 = vmatprep.subr.mxu0 0.0
  %1435 = vmatpush1.msra.mxu0 0.0
  %1436 = vmatprep.subr.mxu0 0.0
  %1437 = vmatpush1.msra.mxu0 0.0
  %1438 = vmatprep.subr.mxu0 0.0
  %1439 = vmatpush1.msra.mxu0 0.0
  %1440 = vmatprep.subr.mxu0 0.0
  %1441 = vmatpush1.msra.mxu0 0.0
  %1442 = vmatprep.subr.mxu0 0.0
  %1443 = vmatpush1.msra.mxu0 0.0
  %1444 = vmatprep.subr.mxu0 0.0
  %1445 = vmatpush1.msra.mxu0 %v206
  %1446 = vmatprep.subr.mxu0 0.0
  %1447 = vmatpush1.msra.mxu0 %v205
  %1448 = vmatprep.subr.mxu0 0.0
  %1449 = vmatpush1.msra.mxu0 %v204
  %1450 = vmatprep.subr.mxu0 0.0
  %1451 = vmatpush1.msra.mxu0 %v203
  %1452 = vmatprep.subr.mxu0 0.0
  %1453 = vmatpush1.msra.mxu0 %v202
  %1454 = vmatprep.subr.mxu0 0.0
  %1455 = vmatpush1.msra.mxu0 %v201
  %1456 = vmatprep.subr.mxu0 0.0
  %1457 = vmatpush1.msra.mxu0 %v200
  %1458 = vmatprep.subr.mxu0 0.0
  %1459 = vmatpush1.msra.mxu0 %v199
  %1460 = vmatprep.subr.mxu0 0.0
  %1461 = vmatpush2.msra.mxu0 0.0
  %1462 = vmatprep.subr.mxu0 0.0
  %1463 = vmatpush2.msra.mxu0 0.0
  %1464 = vmatprep.subr.mxu0 0.0
  %1465 = vmatpush2.msra.mxu0 0.0
  %1466 = vmatprep.subr.mxu0 0.0
  %1467 = vmatpush2.msra.mxu0 0.0
  %1468 = vmatprep.subr.mxu0 0.0
  %1469 = vmatpush2.msra.mxu0 0.0
  %1470 = vmatprep.subr.mxu0 0.0
  %1471 = vmatpush2.msra.mxu0 0.0
  %1472 = vmatprep.subr.mxu0 0.0
  %1473 = vmatpush2.msra.mxu0 0.0
  %1474 = vmatprep.subr.mxu0 0.0
  %1475 = vmatpush2.msra.mxu0 0.0
  %1476 = vmatprep.subr.mxu0 0.0
  %1477 = vmatpush2.msra.mxu0 0.0
  %1478 = vmatprep.subr.mxu0 0.0
  %1479 = vmatpush2.msra.mxu0 0.0
  %1480 = vmatprep.subr.mxu0 0.0
  %1481 = vmatpush2.msra.mxu0 0.0
  %1482 = vmatprep.subr.mxu0 0.0
  %1483 = vmatpush2.msra.mxu0 0.0
  %1484 = vmatprep.subr.mxu0 0.0
  %1485 = vmatpush2.msra.mxu0 0.0
  %1486 = vmatprep.subr.mxu0 0.0
  %1487 = vmatpush2.msra.mxu0 0.0
  %1488 = vmatprep.subr.mxu0 0.0
  %1489 = vmatpush2.msra.mxu0 0.0
  %1490 = vmatprep.subr.mxu0 0.0
  %1491 = vmatpush2.msra.mxu0 0.0
  %1492 = vmatprep.mubr.f32.mxu0 0.0
  %1493 = vmatmul.mubr.f32.gmra.mxu0 %v1423
  %v1494 = vpop.f32.mrf.mxu0
  %v1495 = vadd.f32 0.0, %v1494
  %v1496 = vpop.f32.mrf.mxu0
  %1497 = vmatprep.mubr.f32.mxu0 0.0
  %1498 = vmatmul.mubr.f32.gmra.mxu0 %v1426
  %v1499 = vpop.f32.mrf.mxu0
  %v1500 = vadd.f32 0.0, %v1499
  %v1501 = vpop.f32.mrf.mxu0
  %1502 = vdwg.mxu0
  %v1504 = vsel %vm287, %v285, 0
  %v1507 = vsel %vm287, %v286, 0
  %1509 = vmatprep.subr.mxu0 0.0
  %1510 = vmatpush1.msra.mxu0 0.0
  %1511 = vmatprep.subr.mxu0 0.0
  %1512 = vmatpush1.msra.mxu0 0.0
  %1513 = vmatprep.subr.mxu0 0.0
  %1514 = vmatpush1.msra.mxu0 0.0
  %1515 = vmatprep.subr.mxu0 0.0
  %1516 = vmatpush1.msra.mxu0 0.0
  %1517 = vmatprep.subr.mxu0 0.0
  %1518 = vmatpush1.msra.mxu0 0.0
  %1519 = vmatprep.subr.mxu0 0.0
  %1520 = vmatpush1.msra.mxu0 0.0
  %1521 = vmatprep.subr.mxu0 0.0
  %1522 = vmatpush1.msra.mxu0 0.0
  %1523 = vmatprep.subr.mxu0 0.0
  %1524 = vmatpush1.msra.mxu0 0.0
  %1525 = vmatprep.subr.mxu0 0.0
  %1526 = vmatpush1.msra.mxu0 %v206
  %1527 = vmatprep.subr.mxu0 0.0
  %1528 = vmatpush1.msra.mxu0 %v205
  %1529 = vmatprep.subr.mxu0 0.0
  %1530 = vmatpush1.msra.mxu0 %v204
  %1531 = vmatprep.subr.mxu0 0.0
  %1532 = vmatpush1.msra.mxu0 %v203
  %1533 = vmatprep.subr.mxu0 0.0
  %1534 = vmatpush1.msra.mxu0 %v202
  %1535 = vmatprep.subr.mxu0 0.0
  %1536 = vmatpush1.msra.mxu0 %v201
  %1537 = vmatprep.subr.mxu0 0.0
  %1538 = vmatpush1.msra.mxu0 %v200
  %1539 = vmatprep.subr.mxu0 0.0
  %1540 = vmatpush1.msra.mxu0 %v199
  %1541 = vmatprep.subr.mxu0 0.0
  %1542 = vmatpush2.msra.mxu0 0.0
  %1543 = vmatprep.subr.mxu0 0.0
  %1544 = vmatpush2.msra.mxu0 0.0
  %1545 = vmatprep.subr.mxu0 0.0
  %1546 = vmatpush2.msra.mxu0 0.0
  %1547 = vmatprep.subr.mxu0 0.0
  %1548 = vmatpush2.msra.mxu0 0.0
  %1549 = vmatprep.subr.mxu0 0.0
  %1550 = vmatpush2.msra.mxu0 0.0
  %1551 = vmatprep.subr.mxu0 0.0
  %1552 = vmatpush2.msra.mxu0 0.0
  %1553 = vmatprep.subr.mxu0 0.0
  %1554 = vmatpush2.msra.mxu0 0.0
  %1555 = vmatprep.subr.mxu0 0.0
  %1556 = vmatpush2.msra.mxu0 0.0
  %1557 = vmatprep.subr.mxu0 0.0
  %1558 = vmatpush2.msra.mxu0 0.0
  %1559 = vmatprep.subr.mxu0 0.0
  %1560 = vmatpush2.msra.mxu0 0.0
  %1561 = vmatprep.subr.mxu0 0.0
  %1562 = vmatpush2.msra.mxu0 0.0
  %1563 = vmatprep.subr.mxu0 0.0
  %1564 = vmatpush2.msra.mxu0 0.0
  %1565 = vmatprep.subr.mxu0 0.0
  %1566 = vmatpush2.msra.mxu0 0.0
  %1567 = vmatprep.subr.mxu0 0.0
  %1568 = vmatpush2.msra.mxu0 0.0
  %1569 = vmatprep.subr.mxu0 0.0
  %1570 = vmatpush2.msra.mxu0 0.0
  %1571 = vmatprep.subr.mxu0 0.0
  %1572 = vmatpush2.msra.mxu0 0.0
  %1573 = vmatprep.mubr.f32.mxu0 0.0
  %1574 = vmatmul.mubr.f32.gmra.mxu0 %v1504
  %v1575 = vpop.f32.mrf.mxu0
  %v1576 = vadd.f32 0.0, %v1575
  %v1577 = vpop.f32.mrf.mxu0
  %1578 = vmatprep.mubr.f32.mxu0 0.0
  %1579 = vmatmul.mubr.f32.gmra.mxu0 %v1507
  %v1580 = vpop.f32.mrf.mxu0
  %v1581 = vadd.f32 0.0, %v1580
  %v1582 = vpop.f32.mrf.mxu0
  %1583 = vdwg.mxu0
  %1586 = vrot.lane.b32.xlu0 %v442, 64
  %v1587 = vpop.permute.xlu0 %1586
  %1588 = vrot.lane.b32.xlu0 %v447, 64
  %v1589 = vpop.permute.xlu0 %1588
  %1594 = vrot.lane.b32.xlu0 %v604, 64
  %v1595 = vpop.permute.xlu0 %1594
  %1596 = vrot.lane.b32.xlu0 %v609, 64
  %v1597 = vpop.permute.xlu0 %1596
  %1602 = vrot.lane.b32.xlu0 %v766, 64
  %v1603 = vpop.permute.xlu0 %1602
  %1604 = vrot.lane.b32.xlu0 %v771, 64
  %v1605 = vpop.permute.xlu0 %1604
  %1610 = vrot.lane.b32.xlu0 %v928, 64
  %v1611 = vpop.permute.xlu0 %1610
  %1612 = vrot.lane.b32.xlu0 %v933, 64
  %v1613 = vpop.permute.xlu0 %1612
  %1618 = vrot.lane.b32.xlu0 %v1090, 64
  %v1619 = vpop.permute.xlu0 %1618
  %1620 = vrot.lane.b32.xlu0 %v1095, 64
  %v1621 = vpop.permute.xlu0 %1620
  %1626 = vrot.lane.b32.xlu0 %v1252, 64
  %v1627 = vpop.permute.xlu0 %1626
  %1628 = vrot.lane.b32.xlu0 %v1257, 64
  %v1629 = vpop.permute.xlu0 %1628
  %1634 = vrot.lane.b32.xlu0 %v1414, 64
  %v1635 = vpop.permute.xlu0 %1634
  %1636 = vrot.lane.b32.xlu0 %v1419, 64
  %v1637 = vpop.permute.xlu0 %1636
  %1642 = vrot.lane.b32.xlu0 %v1576, 64
  %v1643 = vpop.permute.xlu0 %1642
  %1644 = vrot.lane.b32.xlu0 %v1581, 64
  %v1645 = vpop.permute.xlu0 %1644
  %v1648 = vsel %vm287, %v361, %v1587
  %v1649 = vsel %vm287, %v366, %v1589
  %v1650 = vsel %vm287, %v523, %v1595
  %v1651 = vsel %vm287, %v528, %v1597
  %v1652 = vsel %vm287, %v685, %v1603
  %v1653 = vsel %vm287, %v690, %v1605
  %v1654 = vsel %vm287, %v847, %v1611
  %v1655 = vsel %vm287, %v852, %v1613
  %v1656 = vsel %vm287, %v1009, %v1619
  %v1657 = vsel %vm287, %v1014, %v1621
  %v1658 = vsel %vm287, %v1171, %v1627
  %v1659 = vsel %vm287, %v1176, %v1629
  %v1660 = vsel %vm287, %v1333, %v1635
  %v1661 = vsel %vm287, %v1338, %v1637
  %v1662 = vsel %vm287, %v1495, %v1643
  %v1663 = vsel %vm287, %v1500, %v1645
  %v1664 = vld [vmem:[%s4] sm:$0xf]
  %v1665 = vld [vmem:[%s4 + $0x4] sm:$0xf]
  %v1666 = vld [vmem:[%s4 + $0x8] sm:$0xf]
  %v1667 = vld [vmem:[%s4 + $0xc] sm:$0xf]
  %v1668 = vld [vmem:[%s4 + $0x10] sm:$0xf]
  %v1669 = vld [vmem:[%s4 + $0x14] sm:$0xf]
  %v1670 = vld [vmem:[%s4 + $0x18] sm:$0xf]
  %v1671 = vld [vmem:[%s4 + $0x1c] sm:$0xf]
  %v1672 = vld [vmem:[%s4 + $0x20] sm:$0xf]
  %v1673 = vld [vmem:[%s4 + $0x24] sm:$0xf]
  %v1674 = vld [vmem:[%s4 + $0x28] sm:$0xf]
  %v1675 = vld [vmem:[%s4 + $0x2c] sm:$0xf]
  %v1676 = vld [vmem:[%s4 + $0x30] sm:$0xf]
  %v1677 = vld [vmem:[%s4 + $0x34] sm:$0xf]
  %v1678 = vld [vmem:[%s4 + $0x38] sm:$0xf]
  %v1679 = vld [vmem:[%s4 + $0x3c] sm:$0xf]
  %v1680 = vld [vmem:[%s4 + $0x40] sm:$0xf]
  %v1681 = vld [vmem:[%s4 + $0x44] sm:$0xf]
  %v1682 = vld [vmem:[%s4 + $0x48] sm:$0xf]
  %v1683 = vld [vmem:[%s4 + $0x4c] sm:$0xf]
  %v1684 = vld [vmem:[%s4 + $0x50] sm:$0xf]
  %v1685 = vld [vmem:[%s4 + $0x54] sm:$0xf]
  %v1686 = vld [vmem:[%s4 + $0x58] sm:$0xf]
  %v1687 = vld [vmem:[%s4 + $0x5c] sm:$0xf]
  %v1688 = vld [vmem:[%s4 + $0x60] sm:$0xf]
  %v1689 = vld [vmem:[%s4 + $0x64] sm:$0xf]
  %v1690 = vld [vmem:[%s4 + $0x68] sm:$0xf]
  %v1691 = vld [vmem:[%s4 + $0x6c] sm:$0xf]
  %v1692 = vld [vmem:[%s4 + $0x70] sm:$0xf]
  %v1693 = vld [vmem:[%s4 + $0x74] sm:$0xf]
  %v1694 = vld [vmem:[%s4 + $0x78] sm:$0xf]
  %v1695 = vld [vmem:[%s4 + $0x7c] sm:$0xf]
  %v1696 = vld [vmem:[%s4 + $0x80] sm:$0xf]
  %v1697 = vld [vmem:[%s4 + $0x84] sm:$0xf]
  %v1698 = vld [vmem:[%s4 + $0x88] sm:$0xf]
  %v1699 = vld [vmem:[%s4 + $0x8c] sm:$0xf]
  %v1700 = vld [vmem:[%s4 + $0x90] sm:$0xf]
  %v1701 = vld [vmem:[%s4 + $0x94] sm:$0xf]
  %v1702 = vld [vmem:[%s4 + $0x98] sm:$0xf]
  %v1703 = vld [vmem:[%s4 + $0x9c] sm:$0xf]
  %v1704 = vld [vmem:[%s4 + $0xa0] sm:$0xf]
  %v1705 = vld [vmem:[%s4 + $0xa4] sm:$0xf]
  %v1706 = vld [vmem:[%s4 + $0xa8] sm:$0xf]
  %v1707 = vld [vmem:[%s4 + $0xac] sm:$0xf]
  %v1708 = vld [vmem:[%s4 + $0xb0] sm:$0xf]
  %v1709 = vld [vmem:[%s4 + $0xb4] sm:$0xf]
  %v1710 = vld [vmem:[%s4 + $0xb8] sm:$0xf]
  %v1711 = vld [vmem:[%s4 + $0xbc] sm:$0xf]
  %v1712 = vld [vmem:[%s4 + $0xc0] sm:$0xf]
  %v1713 = vld [vmem:[%s4 + $0xc4] sm:$0xf]
  %v1714 = vld [vmem:[%s4 + $0xc8] sm:$0xf]
  %v1715 = vld [vmem:[%s4 + $0xcc] sm:$0xf]
  %v1716 = vld [vmem:[%s4 + $0xd0] sm:$0xf]
  %v1717 = vld [vmem:[%s4 + $0xd4] sm:$0xf]
  %v1718 = vld [vmem:[%s4 + $0xd8] sm:$0xf]
  %v1719 = vld [vmem:[%s4 + $0xdc] sm:$0xf]
  %v1720 = vld [vmem:[%s4 + $0xe0] sm:$0xf]
  %v1721 = vld [vmem:[%s4 + $0xe4] sm:$0xf]
  %v1722 = vld [vmem:[%s4 + $0xe8] sm:$0xf]
  %v1723 = vld [vmem:[%s4 + $0xec] sm:$0xf]
  %v1724 = vld [vmem:[%s4 + $0xf0] sm:$0xf]
  %v1725 = vld [vmem:[%s4 + $0xf4] sm:$0xf]
  %v1726 = vld [vmem:[%s4 + $0xf8] sm:$0xf]
  %v1727 = vld [vmem:[%s4 + $0xfc] sm:$0xf]
  %v1728 = vld [vmem:[%s4 + $0x100] sm:$0xf]
  %v1729 = vld [vmem:[%s4 + $0x104] sm:$0xf]
  %v1730 = vld [vmem:[%s4 + $0x108] sm:$0xf]
  %v1731 = vld [vmem:[%s4 + $0x10c] sm:$0xf]
  %v1732 = vld [vmem:[%s4 + $0x110] sm:$0xf]
  %v1733 = vld [vmem:[%s4 + $0x114] sm:$0xf]
  %v1734 = vld [vmem:[%s4 + $0x118] sm:$0xf]
  %v1735 = vld [vmem:[%s4 + $0x11c] sm:$0xf]
  %v1736 = vld [vmem:[%s4 + $0x120] sm:$0xf]
  %v1737 = vld [vmem:[%s4 + $0x124] sm:$0xf]
  %v1738 = vld [vmem:[%s4 + $0x128] sm:$0xf]
  %v1739 = vld [vmem:[%s4 + $0x12c] sm:$0xf]
  %v1740 = vld [vmem:[%s4 + $0x130] sm:$0xf]
  %v1741 = vld [vmem:[%s4 + $0x134] sm:$0xf]
  %v1742 = vld [vmem:[%s4 + $0x138] sm:$0xf]
  %v1743 = vld [vmem:[%s4 + $0x13c] sm:$0xf]
  %v1744 = vld [vmem:[%s4 + $0x140] sm:$0xf]
  %v1745 = vld [vmem:[%s4 + $0x144] sm:$0xf]
  %v1746 = vld [vmem:[%s4 + $0x148] sm:$0xf]
  %v1747 = vld [vmem:[%s4 + $0x14c] sm:$0xf]
  %v1748 = vld [vmem:[%s4 + $0x150] sm:$0xf]
  %v1749 = vld [vmem:[%s4 + $0x154] sm:$0xf]
  %v1750 = vld [vmem:[%s4 + $0x158] sm:$0xf]
  %v1751 = vld [vmem:[%s4 + $0x15c] sm:$0xf]
  %v1752 = vld [vmem:[%s4 + $0x160] sm:$0xf]
  %v1753 = vld [vmem:[%s4 + $0x164] sm:$0xf]
  %v1754 = vld [vmem:[%s4 + $0x168] sm:$0xf]
  %v1755 = vld [vmem:[%s4 + $0x16c] sm:$0xf]
  %v1756 = vld [vmem:[%s4 + $0x170] sm:$0xf]
  %v1757 = vld [vmem:[%s4 + $0x174] sm:$0xf]
  %v1758 = vld [vmem:[%s4 + $0x178] sm:$0xf]
  %v1759 = vld [vmem:[%s4 + $0x17c] sm:$0xf]
  %v1760 = vld [vmem:[%s4 + $0x180] sm:$0xf]
  %v1761 = vld [vmem:[%s4 + $0x184] sm:$0xf]
  %v1762 = vld [vmem:[%s4 + $0x188] sm:$0xf]
  %v1763 = vld [vmem:[%s4 + $0x18c] sm:$0xf]
  %v1764 = vld [vmem:[%s4 + $0x190] sm:$0xf]
  %v1765 = vld [vmem:[%s4 + $0x194] sm:$0xf]
  %v1766 = vld [vmem:[%s4 + $0x198] sm:$0xf]
  %v1767 = vld [vmem:[%s4 + $0x19c] sm:$0xf]
  %v1768 = vld [vmem:[%s4 + $0x1a0] sm:$0xf]
  %v1769 = vld [vmem:[%s4 + $0x1a4] sm:$0xf]
  %v1770 = vld [vmem:[%s4 + $0x1a8] sm:$0xf]
  %v1771 = vld [vmem:[%s4 + $0x1ac] sm:$0xf]
  %v1772 = vld [vmem:[%s4 + $0x1b0] sm:$0xf]
  %v1773 = vld [vmem:[%s4 + $0x1b4] sm:$0xf]
  %v1774 = vld [vmem:[%s4 + $0x1b8] sm:$0xf]
  %v1775 = vld [vmem:[%s4 + $0x1bc] sm:$0xf]
  %v1776 = vld [vmem:[%s4 + $0x1c0] sm:$0xf]
  %v1777 = vld [vmem:[%s4 + $0x1c4] sm:$0xf]
  %v1778 = vld [vmem:[%s4 + $0x1c8] sm:$0xf]
  %v1779 = vld [vmem:[%s4 + $0x1cc] sm:$0xf]
  %v1780 = vld [vmem:[%s4 + $0x1d0] sm:$0xf]
  %v1781 = vld [vmem:[%s4 + $0x1d4] sm:$0xf]
  %v1782 = vld [vmem:[%s4 + $0x1d8] sm:$0xf]
  %v1783 = vld [vmem:[%s4 + $0x1dc] sm:$0xf]
  %v1784 = vld [vmem:[%s4 + $0x1e0] sm:$0xf]
  %v1785 = vld [vmem:[%s4 + $0x1e4] sm:$0xf]
  %v1786 = vld [vmem:[%s4 + $0x1e8] sm:$0xf]
  %v1787 = vld [vmem:[%s4 + $0x1ec] sm:$0xf]
  %v1788 = vld [vmem:[%s4 + $0x1f0] sm:$0xf]
  %v1789 = vld [vmem:[%s4 + $0x1f4] sm:$0xf]
  %v1790 = vld [vmem:[%s4 + $0x1f8] sm:$0xf]
  %v1791 = vld [vmem:[%s4 + $0x1fc] sm:$0xf]
  %v1792 = vunpack.c.l.bf16 %v1664
  %v1793 = vunpack.c.l.bf16 %v1665
  %v1794 = vunpack.c.l.bf16 %v1666
  %v1795 = vunpack.c.l.bf16 %v1667
  %v1796 = vunpack.c.l.bf16 %v1668
  %v1797 = vunpack.c.l.bf16 %v1669
  %v1798 = vunpack.c.l.bf16 %v1670
  %v1799 = vunpack.c.l.bf16 %v1671
  %v1800 = vunpack.c.l.bf16 %v1672
  %v1801 = vunpack.c.l.bf16 %v1673
  %v1802 = vunpack.c.l.bf16 %v1674
  %v1803 = vunpack.c.l.bf16 %v1675
  %v1804 = vunpack.c.l.bf16 %v1676
  %v1805 = vunpack.c.l.bf16 %v1677
  %v1806 = vunpack.c.l.bf16 %v1678
  %v1807 = vunpack.c.l.bf16 %v1679
  %v1808 = vunpack.c.l.bf16 %v1680
  %v1809 = vunpack.c.l.bf16 %v1681
  %v1810 = vunpack.c.l.bf16 %v1682
  %v1811 = vunpack.c.l.bf16 %v1683
  %v1812 = vunpack.c.l.bf16 %v1684
  %v1813 = vunpack.c.l.bf16 %v1685
  %v1814 = vunpack.c.l.bf16 %v1686
  %v1815 = vunpack.c.l.bf16 %v1687
  %v1816 = vunpack.c.l.bf16 %v1688
  %v1817 = vunpack.c.l.bf16 %v1689
  %v1818 = vunpack.c.l.bf16 %v1690
  %v1819 = vunpack.c.l.bf16 %v1691
  %v1820 = vunpack.c.l.bf16 %v1692
  %v1821 = vunpack.c.l.bf16 %v1693
  %v1822 = vunpack.c.l.bf16 %v1694
  %v1823 = vunpack.c.l.bf16 %v1695
  %v1824 = vunpack.c.l.bf16 %v1696
  %v1825 = vunpack.c.l.bf16 %v1697
  %v1826 = vunpack.c.l.bf16 %v1698
  %v1827 = vunpack.c.l.bf16 %v1699
  %v1828 = vunpack.c.l.bf16 %v1700
  %v1829 = vunpack.c.l.bf16 %v1701
  %v1830 = vunpack.c.l.bf16 %v1702
  %v1831 = vunpack.c.l.bf16 %v1703
  %v1832 = vunpack.c.l.bf16 %v1704
  %v1833 = vunpack.c.l.bf16 %v1705
  %v1834 = vunpack.c.l.bf16 %v1706
  %v1835 = vunpack.c.l.bf16 %v1707
  %v1836 = vunpack.c.l.bf16 %v1708
  %v1837 = vunpack.c.l.bf16 %v1709
  %v1838 = vunpack.c.l.bf16 %v1710
  %v1839 = vunpack.c.l.bf16 %v1711
  %v1840 = vunpack.c.l.bf16 %v1712
  %v1841 = vunpack.c.l.bf16 %v1713
  %v1842 = vunpack.c.l.bf16 %v1714
  %v1843 = vunpack.c.l.bf16 %v1715
  %v1844 = vunpack.c.l.bf16 %v1716
  %v1845 = vunpack.c.l.bf16 %v1717
  %v1846 = vunpack.c.l.bf16 %v1718
  %v1847 = vunpack.c.l.bf16 %v1719
  %v1848 = vunpack.c.l.bf16 %v1720
  %v1849 = vunpack.c.l.bf16 %v1721
  %v1850 = vunpack.c.l.bf16 %v1722
  %v1851 = vunpack.c.l.bf16 %v1723
  %v1852 = vunpack.c.l.bf16 %v1724
  %v1853 = vunpack.c.l.bf16 %v1725
  %v1854 = vunpack.c.l.bf16 %v1726
  %v1855 = vunpack.c.l.bf16 %v1727
  %v1856 = vunpack.c.l.bf16 %v1728
  %v1857 = vunpack.c.l.bf16 %v1729
  %v1858 = vunpack.c.l.bf16 %v1730
  %v1859 = vunpack.c.l.bf16 %v1731
  %v1860 = vunpack.c.l.bf16 %v1732
  %v1861 = vunpack.c.l.bf16 %v1733
  %v1862 = vunpack.c.l.bf16 %v1734
  %v1863 = vunpack.c.l.bf16 %v1735
  %v1864 = vunpack.c.l.bf16 %v1736
  %v1865 = vunpack.c.l.bf16 %v1737
  %v1866 = vunpack.c.l.bf16 %v1738
  %v1867 = vunpack.c.l.bf16 %v1739
  %v1868 = vunpack.c.l.bf16 %v1740
  %v1869 = vunpack.c.l.bf16 %v1741
  %v1870 = vunpack.c.l.bf16 %v1742
  %v1871 = vunpack.c.l.bf16 %v1743
  %v1872 = vunpack.c.l.bf16 %v1744
  %v1873 = vunpack.c.l.bf16 %v1745
  %v1874 = vunpack.c.l.bf16 %v1746
  %v1875 = vunpack.c.l.bf16 %v1747
  %v1876 = vunpack.c.l.bf16 %v1748
  %v1877 = vunpack.c.l.bf16 %v1749
  %v1878 = vunpack.c.l.bf16 %v1750
  %v1879 = vunpack.c.l.bf16 %v1751
  %v1880 = vunpack.c.l.bf16 %v1752
  %v1881 = vunpack.c.l.bf16 %v1753
  %v1882 = vunpack.c.l.bf16 %v1754
  %v1883 = vunpack.c.l.bf16 %v1755
  %v1884 = vunpack.c.l.bf16 %v1756
  %v1885 = vunpack.c.l.bf16 %v1757
  %v1886 = vunpack.c.l.bf16 %v1758
  %v1887 = vunpack.c.l.bf16 %v1759
  %v1888 = vunpack.c.l.bf16 %v1760
  %v1889 = vunpack.c.l.bf16 %v1761
  %v1890 = vunpack.c.l.bf16 %v1762
  %v1891 = vunpack.c.l.bf16 %v1763
  %v1892 = vunpack.c.l.bf16 %v1764
  %v1893 = vunpack.c.l.bf16 %v1765
  %v1894 = vunpack.c.l.bf16 %v1766
  %v1895 = vunpack.c.l.bf16 %v1767
  %v1896 = vunpack.c.l.bf16 %v1768
  %v1897 = vunpack.c.l.bf16 %v1769
  %v1898 = vunpack.c.l.bf16 %v1770
  %v1899 = vunpack.c.l.bf16 %v1771
  %v1900 = vunpack.c.l.bf16 %v1772
  %v1901 = vunpack.c.l.bf16 %v1773
  %v1902 = vunpack.c.l.bf16 %v1774
  %v1903 = vunpack.c.l.bf16 %v1775
  %v1904 = vunpack.c.l.bf16 %v1776
  %v1905 = vunpack.c.l.bf16 %v1777
  %v1906 = vunpack.c.l.bf16 %v1778
  %v1907 = vunpack.c.l.bf16 %v1779
  %v1908 = vunpack.c.l.bf16 %v1780
  %v1909 = vunpack.c.l.bf16 %v1781
  %v1910 = vunpack.c.l.bf16 %v1782
  %v1911 = vunpack.c.l.bf16 %v1783
  %v1912 = vunpack.c.l.bf16 %v1784
  %v1913 = vunpack.c.l.bf16 %v1785
  %v1914 = vunpack.c.l.bf16 %v1786
  %v1915 = vunpack.c.l.bf16 %v1787
  %v1916 = vunpack.c.l.bf16 %v1788
  %v1917 = vunpack.c.l.bf16 %v1789
  %v1918 = vunpack.c.l.bf16 %v1790
  %v1919 = vunpack.c.l.bf16 %v1791
  %1920 = vmatprep.subr.mxu0 0.0
  %1921 = vmatpush1.msra.mxu0 %v1807
  %1922 = vmatprep.subr.mxu0 0.0
  %1923 = vmatpush1.msra.mxu0 %v1806
  %1924 = vmatprep.subr.mxu0 0.0
  %1925 = vmatpush1.msra.mxu0 %v1805
  %1926 = vmatprep.subr.mxu0 0.0
  %1927 = vmatpush1.msra.mxu0 %v1804
  %1928 = vmatprep.subr.mxu0 0.0
  %1929 = vmatpush1.msra.mxu0 %v1803
  %1930 = vmatprep.subr.mxu0 0.0
  %1931 = vmatpush1.msra.mxu0 %v1802
  %1932 = vmatprep.subr.mxu0 0.0
  %1933 = vmatpush1.msra.mxu0 %v1801
  %1934 = vmatprep.subr.mxu0 0.0
  %1935 = vmatpush1.msra.mxu0 %v1800
  %1936 = vmatprep.subr.mxu0 0.0
  %1937 = vmatpush1.msra.mxu0 %v1799
  %1938 = vmatprep.subr.mxu0 0.0
  %1939 = vmatpush1.msra.mxu0 %v1798
  %1940 = vmatprep.subr.mxu0 0.0
  %1941 = vmatpush1.msra.mxu0 %v1797
  %1942 = vmatprep.subr.mxu0 0.0
  %1943 = vmatpush1.msra.mxu0 %v1796
  %1944 = vmatprep.subr.mxu0 0.0
  %1945 = vmatpush1.msra.mxu0 %v1795
  %1946 = vmatprep.subr.mxu0 0.0
  %1947 = vmatpush1.msra.mxu0 %v1794
  %1948 = vmatprep.subr.mxu0 0.0
  %1949 = vmatpush1.msra.mxu0 %v1793
  %1950 = vmatprep.subr.mxu0 0.0
  %1951 = vmatpush1.msra.mxu0 %v1792
  %1952 = vmatprep.subr.mxu0 0.0
  %1953 = vmatpush2.msra.mxu0 %v1823
  %1954 = vmatprep.subr.mxu0 0.0
  %1955 = vmatpush2.msra.mxu0 %v1822
  %1956 = vmatprep.subr.mxu0 0.0
  %1957 = vmatpush2.msra.mxu0 %v1821
  %1958 = vmatprep.subr.mxu0 0.0
  %1959 = vmatpush2.msra.mxu0 %v1820
  %1960 = vmatprep.subr.mxu0 0.0
  %1961 = vmatpush2.msra.mxu0 %v1819
  %1962 = vmatprep.subr.mxu0 0.0
  %1963 = vmatpush2.msra.mxu0 %v1818
  %1964 = vmatprep.subr.mxu0 0.0
  %1965 = vmatpush2.msra.mxu0 %v1817
  %1966 = vmatprep.subr.mxu0 0.0
  %1967 = vmatpush2.msra.mxu0 %v1816
  %1968 = vmatprep.subr.mxu0 0.0
  %1969 = vmatpush2.msra.mxu0 %v1815
  %1970 = vmatprep.subr.mxu0 0.0
  %1971 = vmatpush2.msra.mxu0 %v1814
  %1972 = vmatprep.subr.mxu0 0.0
  %1973 = vmatpush2.msra.mxu0 %v1813
  %1974 = vmatprep.subr.mxu0 0.0
  %1975 = vmatpush2.msra.mxu0 %v1812
  %1976 = vmatprep.subr.mxu0 0.0
  %1977 = vmatpush2.msra.mxu0 %v1811
  %1978 = vmatprep.subr.mxu0 0.0
  %1979 = vmatpush2.msra.mxu0 %v1810
  %1980 = vmatprep.subr.mxu0 0.0
  %1981 = vmatpush2.msra.mxu0 %v1809
  %1982 = vmatprep.subr.mxu0 0.0
  %1983 = vmatpush2.msra.mxu0 %v1808
  %1984 = vmatprep.mubr.f32.mxu0 %v1650
  %1985 = vmatmul.mubr.f32.gmra.mxu0 %v1648
  %v1986 = vpop.f32.mrf.mxu0
  %v1987 = vadd.f32 0.0, %v1986
  %v1988 = vpop.f32.mrf.mxu0
  %1989 = vmatprep.mubr.f32.mxu0 %v1651
  %1990 = vmatmul.mubr.f32.gmra.mxu0 %v1649
  %v1991 = vpop.f32.mrf.mxu0
  %v1992 = vadd.f32 0.0, %v1991
  %v1993 = vpop.f32.mrf.mxu0
  %1994 = vdwg.mxu0
  %1995 = vmatprep.subr.mxu0 0.0
  %1996 = vmatpush1.msra.mxu0 %v1839
  %1997 = vmatprep.subr.mxu0 0.0
  %1998 = vmatpush1.msra.mxu0 %v1838
  %1999 = vmatprep.subr.mxu0 0.0
  %2000 = vmatpush1.msra.mxu0 %v1837
  %2001 = vmatprep.subr.mxu0 0.0
  %2002 = vmatpush1.msra.mxu0 %v1836
  %2003 = vmatprep.subr.mxu0 0.0
  %2004 = vmatpush1.msra.mxu0 %v1835
  %2005 = vmatprep.subr.mxu0 0.0
  %2006 = vmatpush1.msra.mxu0 %v1834
  %2007 = vmatprep.subr.mxu0 0.0
  %2008 = vmatpush1.msra.mxu0 %v1833
  %2009 = vmatprep.subr.mxu0 0.0
  %2010 = vmatpush1.msra.mxu0 %v1832
  %2011 = vmatprep.subr.mxu0 0.0
  %2012 = vmatpush1.msra.mxu0 %v1831
  %2013 = vmatprep.subr.mxu0 0.0
  %2014 = vmatpush1.msra.mxu0 %v1830
  %2015 = vmatprep.subr.mxu0 0.0
  %2016 = vmatpush1.msra.mxu0 %v1829
  %2017 = vmatprep.subr.mxu0 0.0
  %2018 = vmatpush1.msra.mxu0 %v1828
  %2019 = vmatprep.subr.mxu0 0.0
  %2020 = vmatpush1.msra.mxu0 %v1827
  %2021 = vmatprep.subr.mxu0 0.0
  %2022 = vmatpush1.msra.mxu0 %v1826
  %2023 = vmatprep.subr.mxu0 0.0
  %2024 = vmatpush1.msra.mxu0 %v1825
  %2025 = vmatprep.subr.mxu0 0.0
  %2026 = vmatpush1.msra.mxu0 %v1824
  %2027 = vmatprep.subr.mxu0 0.0
  %2028 = vmatpush2.msra.mxu0 %v1855
  %2029 = vmatprep.subr.mxu0 0.0
  %2030 = vmatpush2.msra.mxu0 %v1854
  %2031 = vmatprep.subr.mxu0 0.0
  %2032 = vmatpush2.msra.mxu0 %v1853
  %2033 = vmatprep.subr.mxu0 0.0
  %2034 = vmatpush2.msra.mxu0 %v1852
  %2035 = vmatprep.subr.mxu0 0.0
  %2036 = vmatpush2.msra.mxu0 %v1851
  %2037 = vmatprep.subr.mxu0 0.0
  %2038 = vmatpush2.msra.mxu0 %v1850
  %2039 = vmatprep.subr.mxu0 0.0
  %2040 = vmatpush2.msra.mxu0 %v1849
  %2041 = vmatprep.subr.mxu0 0.0
  %2042 = vmatpush2.msra.mxu0 %v1848
  %2043 = vmatprep.subr.mxu0 0.0
  %2044 = vmatpush2.msra.mxu0 %v1847
  %2045 = vmatprep.subr.mxu0 0.0
  %2046 = vmatpush2.msra.mxu0 %v1846
  %2047 = vmatprep.subr.mxu0 0.0
  %2048 = vmatpush2.msra.mxu0 %v1845
  %2049 = vmatprep.subr.mxu0 0.0
  %2050 = vmatpush2.msra.mxu0 %v1844
  %2051 = vmatprep.subr.mxu0 0.0
  %2052 = vmatpush2.msra.mxu0 %v1843
  %2053 = vmatprep.subr.mxu0 0.0
  %2054 = vmatpush2.msra.mxu0 %v1842
  %2055 = vmatprep.subr.mxu0 0.0
  %2056 = vmatpush2.msra.mxu0 %v1841
  %2057 = vmatprep.subr.mxu0 0.0
  %2058 = vmatpush2.msra.mxu0 %v1840
  %2059 = vmatprep.mubr.f32.mxu0 %v1654
  %2060 = vmatmul.mubr.f32.gmra.mxu0 %v1652
  %v2061 = vpop.f32.mrf.mxu0
  %v2062 = vadd.f32 %v1987, %v2061
  %v2063 = vpop.f32.mrf.mxu0
  %2064 = vmatprep.mubr.f32.mxu0 %v1655
  %2065 = vmatmul.mubr.f32.gmra.mxu0 %v1653
  %v2066 = vpop.f32.mrf.mxu0
  %v2067 = vadd.f32 %v1992, %v2066
  %v2068 = vpop.f32.mrf.mxu0
  %2069 = vdwg.mxu0
  %2070 = vmatprep.subr.mxu0 0.0
  %2071 = vmatpush1.msra.mxu0 %v1871
  %2072 = vmatprep.subr.mxu0 0.0
  %2073 = vmatpush1.msra.mxu0 %v1870
  %2074 = vmatprep.subr.mxu0 0.0
  %2075 = vmatpush1.msra.mxu0 %v1869
  %2076 = vmatprep.subr.mxu0 0.0
  %2077 = vmatpush1.msra.mxu0 %v1868
  %2078 = vmatprep.subr.mxu0 0.0
  %2079 = vmatpush1.msra.mxu0 %v1867
  %2080 = vmatprep.subr.mxu0 0.0
  %2081 = vmatpush1.msra.mxu0 %v1866
  %2082 = vmatprep.subr.mxu0 0.0
  %2083 = vmatpush1.msra.mxu0 %v1865
  %2084 = vmatprep.subr.mxu0 0.0
  %2085 = vmatpush1.msra.mxu0 %v1864
  %2086 = vmatprep.subr.mxu0 0.0
  %2087 = vmatpush1.msra.mxu0 %v1863
  %2088 = vmatprep.subr.mxu0 0.0
  %2089 = vmatpush1.msra.mxu0 %v1862
  %2090 = vmatprep.subr.mxu0 0.0
  %2091 = vmatpush1.msra.mxu0 %v1861
  %2092 = vmatprep.subr.mxu0 0.0
  %2093 = vmatpush1.msra.mxu0 %v1860
  %2094 = vmatprep.subr.mxu0 0.0
  %2095 = vmatpush1.msra.mxu0 %v1859
  %2096 = vmatprep.subr.mxu0 0.0
  %2097 = vmatpush1.msra.mxu0 %v1858
  %2098 = vmatprep.subr.mxu0 0.0
  %2099 = vmatpush1.msra.mxu0 %v1857
  %2100 = vmatprep.subr.mxu0 0.0
  %2101 = vmatpush1.msra.mxu0 %v1856
  %2102 = vmatprep.subr.mxu0 0.0
  %2103 = vmatpush2.msra.mxu0 %v1887
  %2104 = vmatprep.subr.mxu0 0.0
  %2105 = vmatpush2.msra.mxu0 %v1886
  %2106 = vmatprep.subr.mxu0 0.0
  %2107 = vmatpush2.msra.mxu0 %v1885
  %2108 = vmatprep.subr.mxu0 0.0
  %2109 = vmatpush2.msra.mxu0 %v1884
  %2110 = vmatprep.subr.mxu0 0.0
  %2111 = vmatpush2.msra.mxu0 %v1883
  %2112 = vmatprep.subr.mxu0 0.0
  %2113 = vmatpush2.msra.mxu0 %v1882
  %2114 = vmatprep.subr.mxu0 0.0
  %2115 = vmatpush2.msra.mxu0 %v1881
  %2116 = vmatprep.subr.mxu0 0.0
  %2117 = vmatpush2.msra.mxu0 %v1880
  %2118 = vmatprep.subr.mxu0 0.0
  %2119 = vmatpush2.msra.mxu0 %v1879
  %2120 = vmatprep.subr.mxu0 0.0
  %2121 = vmatpush2.msra.mxu0 %v1878
  %2122 = vmatprep.subr.mxu0 0.0
  %2123 = vmatpush2.msra.mxu0 %v1877
  %2124 = vmatprep.subr.mxu0 0.0
  %2125 = vmatpush2.msra.mxu0 %v1876
  %2126 = vmatprep.subr.mxu0 0.0
  %2127 = vmatpush2.msra.mxu0 %v1875
  %2128 = vmatprep.subr.mxu0 0.0
  %2129 = vmatpush2.msra.mxu0 %v1874
  %2130 = vmatprep.subr.mxu0 0.0
  %2131 = vmatpush2.msra.mxu0 %v1873
  %2132 = vmatprep.subr.mxu0 0.0
  %2133 = vmatpush2.msra.mxu0 %v1872
  %2134 = vmatprep.mubr.f32.mxu0 %v1658
  %2135 = vmatmul.mubr.f32.gmra.mxu0 %v1656
  %v2136 = vpop.f32.mrf.mxu0
  %v2137 = vadd.f32 %v2062, %v2136
  %v2138 = vpop.f32.mrf.mxu0
  %2139 = vmatprep.mubr.f32.mxu0 %v1659
  %2140 = vmatmul.mubr.f32.gmra.mxu0 %v1657
  %v2141 = vpop.f32.mrf.mxu0
  %v2142 = vadd.f32 %v2067, %v2141
  %v2143 = vpop.f32.mrf.mxu0
  %2144 = vdwg.mxu0
  %2145 = vmatprep.subr.mxu0 0.0
  %2146 = vmatpush1.msra.mxu0 %v1903
  %2147 = vmatprep.subr.mxu0 0.0
  %2148 = vmatpush1.msra.mxu0 %v1902
  %2149 = vmatprep.subr.mxu0 0.0
  %2150 = vmatpush1.msra.mxu0 %v1901
  %2151 = vmatprep.subr.mxu0 0.0
  %2152 = vmatpush1.msra.mxu0 %v1900
  %2153 = vmatprep.subr.mxu0 0.0
  %2154 = vmatpush1.msra.mxu0 %v1899
  %2155 = vmatprep.subr.mxu0 0.0
  %2156 = vmatpush1.msra.mxu0 %v1898
  %2157 = vmatprep.subr.mxu0 0.0
  %2158 = vmatpush1.msra.mxu0 %v1897
  %2159 = vmatprep.subr.mxu0 0.0
  %2160 = vmatpush1.msra.mxu0 %v1896
  %2161 = vmatprep.subr.mxu0 0.0
  %2162 = vmatpush1.msra.mxu0 %v1895
  %2163 = vmatprep.subr.mxu0 0.0
  %2164 = vmatpush1.msra.mxu0 %v1894
  %2165 = vmatprep.subr.mxu0 0.0
  %2166 = vmatpush1.msra.mxu0 %v1893
  %2167 = vmatprep.subr.mxu0 0.0
  %2168 = vmatpush1.msra.mxu0 %v1892
  %2169 = vmatprep.subr.mxu0 0.0
  %2170 = vmatpush1.msra.mxu0 %v1891
  %2171 = vmatprep.subr.mxu0 0.0
  %2172 = vmatpush1.msra.mxu0 %v1890
  %2173 = vmatprep.subr.mxu0 0.0
  %2174 = vmatpush1.msra.mxu0 %v1889
  %2175 = vmatprep.subr.mxu0 0.0
  %2176 = vmatpush1.msra.mxu0 %v1888
  %2177 = vmatprep.subr.mxu0 0.0
  %2178 = vmatpush2.msra.mxu0 %v1919
  %2179 = vmatprep.subr.mxu0 0.0
  %2180 = vmatpush2.msra.mxu0 %v1918
  %2181 = vmatprep.subr.mxu0 0.0
  %2182 = vmatpush2.msra.mxu0 %v1917
  %2183 = vmatprep.subr.mxu0 0.0
  %2184 = vmatpush2.msra.mxu0 %v1916
  %2185 = vmatprep.subr.mxu0 0.0
  %2186 = vmatpush2.msra.mxu0 %v1915
  %2187 = vmatprep.subr.mxu0 0.0
  %2188 = vmatpush2.msra.mxu0 %v1914
  %2189 = vmatprep.subr.mxu0 0.0
  %2190 = vmatpush2.msra.mxu0 %v1913
  %2191 = vmatprep.subr.mxu0 0.0
  %2192 = vmatpush2.msra.mxu0 %v1912
  %2193 = vmatprep.subr.mxu0 0.0
  %2194 = vmatpush2.msra.mxu0 %v1911
  %2195 = vmatprep.subr.mxu0 0.0
  %2196 = vmatpush2.msra.mxu0 %v1910
  %2197 = vmatprep.subr.mxu0 0.0
  %2198 = vmatpush2.msra.mxu0 %v1909
  %2199 = vmatprep.subr.mxu0 0.0
  %2200 = vmatpush2.msra.mxu0 %v1908
  %2201 = vmatprep.subr.mxu0 0.0
  %2202 = vmatpush2.msra.mxu0 %v1907
  %2203 = vmatprep.subr.mxu0 0.0
  %2204 = vmatpush2.msra.mxu0 %v1906
  %2205 = vmatprep.subr.mxu0 0.0
  %2206 = vmatpush2.msra.mxu0 %v1905
  %2207 = vmatprep.subr.mxu0 0.0
  %2208 = vmatpush2.msra.mxu0 %v1904
  %2209 = vmatprep.mubr.f32.mxu0 %v1662
  %2210 = vmatmul.mubr.f32.gmra.mxu0 %v1660
  %v2211 = vpop.f32.mrf.mxu0
  %v2212 = vadd.f32 %v2137, %v2211
  %v2213 = vpop.f32.mrf.mxu0
  %2214 = vmatprep.mubr.f32.mxu0 %v1663
  %2215 = vmatmul.mubr.f32.gmra.mxu0 %v1661
  %v2216 = vpop.f32.mrf.mxu0
  %v2217 = vadd.f32 %v2142, %v2216
  %v2218 = vpop.f32.mrf.mxu0
  %2219 = vdwg.mxu0
  %v2220 = vsel %vm287, %v2212, 0.0
  %v2221 = vsel %vm287, %v2217, 0.0
  %v2222 = vadd.f32 %v2220, %v2221
  %v2223 = vrot.slane %v2222, 4
  %v2224 = vadd.f32 %v2222, %v2223
  %v2225 = vrot.slane %v2224, 2
  %v2226 = vadd.f32 %v2224, %v2225
  %v2227 = vrot.slane %v2226, 1
  %v2228 = vadd.f32 %v2226, %v2227
  %v2229 = vmul.f32 %v2212, %v2212
  %v2230 = vmul.f32 %v2217, %v2217
  %v2231 = vsel %vm287, %v2229, 0.0
  %v2232 = vsel %vm287, %v2230, 0.0
  %v2233 = vadd.f32 %v2231, %v2232
  %v2234 = vrot.slane %v2233, 4
  %v2235 = vadd.f32 %v2233, %v2234
  %v2236 = vrot.slane %v2235, 2
  %v2237 = vadd.f32 %v2235, %v2236
  %v2238 = vrot.slane %v2237, 1
  %v2239 = vadd.f32 %v2237, %v2238
  %vm2240 = vcmask 1040384
  %v2241 = vsel %vm2240, %v2228, %v2239
  %v2243 = vsel %vm287, %v2241, 0
  %2245 = vmatprep.subr.mxu0 0.0
  %2246 = vmatpush1.msra.mxu0 0.0
  %2247 = vmatprep.subr.mxu0 0.0
  %2248 = vmatpush1.msra.mxu0 0.0
  %2249 = vmatprep.subr.mxu0 0.0
  %2250 = vmatpush1.msra.mxu0 0.0
  %2251 = vmatprep.subr.mxu0 0.0
  %2252 = vmatpush1.msra.mxu0 0.0
  %2253 = vmatprep.subr.mxu0 0.0
  %2254 = vmatpush1.msra.mxu0 0.0
  %2255 = vmatprep.subr.mxu0 0.0
  %2256 = vmatpush1.msra.mxu0 0.0
  %2257 = vmatprep.subr.mxu0 0.0
  %2258 = vmatpush1.msra.mxu0 0.0
  %2259 = vmatprep.subr.mxu0 0.0
  %2260 = vmatpush1.msra.mxu0 0.0
  %2261 = vmatprep.subr.mxu0 0.0
  %2262 = vmatpush1.msra.mxu0 %v222
  %2263 = vmatprep.subr.mxu0 0.0
  %2264 = vmatpush1.msra.mxu0 %v221
  %2265 = vmatprep.subr.mxu0 0.0
  %2266 = vmatpush1.msra.mxu0 %v220
  %2267 = vmatprep.subr.mxu0 0.0
  %2268 = vmatpush1.msra.mxu0 %v219
  %2269 = vmatprep.subr.mxu0 0.0
  %2270 = vmatpush1.msra.mxu0 %v218
  %2271 = vmatprep.subr.mxu0 0.0
  %2272 = vmatpush1.msra.mxu0 %v217
  %2273 = vmatprep.subr.mxu0 0.0
  %2274 = vmatpush1.msra.mxu0 %v216
  %2275 = vmatprep.subr.mxu0 0.0
  %2276 = vmatpush1.msra.mxu0 %v215
  %2277 = vmatprep.subr.mxu0 0.0
  %2278 = vmatpush2.msra.mxu0 0.0
  %2279 = vmatprep.subr.mxu0 0.0
  %2280 = vmatpush2.msra.mxu0 0.0
  %2281 = vmatprep.subr.mxu0 0.0
  %2282 = vmatpush2.msra.mxu0 0.0
  %2283 = vmatprep.subr.mxu0 0.0
  %2284 = vmatpush2.msra.mxu0 0.0
  %2285 = vmatprep.subr.mxu0 0.0
  %2286 = vmatpush2.msra.mxu0 0.0
  %2287 = vmatprep.subr.mxu0 0.0
  %2288 = vmatpush2.msra.mxu0 0.0
  %2289 = vmatprep.subr.mxu0 0.0
  %2290 = vmatpush2.msra.mxu0 0.0
  %2291 = vmatprep.subr.mxu0 0.0
  %2292 = vmatpush2.msra.mxu0 0.0
  %2293 = vmatprep.subr.mxu0 0.0
  %2294 = vmatpush2.msra.mxu0 0.0
  %2295 = vmatprep.subr.mxu0 0.0
  %2296 = vmatpush2.msra.mxu0 0.0
  %2297 = vmatprep.subr.mxu0 0.0
  %2298 = vmatpush2.msra.mxu0 0.0
  %2299 = vmatprep.subr.mxu0 0.0
  %2300 = vmatpush2.msra.mxu0 0.0
  %2301 = vmatprep.subr.mxu0 0.0
  %2302 = vmatpush2.msra.mxu0 0.0
  %2303 = vmatprep.subr.mxu0 0.0
  %2304 = vmatpush2.msra.mxu0 0.0
  %2305 = vmatprep.subr.mxu0 0.0
  %2306 = vmatpush2.msra.mxu0 0.0
  %2307 = vmatprep.subr.mxu0 0.0
  %2308 = vmatpush2.msra.mxu0 0.0
  %2309 = vmatprep.mubr.f32.mxu0 0.0
  %2310 = vmatmul.mubr.f32.gmra.mxu0 %v2243
  %v2311 = vpop.f32.mrf.mxu0
  %v2312 = vadd.f32 0.0, %v2311
  %v2313 = vpop.f32.mrf.mxu0
  %2314 = vdwg.mxu0
  %v2315 = vrcp.pop 128.0
  %v2316 = vmul.f32 %v2312, %v2315
  %v2317 = vmul.f32 %v2316, %v2316
  %v2319 = vrot.slane %v2317, 7
  %v2321 = vsub.f32 %v2316, %v2319
  %v2322 = vmax.f32 %v2321, 0.0
  %v2323 = vld [vmem:[%s10] sm:$0x1]
  %v2324 = vld [vmem:[%s11] sm:$0x1]
  %v2325 = vlaneseq
  %v2326 = vshrl.u32 %v2325, 7
  %v2327 = vsub.s32 0, %v2326
  %v2328 = vrot.slane %v2316, %v2327
  %v2329 = vsub.f32 %v2212, %v2328
  %v2330 = vsub.f32 %v2217, %v2328
  %v2331 = vadd.f32 %v2322, 1e-05
  %v2332 = vrsqrt.pop %v2331
  %v2333 = vlaneseq
  %v2334 = vshrl.u32 %v2333, 7
  %v2335 = vsub.s32 1, %v2334
  %v2336 = vrot.slane %v2332, %v2335
  %v2337 = vmul.f32 %v2329, %v2336
  %v2338 = vmul.f32 %v2330, %v2336
  %v2339 = vlaneseq
  %v2340 = vshrl.u32 %v2339, 7
  %v2341 = vsub.s32 0, %v2340
  %v2342 = vrot.slane %v2323, %v2341
  %v2343 = vmul.f32 %v2337, %v2342
  %v2344 = vmul.f32 %v2338, %v2342
  %v2345 = vlaneseq
  %v2346 = vshrl.u32 %v2345, 7
  %v2347 = vsub.s32 0, %v2346
  %v2348 = vrot.slane %v2324, %v2347
  %v2349 = vadd.f32 %v2343, %v2348
  %v2350 = vadd.f32 %v2344, %v2348
  %vm2351 = vcmp.ge.f32.partialorder %v2349, 0.0
  %vm2352 = vcmp.ge.f32.partialorder %v2350, 0.0
  %v2353 = vmul.f32 %v2349, 0.2
  %v2354 = vmul.f32 %v2350, 0.2
  %v2355 = vsel %vm2351, %v2349, %v2353
  %v2356 = vsel %vm2352, %v2350, %v2354
  %v2357 = vld [vmem:[%s5] sm:$0x3]
  %v2358 = vld [vmem:[%s5 + $0x2] sm:$0x3]
  %v2359 = vld [vmem:[%s5 + $0x4] sm:$0x3]
  %v2360 = vld [vmem:[%s5 + $0x6] sm:$0x3]
  %v2361 = vld [vmem:[%s5 + $0x8] sm:$0x3]
  %v2362 = vld [vmem:[%s5 + $0xa] sm:$0x3]
  %v2363 = vld [vmem:[%s5 + $0xc] sm:$0x3]
  %v2364 = vld [vmem:[%s5 + $0xe] sm:$0x3]
  %v2365 = vld [vmem:[%s5 + $0x10] sm:$0x3]
  %v2366 = vld [vmem:[%s5 + $0x12] sm:$0x3]
  %v2367 = vld [vmem:[%s5 + $0x14] sm:$0x3]
  %v2368 = vld [vmem:[%s5 + $0x16] sm:$0x3]
  %v2369 = vld [vmem:[%s5 + $0x18] sm:$0x3]
  %v2370 = vld [vmem:[%s5 + $0x1a] sm:$0x3]
  %v2371 = vld [vmem:[%s5 + $0x1c] sm:$0x3]
  %v2372 = vld [vmem:[%s5 + $0x1e] sm:$0x3]
  %v2373 = vunpack.c.l.bf16 %v2357
  %v2374 = vunpack.c.l.bf16 %v2358
  %v2375 = vunpack.c.l.bf16 %v2359
  %v2376 = vunpack.c.l.bf16 %v2360
  %v2377 = vunpack.c.l.bf16 %v2361
  %v2378 = vunpack.c.l.bf16 %v2362
  %v2379 = vunpack.c.l.bf16 %v2363
  %v2380 = vunpack.c.l.bf16 %v2364
  %v2381 = vunpack.c.l.bf16 %v2365
  %v2382 = vunpack.c.l.bf16 %v2366
  %v2383 = vunpack.c.l.bf16 %v2367
  %v2384 = vunpack.c.l.bf16 %v2368
  %v2385 = vunpack.c.l.bf16 %v2369
  %v2386 = vunpack.c.l.bf16 %v2370
  %v2387 = vunpack.c.l.bf16 %v2371
  %v2388 = vunpack.c.l.bf16 %v2372
  %vm2389 = vcmask 130048
  %v2391 = vsel %vm2389, %v2373, 0
  %2393 = vmatprep.subr.mxu0 0.0
  %2394 = vmatpush1.msra.mxu0 0.0
  %2395 = vmatprep.subr.mxu0 0.0
  %2396 = vmatpush1.msra.mxu0 0.0
  %2397 = vmatprep.subr.mxu0 0.0
  %2398 = vmatpush1.msra.mxu0 0.0
  %2399 = vmatprep.subr.mxu0 0.0
  %2400 = vmatpush1.msra.mxu0 0.0
  %2401 = vmatprep.subr.mxu0 0.0
  %2402 = vmatpush1.msra.mxu0 0.0
  %2403 = vmatprep.subr.mxu0 0.0
  %2404 = vmatpush1.msra.mxu0 0.0
  %2405 = vmatprep.subr.mxu0 0.0
  %2406 = vmatpush1.msra.mxu0 0.0
  %2407 = vmatprep.subr.mxu0 0.0
  %2408 = vmatpush1.msra.mxu0 0.0
  %2409 = vmatprep.subr.mxu0 0.0
  %2410 = vmatpush1.msra.mxu0 0.0
  %2411 = vmatprep.subr.mxu0 0.0
  %2412 = vmatpush1.msra.mxu0 0.0
  %2413 = vmatprep.subr.mxu0 0.0
  %2414 = vmatpush1.msra.mxu0 0.0
  %2415 = vmatprep.subr.mxu0 0.0
  %2416 = vmatpush1.msra.mxu0 0.0
  %2417 = vmatprep.subr.mxu0 0.0
  %2418 = vmatpush1.msra.mxu0 0.0
  %2419 = vmatprep.subr.mxu0 0.0
  %2420 = vmatpush1.msra.mxu0 0.0
  %2421 = vmatprep.subr.mxu0 0.0
  %2422 = vmatpush1.msra.mxu0 %v2356
  %2423 = vmatprep.subr.mxu0 0.0
  %2424 = vmatpush1.msra.mxu0 %v2355
  %2425 = vmatprep.subr.mxu0 0.0
  %2426 = vmatpush2.msra.mxu0 0.0
  %2427 = vmatprep.subr.mxu0 0.0
  %2428 = vmatpush2.msra.mxu0 0.0
  %2429 = vmatprep.subr.mxu0 0.0
  %2430 = vmatpush2.msra.mxu0 0.0
  %2431 = vmatprep.subr.mxu0 0.0
  %2432 = vmatpush2.msra.mxu0 0.0
  %2433 = vmatprep.subr.mxu0 0.0
  %2434 = vmatpush2.msra.mxu0 0.0
  %2435 = vmatprep.subr.mxu0 0.0
  %2436 = vmatpush2.msra.mxu0 0.0
  %2437 = vmatprep.subr.mxu0 0.0
  %2438 = vmatpush2.msra.mxu0 0.0
  %2439 = vmatprep.subr.mxu0 0.0
  %2440 = vmatpush2.msra.mxu0 0.0
  %2441 = vmatprep.subr.mxu0 0.0
  %2442 = vmatpush2.msra.mxu0 0.0
  %2443 = vmatprep.subr.mxu0 0.0
  %2444 = vmatpush2.msra.mxu0 0.0
  %2445 = vmatprep.subr.mxu0 0.0
  %2446 = vmatpush2.msra.mxu0 0.0
  %2447 = vmatprep.subr.mxu0 0.0
  %2448 = vmatpush2.msra.mxu0 0.0
  %2449 = vmatprep.subr.mxu0 0.0
  %2450 = vmatpush2.msra.mxu0 0.0
  %2451 = vmatprep.subr.mxu0 0.0
  %2452 = vmatpush2.msra.mxu0 0.0
  %2453 = vmatprep.subr.mxu0 0.0
  %2454 = vmatpush2.msra.mxu0 0.0
  %2455 = vmatprep.subr.mxu0 0.0
  %2456 = vmatpush2.msra.mxu0 0.0
  %2457 = vmatprep.mubr.f32.mxu0 0.0
  %2458 = vmatmul.mubr.f32.gmra.mxu0 %v2391
  %v2459 = vpop.f32.mrf.mxu0
  %v2460 = vadd.f32 0.0, %v2459
  %v2461 = vpop.f32.mrf.mxu0
  %2462 = vdwg.mxu0
  %v2464 = vsel %vm2389, %v2374, 0
  %2466 = vmatprep.subr.mxu0 0.0
  %2467 = vmatpush1.msra.mxu0 0.0
  %2468 = vmatprep.subr.mxu0 0.0
  %2469 = vmatpush1.msra.mxu0 0.0
  %2470 = vmatprep.subr.mxu0 0.0
  %2471 = vmatpush1.msra.mxu0 0.0
  %2472 = vmatprep.subr.mxu0 0.0
  %2473 = vmatpush1.msra.mxu0 0.0
  %2474 = vmatprep.subr.mxu0 0.0
  %2475 = vmatpush1.msra.mxu0 0.0
  %2476 = vmatprep.subr.mxu0 0.0
  %2477 = vmatpush1.msra.mxu0 0.0
  %2478 = vmatprep.subr.mxu0 0.0
  %2479 = vmatpush1.msra.mxu0 0.0
  %2480 = vmatprep.subr.mxu0 0.0
  %2481 = vmatpush1.msra.mxu0 0.0
  %2482 = vmatprep.subr.mxu0 0.0
  %2483 = vmatpush1.msra.mxu0 0.0
  %2484 = vmatprep.subr.mxu0 0.0
  %2485 = vmatpush1.msra.mxu0 0.0
  %2486 = vmatprep.subr.mxu0 0.0
  %2487 = vmatpush1.msra.mxu0 0.0
  %2488 = vmatprep.subr.mxu0 0.0
  %2489 = vmatpush1.msra.mxu0 0.0
  %2490 = vmatprep.subr.mxu0 0.0
  %2491 = vmatpush1.msra.mxu0 0.0
  %2492 = vmatprep.subr.mxu0 0.0
  %2493 = vmatpush1.msra.mxu0 0.0
  %2494 = vmatprep.subr.mxu0 0.0
  %2495 = vmatpush1.msra.mxu0 %v2356
  %2496 = vmatprep.subr.mxu0 0.0
  %2497 = vmatpush1.msra.mxu0 %v2355
  %2498 = vmatprep.subr.mxu0 0.0
  %2499 = vmatpush2.msra.mxu0 0.0
  %2500 = vmatprep.subr.mxu0 0.0
  %2501 = vmatpush2.msra.mxu0 0.0
  %2502 = vmatprep.subr.mxu0 0.0
  %2503 = vmatpush2.msra.mxu0 0.0
  %2504 = vmatprep.subr.mxu0 0.0
  %2505 = vmatpush2.msra.mxu0 0.0
  %2506 = vmatprep.subr.mxu0 0.0
  %2507 = vmatpush2.msra.mxu0 0.0
  %2508 = vmatprep.subr.mxu0 0.0
  %2509 = vmatpush2.msra.mxu0 0.0
  %2510 = vmatprep.subr.mxu0 0.0
  %2511 = vmatpush2.msra.mxu0 0.0
  %2512 = vmatprep.subr.mxu0 0.0
  %2513 = vmatpush2.msra.mxu0 0.0
  %2514 = vmatprep.subr.mxu0 0.0
  %2515 = vmatpush2.msra.mxu0 0.0
  %2516 = vmatprep.subr.mxu0 0.0
  %2517 = vmatpush2.msra.mxu0 0.0
  %2518 = vmatprep.subr.mxu0 0.0
  %2519 = vmatpush2.msra.mxu0 0.0
  %2520 = vmatprep.subr.mxu0 0.0
  %2521 = vmatpush2.msra.mxu0 0.0
  %2522 = vmatprep.subr.mxu0 0.0
  %2523 = vmatpush2.msra.mxu0 0.0
  %2524 = vmatprep.subr.mxu0 0.0
  %2525 = vmatpush2.msra.mxu0 0.0
  %2526 = vmatprep.subr.mxu0 0.0
  %2527 = vmatpush2.msra.mxu0 0.0
  %2528 = vmatprep.subr.mxu0 0.0
  %2529 = vmatpush2.msra.mxu0 0.0
  %2530 = vmatprep.mubr.f32.mxu0 0.0
  %2531 = vmatmul.mubr.f32.gmra.mxu0 %v2464
  %v2532 = vpop.f32.mrf.mxu0
  %v2533 = vadd.f32 0.0, %v2532
  %v2534 = vpop.f32.mrf.mxu0
  %2535 = vdwg.mxu0
  %v2537 = vsel %vm2389, %v2375, 0
  %2539 = vmatprep.subr.mxu0 0.0
  %2540 = vmatpush1.msra.mxu0 0.0
  %2541 = vmatprep.subr.mxu0 0.0
  %2542 = vmatpush1.msra.mxu0 0.0
  %2543 = vmatprep.subr.mxu0 0.0
  %2544 = vmatpush1.msra.mxu0 0.0
  %2545 = vmatprep.subr.mxu0 0.0
  %2546 = vmatpush1.msra.mxu0 0.0
  %2547 = vmatprep.subr.mxu0 0.0
  %2548 = vmatpush1.msra.mxu0 0.0
  %2549 = vmatprep.subr.mxu0 0.0
  %2550 = vmatpush1.msra.mxu0 0.0
  %2551 = vmatprep.subr.mxu0 0.0
  %2552 = vmatpush1.msra.mxu0 0.0
  %2553 = vmatprep.subr.mxu0 0.0
  %2554 = vmatpush1.msra.mxu0 0.0
  %2555 = vmatprep.subr.mxu0 0.0
  %2556 = vmatpush1.msra.mxu0 0.0
  %2557 = vmatprep.subr.mxu0 0.0
  %2558 = vmatpush1.msra.mxu0 0.0
  %2559 = vmatprep.subr.mxu0 0.0
  %2560 = vmatpush1.msra.mxu0 0.0
  %2561 = vmatprep.subr.mxu0 0.0
  %2562 = vmatpush1.msra.mxu0 0.0
  %2563 = vmatprep.subr.mxu0 0.0
  %2564 = vmatpush1.msra.mxu0 0.0
  %2565 = vmatprep.subr.mxu0 0.0
  %2566 = vmatpush1.msra.mxu0 0.0
  %2567 = vmatprep.subr.mxu0 0.0
  %2568 = vmatpush1.msra.mxu0 %v2356
  %2569 = vmatprep.subr.mxu0 0.0
  %2570 = vmatpush1.msra.mxu0 %v2355
  %2571 = vmatprep.subr.mxu0 0.0
  %2572 = vmatpush2.msra.mxu0 0.0
  %2573 = vmatprep.subr.mxu0 0.0
  %2574 = vmatpush2.msra.mxu0 0.0
  %2575 = vmatprep.subr.mxu0 0.0
  %2576 = vmatpush2.msra.mxu0 0.0
  %2577 = vmatprep.subr.mxu0 0.0
  %2578 = vmatpush2.msra.mxu0 0.0
  %2579 = vmatprep.subr.mxu0 0.0
  %2580 = vmatpush2.msra.mxu0 0.0
  %2581 = vmatprep.subr.mxu0 0.0
  %2582 = vmatpush2.msra.mxu0 0.0
  %2583 = vmatprep.subr.mxu0 0.0
  %2584 = vmatpush2.msra.mxu0 0.0
  %2585 = vmatprep.subr.mxu0 0.0
  %2586 = vmatpush2.msra.mxu0 0.0
  %2587 = vmatprep.subr.mxu0 0.0
  %2588 = vmatpush2.msra.mxu0 0.0
  %2589 = vmatprep.subr.mxu0 0.0
  %2590 = vmatpush2.msra.mxu0 0.0
  %2591 = vmatprep.subr.mxu0 0.0
  %2592 = vmatpush2.msra.mxu0 0.0
  %2593 = vmatprep.subr.mxu0 0.0
  %2594 = vmatpush2.msra.mxu0 0.0
  %2595 = vmatprep.subr.mxu0 0.0
  %2596 = vmatpush2.msra.mxu0 0.0
  %2597 = vmatprep.subr.mxu0 0.0
  %2598 = vmatpush2.msra.mxu0 0.0
  %2599 = vmatprep.subr.mxu0 0.0
  %2600 = vmatpush2.msra.mxu0 0.0
  %2601 = vmatprep.subr.mxu0 0.0
  %2602 = vmatpush2.msra.mxu0 0.0
  %2603 = vmatprep.mubr.f32.mxu0 0.0
  %2604 = vmatmul.mubr.f32.gmra.mxu0 %v2537
  %v2605 = vpop.f32.mrf.mxu0
  %v2606 = vadd.f32 0.0, %v2605
  %v2607 = vpop.f32.mrf.mxu0
  %2608 = vdwg.mxu0
  %v2610 = vsel %vm2389, %v2376, 0
  %2612 = vmatprep.subr.mxu0 0.0
  %2613 = vmatpush1.msra.mxu0 0.0
  %2614 = vmatprep.subr.mxu0 0.0
  %2615 = vmatpush1.msra.mxu0 0.0
  %2616 = vmatprep.subr.mxu0 0.0
  %2617 = vmatpush1.msra.mxu0 0.0
  %2618 = vmatprep.subr.mxu0 0.0
  %2619 = vmatpush1.msra.mxu0 0.0
  %2620 = vmatprep.subr.mxu0 0.0
  %2621 = vmatpush1.msra.mxu0 0.0
  %2622 = vmatprep.subr.mxu0 0.0
  %2623 = vmatpush1.msra.mxu0 0.0
  %2624 = vmatprep.subr.mxu0 0.0
  %2625 = vmatpush1.msra.mxu0 0.0
  %2626 = vmatprep.subr.mxu0 0.0
  %2627 = vmatpush1.msra.mxu0 0.0
  %2628 = vmatprep.subr.mxu0 0.0
  %2629 = vmatpush1.msra.mxu0 0.0
  %2630 = vmatprep.subr.mxu0 0.0
  %2631 = vmatpush1.msra.mxu0 0.0
  %2632 = vmatprep.subr.mxu0 0.0
  %2633 = vmatpush1.msra.mxu0 0.0
  %2634 = vmatprep.subr.mxu0 0.0
  %2635 = vmatpush1.msra.mxu0 0.0
  %2636 = vmatprep.subr.mxu0 0.0
  %2637 = vmatpush1.msra.mxu0 0.0
  %2638 = vmatprep.subr.mxu0 0.0
  %2639 = vmatpush1.msra.mxu0 0.0
  %2640 = vmatprep.subr.mxu0 0.0
  %2641 = vmatpush1.msra.mxu0 %v2356
  %2642 = vmatprep.subr.mxu0 0.0
  %2643 = vmatpush1.msra.mxu0 %v2355
  %2644 = vmatprep.subr.mxu0 0.0
  %2645 = vmatpush2.msra.mxu0 0.0
  %2646 = vmatprep.subr.mxu0 0.0
  %2647 = vmatpush2.msra.mxu0 0.0
  %2648 = vmatprep.subr.mxu0 0.0
  %2649 = vmatpush2.msra.mxu0 0.0
  %2650 = vmatprep.subr.mxu0 0.0
  %2651 = vmatpush2.msra.mxu0 0.0
  %2652 = vmatprep.subr.mxu0 0.0
  %2653 = vmatpush2.msra.mxu0 0.0
  %2654 = vmatprep.subr.mxu0 0.0
  %2655 = vmatpush2.msra.mxu0 0.0
  %2656 = vmatprep.subr.mxu0 0.0
  %2657 = vmatpush2.msra.mxu0 0.0
  %2658 = vmatprep.subr.mxu0 0.0
  %2659 = vmatpush2.msra.mxu0 0.0
  %2660 = vmatprep.subr.mxu0 0.0
  %2661 = vmatpush2.msra.mxu0 0.0
  %2662 = vmatprep.subr.mxu0 0.0
  %2663 = vmatpush2.msra.mxu0 0.0
  %2664 = vmatprep.subr.mxu0 0.0
  %2665 = vmatpush2.msra.mxu0 0.0
  %2666 = vmatprep.subr.mxu0 0.0
  %2667 = vmatpush2.msra.mxu0 0.0
  %2668 = vmatprep.subr.mxu0 0.0
  %2669 = vmatpush2.msra.mxu0 0.0
  %2670 = vmatprep.subr.mxu0 0.0
  %2671 = vmatpush2.msra.mxu0 0.0
  %2672 = vmatprep.subr.mxu0 0.0
  %2673 = vmatpush2.msra.mxu0 0.0
  %2674 = vmatprep.subr.mxu0 0.0
  %2675 = vmatpush2.msra.mxu0 0.0
  %2676 = vmatprep.mubr.f32.mxu0 0.0
  %2677 = vmatmul.mubr.f32.gmra.mxu0 %v2610
  %v2678 = vpop.f32.mrf.mxu0
  %v2679 = vadd.f32 0.0, %v2678
  %v2680 = vpop.f32.mrf.mxu0
  %2681 = vdwg.mxu0
  %v2683 = vsel %vm2389, %v2377, 0
  %2685 = vmatprep.subr.mxu0 0.0
  %2686 = vmatpush1.msra.mxu0 0.0
  %2687 = vmatprep.subr.mxu0 0.0
  %2688 = vmatpush1.msra.mxu0 0.0
  %2689 = vmatprep.subr.mxu0 0.0
  %2690 = vmatpush1.msra.mxu0 0.0
  %2691 = vmatprep.subr.mxu0 0.0
  %2692 = vmatpush1.msra.mxu0 0.0
  %2693 = vmatprep.subr.mxu0 0.0
  %2694 = vmatpush1.msra.mxu0 0.0
  %2695 = vmatprep.subr.mxu0 0.0
  %2696 = vmatpush1.msra.mxu0 0.0
  %2697 = vmatprep.subr.mxu0 0.0
  %2698 = vmatpush1.msra.mxu0 0.0
  %2699 = vmatprep.subr.mxu0 0.0
  %2700 = vmatpush1.msra.mxu0 0.0
  %2701 = vmatprep.subr.mxu0 0.0
  %2702 = vmatpush1.msra.mxu0 0.0
  %2703 = vmatprep.subr.mxu0 0.0
  %2704 = vmatpush1.msra.mxu0 0.0
  %2705 = vmatprep.subr.mxu0 0.0
  %2706 = vmatpush1.msra.mxu0 0.0
  %2707 = vmatprep.subr.mxu0 0.0
  %2708 = vmatpush1.msra.mxu0 0.0
  %2709 = vmatprep.subr.mxu0 0.0
  %2710 = vmatpush1.msra.mxu0 0.0
  %2711 = vmatprep.subr.mxu0 0.0
  %2712 = vmatpush1.msra.mxu0 0.0
  %2713 = vmatprep.subr.mxu0 0.0
  %2714 = vmatpush1.msra.mxu0 %v2356
  %2715 = vmatprep.subr.mxu0 0.0
  %2716 = vmatpush1.msra.mxu0 %v2355
  %2717 = vmatprep.subr.mxu0 0.0
  %2718 = vmatpush2.msra.mxu0 0.0
  %2719 = vmatprep.subr.mxu0 0.0
  %2720 = vmatpush2.msra.mxu0 0.0
  %2721 = vmatprep.subr.mxu0 0.0
  %2722 = vmatpush2.msra.mxu0 0.0
  %2723 = vmatprep.subr.mxu0 0.0
  %2724 = vmatpush2.msra.mxu0 0.0
  %2725 = vmatprep.subr.mxu0 0.0
  %2726 = vmatpush2.msra.mxu0 0.0
  %2727 = vmatprep.subr.mxu0 0.0
  %2728 = vmatpush2.msra.mxu0 0.0
  %2729 = vmatprep.subr.mxu0 0.0
  %2730 = vmatpush2.msra.mxu0 0.0
  %2731 = vmatprep.subr.mxu0 0.0
  %2732 = vmatpush2.msra.mxu0 0.0
  %2733 = vmatprep.subr.mxu0 0.0
  %2734 = vmatpush2.msra.mxu0 0.0
  %2735 = vmatprep.subr.mxu0 0.0
  %2736 = vmatpush2.msra.mxu0 0.0
  %2737 = vmatprep.subr.mxu0 0.0
  %2738 = vmatpush2.msra.mxu0 0.0
  %2739 = vmatprep.subr.mxu0 0.0
  %2740 = vmatpush2.msra.mxu0 0.0
  %2741 = vmatprep.subr.mxu0 0.0
  %2742 = vmatpush2.msra.mxu0 0.0
  %2743 = vmatprep.subr.mxu0 0.0
  %2744 = vmatpush2.msra.mxu0 0.0
  %2745 = vmatprep.subr.mxu0 0.0
  %2746 = vmatpush2.msra.mxu0 0.0
  %2747 = vmatprep.subr.mxu0 0.0
  %2748 = vmatpush2.msra.mxu0 0.0
  %2749 = vmatprep.mubr.f32.mxu0 0.0
  %2750 = vmatmul.mubr.f32.gmra.mxu0 %v2683
  %v2751 = vpop.f32.mrf.mxu0
  %v2752 = vadd.f32 0.0, %v2751
  %v2753 = vpop.f32.mrf.mxu0
  %2754 = vdwg.mxu0
  %v2756 = vsel %vm2389, %v2378, 0
  %2758 = vmatprep.subr.mxu0 0.0
  %2759 = vmatpush1.msra.mxu0 0.0
  %2760 = vmatprep.subr.mxu0 0.0
  %2761 = vmatpush1.msra.mxu0 0.0
  %2762 = vmatprep.subr.mxu0 0.0
  %2763 = vmatpush1.msra.mxu0 0.0
  %2764 = vmatprep.subr.mxu0 0.0
  %2765 = vmatpush1.msra.mxu0 0.0
  %2766 = vmatprep.subr.mxu0 0.0
  %2767 = vmatpush1.msra.mxu0 0.0
  %2768 = vmatprep.subr.mxu0 0.0
  %2769 = vmatpush1.msra.mxu0 0.0
  %2770 = vmatprep.subr.mxu0 0.0
  %2771 = vmatpush1.msra.mxu0 0.0
  %2772 = vmatprep.subr.mxu0 0.0
  %2773 = vmatpush1.msra.mxu0 0.0
  %2774 = vmatprep.subr.mxu0 0.0
  %2775 = vmatpush1.msra.mxu0 0.0
  %2776 = vmatprep.subr.mxu0 0.0
  %2777 = vmatpush1.msra.mxu0 0.0
  %2778 = vmatprep.subr.mxu0 0.0
  %2779 = vmatpush1.msra.mxu0 0.0
  %2780 = vmatprep.subr.mxu0 0.0
  %2781 = vmatpush1.msra.mxu0 0.0
  %2782 = vmatprep.subr.mxu0 0.0
  %2783 = vmatpush1.msra.mxu0 0.0
  %2784 = vmatprep.subr.mxu0 0.0
  %2785 = vmatpush1.msra.mxu0 0.0
  %2786 = vmatprep.subr.mxu0 0.0
  %2787 = vmatpush1.msra.mxu0 %v2356
  %2788 = vmatprep.subr.mxu0 0.0
  %2789 = vmatpush1.msra.mxu0 %v2355
  %2790 = vmatprep.subr.mxu0 0.0
  %2791 = vmatpush2.msra.mxu0 0.0
  %2792 = vmatprep.subr.mxu0 0.0
  %2793 = vmatpush2.msra.mxu0 0.0
  %2794 = vmatprep.subr.mxu0 0.0
  %2795 = vmatpush2.msra.mxu0 0.0
  %2796 = vmatprep.subr.mxu0 0.0
  %2797 = vmatpush2.msra.mxu0 0.0
  %2798 = vmatprep.subr.mxu0 0.0
  %2799 = vmatpush2.msra.mxu0 0.0
  %2800 = vmatprep.subr.mxu0 0.0
  %2801 = vmatpush2.msra.mxu0 0.0
  %2802 = vmatprep.subr.mxu0 0.0
  %2803 = vmatpush2.msra.mxu0 0.0
  %2804 = vmatprep.subr.mxu0 0.0
  %2805 = vmatpush2.msra.mxu0 0.0
  %2806 = vmatprep.subr.mxu0 0.0
  %2807 = vmatpush2.msra.mxu0 0.0
  %2808 = vmatprep.subr.mxu0 0.0
  %2809 = vmatpush2.msra.mxu0 0.0
  %2810 = vmatprep.subr.mxu0 0.0
  %2811 = vmatpush2.msra.mxu0 0.0
  %2812 = vmatprep.subr.mxu0 0.0
  %2813 = vmatpush2.msra.mxu0 0.0
  %2814 = vmatprep.subr.mxu0 0.0
  %2815 = vmatpush2.msra.mxu0 0.0
  %2816 = vmatprep.subr.mxu0 0.0
  %2817 = vmatpush2.msra.mxu0 0.0
  %2818 = vmatprep.subr.mxu0 0.0
  %2819 = vmatpush2.msra.mxu0 0.0
  %2820 = vmatprep.subr.mxu0 0.0
  %2821 = vmatpush2.msra.mxu0 0.0
  %2822 = vmatprep.mubr.f32.mxu0 0.0
  %2823 = vmatmul.mubr.f32.gmra.mxu0 %v2756
  %v2824 = vpop.f32.mrf.mxu0
  %v2825 = vadd.f32 0.0, %v2824
  %v2826 = vpop.f32.mrf.mxu0
  %2827 = vdwg.mxu0
  %v2829 = vsel %vm2389, %v2379, 0
  %2831 = vmatprep.subr.mxu0 0.0
  %2832 = vmatpush1.msra.mxu0 0.0
  %2833 = vmatprep.subr.mxu0 0.0
  %2834 = vmatpush1.msra.mxu0 0.0
  %2835 = vmatprep.subr.mxu0 0.0
  %2836 = vmatpush1.msra.mxu0 0.0
  %2837 = vmatprep.subr.mxu0 0.0
  %2838 = vmatpush1.msra.mxu0 0.0
  %2839 = vmatprep.subr.mxu0 0.0
  %2840 = vmatpush1.msra.mxu0 0.0
  %2841 = vmatprep.subr.mxu0 0.0
  %2842 = vmatpush1.msra.mxu0 0.0
  %2843 = vmatprep.subr.mxu0 0.0
  %2844 = vmatpush1.msra.mxu0 0.0
  %2845 = vmatprep.subr.mxu0 0.0
  %2846 = vmatpush1.msra.mxu0 0.0
  %2847 = vmatprep.subr.mxu0 0.0
  %2848 = vmatpush1.msra.mxu0 0.0
  %2849 = vmatprep.subr.mxu0 0.0
  %2850 = vmatpush1.msra.mxu0 0.0
  %2851 = vmatprep.subr.mxu0 0.0
  %2852 = vmatpush1.msra.mxu0 0.0
  %2853 = vmatprep.subr.mxu0 0.0
  %2854 = vmatpush1.msra.mxu0 0.0
  %2855 = vmatprep.subr.mxu0 0.0
  %2856 = vmatpush1.msra.mxu0 0.0
  %2857 = vmatprep.subr.mxu0 0.0
  %2858 = vmatpush1.msra.mxu0 0.0
  %2859 = vmatprep.subr.mxu0 0.0
  %2860 = vmatpush1.msra.mxu0 %v2356
  %2861 = vmatprep.subr.mxu0 0.0
  %2862 = vmatpush1.msra.mxu0 %v2355
  %2863 = vmatprep.subr.mxu0 0.0
  %2864 = vmatpush2.msra.mxu0 0.0
  %2865 = vmatprep.subr.mxu0 0.0
  %2866 = vmatpush2.msra.mxu0 0.0
  %2867 = vmatprep.subr.mxu0 0.0
  %2868 = vmatpush2.msra.mxu0 0.0
  %2869 = vmatprep.subr.mxu0 0.0
  %2870 = vmatpush2.msra.mxu0 0.0
  %2871 = vmatprep.subr.mxu0 0.0
  %2872 = vmatpush2.msra.mxu0 0.0
  %2873 = vmatprep.subr.mxu0 0.0
  %2874 = vmatpush2.msra.mxu0 0.0
  %2875 = vmatprep.subr.mxu0 0.0
  %2876 = vmatpush2.msra.mxu0 0.0
  %2877 = vmatprep.subr.mxu0 0.0
  %2878 = vmatpush2.msra.mxu0 0.0
  %2879 = vmatprep.subr.mxu0 0.0
  %2880 = vmatpush2.msra.mxu0 0.0
  %2881 = vmatprep.subr.mxu0 0.0
  %2882 = vmatpush2.msra.mxu0 0.0
  %2883 = vmatprep.subr.mxu0 0.0
  %2884 = vmatpush2.msra.mxu0 0.0
  %2885 = vmatprep.subr.mxu0 0.0
  %2886 = vmatpush2.msra.mxu0 0.0
  %2887 = vmatprep.subr.mxu0 0.0
  %2888 = vmatpush2.msra.mxu0 0.0
  %2889 = vmatprep.subr.mxu0 0.0
  %2890 = vmatpush2.msra.mxu0 0.0
  %2891 = vmatprep.subr.mxu0 0.0
  %2892 = vmatpush2.msra.mxu0 0.0
  %2893 = vmatprep.subr.mxu0 0.0
  %2894 = vmatpush2.msra.mxu0 0.0
  %2895 = vmatprep.mubr.f32.mxu0 0.0
  %2896 = vmatmul.mubr.f32.gmra.mxu0 %v2829
  %v2897 = vpop.f32.mrf.mxu0
  %v2898 = vadd.f32 0.0, %v2897
  %v2899 = vpop.f32.mrf.mxu0
  %2900 = vdwg.mxu0
  %v2902 = vsel %vm2389, %v2380, 0
  %2904 = vmatprep.subr.mxu0 0.0
  %2905 = vmatpush1.msra.mxu0 0.0
  %2906 = vmatprep.subr.mxu0 0.0
  %2907 = vmatpush1.msra.mxu0 0.0
  %2908 = vmatprep.subr.mxu0 0.0
  %2909 = vmatpush1.msra.mxu0 0.0
  %2910 = vmatprep.subr.mxu0 0.0
  %2911 = vmatpush1.msra.mxu0 0.0
  %2912 = vmatprep.subr.mxu0 0.0
  %2913 = vmatpush1.msra.mxu0 0.0
  %2914 = vmatprep.subr.mxu0 0.0
  %2915 = vmatpush1.msra.mxu0 0.0
  %2916 = vmatprep.subr.mxu0 0.0
  %2917 = vmatpush1.msra.mxu0 0.0
  %2918 = vmatprep.subr.mxu0 0.0
  %2919 = vmatpush1.msra.mxu0 0.0
  %2920 = vmatprep.subr.mxu0 0.0
  %2921 = vmatpush1.msra.mxu0 0.0
  %2922 = vmatprep.subr.mxu0 0.0
  %2923 = vmatpush1.msra.mxu0 0.0
  %2924 = vmatprep.subr.mxu0 0.0
  %2925 = vmatpush1.msra.mxu0 0.0
  %2926 = vmatprep.subr.mxu0 0.0
  %2927 = vmatpush1.msra.mxu0 0.0
  %2928 = vmatprep.subr.mxu0 0.0
  %2929 = vmatpush1.msra.mxu0 0.0
  %2930 = vmatprep.subr.mxu0 0.0
  %2931 = vmatpush1.msra.mxu0 0.0
  %2932 = vmatprep.subr.mxu0 0.0
  %2933 = vmatpush1.msra.mxu0 %v2356
  %2934 = vmatprep.subr.mxu0 0.0
  %2935 = vmatpush1.msra.mxu0 %v2355
  %2936 = vmatprep.subr.mxu0 0.0
  %2937 = vmatpush2.msra.mxu0 0.0
  %2938 = vmatprep.subr.mxu0 0.0
  %2939 = vmatpush2.msra.mxu0 0.0
  %2940 = vmatprep.subr.mxu0 0.0
  %2941 = vmatpush2.msra.mxu0 0.0
  %2942 = vmatprep.subr.mxu0 0.0
  %2943 = vmatpush2.msra.mxu0 0.0
  %2944 = vmatprep.subr.mxu0 0.0
  %2945 = vmatpush2.msra.mxu0 0.0
  %2946 = vmatprep.subr.mxu0 0.0
  %2947 = vmatpush2.msra.mxu0 0.0
  %2948 = vmatprep.subr.mxu0 0.0
  %2949 = vmatpush2.msra.mxu0 0.0
  %2950 = vmatprep.subr.mxu0 0.0
  %2951 = vmatpush2.msra.mxu0 0.0
  %2952 = vmatprep.subr.mxu0 0.0
  %2953 = vmatpush2.msra.mxu0 0.0
  %2954 = vmatprep.subr.mxu0 0.0
  %2955 = vmatpush2.msra.mxu0 0.0
  %2956 = vmatprep.subr.mxu0 0.0
  %2957 = vmatpush2.msra.mxu0 0.0
  %2958 = vmatprep.subr.mxu0 0.0
  %2959 = vmatpush2.msra.mxu0 0.0
  %2960 = vmatprep.subr.mxu0 0.0
  %2961 = vmatpush2.msra.mxu0 0.0
  %2962 = vmatprep.subr.mxu0 0.0
  %2963 = vmatpush2.msra.mxu0 0.0
  %2964 = vmatprep.subr.mxu0 0.0
  %2965 = vmatpush2.msra.mxu0 0.0
  %2966 = vmatprep.subr.mxu0 0.0
  %2967 = vmatpush2.msra.mxu0 0.0
  %2968 = vmatprep.mubr.f32.mxu0 0.0
  %2969 = vmatmul.mubr.f32.gmra.mxu0 %v2902
  %v2970 = vpop.f32.mrf.mxu0
  %v2971 = vadd.f32 0.0, %v2970
  %v2972 = vpop.f32.mrf.mxu0
  %2973 = vdwg.mxu0
  %v2975 = vsel %vm2389, %v2381, 0
  %2977 = vmatprep.subr.mxu0 0.0
  %2978 = vmatpush1.msra.mxu0 0.0
  %2979 = vmatprep.subr.mxu0 0.0
  %2980 = vmatpush1.msra.mxu0 0.0
  %2981 = vmatprep.subr.mxu0 0.0
  %2982 = vmatpush1.msra.mxu0 0.0
  %2983 = vmatprep.subr.mxu0 0.0
  %2984 = vmatpush1.msra.mxu0 0.0
  %2985 = vmatprep.subr.mxu0 0.0
  %2986 = vmatpush1.msra.mxu0 0.0
  %2987 = vmatprep.subr.mxu0 0.0
  %2988 = vmatpush1.msra.mxu0 0.0
  %2989 = vmatprep.subr.mxu0 0.0
  %2990 = vmatpush1.msra.mxu0 0.0
  %2991 = vmatprep.subr.mxu0 0.0
  %2992 = vmatpush1.msra.mxu0 0.0
  %2993 = vmatprep.subr.mxu0 0.0
  %2994 = vmatpush1.msra.mxu0 0.0
  %2995 = vmatprep.subr.mxu0 0.0
  %2996 = vmatpush1.msra.mxu0 0.0
  %2997 = vmatprep.subr.mxu0 0.0
  %2998 = vmatpush1.msra.mxu0 0.0
  %2999 = vmatprep.subr.mxu0 0.0
  %3000 = vmatpush1.msra.mxu0 0.0
  %3001 = vmatprep.subr.mxu0 0.0
  %3002 = vmatpush1.msra.mxu0 0.0
  %3003 = vmatprep.subr.mxu0 0.0
  %3004 = vmatpush1.msra.mxu0 0.0
  %3005 = vmatprep.subr.mxu0 0.0
  %3006 = vmatpush1.msra.mxu0 %v2356
  %3007 = vmatprep.subr.mxu0 0.0
  %3008 = vmatpush1.msra.mxu0 %v2355
  %3009 = vmatprep.subr.mxu0 0.0
  %3010 = vmatpush2.msra.mxu0 0.0
  %3011 = vmatprep.subr.mxu0 0.0
  %3012 = vmatpush2.msra.mxu0 0.0
  %3013 = vmatprep.subr.mxu0 0.0
  %3014 = vmatpush2.msra.mxu0 0.0
  %3015 = vmatprep.subr.mxu0 0.0
  %3016 = vmatpush2.msra.mxu0 0.0
  %3017 = vmatprep.subr.mxu0 0.0
  %3018 = vmatpush2.msra.mxu0 0.0
  %3019 = vmatprep.subr.mxu0 0.0
  %3020 = vmatpush2.msra.mxu0 0.0
  %3021 = vmatprep.subr.mxu0 0.0
  %3022 = vmatpush2.msra.mxu0 0.0
  %3023 = vmatprep.subr.mxu0 0.0
  %3024 = vmatpush2.msra.mxu0 0.0
  %3025 = vmatprep.subr.mxu0 0.0
  %3026 = vmatpush2.msra.mxu0 0.0
  %3027 = vmatprep.subr.mxu0 0.0
  %3028 = vmatpush2.msra.mxu0 0.0
  %3029 = vmatprep.subr.mxu0 0.0
  %3030 = vmatpush2.msra.mxu0 0.0
  %3031 = vmatprep.subr.mxu0 0.0
  %3032 = vmatpush2.msra.mxu0 0.0
  %3033 = vmatprep.subr.mxu0 0.0
  %3034 = vmatpush2.msra.mxu0 0.0
  %3035 = vmatprep.subr.mxu0 0.0
  %3036 = vmatpush2.msra.mxu0 0.0
  %3037 = vmatprep.subr.mxu0 0.0
  %3038 = vmatpush2.msra.mxu0 0.0
  %3039 = vmatprep.subr.mxu0 0.0
  %3040 = vmatpush2.msra.mxu0 0.0
  %3041 = vmatprep.mubr.f32.mxu0 0.0
  %3042 = vmatmul.mubr.f32.gmra.mxu0 %v2975
  %v3043 = vpop.f32.mrf.mxu0
  %v3044 = vadd.f32 0.0, %v3043
  %v3045 = vpop.f32.mrf.mxu0
  %3046 = vdwg.mxu0
  %v3048 = vsel %vm2389, %v2382, 0
  %3050 = vmatprep.subr.mxu0 0.0
  %3051 = vmatpush1.msra.mxu0 0.0
  %3052 = vmatprep.subr.mxu0 0.0
  %3053 = vmatpush1.msra.mxu0 0.0
  %3054 = vmatprep.subr.mxu0 0.0
  %3055 = vmatpush1.msra.mxu0 0.0
  %3056 = vmatprep.subr.mxu0 0.0
  %3057 = vmatpush1.msra.mxu0 0.0
  %3058 = vmatprep.subr.mxu0 0.0
  %3059 = vmatpush1.msra.mxu0 0.0
  %3060 = vmatprep.subr.mxu0 0.0
  %3061 = vmatpush1.msra.mxu0 0.0
  %3062 = vmatprep.subr.mxu0 0.0
  %3063 = vmatpush1.msra.mxu0 0.0
  %3064 = vmatprep.subr.mxu0 0.0
  %3065 = vmatpush1.msra.mxu0 0.0
  %3066 = vmatprep.subr.mxu0 0.0
  %3067 = vmatpush1.msra.mxu0 0.0
  %3068 = vmatprep.subr.mxu0 0.0
  %3069 = vmatpush1.msra.mxu0 0.0
  %3070 = vmatprep.subr.mxu0 0.0
  %3071 = vmatpush1.msra.mxu0 0.0
  %3072 = vmatprep.subr.mxu0 0.0
  %3073 = vmatpush1.msra.mxu0 0.0
  %3074 = vmatprep.subr.mxu0 0.0
  %3075 = vmatpush1.msra.mxu0 0.0
  %3076 = vmatprep.subr.mxu0 0.0
  %3077 = vmatpush1.msra.mxu0 0.0
  %3078 = vmatprep.subr.mxu0 0.0
  %3079 = vmatpush1.msra.mxu0 %v2356
  %3080 = vmatprep.subr.mxu0 0.0
  %3081 = vmatpush1.msra.mxu0 %v2355
  %3082 = vmatprep.subr.mxu0 0.0
  %3083 = vmatpush2.msra.mxu0 0.0
  %3084 = vmatprep.subr.mxu0 0.0
  %3085 = vmatpush2.msra.mxu0 0.0
  %3086 = vmatprep.subr.mxu0 0.0
  %3087 = vmatpush2.msra.mxu0 0.0
  %3088 = vmatprep.subr.mxu0 0.0
  %3089 = vmatpush2.msra.mxu0 0.0
  %3090 = vmatprep.subr.mxu0 0.0
  %3091 = vmatpush2.msra.mxu0 0.0
  %3092 = vmatprep.subr.mxu0 0.0
  %3093 = vmatpush2.msra.mxu0 0.0
  %3094 = vmatprep.subr.mxu0 0.0
  %3095 = vmatpush2.msra.mxu0 0.0
  %3096 = vmatprep.subr.mxu0 0.0
  %3097 = vmatpush2.msra.mxu0 0.0
  %3098 = vmatprep.subr.mxu0 0.0
  %3099 = vmatpush2.msra.mxu0 0.0
  %3100 = vmatprep.subr.mxu0 0.0
  %3101 = vmatpush2.msra.mxu0 0.0
  %3102 = vmatprep.subr.mxu0 0.0
  %3103 = vmatpush2.msra.mxu0 0.0
  %3104 = vmatprep.subr.mxu0 0.0
  %3105 = vmatpush2.msra.mxu0 0.0
  %3106 = vmatprep.subr.mxu0 0.0
  %3107 = vmatpush2.msra.mxu0 0.0
  %3108 = vmatprep.subr.mxu0 0.0
  %3109 = vmatpush2.msra.mxu0 0.0
  %3110 = vmatprep.subr.mxu0 0.0
  %3111 = vmatpush2.msra.mxu0 0.0
  %3112 = vmatprep.subr.mxu0 0.0
  %3113 = vmatpush2.msra.mxu0 0.0
  %3114 = vmatprep.mubr.f32.mxu0 0.0
  %3115 = vmatmul.mubr.f32.gmra.mxu0 %v3048
  %v3116 = vpop.f32.mrf.mxu0
  %v3117 = vadd.f32 0.0, %v3116
  %v3118 = vpop.f32.mrf.mxu0
  %3119 = vdwg.mxu0
  %v3121 = vsel %vm2389, %v2383, 0
  %3123 = vmatprep.subr.mxu0 0.0
  %3124 = vmatpush1.msra.mxu0 0.0
  %3125 = vmatprep.subr.mxu0 0.0
  %3126 = vmatpush1.msra.mxu0 0.0
  %3127 = vmatprep.subr.mxu0 0.0
  %3128 = vmatpush1.msra.mxu0 0.0
  %3129 = vmatprep.subr.mxu0 0.0
  %3130 = vmatpush1.msra.mxu0 0.0
  %3131 = vmatprep.subr.mxu0 0.0
  %3132 = vmatpush1.msra.mxu0 0.0
  %3133 = vmatprep.subr.mxu0 0.0
  %3134 = vmatpush1.msra.mxu0 0.0
  %3135 = vmatprep.subr.mxu0 0.0
  %3136 = vmatpush1.msra.mxu0 0.0
  %3137 = vmatprep.subr.mxu0 0.0
  %3138 = vmatpush1.msra.mxu0 0.0
  %3139 = vmatprep.subr.mxu0 0.0
  %3140 = vmatpush1.msra.mxu0 0.0
  %3141 = vmatprep.subr.mxu0 0.0
  %3142 = vmatpush1.msra.mxu0 0.0
  %3143 = vmatprep.subr.mxu0 0.0
  %3144 = vmatpush1.msra.mxu0 0.0
  %3145 = vmatprep.subr.mxu0 0.0
  %3146 = vmatpush1.msra.mxu0 0.0
  %3147 = vmatprep.subr.mxu0 0.0
  %3148 = vmatpush1.msra.mxu0 0.0
  %3149 = vmatprep.subr.mxu0 0.0
  %3150 = vmatpush1.msra.mxu0 0.0
  %3151 = vmatprep.subr.mxu0 0.0
  %3152 = vmatpush1.msra.mxu0 %v2356
  %3153 = vmatprep.subr.mxu0 0.0
  %3154 = vmatpush1.msra.mxu0 %v2355
  %3155 = vmatprep.subr.mxu0 0.0
  %3156 = vmatpush2.msra.mxu0 0.0
  %3157 = vmatprep.subr.mxu0 0.0
  %3158 = vmatpush2.msra.mxu0 0.0
  %3159 = vmatprep.subr.mxu0 0.0
  %3160 = vmatpush2.msra.mxu0 0.0
  %3161 = vmatprep.subr.mxu0 0.0
  %3162 = vmatpush2.msra.mxu0 0.0
  %3163 = vmatprep.subr.mxu0 0.0
  %3164 = vmatpush2.msra.mxu0 0.0
  %3165 = vmatprep.subr.mxu0 0.0
  %3166 = vmatpush2.msra.mxu0 0.0
  %3167 = vmatprep.subr.mxu0 0.0
  %3168 = vmatpush2.msra.mxu0 0.0
  %3169 = vmatprep.subr.mxu0 0.0
  %3170 = vmatpush2.msra.mxu0 0.0
  %3171 = vmatprep.subr.mxu0 0.0
  %3172 = vmatpush2.msra.mxu0 0.0
  %3173 = vmatprep.subr.mxu0 0.0
  %3174 = vmatpush2.msra.mxu0 0.0
  %3175 = vmatprep.subr.mxu0 0.0
  %3176 = vmatpush2.msra.mxu0 0.0
  %3177 = vmatprep.subr.mxu0 0.0
  %3178 = vmatpush2.msra.mxu0 0.0
  %3179 = vmatprep.subr.mxu0 0.0
  %3180 = vmatpush2.msra.mxu0 0.0
  %3181 = vmatprep.subr.mxu0 0.0
  %3182 = vmatpush2.msra.mxu0 0.0
  %3183 = vmatprep.subr.mxu0 0.0
  %3184 = vmatpush2.msra.mxu0 0.0
  %3185 = vmatprep.subr.mxu0 0.0
  %3186 = vmatpush2.msra.mxu0 0.0
  %3187 = vmatprep.mubr.f32.mxu0 0.0
  %3188 = vmatmul.mubr.f32.gmra.mxu0 %v3121
  %v3189 = vpop.f32.mrf.mxu0
  %v3190 = vadd.f32 0.0, %v3189
  %v3191 = vpop.f32.mrf.mxu0
  %3192 = vdwg.mxu0
  %v3194 = vsel %vm2389, %v2384, 0
  %3196 = vmatprep.subr.mxu0 0.0
  %3197 = vmatpush1.msra.mxu0 0.0
  %3198 = vmatprep.subr.mxu0 0.0
  %3199 = vmatpush1.msra.mxu0 0.0
  %3200 = vmatprep.subr.mxu0 0.0
  %3201 = vmatpush1.msra.mxu0 0.0
  %3202 = vmatprep.subr.mxu0 0.0
  %3203 = vmatpush1.msra.mxu0 0.0
  %3204 = vmatprep.subr.mxu0 0.0
  %3205 = vmatpush1.msra.mxu0 0.0
  %3206 = vmatprep.subr.mxu0 0.0
  %3207 = vmatpush1.msra.mxu0 0.0
  %3208 = vmatprep.subr.mxu0 0.0
  %3209 = vmatpush1.msra.mxu0 0.0
  %3210 = vmatprep.subr.mxu0 0.0
  %3211 = vmatpush1.msra.mxu0 0.0
  %3212 = vmatprep.subr.mxu0 0.0
  %3213 = vmatpush1.msra.mxu0 0.0
  %3214 = vmatprep.subr.mxu0 0.0
  %3215 = vmatpush1.msra.mxu0 0.0
  %3216 = vmatprep.subr.mxu0 0.0
  %3217 = vmatpush1.msra.mxu0 0.0
  %3218 = vmatprep.subr.mxu0 0.0
  %3219 = vmatpush1.msra.mxu0 0.0
  %3220 = vmatprep.subr.mxu0 0.0
  %3221 = vmatpush1.msra.mxu0 0.0
  %3222 = vmatprep.subr.mxu0 0.0
  %3223 = vmatpush1.msra.mxu0 0.0
  %3224 = vmatprep.subr.mxu0 0.0
  %3225 = vmatpush1.msra.mxu0 %v2356
  %3226 = vmatprep.subr.mxu0 0.0
  %3227 = vmatpush1.msra.mxu0 %v2355
  %3228 = vmatprep.subr.mxu0 0.0
  %3229 = vmatpush2.msra.mxu0 0.0
  %3230 = vmatprep.subr.mxu0 0.0
  %3231 = vmatpush2.msra.mxu0 0.0
  %3232 = vmatprep.subr.mxu0 0.0
  %3233 = vmatpush2.msra.mxu0 0.0
  %3234 = vmatprep.subr.mxu0 0.0
  %3235 = vmatpush2.msra.mxu0 0.0
  %3236 = vmatprep.subr.mxu0 0.0
  %3237 = vmatpush2.msra.mxu0 0.0
  %3238 = vmatprep.subr.mxu0 0.0
  %3239 = vmatpush2.msra.mxu0 0.0
  %3240 = vmatprep.subr.mxu0 0.0
  %3241 = vmatpush2.msra.mxu0 0.0
  %3242 = vmatprep.subr.mxu0 0.0
  %3243 = vmatpush2.msra.mxu0 0.0
  %3244 = vmatprep.subr.mxu0 0.0
  %3245 = vmatpush2.msra.mxu0 0.0
  %3246 = vmatprep.subr.mxu0 0.0
  %3247 = vmatpush2.msra.mxu0 0.0
  %3248 = vmatprep.subr.mxu0 0.0
  %3249 = vmatpush2.msra.mxu0 0.0
  %3250 = vmatprep.subr.mxu0 0.0
  %3251 = vmatpush2.msra.mxu0 0.0
  %3252 = vmatprep.subr.mxu0 0.0
  %3253 = vmatpush2.msra.mxu0 0.0
  %3254 = vmatprep.subr.mxu0 0.0
  %3255 = vmatpush2.msra.mxu0 0.0
  %3256 = vmatprep.subr.mxu0 0.0
  %3257 = vmatpush2.msra.mxu0 0.0
  %3258 = vmatprep.subr.mxu0 0.0
  %3259 = vmatpush2.msra.mxu0 0.0
  %3260 = vmatprep.mubr.f32.mxu0 0.0
  %3261 = vmatmul.mubr.f32.gmra.mxu0 %v3194
  %v3262 = vpop.f32.mrf.mxu0
  %v3263 = vadd.f32 0.0, %v3262
  %v3264 = vpop.f32.mrf.mxu0
  %3265 = vdwg.mxu0
  %v3267 = vsel %vm2389, %v2385, 0
  %3269 = vmatprep.subr.mxu0 0.0
  %3270 = vmatpush1.msra.mxu0 0.0
  %3271 = vmatprep.subr.mxu0 0.0
  %3272 = vmatpush1.msra.mxu0 0.0
  %3273 = vmatprep.subr.mxu0 0.0
  %3274 = vmatpush1.msra.mxu0 0.0
  %3275 = vmatprep.subr.mxu0 0.0
  %3276 = vmatpush1.msra.mxu0 0.0
  %3277 = vmatprep.subr.mxu0 0.0
  %3278 = vmatpush1.msra.mxu0 0.0
  %3279 = vmatprep.subr.mxu0 0.0
  %3280 = vmatpush1.msra.mxu0 0.0
  %3281 = vmatprep.subr.mxu0 0.0
  %3282 = vmatpush1.msra.mxu0 0.0
  %3283 = vmatprep.subr.mxu0 0.0
  %3284 = vmatpush1.msra.mxu0 0.0
  %3285 = vmatprep.subr.mxu0 0.0
  %3286 = vmatpush1.msra.mxu0 0.0
  %3287 = vmatprep.subr.mxu0 0.0
  %3288 = vmatpush1.msra.mxu0 0.0
  %3289 = vmatprep.subr.mxu0 0.0
  %3290 = vmatpush1.msra.mxu0 0.0
  %3291 = vmatprep.subr.mxu0 0.0
  %3292 = vmatpush1.msra.mxu0 0.0
  %3293 = vmatprep.subr.mxu0 0.0
  %3294 = vmatpush1.msra.mxu0 0.0
  %3295 = vmatprep.subr.mxu0 0.0
  %3296 = vmatpush1.msra.mxu0 0.0
  %3297 = vmatprep.subr.mxu0 0.0
  %3298 = vmatpush1.msra.mxu0 %v2356
  %3299 = vmatprep.subr.mxu0 0.0
  %3300 = vmatpush1.msra.mxu0 %v2355
  %3301 = vmatprep.subr.mxu0 0.0
  %3302 = vmatpush2.msra.mxu0 0.0
  %3303 = vmatprep.subr.mxu0 0.0
  %3304 = vmatpush2.msra.mxu0 0.0
  %3305 = vmatprep.subr.mxu0 0.0
  %3306 = vmatpush2.msra.mxu0 0.0
  %3307 = vmatprep.subr.mxu0 0.0
  %3308 = vmatpush2.msra.mxu0 0.0
  %3309 = vmatprep.subr.mxu0 0.0
  %3310 = vmatpush2.msra.mxu0 0.0
  %3311 = vmatprep.subr.mxu0 0.0
  %3312 = vmatpush2.msra.mxu0 0.0
  %3313 = vmatprep.subr.mxu0 0.0
  %3314 = vmatpush2.msra.mxu0 0.0
  %3315 = vmatprep.subr.mxu0 0.0
  %3316 = vmatpush2.msra.mxu0 0.0
  %3317 = vmatprep.subr.mxu0 0.0
  %3318 = vmatpush2.msra.mxu0 0.0
  %3319 = vmatprep.subr.mxu0 0.0
  %3320 = vmatpush2.msra.mxu0 0.0
  %3321 = vmatprep.subr.mxu0 0.0
  %3322 = vmatpush2.msra.mxu0 0.0
  %3323 = vmatprep.subr.mxu0 0.0
  %3324 = vmatpush2.msra.mxu0 0.0
  %3325 = vmatprep.subr.mxu0 0.0
  %3326 = vmatpush2.msra.mxu0 0.0
  %3327 = vmatprep.subr.mxu0 0.0
  %3328 = vmatpush2.msra.mxu0 0.0
  %3329 = vmatprep.subr.mxu0 0.0
  %3330 = vmatpush2.msra.mxu0 0.0
  %3331 = vmatprep.subr.mxu0 0.0
  %3332 = vmatpush2.msra.mxu0 0.0
  %3333 = vmatprep.mubr.f32.mxu0 0.0
  %3334 = vmatmul.mubr.f32.gmra.mxu0 %v3267
  %v3335 = vpop.f32.mrf.mxu0
  %v3336 = vadd.f32 0.0, %v3335
  %v3337 = vpop.f32.mrf.mxu0
  %3338 = vdwg.mxu0
  %v3340 = vsel %vm2389, %v2386, 0
  %3342 = vmatprep.subr.mxu0 0.0
  %3343 = vmatpush1.msra.mxu0 0.0
  %3344 = vmatprep.subr.mxu0 0.0
  %3345 = vmatpush1.msra.mxu0 0.0
  %3346 = vmatprep.subr.mxu0 0.0
  %3347 = vmatpush1.msra.mxu0 0.0
  %3348 = vmatprep.subr.mxu0 0.0
  %3349 = vmatpush1.msra.mxu0 0.0
  %3350 = vmatprep.subr.mxu0 0.0
  %3351 = vmatpush1.msra.mxu0 0.0
  %3352 = vmatprep.subr.mxu0 0.0
  %3353 = vmatpush1.msra.mxu0 0.0
  %3354 = vmatprep.subr.mxu0 0.0
  %3355 = vmatpush1.msra.mxu0 0.0
  %3356 = vmatprep.subr.mxu0 0.0
  %3357 = vmatpush1.msra.mxu0 0.0
  %3358 = vmatprep.subr.mxu0 0.0
  %3359 = vmatpush1.msra.mxu0 0.0
  %3360 = vmatprep.subr.mxu0 0.0
  %3361 = vmatpush1.msra.mxu0 0.0
  %3362 = vmatprep.subr.mxu0 0.0
  %3363 = vmatpush1.msra.mxu0 0.0
  %3364 = vmatprep.subr.mxu0 0.0
  %3365 = vmatpush1.msra.mxu0 0.0
  %3366 = vmatprep.subr.mxu0 0.0
  %3367 = vmatpush1.msra.mxu0 0.0
  %3368 = vmatprep.subr.mxu0 0.0
  %3369 = vmatpush1.msra.mxu0 0.0
  %3370 = vmatprep.subr.mxu0 0.0
  %3371 = vmatpush1.msra.mxu0 %v2356
  %3372 = vmatprep.subr.mxu0 0.0
  %3373 = vmatpush1.msra.mxu0 %v2355
  %3374 = vmatprep.subr.mxu0 0.0
  %3375 = vmatpush2.msra.mxu0 0.0
  %3376 = vmatprep.subr.mxu0 0.0
  %3377 = vmatpush2.msra.mxu0 0.0
  %3378 = vmatprep.subr.mxu0 0.0
  %3379 = vmatpush2.msra.mxu0 0.0
  %3380 = vmatprep.subr.mxu0 0.0
  %3381 = vmatpush2.msra.mxu0 0.0
  %3382 = vmatprep.subr.mxu0 0.0
  %3383 = vmatpush2.msra.mxu0 0.0
  %3384 = vmatprep.subr.mxu0 0.0
  %3385 = vmatpush2.msra.mxu0 0.0
  %3386 = vmatprep.subr.mxu0 0.0
  %3387 = vmatpush2.msra.mxu0 0.0
  %3388 = vmatprep.subr.mxu0 0.0
  %3389 = vmatpush2.msra.mxu0 0.0
  %3390 = vmatprep.subr.mxu0 0.0
  %3391 = vmatpush2.msra.mxu0 0.0
  %3392 = vmatprep.subr.mxu0 0.0
  %3393 = vmatpush2.msra.mxu0 0.0
  %3394 = vmatprep.subr.mxu0 0.0
  %3395 = vmatpush2.msra.mxu0 0.0
  %3396 = vmatprep.subr.mxu0 0.0
  %3397 = vmatpush2.msra.mxu0 0.0
  %3398 = vmatprep.subr.mxu0 0.0
  %3399 = vmatpush2.msra.mxu0 0.0
  %3400 = vmatprep.subr.mxu0 0.0
  %3401 = vmatpush2.msra.mxu0 0.0
  %3402 = vmatprep.subr.mxu0 0.0
  %3403 = vmatpush2.msra.mxu0 0.0
  %3404 = vmatprep.subr.mxu0 0.0
  %3405 = vmatpush2.msra.mxu0 0.0
  %3406 = vmatprep.mubr.f32.mxu0 0.0
  %3407 = vmatmul.mubr.f32.gmra.mxu0 %v3340
  %v3408 = vpop.f32.mrf.mxu0
  %v3409 = vadd.f32 0.0, %v3408
  %v3410 = vpop.f32.mrf.mxu0
  %3411 = vdwg.mxu0
  %v3413 = vsel %vm2389, %v2387, 0
  %3415 = vmatprep.subr.mxu0 0.0
  %3416 = vmatpush1.msra.mxu0 0.0
  %3417 = vmatprep.subr.mxu0 0.0
  %3418 = vmatpush1.msra.mxu0 0.0
  %3419 = vmatprep.subr.mxu0 0.0
  %3420 = vmatpush1.msra.mxu0 0.0
  %3421 = vmatprep.subr.mxu0 0.0
  %3422 = vmatpush1.msra.mxu0 0.0
  %3423 = vmatprep.subr.mxu0 0.0
  %3424 = vmatpush1.msra.mxu0 0.0
  %3425 = vmatprep.subr.mxu0 0.0
  %3426 = vmatpush1.msra.mxu0 0.0
  %3427 = vmatprep.subr.mxu0 0.0
  %3428 = vmatpush1.msra.mxu0 0.0
  %3429 = vmatprep.subr.mxu0 0.0
  %3430 = vmatpush1.msra.mxu0 0.0
  %3431 = vmatprep.subr.mxu0 0.0
  %3432 = vmatpush1.msra.mxu0 0.0
  %3433 = vmatprep.subr.mxu0 0.0
  %3434 = vmatpush1.msra.mxu0 0.0
  %3435 = vmatprep.subr.mxu0 0.0
  %3436 = vmatpush1.msra.mxu0 0.0
  %3437 = vmatprep.subr.mxu0 0.0
  %3438 = vmatpush1.msra.mxu0 0.0
  %3439 = vmatprep.subr.mxu0 0.0
  %3440 = vmatpush1.msra.mxu0 0.0
  %3441 = vmatprep.subr.mxu0 0.0
  %3442 = vmatpush1.msra.mxu0 0.0
  %3443 = vmatprep.subr.mxu0 0.0
  %3444 = vmatpush1.msra.mxu0 %v2356
  %3445 = vmatprep.subr.mxu0 0.0
  %3446 = vmatpush1.msra.mxu0 %v2355
  %3447 = vmatprep.subr.mxu0 0.0
  %3448 = vmatpush2.msra.mxu0 0.0
  %3449 = vmatprep.subr.mxu0 0.0
  %3450 = vmatpush2.msra.mxu0 0.0
  %3451 = vmatprep.subr.mxu0 0.0
  %3452 = vmatpush2.msra.mxu0 0.0
  %3453 = vmatprep.subr.mxu0 0.0
  %3454 = vmatpush2.msra.mxu0 0.0
  %3455 = vmatprep.subr.mxu0 0.0
  %3456 = vmatpush2.msra.mxu0 0.0
  %3457 = vmatprep.subr.mxu0 0.0
  %3458 = vmatpush2.msra.mxu0 0.0
  %3459 = vmatprep.subr.mxu0 0.0
  %3460 = vmatpush2.msra.mxu0 0.0
  %3461 = vmatprep.subr.mxu0 0.0
  %3462 = vmatpush2.msra.mxu0 0.0
  %3463 = vmatprep.subr.mxu0 0.0
  %3464 = vmatpush2.msra.mxu0 0.0
  %3465 = vmatprep.subr.mxu0 0.0
  %3466 = vmatpush2.msra.mxu0 0.0
  %3467 = vmatprep.subr.mxu0 0.0
  %3468 = vmatpush2.msra.mxu0 0.0
  %3469 = vmatprep.subr.mxu0 0.0
  %3470 = vmatpush2.msra.mxu0 0.0
  %3471 = vmatprep.subr.mxu0 0.0
  %3472 = vmatpush2.msra.mxu0 0.0
  %3473 = vmatprep.subr.mxu0 0.0
  %3474 = vmatpush2.msra.mxu0 0.0
  %3475 = vmatprep.subr.mxu0 0.0
  %3476 = vmatpush2.msra.mxu0 0.0
  %3477 = vmatprep.subr.mxu0 0.0
  %3478 = vmatpush2.msra.mxu0 0.0
  %3479 = vmatprep.mubr.f32.mxu0 0.0
  %3480 = vmatmul.mubr.f32.gmra.mxu0 %v3413
  %v3481 = vpop.f32.mrf.mxu0
  %v3482 = vadd.f32 0.0, %v3481
  %v3483 = vpop.f32.mrf.mxu0
  %3484 = vdwg.mxu0
  %v3486 = vsel %vm2389, %v2388, 0
  %3488 = vmatprep.subr.mxu0 0.0
  %3489 = vmatpush1.msra.mxu0 0.0
  %3490 = vmatprep.subr.mxu0 0.0
  %3491 = vmatpush1.msra.mxu0 0.0
  %3492 = vmatprep.subr.mxu0 0.0
  %3493 = vmatpush1.msra.mxu0 0.0
  %3494 = vmatprep.subr.mxu0 0.0
  %3495 = vmatpush1.msra.mxu0 0.0
  %3496 = vmatprep.subr.mxu0 0.0
  %3497 = vmatpush1.msra.mxu0 0.0
  %3498 = vmatprep.subr.mxu0 0.0
  %3499 = vmatpush1.msra.mxu0 0.0
  %3500 = vmatprep.subr.mxu0 0.0
  %3501 = vmatpush1.msra.mxu0 0.0
  %3502 = vmatprep.subr.mxu0 0.0
  %3503 = vmatpush1.msra.mxu0 0.0
  %3504 = vmatprep.subr.mxu0 0.0
  %3505 = vmatpush1.msra.mxu0 0.0
  %3506 = vmatprep.subr.mxu0 0.0
  %3507 = vmatpush1.msra.mxu0 0.0
  %3508 = vmatprep.subr.mxu0 0.0
  %3509 = vmatpush1.msra.mxu0 0.0
  %3510 = vmatprep.subr.mxu0 0.0
  %3511 = vmatpush1.msra.mxu0 0.0
  %3512 = vmatprep.subr.mxu0 0.0
  %3513 = vmatpush1.msra.mxu0 0.0
  %3514 = vmatprep.subr.mxu0 0.0
  %3515 = vmatpush1.msra.mxu0 0.0
  %3516 = vmatprep.subr.mxu0 0.0
  %3517 = vmatpush1.msra.mxu0 %v2356
  %3518 = vmatprep.subr.mxu0 0.0
  %3519 = vmatpush1.msra.mxu0 %v2355
  %3520 = vmatprep.subr.mxu0 0.0
  %3521 = vmatpush2.msra.mxu0 0.0
  %3522 = vmatprep.subr.mxu0 0.0
  %3523 = vmatpush2.msra.mxu0 0.0
  %3524 = vmatprep.subr.mxu0 0.0
  %3525 = vmatpush2.msra.mxu0 0.0
  %3526 = vmatprep.subr.mxu0 0.0
  %3527 = vmatpush2.msra.mxu0 0.0
  %3528 = vmatprep.subr.mxu0 0.0
  %3529 = vmatpush2.msra.mxu0 0.0
  %3530 = vmatprep.subr.mxu0 0.0
  %3531 = vmatpush2.msra.mxu0 0.0
  %3532 = vmatprep.subr.mxu0 0.0
  %3533 = vmatpush2.msra.mxu0 0.0
  %3534 = vmatprep.subr.mxu0 0.0
  %3535 = vmatpush2.msra.mxu0 0.0
  %3536 = vmatprep.subr.mxu0 0.0
  %3537 = vmatpush2.msra.mxu0 0.0
  %3538 = vmatprep.subr.mxu0 0.0
  %3539 = vmatpush2.msra.mxu0 0.0
  %3540 = vmatprep.subr.mxu0 0.0
  %3541 = vmatpush2.msra.mxu0 0.0
  %3542 = vmatprep.subr.mxu0 0.0
  %3543 = vmatpush2.msra.mxu0 0.0
  %3544 = vmatprep.subr.mxu0 0.0
  %3545 = vmatpush2.msra.mxu0 0.0
  %3546 = vmatprep.subr.mxu0 0.0
  %3547 = vmatpush2.msra.mxu0 0.0
  %3548 = vmatprep.subr.mxu0 0.0
  %3549 = vmatpush2.msra.mxu0 0.0
  %3550 = vmatprep.subr.mxu0 0.0
  %3551 = vmatpush2.msra.mxu0 0.0
  %3552 = vmatprep.mubr.f32.mxu0 0.0
  %3553 = vmatmul.mubr.f32.gmra.mxu0 %v3486
  %v3554 = vpop.f32.mrf.mxu0
  %v3555 = vadd.f32 0.0, %v3554
  %v3556 = vpop.f32.mrf.mxu0
  %3557 = vdwg.mxu0
  %3559 = vrot.lane.b32.xlu0 %v2533, 64
  %v3560 = vpop.permute.xlu0 %3559
  %3563 = vrot.lane.b32.xlu0 %v2679, 64
  %v3564 = vpop.permute.xlu0 %3563
  %3567 = vrot.lane.b32.xlu0 %v2825, 64
  %v3568 = vpop.permute.xlu0 %3567
  %3571 = vrot.lane.b32.xlu0 %v2971, 64
  %v3572 = vpop.permute.xlu0 %3571
  %3575 = vrot.lane.b32.xlu0 %v3117, 64
  %v3576 = vpop.permute.xlu0 %3575
  %3579 = vrot.lane.b32.xlu0 %v3263, 64
  %v3580 = vpop.permute.xlu0 %3579
  %3583 = vrot.lane.b32.xlu0 %v3409, 64
  %v3584 = vpop.permute.xlu0 %3583
  %3587 = vrot.lane.b32.xlu0 %v3555, 64
  %v3588 = vpop.permute.xlu0 %3587
  %v3590 = vsel %vm287, %v2460, %v3560
  %v3591 = vsel %vm287, %v2606, %v3564
  %v3592 = vsel %vm287, %v2752, %v3568
  %v3593 = vsel %vm287, %v2898, %v3572
  %v3594 = vsel %vm287, %v3044, %v3576
  %v3595 = vsel %vm287, %v3190, %v3580
  %v3596 = vsel %vm287, %v3336, %v3584
  %v3597 = vsel %vm287, %v3482, %v3588
  %v3598 = vld [vmem:[%s6] sm:$0xf]
  %v3599 = vld [vmem:[%s6 + $0x4] sm:$0xf]
  %v3600 = vld [vmem:[%s6 + $0x8] sm:$0xf]
  %v3601 = vld [vmem:[%s6 + $0xc] sm:$0xf]
  %v3602 = vld [vmem:[%s6 + $0x10] sm:$0xf]
  %v3603 = vld [vmem:[%s6 + $0x14] sm:$0xf]
  %v3604 = vld [vmem:[%s6 + $0x18] sm:$0xf]
  %v3605 = vld [vmem:[%s6 + $0x1c] sm:$0xf]
  %v3606 = vld [vmem:[%s6 + $0x20] sm:$0xf]
  %v3607 = vld [vmem:[%s6 + $0x24] sm:$0xf]
  %v3608 = vld [vmem:[%s6 + $0x28] sm:$0xf]
  %v3609 = vld [vmem:[%s6 + $0x2c] sm:$0xf]
  %v3610 = vld [vmem:[%s6 + $0x30] sm:$0xf]
  %v3611 = vld [vmem:[%s6 + $0x34] sm:$0xf]
  %v3612 = vld [vmem:[%s6 + $0x38] sm:$0xf]
  %v3613 = vld [vmem:[%s6 + $0x3c] sm:$0xf]
  %v3614 = vld [vmem:[%s6 + $0x40] sm:$0xf]
  %v3615 = vld [vmem:[%s6 + $0x44] sm:$0xf]
  %v3616 = vld [vmem:[%s6 + $0x48] sm:$0xf]
  %v3617 = vld [vmem:[%s6 + $0x4c] sm:$0xf]
  %v3618 = vld [vmem:[%s6 + $0x50] sm:$0xf]
  %v3619 = vld [vmem:[%s6 + $0x54] sm:$0xf]
  %v3620 = vld [vmem:[%s6 + $0x58] sm:$0xf]
  %v3621 = vld [vmem:[%s6 + $0x5c] sm:$0xf]
  %v3622 = vld [vmem:[%s6 + $0x60] sm:$0xf]
  %v3623 = vld [vmem:[%s6 + $0x64] sm:$0xf]
  %v3624 = vld [vmem:[%s6 + $0x68] sm:$0xf]
  %v3625 = vld [vmem:[%s6 + $0x6c] sm:$0xf]
  %v3626 = vld [vmem:[%s6 + $0x70] sm:$0xf]
  %v3627 = vld [vmem:[%s6 + $0x74] sm:$0xf]
  %v3628 = vld [vmem:[%s6 + $0x78] sm:$0xf]
  %v3629 = vld [vmem:[%s6 + $0x7c] sm:$0xf]
  %v3630 = vld [vmem:[%s6 + $0x80] sm:$0xf]
  %v3631 = vld [vmem:[%s6 + $0x84] sm:$0xf]
  %v3632 = vld [vmem:[%s6 + $0x88] sm:$0xf]
  %v3633 = vld [vmem:[%s6 + $0x8c] sm:$0xf]
  %v3634 = vld [vmem:[%s6 + $0x90] sm:$0xf]
  %v3635 = vld [vmem:[%s6 + $0x94] sm:$0xf]
  %v3636 = vld [vmem:[%s6 + $0x98] sm:$0xf]
  %v3637 = vld [vmem:[%s6 + $0x9c] sm:$0xf]
  %v3638 = vld [vmem:[%s6 + $0xa0] sm:$0xf]
  %v3639 = vld [vmem:[%s6 + $0xa4] sm:$0xf]
  %v3640 = vld [vmem:[%s6 + $0xa8] sm:$0xf]
  %v3641 = vld [vmem:[%s6 + $0xac] sm:$0xf]
  %v3642 = vld [vmem:[%s6 + $0xb0] sm:$0xf]
  %v3643 = vld [vmem:[%s6 + $0xb4] sm:$0xf]
  %v3644 = vld [vmem:[%s6 + $0xb8] sm:$0xf]
  %v3645 = vld [vmem:[%s6 + $0xbc] sm:$0xf]
  %v3646 = vld [vmem:[%s6 + $0xc0] sm:$0xf]
  %v3647 = vld [vmem:[%s6 + $0xc4] sm:$0xf]
  %v3648 = vld [vmem:[%s6 + $0xc8] sm:$0xf]
  %v3649 = vld [vmem:[%s6 + $0xcc] sm:$0xf]
  %v3650 = vld [vmem:[%s6 + $0xd0] sm:$0xf]
  %v3651 = vld [vmem:[%s6 + $0xd4] sm:$0xf]
  %v3652 = vld [vmem:[%s6 + $0xd8] sm:$0xf]
  %v3653 = vld [vmem:[%s6 + $0xdc] sm:$0xf]
  %v3654 = vld [vmem:[%s6 + $0xe0] sm:$0xf]
  %v3655 = vld [vmem:[%s6 + $0xe4] sm:$0xf]
  %v3656 = vld [vmem:[%s6 + $0xe8] sm:$0xf]
  %v3657 = vld [vmem:[%s6 + $0xec] sm:$0xf]
  %v3658 = vld [vmem:[%s6 + $0xf0] sm:$0xf]
  %v3659 = vld [vmem:[%s6 + $0xf4] sm:$0xf]
  %v3660 = vld [vmem:[%s6 + $0xf8] sm:$0xf]
  %v3661 = vld [vmem:[%s6 + $0xfc] sm:$0xf]
  %v3662 = vld [vmem:[%s6 + $0x100] sm:$0xf]
  %v3663 = vld [vmem:[%s6 + $0x104] sm:$0xf]
  %v3664 = vld [vmem:[%s6 + $0x108] sm:$0xf]
  %v3665 = vld [vmem:[%s6 + $0x10c] sm:$0xf]
  %v3666 = vld [vmem:[%s6 + $0x110] sm:$0xf]
  %v3667 = vld [vmem:[%s6 + $0x114] sm:$0xf]
  %v3668 = vld [vmem:[%s6 + $0x118] sm:$0xf]
  %v3669 = vld [vmem:[%s6 + $0x11c] sm:$0xf]
  %v3670 = vld [vmem:[%s6 + $0x120] sm:$0xf]
  %v3671 = vld [vmem:[%s6 + $0x124] sm:$0xf]
  %v3672 = vld [vmem:[%s6 + $0x128] sm:$0xf]
  %v3673 = vld [vmem:[%s6 + $0x12c] sm:$0xf]
  %v3674 = vld [vmem:[%s6 + $0x130] sm:$0xf]
  %v3675 = vld [vmem:[%s6 + $0x134] sm:$0xf]
  %v3676 = vld [vmem:[%s6 + $0x138] sm:$0xf]
  %v3677 = vld [vmem:[%s6 + $0x13c] sm:$0xf]
  %v3678 = vld [vmem:[%s6 + $0x140] sm:$0xf]
  %v3679 = vld [vmem:[%s6 + $0x144] sm:$0xf]
  %v3680 = vld [vmem:[%s6 + $0x148] sm:$0xf]
  %v3681 = vld [vmem:[%s6 + $0x14c] sm:$0xf]
  %v3682 = vld [vmem:[%s6 + $0x150] sm:$0xf]
  %v3683 = vld [vmem:[%s6 + $0x154] sm:$0xf]
  %v3684 = vld [vmem:[%s6 + $0x158] sm:$0xf]
  %v3685 = vld [vmem:[%s6 + $0x15c] sm:$0xf]
  %v3686 = vld [vmem:[%s6 + $0x160] sm:$0xf]
  %v3687 = vld [vmem:[%s6 + $0x164] sm:$0xf]
  %v3688 = vld [vmem:[%s6 + $0x168] sm:$0xf]
  %v3689 = vld [vmem:[%s6 + $0x16c] sm:$0xf]
  %v3690 = vld [vmem:[%s6 + $0x170] sm:$0xf]
  %v3691 = vld [vmem:[%s6 + $0x174] sm:$0xf]
  %v3692 = vld [vmem:[%s6 + $0x178] sm:$0xf]
  %v3693 = vld [vmem:[%s6 + $0x17c] sm:$0xf]
  %v3694 = vld [vmem:[%s6 + $0x180] sm:$0xf]
  %v3695 = vld [vmem:[%s6 + $0x184] sm:$0xf]
  %v3696 = vld [vmem:[%s6 + $0x188] sm:$0xf]
  %v3697 = vld [vmem:[%s6 + $0x18c] sm:$0xf]
  %v3698 = vld [vmem:[%s6 + $0x190] sm:$0xf]
  %v3699 = vld [vmem:[%s6 + $0x194] sm:$0xf]
  %v3700 = vld [vmem:[%s6 + $0x198] sm:$0xf]
  %v3701 = vld [vmem:[%s6 + $0x19c] sm:$0xf]
  %v3702 = vld [vmem:[%s6 + $0x1a0] sm:$0xf]
  %v3703 = vld [vmem:[%s6 + $0x1a4] sm:$0xf]
  %v3704 = vld [vmem:[%s6 + $0x1a8] sm:$0xf]
  %v3705 = vld [vmem:[%s6 + $0x1ac] sm:$0xf]
  %v3706 = vld [vmem:[%s6 + $0x1b0] sm:$0xf]
  %v3707 = vld [vmem:[%s6 + $0x1b4] sm:$0xf]
  %v3708 = vld [vmem:[%s6 + $0x1b8] sm:$0xf]
  %v3709 = vld [vmem:[%s6 + $0x1bc] sm:$0xf]
  %v3710 = vld [vmem:[%s6 + $0x1c0] sm:$0xf]
  %v3711 = vld [vmem:[%s6 + $0x1c4] sm:$0xf]
  %v3712 = vld [vmem:[%s6 + $0x1c8] sm:$0xf]
  %v3713 = vld [vmem:[%s6 + $0x1cc] sm:$0xf]
  %v3714 = vld [vmem:[%s6 + $0x1d0] sm:$0xf]
  %v3715 = vld [vmem:[%s6 + $0x1d4] sm:$0xf]
  %v3716 = vld [vmem:[%s6 + $0x1d8] sm:$0xf]
  %v3717 = vld [vmem:[%s6 + $0x1dc] sm:$0xf]
  %v3718 = vld [vmem:[%s6 + $0x1e0] sm:$0xf]
  %v3719 = vld [vmem:[%s6 + $0x1e4] sm:$0xf]
  %v3720 = vld [vmem:[%s6 + $0x1e8] sm:$0xf]
  %v3721 = vld [vmem:[%s6 + $0x1ec] sm:$0xf]
  %v3722 = vld [vmem:[%s6 + $0x1f0] sm:$0xf]
  %v3723 = vld [vmem:[%s6 + $0x1f4] sm:$0xf]
  %v3724 = vld [vmem:[%s6 + $0x1f8] sm:$0xf]
  %v3725 = vld [vmem:[%s6 + $0x1fc] sm:$0xf]
  %v3726 = vunpack.c.l.bf16 %v3598
  %v3727 = vunpack.c.l.bf16 %v3599
  %v3728 = vunpack.c.l.bf16 %v3600
  %v3729 = vunpack.c.l.bf16 %v3601
  %v3730 = vunpack.c.l.bf16 %v3602
  %v3731 = vunpack.c.l.bf16 %v3603
  %v3732 = vunpack.c.l.bf16 %v3604
  %v3733 = vunpack.c.l.bf16 %v3605
  %v3734 = vunpack.c.l.bf16 %v3606
  %v3735 = vunpack.c.l.bf16 %v3607
  %v3736 = vunpack.c.l.bf16 %v3608
  %v3737 = vunpack.c.l.bf16 %v3609
  %v3738 = vunpack.c.l.bf16 %v3610
  %v3739 = vunpack.c.l.bf16 %v3611
  %v3740 = vunpack.c.l.bf16 %v3612
  %v3741 = vunpack.c.l.bf16 %v3613
  %v3742 = vunpack.c.l.bf16 %v3614
  %v3743 = vunpack.c.l.bf16 %v3615
  %v3744 = vunpack.c.l.bf16 %v3616
  %v3745 = vunpack.c.l.bf16 %v3617
  %v3746 = vunpack.c.l.bf16 %v3618
  %v3747 = vunpack.c.l.bf16 %v3619
  %v3748 = vunpack.c.l.bf16 %v3620
  %v3749 = vunpack.c.l.bf16 %v3621
  %v3750 = vunpack.c.l.bf16 %v3622
  %v3751 = vunpack.c.l.bf16 %v3623
  %v3752 = vunpack.c.l.bf16 %v3624
  %v3753 = vunpack.c.l.bf16 %v3625
  %v3754 = vunpack.c.l.bf16 %v3626
  %v3755 = vunpack.c.l.bf16 %v3627
  %v3756 = vunpack.c.l.bf16 %v3628
  %v3757 = vunpack.c.l.bf16 %v3629
  %v3758 = vunpack.c.l.bf16 %v3630
  %v3759 = vunpack.c.l.bf16 %v3631
  %v3760 = vunpack.c.l.bf16 %v3632
  %v3761 = vunpack.c.l.bf16 %v3633
  %v3762 = vunpack.c.l.bf16 %v3634
  %v3763 = vunpack.c.l.bf16 %v3635
  %v3764 = vunpack.c.l.bf16 %v3636
  %v3765 = vunpack.c.l.bf16 %v3637
  %v3766 = vunpack.c.l.bf16 %v3638
  %v3767 = vunpack.c.l.bf16 %v3639
  %v3768 = vunpack.c.l.bf16 %v3640
  %v3769 = vunpack.c.l.bf16 %v3641
  %v3770 = vunpack.c.l.bf16 %v3642
  %v3771 = vunpack.c.l.bf16 %v3643
  %v3772 = vunpack.c.l.bf16 %v3644
  %v3773 = vunpack.c.l.bf16 %v3645
  %v3774 = vunpack.c.l.bf16 %v3646
  %v3775 = vunpack.c.l.bf16 %v3647
  %v3776 = vunpack.c.l.bf16 %v3648
  %v3777 = vunpack.c.l.bf16 %v3649
  %v3778 = vunpack.c.l.bf16 %v3650
  %v3779 = vunpack.c.l.bf16 %v3651
  %v3780 = vunpack.c.l.bf16 %v3652
  %v3781 = vunpack.c.l.bf16 %v3653
  %v3782 = vunpack.c.l.bf16 %v3654
  %v3783 = vunpack.c.l.bf16 %v3655
  %v3784 = vunpack.c.l.bf16 %v3656
  %v3785 = vunpack.c.l.bf16 %v3657
  %v3786 = vunpack.c.l.bf16 %v3658
  %v3787 = vunpack.c.l.bf16 %v3659
  %v3788 = vunpack.c.l.bf16 %v3660
  %v3789 = vunpack.c.l.bf16 %v3661
  %v3790 = vunpack.c.l.bf16 %v3662
  %v3791 = vunpack.c.l.bf16 %v3663
  %v3792 = vunpack.c.l.bf16 %v3664
  %v3793 = vunpack.c.l.bf16 %v3665
  %v3794 = vunpack.c.l.bf16 %v3666
  %v3795 = vunpack.c.l.bf16 %v3667
  %v3796 = vunpack.c.l.bf16 %v3668
  %v3797 = vunpack.c.l.bf16 %v3669
  %v3798 = vunpack.c.l.bf16 %v3670
  %v3799 = vunpack.c.l.bf16 %v3671
  %v3800 = vunpack.c.l.bf16 %v3672
  %v3801 = vunpack.c.l.bf16 %v3673
  %v3802 = vunpack.c.l.bf16 %v3674
  %v3803 = vunpack.c.l.bf16 %v3675
  %v3804 = vunpack.c.l.bf16 %v3676
  %v3805 = vunpack.c.l.bf16 %v3677
  %v3806 = vunpack.c.l.bf16 %v3678
  %v3807 = vunpack.c.l.bf16 %v3679
  %v3808 = vunpack.c.l.bf16 %v3680
  %v3809 = vunpack.c.l.bf16 %v3681
  %v3810 = vunpack.c.l.bf16 %v3682
  %v3811 = vunpack.c.l.bf16 %v3683
  %v3812 = vunpack.c.l.bf16 %v3684
  %v3813 = vunpack.c.l.bf16 %v3685
  %v3814 = vunpack.c.l.bf16 %v3686
  %v3815 = vunpack.c.l.bf16 %v3687
  %v3816 = vunpack.c.l.bf16 %v3688
  %v3817 = vunpack.c.l.bf16 %v3689
  %v3818 = vunpack.c.l.bf16 %v3690
  %v3819 = vunpack.c.l.bf16 %v3691
  %v3820 = vunpack.c.l.bf16 %v3692
  %v3821 = vunpack.c.l.bf16 %v3693
  %v3822 = vunpack.c.l.bf16 %v3694
  %v3823 = vunpack.c.l.bf16 %v3695
  %v3824 = vunpack.c.l.bf16 %v3696
  %v3825 = vunpack.c.l.bf16 %v3697
  %v3826 = vunpack.c.l.bf16 %v3698
  %v3827 = vunpack.c.l.bf16 %v3699
  %v3828 = vunpack.c.l.bf16 %v3700
  %v3829 = vunpack.c.l.bf16 %v3701
  %v3830 = vunpack.c.l.bf16 %v3702
  %v3831 = vunpack.c.l.bf16 %v3703
  %v3832 = vunpack.c.l.bf16 %v3704
  %v3833 = vunpack.c.l.bf16 %v3705
  %v3834 = vunpack.c.l.bf16 %v3706
  %v3835 = vunpack.c.l.bf16 %v3707
  %v3836 = vunpack.c.l.bf16 %v3708
  %v3837 = vunpack.c.l.bf16 %v3709
  %v3838 = vunpack.c.l.bf16 %v3710
  %v3839 = vunpack.c.l.bf16 %v3711
  %v3840 = vunpack.c.l.bf16 %v3712
  %v3841 = vunpack.c.l.bf16 %v3713
  %v3842 = vunpack.c.l.bf16 %v3714
  %v3843 = vunpack.c.l.bf16 %v3715
  %v3844 = vunpack.c.l.bf16 %v3716
  %v3845 = vunpack.c.l.bf16 %v3717
  %v3846 = vunpack.c.l.bf16 %v3718
  %v3847 = vunpack.c.l.bf16 %v3719
  %v3848 = vunpack.c.l.bf16 %v3720
  %v3849 = vunpack.c.l.bf16 %v3721
  %v3850 = vunpack.c.l.bf16 %v3722
  %v3851 = vunpack.c.l.bf16 %v3723
  %v3852 = vunpack.c.l.bf16 %v3724
  %v3853 = vunpack.c.l.bf16 %v3725
  %3854 = vmatprep.subr.mxu0 0.0
  %3855 = vmatpush1.msra.mxu0 %v3741
  %3856 = vmatprep.subr.mxu0 0.0
  %3857 = vmatpush1.msra.mxu0 %v3740
  %3858 = vmatprep.subr.mxu0 0.0
  %3859 = vmatpush1.msra.mxu0 %v3739
  %3860 = vmatprep.subr.mxu0 0.0
  %3861 = vmatpush1.msra.mxu0 %v3738
  %3862 = vmatprep.subr.mxu0 0.0
  %3863 = vmatpush1.msra.mxu0 %v3737
  %3864 = vmatprep.subr.mxu0 0.0
  %3865 = vmatpush1.msra.mxu0 %v3736
  %3866 = vmatprep.subr.mxu0 0.0
  %3867 = vmatpush1.msra.mxu0 %v3735
  %3868 = vmatprep.subr.mxu0 0.0
  %3869 = vmatpush1.msra.mxu0 %v3734
  %3870 = vmatprep.subr.mxu0 0.0
  %3871 = vmatpush1.msra.mxu0 %v3733
  %3872 = vmatprep.subr.mxu0 0.0
  %3873 = vmatpush1.msra.mxu0 %v3732
  %3874 = vmatprep.subr.mxu0 0.0
  %3875 = vmatpush1.msra.mxu0 %v3731
  %3876 = vmatprep.subr.mxu0 0.0
  %3877 = vmatpush1.msra.mxu0 %v3730
  %3878 = vmatprep.subr.mxu0 0.0
  %3879 = vmatpush1.msra.mxu0 %v3729
  %3880 = vmatprep.subr.mxu0 0.0
  %3881 = vmatpush1.msra.mxu0 %v3728
  %3882 = vmatprep.subr.mxu0 0.0
  %3883 = vmatpush1.msra.mxu0 %v3727
  %3884 = vmatprep.subr.mxu0 0.0
  %3885 = vmatpush1.msra.mxu0 %v3726
  %3886 = vmatprep.subr.mxu0 0.0
  %3887 = vmatpush2.msra.mxu0 %v3757
  %3888 = vmatprep.subr.mxu0 0.0
  %3889 = vmatpush2.msra.mxu0 %v3756
  %3890 = vmatprep.subr.mxu0 0.0
  %3891 = vmatpush2.msra.mxu0 %v3755
  %3892 = vmatprep.subr.mxu0 0.0
  %3893 = vmatpush2.msra.mxu0 %v3754
  %3894 = vmatprep.subr.mxu0 0.0
  %3895 = vmatpush2.msra.mxu0 %v3753
  %3896 = vmatprep.subr.mxu0 0.0
  %3897 = vmatpush2.msra.mxu0 %v3752
  %3898 = vmatprep.subr.mxu0 0.0
  %3899 = vmatpush2.msra.mxu0 %v3751
  %3900 = vmatprep.subr.mxu0 0.0
  %3901 = vmatpush2.msra.mxu0 %v3750
  %3902 = vmatprep.subr.mxu0 0.0
  %3903 = vmatpush2.msra.mxu0 %v3749
  %3904 = vmatprep.subr.mxu0 0.0
  %3905 = vmatpush2.msra.mxu0 %v3748
  %3906 = vmatprep.subr.mxu0 0.0
  %3907 = vmatpush2.msra.mxu0 %v3747
  %3908 = vmatprep.subr.mxu0 0.0
  %3909 = vmatpush2.msra.mxu0 %v3746
  %3910 = vmatprep.subr.mxu0 0.0
  %3911 = vmatpush2.msra.mxu0 %v3745
  %3912 = vmatprep.subr.mxu0 0.0
  %3913 = vmatpush2.msra.mxu0 %v3744
  %3914 = vmatprep.subr.mxu0 0.0
  %3915 = vmatpush2.msra.mxu0 %v3743
  %3916 = vmatprep.subr.mxu0 0.0
  %3917 = vmatpush2.msra.mxu0 %v3742
  %3918 = vmatprep.mubr.f32.mxu0 %v3591
  %3919 = vmatmul.mubr.f32.gmra.mxu0 %v3590
  %v3920 = vpop.f32.mrf.mxu0
  %v3921 = vadd.f32 0.0, %v3920
  %v3922 = vpop.f32.mrf.mxu0
  %3923 = vdwg.mxu0
  %3924 = vmatprep.subr.mxu0 0.0
  %3925 = vmatpush1.msra.mxu0 %v3773
  %3926 = vmatprep.subr.mxu0 0.0
  %3927 = vmatpush1.msra.mxu0 %v3772
  %3928 = vmatprep.subr.mxu0 0.0
  %3929 = vmatpush1.msra.mxu0 %v3771
  %3930 = vmatprep.subr.mxu0 0.0
  %3931 = vmatpush1.msra.mxu0 %v3770
  %3932 = vmatprep.subr.mxu0 0.0
  %3933 = vmatpush1.msra.mxu0 %v3769
  %3934 = vmatprep.subr.mxu0 0.0
  %3935 = vmatpush1.msra.mxu0 %v3768
  %3936 = vmatprep.subr.mxu0 0.0
  %3937 = vmatpush1.msra.mxu0 %v3767
  %3938 = vmatprep.subr.mxu0 0.0
  %3939 = vmatpush1.msra.mxu0 %v3766
  %3940 = vmatprep.subr.mxu0 0.0
  %3941 = vmatpush1.msra.mxu0 %v3765
  %3942 = vmatprep.subr.mxu0 0.0
  %3943 = vmatpush1.msra.mxu0 %v3764
  %3944 = vmatprep.subr.mxu0 0.0
  %3945 = vmatpush1.msra.mxu0 %v3763
  %3946 = vmatprep.subr.mxu0 0.0
  %3947 = vmatpush1.msra.mxu0 %v3762
  %3948 = vmatprep.subr.mxu0 0.0
  %3949 = vmatpush1.msra.mxu0 %v3761
  %3950 = vmatprep.subr.mxu0 0.0
  %3951 = vmatpush1.msra.mxu0 %v3760
  %3952 = vmatprep.subr.mxu0 0.0
  %3953 = vmatpush1.msra.mxu0 %v3759
  %3954 = vmatprep.subr.mxu0 0.0
  %3955 = vmatpush1.msra.mxu0 %v3758
  %3956 = vmatprep.subr.mxu0 0.0
  %3957 = vmatpush2.msra.mxu0 %v3789
  %3958 = vmatprep.subr.mxu0 0.0
  %3959 = vmatpush2.msra.mxu0 %v3788
  %3960 = vmatprep.subr.mxu0 0.0
  %3961 = vmatpush2.msra.mxu0 %v3787
  %3962 = vmatprep.subr.mxu0 0.0
  %3963 = vmatpush2.msra.mxu0 %v3786
  %3964 = vmatprep.subr.mxu0 0.0
  %3965 = vmatpush2.msra.mxu0 %v3785
  %3966 = vmatprep.subr.mxu0 0.0
  %3967 = vmatpush2.msra.mxu0 %v3784
  %3968 = vmatprep.subr.mxu0 0.0
  %3969 = vmatpush2.msra.mxu0 %v3783
  %3970 = vmatprep.subr.mxu0 0.0
  %3971 = vmatpush2.msra.mxu0 %v3782
  %3972 = vmatprep.subr.mxu0 0.0
  %3973 = vmatpush2.msra.mxu0 %v3781
  %3974 = vmatprep.subr.mxu0 0.0
  %3975 = vmatpush2.msra.mxu0 %v3780
  %3976 = vmatprep.subr.mxu0 0.0
  %3977 = vmatpush2.msra.mxu0 %v3779
  %3978 = vmatprep.subr.mxu0 0.0
  %3979 = vmatpush2.msra.mxu0 %v3778
  %3980 = vmatprep.subr.mxu0 0.0
  %3981 = vmatpush2.msra.mxu0 %v3777
  %3982 = vmatprep.subr.mxu0 0.0
  %3983 = vmatpush2.msra.mxu0 %v3776
  %3984 = vmatprep.subr.mxu0 0.0
  %3985 = vmatpush2.msra.mxu0 %v3775
  %3986 = vmatprep.subr.mxu0 0.0
  %3987 = vmatpush2.msra.mxu0 %v3774
  %3988 = vmatprep.mubr.f32.mxu0 %v3593
  %3989 = vmatmul.mubr.f32.gmra.mxu0 %v3592
  %v3990 = vpop.f32.mrf.mxu0
  %v3991 = vadd.f32 %v3921, %v3990
  %v3992 = vpop.f32.mrf.mxu0
  %3993 = vdwg.mxu0
  %3994 = vmatprep.subr.mxu0 0.0
  %3995 = vmatpush1.msra.mxu0 %v3805
  %3996 = vmatprep.subr.mxu0 0.0
  %3997 = vmatpush1.msra.mxu0 %v3804
  %3998 = vmatprep.subr.mxu0 0.0
  %3999 = vmatpush1.msra.mxu0 %v3803
  %4000 = vmatprep.subr.mxu0 0.0
  %4001 = vmatpush1.msra.mxu0 %v3802
  %4002 = vmatprep.subr.mxu0 0.0
  %4003 = vmatpush1.msra.mxu0 %v3801
  %4004 = vmatprep.subr.mxu0 0.0
  %4005 = vmatpush1.msra.mxu0 %v3800
  %4006 = vmatprep.subr.mxu0 0.0
  %4007 = vmatpush1.msra.mxu0 %v3799
  %4008 = vmatprep.subr.mxu0 0.0
  %4009 = vmatpush1.msra.mxu0 %v3798
  %4010 = vmatprep.subr.mxu0 0.0
  %4011 = vmatpush1.msra.mxu0 %v3797
  %4012 = vmatprep.subr.mxu0 0.0
  %4013 = vmatpush1.msra.mxu0 %v3796
  %4014 = vmatprep.subr.mxu0 0.0
  %4015 = vmatpush1.msra.mxu0 %v3795
  %4016 = vmatprep.subr.mxu0 0.0
  %4017 = vmatpush1.msra.mxu0 %v3794
  %4018 = vmatprep.subr.mxu0 0.0
  %4019 = vmatpush1.msra.mxu0 %v3793
  %4020 = vmatprep.subr.mxu0 0.0
  %4021 = vmatpush1.msra.mxu0 %v3792
  %4022 = vmatprep.subr.mxu0 0.0
  %4023 = vmatpush1.msra.mxu0 %v3791
  %4024 = vmatprep.subr.mxu0 0.0
  %4025 = vmatpush1.msra.mxu0 %v3790
  %4026 = vmatprep.subr.mxu0 0.0
  %4027 = vmatpush2.msra.mxu0 %v3821
  %4028 = vmatprep.subr.mxu0 0.0
  %4029 = vmatpush2.msra.mxu0 %v3820
  %4030 = vmatprep.subr.mxu0 0.0
  %4031 = vmatpush2.msra.mxu0 %v3819
  %4032 = vmatprep.subr.mxu0 0.0
  %4033 = vmatpush2.msra.mxu0 %v3818
  %4034 = vmatprep.subr.mxu0 0.0
  %4035 = vmatpush2.msra.mxu0 %v3817
  %4036 = vmatprep.subr.mxu0 0.0
  %4037 = vmatpush2.msra.mxu0 %v3816
  %4038 = vmatprep.subr.mxu0 0.0
  %4039 = vmatpush2.msra.mxu0 %v3815
  %4040 = vmatprep.subr.mxu0 0.0
  %4041 = vmatpush2.msra.mxu0 %v3814
  %4042 = vmatprep.subr.mxu0 0.0
  %4043 = vmatpush2.msra.mxu0 %v3813
  %4044 = vmatprep.subr.mxu0 0.0
  %4045 = vmatpush2.msra.mxu0 %v3812
  %4046 = vmatprep.subr.mxu0 0.0
  %4047 = vmatpush2.msra.mxu0 %v3811
  %4048 = vmatprep.subr.mxu0 0.0
  %4049 = vmatpush2.msra.mxu0 %v3810
  %4050 = vmatprep.subr.mxu0 0.0
  %4051 = vmatpush2.msra.mxu0 %v3809
  %4052 = vmatprep.subr.mxu0 0.0
  %4053 = vmatpush2.msra.mxu0 %v3808
  %4054 = vmatprep.subr.mxu0 0.0
  %4055 = vmatpush2.msra.mxu0 %v3807
  %4056 = vmatprep.subr.mxu0 0.0
  %4057 = vmatpush2.msra.mxu0 %v3806
  %4058 = vmatprep.mubr.f32.mxu0 %v3595
  %4059 = vmatmul.mubr.f32.gmra.mxu0 %v3594
  %v4060 = vpop.f32.mrf.mxu0
  %v4061 = vadd.f32 %v3991, %v4060
  %v4062 = vpop.f32.mrf.mxu0
  %4063 = vdwg.mxu0
  %4064 = vmatprep.subr.mxu0 0.0
  %4065 = vmatpush1.msra.mxu0 %v3837
  %4066 = vmatprep.subr.mxu0 0.0
  %4067 = vmatpush1.msra.mxu0 %v3836
  %4068 = vmatprep.subr.mxu0 0.0
  %4069 = vmatpush1.msra.mxu0 %v3835
  %4070 = vmatprep.subr.mxu0 0.0
  %4071 = vmatpush1.msra.mxu0 %v3834
  %4072 = vmatprep.subr.mxu0 0.0
  %4073 = vmatpush1.msra.mxu0 %v3833
  %4074 = vmatprep.subr.mxu0 0.0
  %4075 = vmatpush1.msra.mxu0 %v3832
  %4076 = vmatprep.subr.mxu0 0.0
  %4077 = vmatpush1.msra.mxu0 %v3831
  %4078 = vmatprep.subr.mxu0 0.0
  %4079 = vmatpush1.msra.mxu0 %v3830
  %4080 = vmatprep.subr.mxu0 0.0
  %4081 = vmatpush1.msra.mxu0 %v3829
  %4082 = vmatprep.subr.mxu0 0.0
  %4083 = vmatpush1.msra.mxu0 %v3828
  %4084 = vmatprep.subr.mxu0 0.0
  %4085 = vmatpush1.msra.mxu0 %v3827
  %4086 = vmatprep.subr.mxu0 0.0
  %4087 = vmatpush1.msra.mxu0 %v3826
  %4088 = vmatprep.subr.mxu0 0.0
  %4089 = vmatpush1.msra.mxu0 %v3825
  %4090 = vmatprep.subr.mxu0 0.0
  %4091 = vmatpush1.msra.mxu0 %v3824
  %4092 = vmatprep.subr.mxu0 0.0
  %4093 = vmatpush1.msra.mxu0 %v3823
  %4094 = vmatprep.subr.mxu0 0.0
  %4095 = vmatpush1.msra.mxu0 %v3822
  %4096 = vmatprep.subr.mxu0 0.0
  %4097 = vmatpush2.msra.mxu0 %v3853
  %4098 = vmatprep.subr.mxu0 0.0
  %4099 = vmatpush2.msra.mxu0 %v3852
  %4100 = vmatprep.subr.mxu0 0.0
  %4101 = vmatpush2.msra.mxu0 %v3851
  %4102 = vmatprep.subr.mxu0 0.0
  %4103 = vmatpush2.msra.mxu0 %v3850
  %4104 = vmatprep.subr.mxu0 0.0
  %4105 = vmatpush2.msra.mxu0 %v3849
  %4106 = vmatprep.subr.mxu0 0.0
  %4107 = vmatpush2.msra.mxu0 %v3848
  %4108 = vmatprep.subr.mxu0 0.0
  %4109 = vmatpush2.msra.mxu0 %v3847
  %4110 = vmatprep.subr.mxu0 0.0
  %4111 = vmatpush2.msra.mxu0 %v3846
  %4112 = vmatprep.subr.mxu0 0.0
  %4113 = vmatpush2.msra.mxu0 %v3845
  %4114 = vmatprep.subr.mxu0 0.0
  %4115 = vmatpush2.msra.mxu0 %v3844
  %4116 = vmatprep.subr.mxu0 0.0
  %4117 = vmatpush2.msra.mxu0 %v3843
  %4118 = vmatprep.subr.mxu0 0.0
  %4119 = vmatpush2.msra.mxu0 %v3842
  %4120 = vmatprep.subr.mxu0 0.0
  %4121 = vmatpush2.msra.mxu0 %v3841
  %4122 = vmatprep.subr.mxu0 0.0
  %4123 = vmatpush2.msra.mxu0 %v3840
  %4124 = vmatprep.subr.mxu0 0.0
  %4125 = vmatpush2.msra.mxu0 %v3839
  %4126 = vmatprep.subr.mxu0 0.0
  %4127 = vmatpush2.msra.mxu0 %v3838
  %4128 = vmatprep.mubr.f32.mxu0 %v3597
  %4129 = vmatmul.mubr.f32.gmra.mxu0 %v3596
  %v4130 = vpop.f32.mrf.mxu0
  %v4131 = vadd.f32 %v4061, %v4130
  %v4132 = vpop.f32.mrf.mxu0
  %4133 = vdwg.mxu0
  %vm4134 = vcmask 519168
  %v4135 = vsel %vm4134, %v4131, 0.0
  %v4136 = vrot.slane %v4135, 4
  %v4137 = vadd.f32 %v4135, %v4136
  %v4138 = vrot.slane %v4137, 2
  %v4139 = vadd.f32 %v4137, %v4138
  %v4140 = vrot.slane %v4139, 1
  %v4141 = vadd.f32 %v4139, %v4140
  %v4142 = vmul.f32 %v4131, %v4131
  %v4143 = vsel %vm4134, %v4142, 0.0
  %v4144 = vrot.slane %v4143, 4
  %v4145 = vadd.f32 %v4143, %v4144
  %v4146 = vrot.slane %v4145, 2
  %v4147 = vadd.f32 %v4145, %v4146
  %v4148 = vrot.slane %v4147, 1
  %v4149 = vadd.f32 %v4147, %v4148
  %v4150 = vsel %vm2240, %v4141, %v4149
  %v4152 = vsel %vm287, %v4150, 0
  %4154 = vmatprep.subr.mxu0 0.0
  %4155 = vmatpush1.msra.mxu0 0.0
  %4156 = vmatprep.subr.mxu0 0.0
  %4157 = vmatpush1.msra.mxu0 0.0
  %4158 = vmatprep.subr.mxu0 0.0
  %4159 = vmatpush1.msra.mxu0 0.0
  %4160 = vmatprep.subr.mxu0 0.0
  %4161 = vmatpush1.msra.mxu0 0.0
  %4162 = vmatprep.subr.mxu0 0.0
  %4163 = vmatpush1.msra.mxu0 0.0
  %4164 = vmatprep.subr.mxu0 0.0
  %4165 = vmatpush1.msra.mxu0 0.0
  %4166 = vmatprep.subr.mxu0 0.0
  %4167 = vmatpush1.msra.mxu0 0.0
  %4168 = vmatprep.subr.mxu0 0.0
  %4169 = vmatpush1.msra.mxu0 0.0
  %4170 = vmatprep.subr.mxu0 0.0
  %4171 = vmatpush1.msra.mxu0 %v222
  %4172 = vmatprep.subr.mxu0 0.0
  %4173 = vmatpush1.msra.mxu0 %v221
  %4174 = vmatprep.subr.mxu0 0.0
  %4175 = vmatpush1.msra.mxu0 %v220
  %4176 = vmatprep.subr.mxu0 0.0
  %4177 = vmatpush1.msra.mxu0 %v219
  %4178 = vmatprep.subr.mxu0 0.0
  %4179 = vmatpush1.msra.mxu0 %v218
  %4180 = vmatprep.subr.mxu0 0.0
  %4181 = vmatpush1.msra.mxu0 %v217
  %4182 = vmatprep.subr.mxu0 0.0
  %4183 = vmatpush1.msra.mxu0 %v216
  %4184 = vmatprep.subr.mxu0 0.0
  %4185 = vmatpush1.msra.mxu0 %v215
  %4186 = vmatprep.subr.mxu0 0.0
  %4187 = vmatpush2.msra.mxu0 0.0
  %4188 = vmatprep.subr.mxu0 0.0
  %4189 = vmatpush2.msra.mxu0 0.0
  %4190 = vmatprep.subr.mxu0 0.0
  %4191 = vmatpush2.msra.mxu0 0.0
  %4192 = vmatprep.subr.mxu0 0.0
  %4193 = vmatpush2.msra.mxu0 0.0
  %4194 = vmatprep.subr.mxu0 0.0
  %4195 = vmatpush2.msra.mxu0 0.0
  %4196 = vmatprep.subr.mxu0 0.0
  %4197 = vmatpush2.msra.mxu0 0.0
  %4198 = vmatprep.subr.mxu0 0.0
  %4199 = vmatpush2.msra.mxu0 0.0
  %4200 = vmatprep.subr.mxu0 0.0
  %4201 = vmatpush2.msra.mxu0 0.0
  %4202 = vmatprep.subr.mxu0 0.0
  %4203 = vmatpush2.msra.mxu0 0.0
  %4204 = vmatprep.subr.mxu0 0.0
  %4205 = vmatpush2.msra.mxu0 0.0
  %4206 = vmatprep.subr.mxu0 0.0
  %4207 = vmatpush2.msra.mxu0 0.0
  %4208 = vmatprep.subr.mxu0 0.0
  %4209 = vmatpush2.msra.mxu0 0.0
  %4210 = vmatprep.subr.mxu0 0.0
  %4211 = vmatpush2.msra.mxu0 0.0
  %4212 = vmatprep.subr.mxu0 0.0
  %4213 = vmatpush2.msra.mxu0 0.0
  %4214 = vmatprep.subr.mxu0 0.0
  %4215 = vmatpush2.msra.mxu0 0.0
  %4216 = vmatprep.subr.mxu0 0.0
  %4217 = vmatpush2.msra.mxu0 0.0
  %4218 = vmatprep.mubr.f32.mxu0 0.0
  %4219 = vmatmul.mubr.f32.gmra.mxu0 %v4152
  %v4220 = vpop.f32.mrf.mxu0
  %v4221 = vadd.f32 0.0, %v4220
  %v4222 = vpop.f32.mrf.mxu0
  %4223 = vdwg.mxu0
  %v4224 = vrcp.pop 32.0
  %v4225 = vmul.f32 %v4221, %v4224
  %v4226 = vmul.f32 %v4225, %v4225
  %v4228 = vrot.slane %v4226, 7
  %v4230 = vsub.f32 %v4225, %v4228
  %v4231 = vmax.f32 %v4230, 0.0
  %v4232 = vld [vmem:[%s10 + $0x1] sm:$0x1]
  %v4233 = vld [vmem:[%s11 + $0x1] sm:$0x1]
  %v4234 = vlaneseq
  %v4235 = vshrl.u32 %v4234, 7
  %v4236 = vsub.s32 0, %v4235
  %v4237 = vrot.slane %v4225, %v4236
  %v4238 = vsub.f32 %v4131, %v4237
  %v4239 = vadd.f32 %v4231, 1e-05
  %v4240 = vrsqrt.pop %v4239
  %v4241 = vlaneseq
  %v4242 = vshrl.u32 %v4241, 7
  %v4243 = vsub.s32 1, %v4242
  %v4244 = vrot.slane %v4240, %v4243
  %v4245 = vmul.f32 %v4238, %v4244
  %v4246 = vlaneseq
  %v4247 = vshrl.u32 %v4246, 7
  %v4248 = vsub.s32 0, %v4247
  %v4249 = vrot.slane %v4232, %v4248
  %v4250 = vmul.f32 %v4245, %v4249
  %v4251 = vlaneseq
  %v4252 = vshrl.u32 %v4251, 7
  %v4253 = vsub.s32 0, %v4252
  %v4254 = vrot.slane %v4233, %v4253
  %v4255 = vadd.f32 %v4250, %v4254
  %vm4256 = vcmp.ge.f32.partialorder %v4255, 0.0
  %v4257 = vmul.f32 %v4255, 0.2
  %v4258 = vsel %vm4256, %v4255, %v4257
  %v4259 = vld [vmem:[%s7] sm:$0x1]
  %v4260 = vld [vmem:[%s7 + $0x1] sm:$0x1]
  %v4261 = vld [vmem:[%s7 + $0x2] sm:$0x1]
  %v4262 = vld [vmem:[%s7 + $0x3] sm:$0x1]
  %v4263 = vld [vmem:[%s7 + $0x4] sm:$0x1]
  %v4264 = vld [vmem:[%s7 + $0x5] sm:$0x1]
  %v4265 = vld [vmem:[%s7 + $0x6] sm:$0x1]
  %v4266 = vld [vmem:[%s7 + $0x7] sm:$0x1]
  %v4267 = vld [vmem:[%s7 + $0x8] sm:$0x1]
  %v4268 = vld [vmem:[%s7 + $0x9] sm:$0x1]
  %v4269 = vld [vmem:[%s7 + $0xa] sm:$0x1]
  %v4270 = vld [vmem:[%s7 + $0xb] sm:$0x1]
  %v4271 = vld [vmem:[%s7 + $0xc] sm:$0x1]
  %v4272 = vld [vmem:[%s7 + $0xd] sm:$0x1]
  %v4273 = vld [vmem:[%s7 + $0xe] sm:$0x1]
  %v4274 = vld [vmem:[%s7 + $0xf] sm:$0x1]
  %v4275 = vunpack.c.l.bf16 %v4259
  %v4276 = vunpack.c.l.bf16 %v4260
  %v4277 = vunpack.c.l.bf16 %v4261
  %v4278 = vunpack.c.l.bf16 %v4262
  %v4279 = vunpack.c.l.bf16 %v4263
  %v4280 = vunpack.c.l.bf16 %v4264
  %v4281 = vunpack.c.l.bf16 %v4265
  %v4282 = vunpack.c.l.bf16 %v4266
  %v4283 = vunpack.c.l.bf16 %v4267
  %v4284 = vunpack.c.l.bf16 %v4268
  %v4285 = vunpack.c.l.bf16 %v4269
  %v4286 = vunpack.c.l.bf16 %v4270
  %v4287 = vunpack.c.l.bf16 %v4271
  %v4288 = vunpack.c.l.bf16 %v4272
  %v4289 = vunpack.c.l.bf16 %v4273
  %v4290 = vunpack.c.l.bf16 %v4274
  %vm4291 = vcmask 31744
  %v4293 = vsel %vm4291, %v4275, 0
  %vm4295 = vcmask 1043456
  %v4297 = vsel %vm4295, %v4258, 0
  %4299 = vmatprep.subr.mxu0 0.0
  %4300 = vmatpush1.msra.mxu0 0.0
  %4301 = vmatprep.subr.mxu0 0.0
  %4302 = vmatpush1.msra.mxu0 0.0
  %4303 = vmatprep.subr.mxu0 0.0
  %4304 = vmatpush1.msra.mxu0 0.0
  %4305 = vmatprep.subr.mxu0 0.0
  %4306 = vmatpush1.msra.mxu0 0.0
  %4307 = vmatprep.subr.mxu0 0.0
  %4308 = vmatpush1.msra.mxu0 0.0
  %4309 = vmatprep.subr.mxu0 0.0
  %4310 = vmatpush1.msra.mxu0 0.0
  %4311 = vmatprep.subr.mxu0 0.0
  %4312 = vmatpush1.msra.mxu0 0.0
  %4313 = vmatprep.subr.mxu0 0.0
  %4314 = vmatpush1.msra.mxu0 0.0
  %4315 = vmatprep.subr.mxu0 0.0
  %4316 = vmatpush1.msra.mxu0 0.0
  %4317 = vmatprep.subr.mxu0 0.0
  %4318 = vmatpush1.msra.mxu0 0.0
  %4319 = vmatprep.subr.mxu0 0.0
  %4320 = vmatpush1.msra.mxu0 0.0
  %4321 = vmatprep.subr.mxu0 0.0
  %4322 = vmatpush1.msra.mxu0 0.0
  %4323 = vmatprep.subr.mxu0 0.0
  %4324 = vmatpush1.msra.mxu0 0.0
  %4325 = vmatprep.subr.mxu0 0.0
  %4326 = vmatpush1.msra.mxu0 0.0
  %4327 = vmatprep.subr.mxu0 0.0
  %4328 = vmatpush1.msra.mxu0 0.0
  %4329 = vmatprep.subr.mxu0 0.0
  %4330 = vmatpush1.msra.mxu0 %v4297
  %4331 = vmatprep.subr.mxu0 0.0
  %4332 = vmatpush2.msra.mxu0 0.0
  %4333 = vmatprep.subr.mxu0 0.0
  %4334 = vmatpush2.msra.mxu0 0.0
  %4335 = vmatprep.subr.mxu0 0.0
  %4336 = vmatpush2.msra.mxu0 0.0
  %4337 = vmatprep.subr.mxu0 0.0
  %4338 = vmatpush2.msra.mxu0 0.0
  %4339 = vmatprep.subr.mxu0 0.0
  %4340 = vmatpush2.msra.mxu0 0.0
  %4341 = vmatprep.subr.mxu0 0.0
  %4342 = vmatpush2.msra.mxu0 0.0
  %4343 = vmatprep.subr.mxu0 0.0
  %4344 = vmatpush2.msra.mxu0 0.0
  %4345 = vmatprep.subr.mxu0 0.0
  %4346 = vmatpush2.msra.mxu0 0.0
  %4347 = vmatprep.subr.mxu0 0.0
  %4348 = vmatpush2.msra.mxu0 0.0
  %4349 = vmatprep.subr.mxu0 0.0
  %4350 = vmatpush2.msra.mxu0 0.0
  %4351 = vmatprep.subr.mxu0 0.0
  %4352 = vmatpush2.msra.mxu0 0.0
  %4353 = vmatprep.subr.mxu0 0.0
  %4354 = vmatpush2.msra.mxu0 0.0
  %4355 = vmatprep.subr.mxu0 0.0
  %4356 = vmatpush2.msra.mxu0 0.0
  %4357 = vmatprep.subr.mxu0 0.0
  %4358 = vmatpush2.msra.mxu0 0.0
  %4359 = vmatprep.subr.mxu0 0.0
  %4360 = vmatpush2.msra.mxu0 0.0
  %4361 = vmatprep.subr.mxu0 0.0
  %4362 = vmatpush2.msra.mxu0 0.0
  %4363 = vmatprep.mubr.f32.mxu0 0.0
  %4364 = vmatmul.mubr.f32.gmra.mxu0 %v4293
  %v4365 = vpop.f32.mrf.mxu0
  %v4366 = vadd.f32 0.0, %v4365
  %v4367 = vpop.f32.mrf.mxu0
  %4368 = vdwg.mxu0
  %v4370 = vsel %vm4291, %v4276, 0
  %4372 = vmatprep.subr.mxu0 0.0
  %4373 = vmatpush1.msra.mxu0 0.0
  %4374 = vmatprep.subr.mxu0 0.0
  %4375 = vmatpush1.msra.mxu0 0.0
  %4376 = vmatprep.subr.mxu0 0.0
  %4377 = vmatpush1.msra.mxu0 0.0
  %4378 = vmatprep.subr.mxu0 0.0
  %4379 = vmatpush1.msra.mxu0 0.0
  %4380 = vmatprep.subr.mxu0 0.0
  %4381 = vmatpush1.msra.mxu0 0.0
  %4382 = vmatprep.subr.mxu0 0.0
  %4383 = vmatpush1.msra.mxu0 0.0
  %4384 = vmatprep.subr.mxu0 0.0
  %4385 = vmatpush1.msra.mxu0 0.0
  %4386 = vmatprep.subr.mxu0 0.0
  %4387 = vmatpush1.msra.mxu0 0.0
  %4388 = vmatprep.subr.mxu0 0.0
  %4389 = vmatpush1.msra.mxu0 0.0
  %4390 = vmatprep.subr.mxu0 0.0
  %4391 = vmatpush1.msra.mxu0 0.0
  %4392 = vmatprep.subr.mxu0 0.0
  %4393 = vmatpush1.msra.mxu0 0.0
  %4394 = vmatprep.subr.mxu0 0.0
  %4395 = vmatpush1.msra.mxu0 0.0
  %4396 = vmatprep.subr.mxu0 0.0
  %4397 = vmatpush1.msra.mxu0 0.0
  %4398 = vmatprep.subr.mxu0 0.0
  %4399 = vmatpush1.msra.mxu0 0.0
  %4400 = vmatprep.subr.mxu0 0.0
  %4401 = vmatpush1.msra.mxu0 0.0
  %4402 = vmatprep.subr.mxu0 0.0
  %4403 = vmatpush1.msra.mxu0 %v4297
  %4404 = vmatprep.subr.mxu0 0.0
  %4405 = vmatpush2.msra.mxu0 0.0
  %4406 = vmatprep.subr.mxu0 0.0
  %4407 = vmatpush2.msra.mxu0 0.0
  %4408 = vmatprep.subr.mxu0 0.0
  %4409 = vmatpush2.msra.mxu0 0.0
  %4410 = vmatprep.subr.mxu0 0.0
  %4411 = vmatpush2.msra.mxu0 0.0
  %4412 = vmatprep.subr.mxu0 0.0
  %4413 = vmatpush2.msra.mxu0 0.0
  %4414 = vmatprep.subr.mxu0 0.0
  %4415 = vmatpush2.msra.mxu0 0.0
  %4416 = vmatprep.subr.mxu0 0.0
  %4417 = vmatpush2.msra.mxu0 0.0
  %4418 = vmatprep.subr.mxu0 0.0
  %4419 = vmatpush2.msra.mxu0 0.0
  %4420 = vmatprep.subr.mxu0 0.0
  %4421 = vmatpush2.msra.mxu0 0.0
  %4422 = vmatprep.subr.mxu0 0.0
  %4423 = vmatpush2.msra.mxu0 0.0
  %4424 = vmatprep.subr.mxu0 0.0
  %4425 = vmatpush2.msra.mxu0 0.0
  %4426 = vmatprep.subr.mxu0 0.0
  %4427 = vmatpush2.msra.mxu0 0.0
  %4428 = vmatprep.subr.mxu0 0.0
  %4429 = vmatpush2.msra.mxu0 0.0
  %4430 = vmatprep.subr.mxu0 0.0
  %4431 = vmatpush2.msra.mxu0 0.0
  %4432 = vmatprep.subr.mxu0 0.0
  %4433 = vmatpush2.msra.mxu0 0.0
  %4434 = vmatprep.subr.mxu0 0.0
  %4435 = vmatpush2.msra.mxu0 0.0
  %4436 = vmatprep.mubr.f32.mxu0 0.0
  %4437 = vmatmul.mubr.f32.gmra.mxu0 %v4370
  %v4438 = vpop.f32.mrf.mxu0
  %v4439 = vadd.f32 0.0, %v4438
  %v4440 = vpop.f32.mrf.mxu0
  %4441 = vdwg.mxu0
  %v4443 = vsel %vm4291, %v4277, 0
  %4445 = vmatprep.subr.mxu0 0.0
  %4446 = vmatpush1.msra.mxu0 0.0
  %4447 = vmatprep.subr.mxu0 0.0
  %4448 = vmatpush1.msra.mxu0 0.0
  %4449 = vmatprep.subr.mxu0 0.0
  %4450 = vmatpush1.msra.mxu0 0.0
  %4451 = vmatprep.subr.mxu0 0.0
  %4452 = vmatpush1.msra.mxu0 0.0
  %4453 = vmatprep.subr.mxu0 0.0
  %4454 = vmatpush1.msra.mxu0 0.0
  %4455 = vmatprep.subr.mxu0 0.0
  %4456 = vmatpush1.msra.mxu0 0.0
  %4457 = vmatprep.subr.mxu0 0.0
  %4458 = vmatpush1.msra.mxu0 0.0
  %4459 = vmatprep.subr.mxu0 0.0
  %4460 = vmatpush1.msra.mxu0 0.0
  %4461 = vmatprep.subr.mxu0 0.0
  %4462 = vmatpush1.msra.mxu0 0.0
  %4463 = vmatprep.subr.mxu0 0.0
  %4464 = vmatpush1.msra.mxu0 0.0
  %4465 = vmatprep.subr.mxu0 0.0
  %4466 = vmatpush1.msra.mxu0 0.0
  %4467 = vmatprep.subr.mxu0 0.0
  %4468 = vmatpush1.msra.mxu0 0.0
  %4469 = vmatprep.subr.mxu0 0.0
  %4470 = vmatpush1.msra.mxu0 0.0
  %4471 = vmatprep.subr.mxu0 0.0
  %4472 = vmatpush1.msra.mxu0 0.0
  %4473 = vmatprep.subr.mxu0 0.0
  %4474 = vmatpush1.msra.mxu0 0.0
  %4475 = vmatprep.subr.mxu0 0.0
  %4476 = vmatpush1.msra.mxu0 %v4297
  %4477 = vmatprep.subr.mxu0 0.0
  %4478 = vmatpush2.msra.mxu0 0.0
  %4479 = vmatprep.subr.mxu0 0.0
  %4480 = vmatpush2.msra.mxu0 0.0
  %4481 = vmatprep.subr.mxu0 0.0
  %4482 = vmatpush2.msra.mxu0 0.0
  %4483 = vmatprep.subr.mxu0 0.0
  %4484 = vmatpush2.msra.mxu0 0.0
  %4485 = vmatprep.subr.mxu0 0.0
  %4486 = vmatpush2.msra.mxu0 0.0
  %4487 = vmatprep.subr.mxu0 0.0
  %4488 = vmatpush2.msra.mxu0 0.0
  %4489 = vmatprep.subr.mxu0 0.0
  %4490 = vmatpush2.msra.mxu0 0.0
  %4491 = vmatprep.subr.mxu0 0.0
  %4492 = vmatpush2.msra.mxu0 0.0
  %4493 = vmatprep.subr.mxu0 0.0
  %4494 = vmatpush2.msra.mxu0 0.0
  %4495 = vmatprep.subr.mxu0 0.0
  %4496 = vmatpush2.msra.mxu0 0.0
  %4497 = vmatprep.subr.mxu0 0.0
  %4498 = vmatpush2.msra.mxu0 0.0
  %4499 = vmatprep.subr.mxu0 0.0
  %4500 = vmatpush2.msra.mxu0 0.0
  %4501 = vmatprep.subr.mxu0 0.0
  %4502 = vmatpush2.msra.mxu0 0.0
  %4503 = vmatprep.subr.mxu0 0.0
  %4504 = vmatpush2.msra.mxu0 0.0
  %4505 = vmatprep.subr.mxu0 0.0
  %4506 = vmatpush2.msra.mxu0 0.0
  %4507 = vmatprep.subr.mxu0 0.0
  %4508 = vmatpush2.msra.mxu0 0.0
  %4509 = vmatprep.mubr.f32.mxu0 0.0
  %4510 = vmatmul.mubr.f32.gmra.mxu0 %v4443
  %v4511 = vpop.f32.mrf.mxu0
  %v4512 = vadd.f32 0.0, %v4511
  %v4513 = vpop.f32.mrf.mxu0
  %4514 = vdwg.mxu0
  %v4516 = vsel %vm4291, %v4278, 0
  %4518 = vmatprep.subr.mxu0 0.0
  %4519 = vmatpush1.msra.mxu0 0.0
  %4520 = vmatprep.subr.mxu0 0.0
  %4521 = vmatpush1.msra.mxu0 0.0
  %4522 = vmatprep.subr.mxu0 0.0
  %4523 = vmatpush1.msra.mxu0 0.0
  %4524 = vmatprep.subr.mxu0 0.0
  %4525 = vmatpush1.msra.mxu0 0.0
  %4526 = vmatprep.subr.mxu0 0.0
  %4527 = vmatpush1.msra.mxu0 0.0
  %4528 = vmatprep.subr.mxu0 0.0
  %4529 = vmatpush1.msra.mxu0 0.0
  %4530 = vmatprep.subr.mxu0 0.0
  %4531 = vmatpush1.msra.mxu0 0.0
  %4532 = vmatprep.subr.mxu0 0.0
  %4533 = vmatpush1.msra.mxu0 0.0
  %4534 = vmatprep.subr.mxu0 0.0
  %4535 = vmatpush1.msra.mxu0 0.0
  %4536 = vmatprep.subr.mxu0 0.0
  %4537 = vmatpush1.msra.mxu0 0.0
  %4538 = vmatprep.subr.mxu0 0.0
  %4539 = vmatpush1.msra.mxu0 0.0
  %4540 = vmatprep.subr.mxu0 0.0
  %4541 = vmatpush1.msra.mxu0 0.0
  %4542 = vmatprep.subr.mxu0 0.0
  %4543 = vmatpush1.msra.mxu0 0.0
  %4544 = vmatprep.subr.mxu0 0.0
  %4545 = vmatpush1.msra.mxu0 0.0
  %4546 = vmatprep.subr.mxu0 0.0
  %4547 = vmatpush1.msra.mxu0 0.0
  %4548 = vmatprep.subr.mxu0 0.0
  %4549 = vmatpush1.msra.mxu0 %v4297
  %4550 = vmatprep.subr.mxu0 0.0
  %4551 = vmatpush2.msra.mxu0 0.0
  %4552 = vmatprep.subr.mxu0 0.0
  %4553 = vmatpush2.msra.mxu0 0.0
  %4554 = vmatprep.subr.mxu0 0.0
  %4555 = vmatpush2.msra.mxu0 0.0
  %4556 = vmatprep.subr.mxu0 0.0
  %4557 = vmatpush2.msra.mxu0 0.0
  %4558 = vmatprep.subr.mxu0 0.0
  %4559 = vmatpush2.msra.mxu0 0.0
  %4560 = vmatprep.subr.mxu0 0.0
  %4561 = vmatpush2.msra.mxu0 0.0
  %4562 = vmatprep.subr.mxu0 0.0
  %4563 = vmatpush2.msra.mxu0 0.0
  %4564 = vmatprep.subr.mxu0 0.0
  %4565 = vmatpush2.msra.mxu0 0.0
  %4566 = vmatprep.subr.mxu0 0.0
  %4567 = vmatpush2.msra.mxu0 0.0
  %4568 = vmatprep.subr.mxu0 0.0
  %4569 = vmatpush2.msra.mxu0 0.0
  %4570 = vmatprep.subr.mxu0 0.0
  %4571 = vmatpush2.msra.mxu0 0.0
  %4572 = vmatprep.subr.mxu0 0.0
  %4573 = vmatpush2.msra.mxu0 0.0
  %4574 = vmatprep.subr.mxu0 0.0
  %4575 = vmatpush2.msra.mxu0 0.0
  %4576 = vmatprep.subr.mxu0 0.0
  %4577 = vmatpush2.msra.mxu0 0.0
  %4578 = vmatprep.subr.mxu0 0.0
  %4579 = vmatpush2.msra.mxu0 0.0
  %4580 = vmatprep.subr.mxu0 0.0
  %4581 = vmatpush2.msra.mxu0 0.0
  %4582 = vmatprep.mubr.f32.mxu0 0.0
  %4583 = vmatmul.mubr.f32.gmra.mxu0 %v4516
  %v4584 = vpop.f32.mrf.mxu0
  %v4585 = vadd.f32 0.0, %v4584
  %v4586 = vpop.f32.mrf.mxu0
  %4587 = vdwg.mxu0
  %v4589 = vsel %vm4291, %v4279, 0
  %4591 = vmatprep.subr.mxu0 0.0
  %4592 = vmatpush1.msra.mxu0 0.0
  %4593 = vmatprep.subr.mxu0 0.0
  %4594 = vmatpush1.msra.mxu0 0.0
  %4595 = vmatprep.subr.mxu0 0.0
  %4596 = vmatpush1.msra.mxu0 0.0
  %4597 = vmatprep.subr.mxu0 0.0
  %4598 = vmatpush1.msra.mxu0 0.0
  %4599 = vmatprep.subr.mxu0 0.0
  %4600 = vmatpush1.msra.mxu0 0.0
  %4601 = vmatprep.subr.mxu0 0.0
  %4602 = vmatpush1.msra.mxu0 0.0
  %4603 = vmatprep.subr.mxu0 0.0
  %4604 = vmatpush1.msra.mxu0 0.0
  %4605 = vmatprep.subr.mxu0 0.0
  %4606 = vmatpush1.msra.mxu0 0.0
  %4607 = vmatprep.subr.mxu0 0.0
  %4608 = vmatpush1.msra.mxu0 0.0
  %4609 = vmatprep.subr.mxu0 0.0
  %4610 = vmatpush1.msra.mxu0 0.0
  %4611 = vmatprep.subr.mxu0 0.0
  %4612 = vmatpush1.msra.mxu0 0.0
  %4613 = vmatprep.subr.mxu0 0.0
  %4614 = vmatpush1.msra.mxu0 0.0
  %4615 = vmatprep.subr.mxu0 0.0
  %4616 = vmatpush1.msra.mxu0 0.0
  %4617 = vmatprep.subr.mxu0 0.0
  %4618 = vmatpush1.msra.mxu0 0.0
  %4619 = vmatprep.subr.mxu0 0.0
  %4620 = vmatpush1.msra.mxu0 0.0
  %4621 = vmatprep.subr.mxu0 0.0
  %4622 = vmatpush1.msra.mxu0 %v4297
  %4623 = vmatprep.subr.mxu0 0.0
  %4624 = vmatpush2.msra.mxu0 0.0
  %4625 = vmatprep.subr.mxu0 0.0
  %4626 = vmatpush2.msra.mxu0 0.0
  %4627 = vmatprep.subr.mxu0 0.0
  %4628 = vmatpush2.msra.mxu0 0.0
  %4629 = vmatprep.subr.mxu0 0.0
  %4630 = vmatpush2.msra.mxu0 0.0
  %4631 = vmatprep.subr.mxu0 0.0
  %4632 = vmatpush2.msra.mxu0 0.0
  %4633 = vmatprep.subr.mxu0 0.0
  %4634 = vmatpush2.msra.mxu0 0.0
  %4635 = vmatprep.subr.mxu0 0.0
  %4636 = vmatpush2.msra.mxu0 0.0
  %4637 = vmatprep.subr.mxu0 0.0
  %4638 = vmatpush2.msra.mxu0 0.0
  %4639 = vmatprep.subr.mxu0 0.0
  %4640 = vmatpush2.msra.mxu0 0.0
  %4641 = vmatprep.subr.mxu0 0.0
  %4642 = vmatpush2.msra.mxu0 0.0
  %4643 = vmatprep.subr.mxu0 0.0
  %4644 = vmatpush2.msra.mxu0 0.0
  %4645 = vmatprep.subr.mxu0 0.0
  %4646 = vmatpush2.msra.mxu0 0.0
  %4647 = vmatprep.subr.mxu0 0.0
  %4648 = vmatpush2.msra.mxu0 0.0
  %4649 = vmatprep.subr.mxu0 0.0
  %4650 = vmatpush2.msra.mxu0 0.0
  %4651 = vmatprep.subr.mxu0 0.0
  %4652 = vmatpush2.msra.mxu0 0.0
  %4653 = vmatprep.subr.mxu0 0.0
  %4654 = vmatpush2.msra.mxu0 0.0
  %4655 = vmatprep.mubr.f32.mxu0 0.0
  %4656 = vmatmul.mubr.f32.gmra.mxu0 %v4589
  %v4657 = vpop.f32.mrf.mxu0
  %v4658 = vadd.f32 0.0, %v4657
  %v4659 = vpop.f32.mrf.mxu0
  %4660 = vdwg.mxu0
  %v4662 = vsel %vm4291, %v4280, 0
  %4664 = vmatprep.subr.mxu0 0.0
  %4665 = vmatpush1.msra.mxu0 0.0
  %4666 = vmatprep.subr.mxu0 0.0
  %4667 = vmatpush1.msra.mxu0 0.0
  %4668 = vmatprep.subr.mxu0 0.0
  %4669 = vmatpush1.msra.mxu0 0.0
  %4670 = vmatprep.subr.mxu0 0.0
  %4671 = vmatpush1.msra.mxu0 0.0
  %4672 = vmatprep.subr.mxu0 0.0
  %4673 = vmatpush1.msra.mxu0 0.0
  %4674 = vmatprep.subr.mxu0 0.0
  %4675 = vmatpush1.msra.mxu0 0.0
  %4676 = vmatprep.subr.mxu0 0.0
  %4677 = vmatpush1.msra.mxu0 0.0
  %4678 = vmatprep.subr.mxu0 0.0
  %4679 = vmatpush1.msra.mxu0 0.0
  %4680 = vmatprep.subr.mxu0 0.0
  %4681 = vmatpush1.msra.mxu0 0.0
  %4682 = vmatprep.subr.mxu0 0.0
  %4683 = vmatpush1.msra.mxu0 0.0
  %4684 = vmatprep.subr.mxu0 0.0
  %4685 = vmatpush1.msra.mxu0 0.0
  %4686 = vmatprep.subr.mxu0 0.0
  %4687 = vmatpush1.msra.mxu0 0.0
  %4688 = vmatprep.subr.mxu0 0.0
  %4689 = vmatpush1.msra.mxu0 0.0
  %4690 = vmatprep.subr.mxu0 0.0
  %4691 = vmatpush1.msra.mxu0 0.0
  %4692 = vmatprep.subr.mxu0 0.0
  %4693 = vmatpush1.msra.mxu0 0.0
  %4694 = vmatprep.subr.mxu0 0.0
  %4695 = vmatpush1.msra.mxu0 %v4297
  %4696 = vmatprep.subr.mxu0 0.0
  %4697 = vmatpush2.msra.mxu0 0.0
  %4698 = vmatprep.subr.mxu0 0.0
  %4699 = vmatpush2.msra.mxu0 0.0
  %4700 = vmatprep.subr.mxu0 0.0
  %4701 = vmatpush2.msra.mxu0 0.0
  %4702 = vmatprep.subr.mxu0 0.0
  %4703 = vmatpush2.msra.mxu0 0.0
  %4704 = vmatprep.subr.mxu0 0.0
  %4705 = vmatpush2.msra.mxu0 0.0
  %4706 = vmatprep.subr.mxu0 0.0
  %4707 = vmatpush2.msra.mxu0 0.0
  %4708 = vmatprep.subr.mxu0 0.0
  %4709 = vmatpush2.msra.mxu0 0.0
  %4710 = vmatprep.subr.mxu0 0.0
  %4711 = vmatpush2.msra.mxu0 0.0
  %4712 = vmatprep.subr.mxu0 0.0
  %4713 = vmatpush2.msra.mxu0 0.0
  %4714 = vmatprep.subr.mxu0 0.0
  %4715 = vmatpush2.msra.mxu0 0.0
  %4716 = vmatprep.subr.mxu0 0.0
  %4717 = vmatpush2.msra.mxu0 0.0
  %4718 = vmatprep.subr.mxu0 0.0
  %4719 = vmatpush2.msra.mxu0 0.0
  %4720 = vmatprep.subr.mxu0 0.0
  %4721 = vmatpush2.msra.mxu0 0.0
  %4722 = vmatprep.subr.mxu0 0.0
  %4723 = vmatpush2.msra.mxu0 0.0
  %4724 = vmatprep.subr.mxu0 0.0
  %4725 = vmatpush2.msra.mxu0 0.0
  %4726 = vmatprep.subr.mxu0 0.0
  %4727 = vmatpush2.msra.mxu0 0.0
  %4728 = vmatprep.mubr.f32.mxu0 0.0
  %4729 = vmatmul.mubr.f32.gmra.mxu0 %v4662
  %v4730 = vpop.f32.mrf.mxu0
  %v4731 = vadd.f32 0.0, %v4730
  %v4732 = vpop.f32.mrf.mxu0
  %4733 = vdwg.mxu0
  %v4735 = vsel %vm4291, %v4281, 0
  %4737 = vmatprep.subr.mxu0 0.0
  %4738 = vmatpush1.msra.mxu0 0.0
  %4739 = vmatprep.subr.mxu0 0.0
  %4740 = vmatpush1.msra.mxu0 0.0
  %4741 = vmatprep.subr.mxu0 0.0
  %4742 = vmatpush1.msra.mxu0 0.0
  %4743 = vmatprep.subr.mxu0 0.0
  %4744 = vmatpush1.msra.mxu0 0.0
  %4745 = vmatprep.subr.mxu0 0.0
  %4746 = vmatpush1.msra.mxu0 0.0
  %4747 = vmatprep.subr.mxu0 0.0
  %4748 = vmatpush1.msra.mxu0 0.0
  %4749 = vmatprep.subr.mxu0 0.0
  %4750 = vmatpush1.msra.mxu0 0.0
  %4751 = vmatprep.subr.mxu0 0.0
  %4752 = vmatpush1.msra.mxu0 0.0
  %4753 = vmatprep.subr.mxu0 0.0
  %4754 = vmatpush1.msra.mxu0 0.0
  %4755 = vmatprep.subr.mxu0 0.0
  %4756 = vmatpush1.msra.mxu0 0.0
  %4757 = vmatprep.subr.mxu0 0.0
  %4758 = vmatpush1.msra.mxu0 0.0
  %4759 = vmatprep.subr.mxu0 0.0
  %4760 = vmatpush1.msra.mxu0 0.0
  %4761 = vmatprep.subr.mxu0 0.0
  %4762 = vmatpush1.msra.mxu0 0.0
  %4763 = vmatprep.subr.mxu0 0.0
  %4764 = vmatpush1.msra.mxu0 0.0
  %4765 = vmatprep.subr.mxu0 0.0
  %4766 = vmatpush1.msra.mxu0 0.0
  %4767 = vmatprep.subr.mxu0 0.0
  %4768 = vmatpush1.msra.mxu0 %v4297
  %4769 = vmatprep.subr.mxu0 0.0
  %4770 = vmatpush2.msra.mxu0 0.0
  %4771 = vmatprep.subr.mxu0 0.0
  %4772 = vmatpush2.msra.mxu0 0.0
  %4773 = vmatprep.subr.mxu0 0.0
  %4774 = vmatpush2.msra.mxu0 0.0
  %4775 = vmatprep.subr.mxu0 0.0
  %4776 = vmatpush2.msra.mxu0 0.0
  %4777 = vmatprep.subr.mxu0 0.0
  %4778 = vmatpush2.msra.mxu0 0.0
  %4779 = vmatprep.subr.mxu0 0.0
  %4780 = vmatpush2.msra.mxu0 0.0
  %4781 = vmatprep.subr.mxu0 0.0
  %4782 = vmatpush2.msra.mxu0 0.0
  %4783 = vmatprep.subr.mxu0 0.0
  %4784 = vmatpush2.msra.mxu0 0.0
  %4785 = vmatprep.subr.mxu0 0.0
  %4786 = vmatpush2.msra.mxu0 0.0
  %4787 = vmatprep.subr.mxu0 0.0
  %4788 = vmatpush2.msra.mxu0 0.0
  %4789 = vmatprep.subr.mxu0 0.0
  %4790 = vmatpush2.msra.mxu0 0.0
  %4791 = vmatprep.subr.mxu0 0.0
  %4792 = vmatpush2.msra.mxu0 0.0
  %4793 = vmatprep.subr.mxu0 0.0
  %4794 = vmatpush2.msra.mxu0 0.0
  %4795 = vmatprep.subr.mxu0 0.0
  %4796 = vmatpush2.msra.mxu0 0.0
  %4797 = vmatprep.subr.mxu0 0.0
  %4798 = vmatpush2.msra.mxu0 0.0
  %4799 = vmatprep.subr.mxu0 0.0
  %4800 = vmatpush2.msra.mxu0 0.0
  %4801 = vmatprep.mubr.f32.mxu0 0.0
  %4802 = vmatmul.mubr.f32.gmra.mxu0 %v4735
  %v4803 = vpop.f32.mrf.mxu0
  %v4804 = vadd.f32 0.0, %v4803
  %v4805 = vpop.f32.mrf.mxu0
  %4806 = vdwg.mxu0
  %v4808 = vsel %vm4291, %v4282, 0
  %4810 = vmatprep.subr.mxu0 0.0
  %4811 = vmatpush1.msra.mxu0 0.0
  %4812 = vmatprep.subr.mxu0 0.0
  %4813 = vmatpush1.msra.mxu0 0.0
  %4814 = vmatprep.subr.mxu0 0.0
  %4815 = vmatpush1.msra.mxu0 0.0
  %4816 = vmatprep.subr.mxu0 0.0
  %4817 = vmatpush1.msra.mxu0 0.0
  %4818 = vmatprep.subr.mxu0 0.0
  %4819 = vmatpush1.msra.mxu0 0.0
  %4820 = vmatprep.subr.mxu0 0.0
  %4821 = vmatpush1.msra.mxu0 0.0
  %4822 = vmatprep.subr.mxu0 0.0
  %4823 = vmatpush1.msra.mxu0 0.0
  %4824 = vmatprep.subr.mxu0 0.0
  %4825 = vmatpush1.msra.mxu0 0.0
  %4826 = vmatprep.subr.mxu0 0.0
  %4827 = vmatpush1.msra.mxu0 0.0
  %4828 = vmatprep.subr.mxu0 0.0
  %4829 = vmatpush1.msra.mxu0 0.0
  %4830 = vmatprep.subr.mxu0 0.0
  %4831 = vmatpush1.msra.mxu0 0.0
  %4832 = vmatprep.subr.mxu0 0.0
  %4833 = vmatpush1.msra.mxu0 0.0
  %4834 = vmatprep.subr.mxu0 0.0
  %4835 = vmatpush1.msra.mxu0 0.0
  %4836 = vmatprep.subr.mxu0 0.0
  %4837 = vmatpush1.msra.mxu0 0.0
  %4838 = vmatprep.subr.mxu0 0.0
  %4839 = vmatpush1.msra.mxu0 0.0
  %4840 = vmatprep.subr.mxu0 0.0
  %4841 = vmatpush1.msra.mxu0 %v4297
  %4842 = vmatprep.subr.mxu0 0.0
  %4843 = vmatpush2.msra.mxu0 0.0
  %4844 = vmatprep.subr.mxu0 0.0
  %4845 = vmatpush2.msra.mxu0 0.0
  %4846 = vmatprep.subr.mxu0 0.0
  %4847 = vmatpush2.msra.mxu0 0.0
  %4848 = vmatprep.subr.mxu0 0.0
  %4849 = vmatpush2.msra.mxu0 0.0
  %4850 = vmatprep.subr.mxu0 0.0
  %4851 = vmatpush2.msra.mxu0 0.0
  %4852 = vmatprep.subr.mxu0 0.0
  %4853 = vmatpush2.msra.mxu0 0.0
  %4854 = vmatprep.subr.mxu0 0.0
  %4855 = vmatpush2.msra.mxu0 0.0
  %4856 = vmatprep.subr.mxu0 0.0
  %4857 = vmatpush2.msra.mxu0 0.0
  %4858 = vmatprep.subr.mxu0 0.0
  %4859 = vmatpush2.msra.mxu0 0.0
  %4860 = vmatprep.subr.mxu0 0.0
  %4861 = vmatpush2.msra.mxu0 0.0
  %4862 = vmatprep.subr.mxu0 0.0
  %4863 = vmatpush2.msra.mxu0 0.0
  %4864 = vmatprep.subr.mxu0 0.0
  %4865 = vmatpush2.msra.mxu0 0.0
  %4866 = vmatprep.subr.mxu0 0.0
  %4867 = vmatpush2.msra.mxu0 0.0
  %4868 = vmatprep.subr.mxu0 0.0
  %4869 = vmatpush2.msra.mxu0 0.0
  %4870 = vmatprep.subr.mxu0 0.0
  %4871 = vmatpush2.msra.mxu0 0.0
  %4872 = vmatprep.subr.mxu0 0.0
  %4873 = vmatpush2.msra.mxu0 0.0
  %4874 = vmatprep.mubr.f32.mxu0 0.0
  %4875 = vmatmul.mubr.f32.gmra.mxu0 %v4808
  %v4876 = vpop.f32.mrf.mxu0
  %v4877 = vadd.f32 0.0, %v4876
  %v4878 = vpop.f32.mrf.mxu0
  %4879 = vdwg.mxu0
  %v4881 = vsel %vm4291, %v4283, 0
  %4883 = vmatprep.subr.mxu0 0.0
  %4884 = vmatpush1.msra.mxu0 0.0
  %4885 = vmatprep.subr.mxu0 0.0
  %4886 = vmatpush1.msra.mxu0 0.0
  %4887 = vmatprep.subr.mxu0 0.0
  %4888 = vmatpush1.msra.mxu0 0.0
  %4889 = vmatprep.subr.mxu0 0.0
  %4890 = vmatpush1.msra.mxu0 0.0
  %4891 = vmatprep.subr.mxu0 0.0
  %4892 = vmatpush1.msra.mxu0 0.0
  %4893 = vmatprep.subr.mxu0 0.0
  %4894 = vmatpush1.msra.mxu0 0.0
  %4895 = vmatprep.subr.mxu0 0.0
  %4896 = vmatpush1.msra.mxu0 0.0
  %4897 = vmatprep.subr.mxu0 0.0
  %4898 = vmatpush1.msra.mxu0 0.0
  %4899 = vmatprep.subr.mxu0 0.0
  %4900 = vmatpush1.msra.mxu0 0.0
  %4901 = vmatprep.subr.mxu0 0.0
  %4902 = vmatpush1.msra.mxu0 0.0
  %4903 = vmatprep.subr.mxu0 0.0
  %4904 = vmatpush1.msra.mxu0 0.0
  %4905 = vmatprep.subr.mxu0 0.0
  %4906 = vmatpush1.msra.mxu0 0.0
  %4907 = vmatprep.subr.mxu0 0.0
  %4908 = vmatpush1.msra.mxu0 0.0
  %4909 = vmatprep.subr.mxu0 0.0
  %4910 = vmatpush1.msra.mxu0 0.0
  %4911 = vmatprep.subr.mxu0 0.0
  %4912 = vmatpush1.msra.mxu0 0.0
  %4913 = vmatprep.subr.mxu0 0.0
  %4914 = vmatpush1.msra.mxu0 %v4297
  %4915 = vmatprep.subr.mxu0 0.0
  %4916 = vmatpush2.msra.mxu0 0.0
  %4917 = vmatprep.subr.mxu0 0.0
  %4918 = vmatpush2.msra.mxu0 0.0
  %4919 = vmatprep.subr.mxu0 0.0
  %4920 = vmatpush2.msra.mxu0 0.0
  %4921 = vmatprep.subr.mxu0 0.0
  %4922 = vmatpush2.msra.mxu0 0.0
  %4923 = vmatprep.subr.mxu0 0.0
  %4924 = vmatpush2.msra.mxu0 0.0
  %4925 = vmatprep.subr.mxu0 0.0
  %4926 = vmatpush2.msra.mxu0 0.0
  %4927 = vmatprep.subr.mxu0 0.0
  %4928 = vmatpush2.msra.mxu0 0.0
  %4929 = vmatprep.subr.mxu0 0.0
  %4930 = vmatpush2.msra.mxu0 0.0
  %4931 = vmatprep.subr.mxu0 0.0
  %4932 = vmatpush2.msra.mxu0 0.0
  %4933 = vmatprep.subr.mxu0 0.0
  %4934 = vmatpush2.msra.mxu0 0.0
  %4935 = vmatprep.subr.mxu0 0.0
  %4936 = vmatpush2.msra.mxu0 0.0
  %4937 = vmatprep.subr.mxu0 0.0
  %4938 = vmatpush2.msra.mxu0 0.0
  %4939 = vmatprep.subr.mxu0 0.0
  %4940 = vmatpush2.msra.mxu0 0.0
  %4941 = vmatprep.subr.mxu0 0.0
  %4942 = vmatpush2.msra.mxu0 0.0
  %4943 = vmatprep.subr.mxu0 0.0
  %4944 = vmatpush2.msra.mxu0 0.0
  %4945 = vmatprep.subr.mxu0 0.0
  %4946 = vmatpush2.msra.mxu0 0.0
  %4947 = vmatprep.mubr.f32.mxu0 0.0
  %4948 = vmatmul.mubr.f32.gmra.mxu0 %v4881
  %v4949 = vpop.f32.mrf.mxu0
  %v4950 = vadd.f32 0.0, %v4949
  %v4951 = vpop.f32.mrf.mxu0
  %4952 = vdwg.mxu0
  %v4954 = vsel %vm4291, %v4284, 0
  %4956 = vmatprep.subr.mxu0 0.0
  %4957 = vmatpush1.msra.mxu0 0.0
  %4958 = vmatprep.subr.mxu0 0.0
  %4959 = vmatpush1.msra.mxu0 0.0
  %4960 = vmatprep.subr.mxu0 0.0
  %4961 = vmatpush1.msra.mxu0 0.0
  %4962 = vmatprep.subr.mxu0 0.0
  %4963 = vmatpush1.msra.mxu0 0.0
  %4964 = vmatprep.subr.mxu0 0.0
  %4965 = vmatpush1.msra.mxu0 0.0
  %4966 = vmatprep.subr.mxu0 0.0
  %4967 = vmatpush1.msra.mxu0 0.0
  %4968 = vmatprep.subr.mxu0 0.0
  %4969 = vmatpush1.msra.mxu0 0.0
  %4970 = vmatprep.subr.mxu0 0.0
  %4971 = vmatpush1.msra.mxu0 0.0
  %4972 = vmatprep.subr.mxu0 0.0
  %4973 = vmatpush1.msra.mxu0 0.0
  %4974 = vmatprep.subr.mxu0 0.0
  %4975 = vmatpush1.msra.mxu0 0.0
  %4976 = vmatprep.subr.mxu0 0.0
  %4977 = vmatpush1.msra.mxu0 0.0
  %4978 = vmatprep.subr.mxu0 0.0
  %4979 = vmatpush1.msra.mxu0 0.0
  %4980 = vmatprep.subr.mxu0 0.0
  %4981 = vmatpush1.msra.mxu0 0.0
  %4982 = vmatprep.subr.mxu0 0.0
  %4983 = vmatpush1.msra.mxu0 0.0
  %4984 = vmatprep.subr.mxu0 0.0
  %4985 = vmatpush1.msra.mxu0 0.0
  %4986 = vmatprep.subr.mxu0 0.0
  %4987 = vmatpush1.msra.mxu0 %v4297
  %4988 = vmatprep.subr.mxu0 0.0
  %4989 = vmatpush2.msra.mxu0 0.0
  %4990 = vmatprep.subr.mxu0 0.0
  %4991 = vmatpush2.msra.mxu0 0.0
  %4992 = vmatprep.subr.mxu0 0.0
  %4993 = vmatpush2.msra.mxu0 0.0
  %4994 = vmatprep.subr.mxu0 0.0
  %4995 = vmatpush2.msra.mxu0 0.0
  %4996 = vmatprep.subr.mxu0 0.0
  %4997 = vmatpush2.msra.mxu0 0.0
  %4998 = vmatprep.subr.mxu0 0.0
  %4999 = vmatpush2.msra.mxu0 0.0
  %5000 = vmatprep.subr.mxu0 0.0
  %5001 = vmatpush2.msra.mxu0 0.0
  %5002 = vmatprep.subr.mxu0 0.0
  %5003 = vmatpush2.msra.mxu0 0.0
  %5004 = vmatprep.subr.mxu0 0.0
  %5005 = vmatpush2.msra.mxu0 0.0
  %5006 = vmatprep.subr.mxu0 0.0
  %5007 = vmatpush2.msra.mxu0 0.0
  %5008 = vmatprep.subr.mxu0 0.0
  %5009 = vmatpush2.msra.mxu0 0.0
  %5010 = vmatprep.subr.mxu0 0.0
  %5011 = vmatpush2.msra.mxu0 0.0
  %5012 = vmatprep.subr.mxu0 0.0
  %5013 = vmatpush2.msra.mxu0 0.0
  %5014 = vmatprep.subr.mxu0 0.0
  %5015 = vmatpush2.msra.mxu0 0.0
  %5016 = vmatprep.subr.mxu0 0.0
  %5017 = vmatpush2.msra.mxu0 0.0
  %5018 = vmatprep.subr.mxu0 0.0
  %5019 = vmatpush2.msra.mxu0 0.0
  %5020 = vmatprep.mubr.f32.mxu0 0.0
  %5021 = vmatmul.mubr.f32.gmra.mxu0 %v4954
  %v5022 = vpop.f32.mrf.mxu0
  %v5023 = vadd.f32 0.0, %v5022
  %v5024 = vpop.f32.mrf.mxu0
  %5025 = vdwg.mxu0
  %v5027 = vsel %vm4291, %v4285, 0
  %5029 = vmatprep.subr.mxu0 0.0
  %5030 = vmatpush1.msra.mxu0 0.0
  %5031 = vmatprep.subr.mxu0 0.0
  %5032 = vmatpush1.msra.mxu0 0.0
  %5033 = vmatprep.subr.mxu0 0.0
  %5034 = vmatpush1.msra.mxu0 0.0
  %5035 = vmatprep.subr.mxu0 0.0
  %5036 = vmatpush1.msra.mxu0 0.0
  %5037 = vmatprep.subr.mxu0 0.0
  %5038 = vmatpush1.msra.mxu0 0.0
  %5039 = vmatprep.subr.mxu0 0.0
  %5040 = vmatpush1.msra.mxu0 0.0
  %5041 = vmatprep.subr.mxu0 0.0
  %5042 = vmatpush1.msra.mxu0 0.0
  %5043 = vmatprep.subr.mxu0 0.0
  %5044 = vmatpush1.msra.mxu0 0.0
  %5045 = vmatprep.subr.mxu0 0.0
  %5046 = vmatpush1.msra.mxu0 0.0
  %5047 = vmatprep.subr.mxu0 0.0
  %5048 = vmatpush1.msra.mxu0 0.0
  %5049 = vmatprep.subr.mxu0 0.0
  %5050 = vmatpush1.msra.mxu0 0.0
  %5051 = vmatprep.subr.mxu0 0.0
  %5052 = vmatpush1.msra.mxu0 0.0
  %5053 = vmatprep.subr.mxu0 0.0
  %5054 = vmatpush1.msra.mxu0 0.0
  %5055 = vmatprep.subr.mxu0 0.0
  %5056 = vmatpush1.msra.mxu0 0.0
  %5057 = vmatprep.subr.mxu0 0.0
  %5058 = vmatpush1.msra.mxu0 0.0
  %5059 = vmatprep.subr.mxu0 0.0
  %5060 = vmatpush1.msra.mxu0 %v4297
  %5061 = vmatprep.subr.mxu0 0.0
  %5062 = vmatpush2.msra.mxu0 0.0
  %5063 = vmatprep.subr.mxu0 0.0
  %5064 = vmatpush2.msra.mxu0 0.0
  %5065 = vmatprep.subr.mxu0 0.0
  %5066 = vmatpush2.msra.mxu0 0.0
  %5067 = vmatprep.subr.mxu0 0.0
  %5068 = vmatpush2.msra.mxu0 0.0
  %5069 = vmatprep.subr.mxu0 0.0
  %5070 = vmatpush2.msra.mxu0 0.0
  %5071 = vmatprep.subr.mxu0 0.0
  %5072 = vmatpush2.msra.mxu0 0.0
  %5073 = vmatprep.subr.mxu0 0.0
  %5074 = vmatpush2.msra.mxu0 0.0
  %5075 = vmatprep.subr.mxu0 0.0
  %5076 = vmatpush2.msra.mxu0 0.0
  %5077 = vmatprep.subr.mxu0 0.0
  %5078 = vmatpush2.msra.mxu0 0.0
  %5079 = vmatprep.subr.mxu0 0.0
  %5080 = vmatpush2.msra.mxu0 0.0
  %5081 = vmatprep.subr.mxu0 0.0
  %5082 = vmatpush2.msra.mxu0 0.0
  %5083 = vmatprep.subr.mxu0 0.0
  %5084 = vmatpush2.msra.mxu0 0.0
  %5085 = vmatprep.subr.mxu0 0.0
  %5086 = vmatpush2.msra.mxu0 0.0
  %5087 = vmatprep.subr.mxu0 0.0
  %5088 = vmatpush2.msra.mxu0 0.0
  %5089 = vmatprep.subr.mxu0 0.0
  %5090 = vmatpush2.msra.mxu0 0.0
  %5091 = vmatprep.subr.mxu0 0.0
  %5092 = vmatpush2.msra.mxu0 0.0
  %5093 = vmatprep.mubr.f32.mxu0 0.0
  %5094 = vmatmul.mubr.f32.gmra.mxu0 %v5027
  %v5095 = vpop.f32.mrf.mxu0
  %v5096 = vadd.f32 0.0, %v5095
  %v5097 = vpop.f32.mrf.mxu0
  %5098 = vdwg.mxu0
  %v5100 = vsel %vm4291, %v4286, 0
  %5102 = vmatprep.subr.mxu0 0.0
  %5103 = vmatpush1.msra.mxu0 0.0
  %5104 = vmatprep.subr.mxu0 0.0
  %5105 = vmatpush1.msra.mxu0 0.0
  %5106 = vmatprep.subr.mxu0 0.0
  %5107 = vmatpush1.msra.mxu0 0.0
  %5108 = vmatprep.subr.mxu0 0.0
  %5109 = vmatpush1.msra.mxu0 0.0
  %5110 = vmatprep.subr.mxu0 0.0
  %5111 = vmatpush1.msra.mxu0 0.0
  %5112 = vmatprep.subr.mxu0 0.0
  %5113 = vmatpush1.msra.mxu0 0.0
  %5114 = vmatprep.subr.mxu0 0.0
  %5115 = vmatpush1.msra.mxu0 0.0
  %5116 = vmatprep.subr.mxu0 0.0
  %5117 = vmatpush1.msra.mxu0 0.0
  %5118 = vmatprep.subr.mxu0 0.0
  %5119 = vmatpush1.msra.mxu0 0.0
  %5120 = vmatprep.subr.mxu0 0.0
  %5121 = vmatpush1.msra.mxu0 0.0
  %5122 = vmatprep.subr.mxu0 0.0
  %5123 = vmatpush1.msra.mxu0 0.0
  %5124 = vmatprep.subr.mxu0 0.0
  %5125 = vmatpush1.msra.mxu0 0.0
  %5126 = vmatprep.subr.mxu0 0.0
  %5127 = vmatpush1.msra.mxu0 0.0
  %5128 = vmatprep.subr.mxu0 0.0
  %5129 = vmatpush1.msra.mxu0 0.0
  %5130 = vmatprep.subr.mxu0 0.0
  %5131 = vmatpush1.msra.mxu0 0.0
  %5132 = vmatprep.subr.mxu0 0.0
  %5133 = vmatpush1.msra.mxu0 %v4297
  %5134 = vmatprep.subr.mxu0 0.0
  %5135 = vmatpush2.msra.mxu0 0.0
  %5136 = vmatprep.subr.mxu0 0.0
  %5137 = vmatpush2.msra.mxu0 0.0
  %5138 = vmatprep.subr.mxu0 0.0
  %5139 = vmatpush2.msra.mxu0 0.0
  %5140 = vmatprep.subr.mxu0 0.0
  %5141 = vmatpush2.msra.mxu0 0.0
  %5142 = vmatprep.subr.mxu0 0.0
  %5143 = vmatpush2.msra.mxu0 0.0
  %5144 = vmatprep.subr.mxu0 0.0
  %5145 = vmatpush2.msra.mxu0 0.0
  %5146 = vmatprep.subr.mxu0 0.0
  %5147 = vmatpush2.msra.mxu0 0.0
  %5148 = vmatprep.subr.mxu0 0.0
  %5149 = vmatpush2.msra.mxu0 0.0
  %5150 = vmatprep.subr.mxu0 0.0
  %5151 = vmatpush2.msra.mxu0 0.0
  %5152 = vmatprep.subr.mxu0 0.0
  %5153 = vmatpush2.msra.mxu0 0.0
  %5154 = vmatprep.subr.mxu0 0.0
  %5155 = vmatpush2.msra.mxu0 0.0
  %5156 = vmatprep.subr.mxu0 0.0
  %5157 = vmatpush2.msra.mxu0 0.0
  %5158 = vmatprep.subr.mxu0 0.0
  %5159 = vmatpush2.msra.mxu0 0.0
  %5160 = vmatprep.subr.mxu0 0.0
  %5161 = vmatpush2.msra.mxu0 0.0
  %5162 = vmatprep.subr.mxu0 0.0
  %5163 = vmatpush2.msra.mxu0 0.0
  %5164 = vmatprep.subr.mxu0 0.0
  %5165 = vmatpush2.msra.mxu0 0.0
  %5166 = vmatprep.mubr.f32.mxu0 0.0
  %5167 = vmatmul.mubr.f32.gmra.mxu0 %v5100
  %v5168 = vpop.f32.mrf.mxu0
  %v5169 = vadd.f32 0.0, %v5168
  %v5170 = vpop.f32.mrf.mxu0
  %5171 = vdwg.mxu0
  %v5173 = vsel %vm4291, %v4287, 0
  %5175 = vmatprep.subr.mxu0 0.0
  %5176 = vmatpush1.msra.mxu0 0.0
  %5177 = vmatprep.subr.mxu0 0.0
  %5178 = vmatpush1.msra.mxu0 0.0
  %5179 = vmatprep.subr.mxu0 0.0
  %5180 = vmatpush1.msra.mxu0 0.0
  %5181 = vmatprep.subr.mxu0 0.0
  %5182 = vmatpush1.msra.mxu0 0.0
  %5183 = vmatprep.subr.mxu0 0.0
  %5184 = vmatpush1.msra.mxu0 0.0
  %5185 = vmatprep.subr.mxu0 0.0
  %5186 = vmatpush1.msra.mxu0 0.0
  %5187 = vmatprep.subr.mxu0 0.0
  %5188 = vmatpush1.msra.mxu0 0.0
  %5189 = vmatprep.subr.mxu0 0.0
  %5190 = vmatpush1.msra.mxu0 0.0
  %5191 = vmatprep.subr.mxu0 0.0
  %5192 = vmatpush1.msra.mxu0 0.0
  %5193 = vmatprep.subr.mxu0 0.0
  %5194 = vmatpush1.msra.mxu0 0.0
  %5195 = vmatprep.subr.mxu0 0.0
  %5196 = vmatpush1.msra.mxu0 0.0
  %5197 = vmatprep.subr.mxu0 0.0
  %5198 = vmatpush1.msra.mxu0 0.0
  %5199 = vmatprep.subr.mxu0 0.0
  %5200 = vmatpush1.msra.mxu0 0.0
  %5201 = vmatprep.subr.mxu0 0.0
  %5202 = vmatpush1.msra.mxu0 0.0
  %5203 = vmatprep.subr.mxu0 0.0
  %5204 = vmatpush1.msra.mxu0 0.0
  %5205 = vmatprep.subr.mxu0 0.0
  %5206 = vmatpush1.msra.mxu0 %v4297
  %5207 = vmatprep.subr.mxu0 0.0
  %5208 = vmatpush2.msra.mxu0 0.0
  %5209 = vmatprep.subr.mxu0 0.0
  %5210 = vmatpush2.msra.mxu0 0.0
  %5211 = vmatprep.subr.mxu0 0.0
  %5212 = vmatpush2.msra.mxu0 0.0
  %5213 = vmatprep.subr.mxu0 0.0
  %5214 = vmatpush2.msra.mxu0 0.0
  %5215 = vmatprep.subr.mxu0 0.0
  %5216 = vmatpush2.msra.mxu0 0.0
  %5217 = vmatprep.subr.mxu0 0.0
  %5218 = vmatpush2.msra.mxu0 0.0
  %5219 = vmatprep.subr.mxu0 0.0
  %5220 = vmatpush2.msra.mxu0 0.0
  %5221 = vmatprep.subr.mxu0 0.0
  %5222 = vmatpush2.msra.mxu0 0.0
  %5223 = vmatprep.subr.mxu0 0.0
  %5224 = vmatpush2.msra.mxu0 0.0
  %5225 = vmatprep.subr.mxu0 0.0
  %5226 = vmatpush2.msra.mxu0 0.0
  %5227 = vmatprep.subr.mxu0 0.0
  %5228 = vmatpush2.msra.mxu0 0.0
  %5229 = vmatprep.subr.mxu0 0.0
  %5230 = vmatpush2.msra.mxu0 0.0
  %5231 = vmatprep.subr.mxu0 0.0
  %5232 = vmatpush2.msra.mxu0 0.0
  %5233 = vmatprep.subr.mxu0 0.0
  %5234 = vmatpush2.msra.mxu0 0.0
  %5235 = vmatprep.subr.mxu0 0.0
  %5236 = vmatpush2.msra.mxu0 0.0
  %5237 = vmatprep.subr.mxu0 0.0
  %5238 = vmatpush2.msra.mxu0 0.0
  %5239 = vmatprep.mubr.f32.mxu0 0.0
  %5240 = vmatmul.mubr.f32.gmra.mxu0 %v5173
  %v5241 = vpop.f32.mrf.mxu0
  %v5242 = vadd.f32 0.0, %v5241
  %v5243 = vpop.f32.mrf.mxu0
  %5244 = vdwg.mxu0
  %v5246 = vsel %vm4291, %v4288, 0
  %5248 = vmatprep.subr.mxu0 0.0
  %5249 = vmatpush1.msra.mxu0 0.0
  %5250 = vmatprep.subr.mxu0 0.0
  %5251 = vmatpush1.msra.mxu0 0.0
  %5252 = vmatprep.subr.mxu0 0.0
  %5253 = vmatpush1.msra.mxu0 0.0
  %5254 = vmatprep.subr.mxu0 0.0
  %5255 = vmatpush1.msra.mxu0 0.0
  %5256 = vmatprep.subr.mxu0 0.0
  %5257 = vmatpush1.msra.mxu0 0.0
  %5258 = vmatprep.subr.mxu0 0.0
  %5259 = vmatpush1.msra.mxu0 0.0
  %5260 = vmatprep.subr.mxu0 0.0
  %5261 = vmatpush1.msra.mxu0 0.0
  %5262 = vmatprep.subr.mxu0 0.0
  %5263 = vmatpush1.msra.mxu0 0.0
  %5264 = vmatprep.subr.mxu0 0.0
  %5265 = vmatpush1.msra.mxu0 0.0
  %5266 = vmatprep.subr.mxu0 0.0
  %5267 = vmatpush1.msra.mxu0 0.0
  %5268 = vmatprep.subr.mxu0 0.0
  %5269 = vmatpush1.msra.mxu0 0.0
  %5270 = vmatprep.subr.mxu0 0.0
  %5271 = vmatpush1.msra.mxu0 0.0
  %5272 = vmatprep.subr.mxu0 0.0
  %5273 = vmatpush1.msra.mxu0 0.0
  %5274 = vmatprep.subr.mxu0 0.0
  %5275 = vmatpush1.msra.mxu0 0.0
  %5276 = vmatprep.subr.mxu0 0.0
  %5277 = vmatpush1.msra.mxu0 0.0
  %5278 = vmatprep.subr.mxu0 0.0
  %5279 = vmatpush1.msra.mxu0 %v4297
  %5280 = vmatprep.subr.mxu0 0.0
  %5281 = vmatpush2.msra.mxu0 0.0
  %5282 = vmatprep.subr.mxu0 0.0
  %5283 = vmatpush2.msra.mxu0 0.0
  %5284 = vmatprep.subr.mxu0 0.0
  %5285 = vmatpush2.msra.mxu0 0.0
  %5286 = vmatprep.subr.mxu0 0.0
  %5287 = vmatpush2.msra.mxu0 0.0
  %5288 = vmatprep.subr.mxu0 0.0
  %5289 = vmatpush2.msra.mxu0 0.0
  %5290 = vmatprep.subr.mxu0 0.0
  %5291 = vmatpush2.msra.mxu0 0.0
  %5292 = vmatprep.subr.mxu0 0.0
  %5293 = vmatpush2.msra.mxu0 0.0
  %5294 = vmatprep.subr.mxu0 0.0
  %5295 = vmatpush2.msra.mxu0 0.0
  %5296 = vmatprep.subr.mxu0 0.0
  %5297 = vmatpush2.msra.mxu0 0.0
  %5298 = vmatprep.subr.mxu0 0.0
  %5299 = vmatpush2.msra.mxu0 0.0
  %5300 = vmatprep.subr.mxu0 0.0
  %5301 = vmatpush2.msra.mxu0 0.0
  %5302 = vmatprep.subr.mxu0 0.0
  %5303 = vmatpush2.msra.mxu0 0.0
  %5304 = vmatprep.subr.mxu0 0.0
  %5305 = vmatpush2.msra.mxu0 0.0
  %5306 = vmatprep.subr.mxu0 0.0
  %5307 = vmatpush2.msra.mxu0 0.0
  %5308 = vmatprep.subr.mxu0 0.0
  %5309 = vmatpush2.msra.mxu0 0.0
  %5310 = vmatprep.subr.mxu0 0.0
  %5311 = vmatpush2.msra.mxu0 0.0
  %5312 = vmatprep.mubr.f32.mxu0 0.0
  %5313 = vmatmul.mubr.f32.gmra.mxu0 %v5246
  %v5314 = vpop.f32.mrf.mxu0
  %v5315 = vadd.f32 0.0, %v5314
  %v5316 = vpop.f32.mrf.mxu0
  %5317 = vdwg.mxu0
  %v5319 = vsel %vm4291, %v4289, 0
  %5321 = vmatprep.subr.mxu0 0.0
  %5322 = vmatpush1.msra.mxu0 0.0
  %5323 = vmatprep.subr.mxu0 0.0
  %5324 = vmatpush1.msra.mxu0 0.0
  %5325 = vmatprep.subr.mxu0 0.0
  %5326 = vmatpush1.msra.mxu0 0.0
  %5327 = vmatprep.subr.mxu0 0.0
  %5328 = vmatpush1.msra.mxu0 0.0
  %5329 = vmatprep.subr.mxu0 0.0
  %5330 = vmatpush1.msra.mxu0 0.0
  %5331 = vmatprep.subr.mxu0 0.0
  %5332 = vmatpush1.msra.mxu0 0.0
  %5333 = vmatprep.subr.mxu0 0.0
  %5334 = vmatpush1.msra.mxu0 0.0
  %5335 = vmatprep.subr.mxu0 0.0
  %5336 = vmatpush1.msra.mxu0 0.0
  %5337 = vmatprep.subr.mxu0 0.0
  %5338 = vmatpush1.msra.mxu0 0.0
  %5339 = vmatprep.subr.mxu0 0.0
  %5340 = vmatpush1.msra.mxu0 0.0
  %5341 = vmatprep.subr.mxu0 0.0
  %5342 = vmatpush1.msra.mxu0 0.0
  %5343 = vmatprep.subr.mxu0 0.0
  %5344 = vmatpush1.msra.mxu0 0.0
  %5345 = vmatprep.subr.mxu0 0.0
  %5346 = vmatpush1.msra.mxu0 0.0
  %5347 = vmatprep.subr.mxu0 0.0
  %5348 = vmatpush1.msra.mxu0 0.0
  %5349 = vmatprep.subr.mxu0 0.0
  %5350 = vmatpush1.msra.mxu0 0.0
  %5351 = vmatprep.subr.mxu0 0.0
  %5352 = vmatpush1.msra.mxu0 %v4297
  %5353 = vmatprep.subr.mxu0 0.0
  %5354 = vmatpush2.msra.mxu0 0.0
  %5355 = vmatprep.subr.mxu0 0.0
  %5356 = vmatpush2.msra.mxu0 0.0
  %5357 = vmatprep.subr.mxu0 0.0
  %5358 = vmatpush2.msra.mxu0 0.0
  %5359 = vmatprep.subr.mxu0 0.0
  %5360 = vmatpush2.msra.mxu0 0.0
  %5361 = vmatprep.subr.mxu0 0.0
  %5362 = vmatpush2.msra.mxu0 0.0
  %5363 = vmatprep.subr.mxu0 0.0
  %5364 = vmatpush2.msra.mxu0 0.0
  %5365 = vmatprep.subr.mxu0 0.0
  %5366 = vmatpush2.msra.mxu0 0.0
  %5367 = vmatprep.subr.mxu0 0.0
  %5368 = vmatpush2.msra.mxu0 0.0
  %5369 = vmatprep.subr.mxu0 0.0
  %5370 = vmatpush2.msra.mxu0 0.0
  %5371 = vmatprep.subr.mxu0 0.0
  %5372 = vmatpush2.msra.mxu0 0.0
  %5373 = vmatprep.subr.mxu0 0.0
  %5374 = vmatpush2.msra.mxu0 0.0
  %5375 = vmatprep.subr.mxu0 0.0
  %5376 = vmatpush2.msra.mxu0 0.0
  %5377 = vmatprep.subr.mxu0 0.0
  %5378 = vmatpush2.msra.mxu0 0.0
  %5379 = vmatprep.subr.mxu0 0.0
  %5380 = vmatpush2.msra.mxu0 0.0
  %5381 = vmatprep.subr.mxu0 0.0
  %5382 = vmatpush2.msra.mxu0 0.0
  %5383 = vmatprep.subr.mxu0 0.0
  %5384 = vmatpush2.msra.mxu0 0.0
  %5385 = vmatprep.mubr.f32.mxu0 0.0
  %5386 = vmatmul.mubr.f32.gmra.mxu0 %v5319
  %v5387 = vpop.f32.mrf.mxu0
  %v5388 = vadd.f32 0.0, %v5387
  %v5389 = vpop.f32.mrf.mxu0
  %5390 = vdwg.mxu0
  %v5392 = vsel %vm4291, %v4290, 0
  %5394 = vmatprep.subr.mxu0 0.0
  %5395 = vmatpush1.msra.mxu0 0.0
  %5396 = vmatprep.subr.mxu0 0.0
  %5397 = vmatpush1.msra.mxu0 0.0
  %5398 = vmatprep.subr.mxu0 0.0
  %5399 = vmatpush1.msra.mxu0 0.0
  %5400 = vmatprep.subr.mxu0 0.0
  %5401 = vmatpush1.msra.mxu0 0.0
  %5402 = vmatprep.subr.mxu0 0.0
  %5403 = vmatpush1.msra.mxu0 0.0
  %5404 = vmatprep.subr.mxu0 0.0
  %5405 = vmatpush1.msra.mxu0 0.0
  %5406 = vmatprep.subr.mxu0 0.0
  %5407 = vmatpush1.msra.mxu0 0.0
  %5408 = vmatprep.subr.mxu0 0.0
  %5409 = vmatpush1.msra.mxu0 0.0
  %5410 = vmatprep.subr.mxu0 0.0
  %5411 = vmatpush1.msra.mxu0 0.0
  %5412 = vmatprep.subr.mxu0 0.0
  %5413 = vmatpush1.msra.mxu0 0.0
  %5414 = vmatprep.subr.mxu0 0.0
  %5415 = vmatpush1.msra.mxu0 0.0
  %5416 = vmatprep.subr.mxu0 0.0
  %5417 = vmatpush1.msra.mxu0 0.0
  %5418 = vmatprep.subr.mxu0 0.0
  %5419 = vmatpush1.msra.mxu0 0.0
  %5420 = vmatprep.subr.mxu0 0.0
  %5421 = vmatpush1.msra.mxu0 0.0
  %5422 = vmatprep.subr.mxu0 0.0
  %5423 = vmatpush1.msra.mxu0 0.0
  %5424 = vmatprep.subr.mxu0 0.0
  %5425 = vmatpush1.msra.mxu0 %v4297
  %5426 = vmatprep.subr.mxu0 0.0
  %5427 = vmatpush2.msra.mxu0 0.0
  %5428 = vmatprep.subr.mxu0 0.0
  %5429 = vmatpush2.msra.mxu0 0.0
  %5430 = vmatprep.subr.mxu0 0.0
  %5431 = vmatpush2.msra.mxu0 0.0
  %5432 = vmatprep.subr.mxu0 0.0
  %5433 = vmatpush2.msra.mxu0 0.0
  %5434 = vmatprep.subr.mxu0 0.0
  %5435 = vmatpush2.msra.mxu0 0.0
  %5436 = vmatprep.subr.mxu0 0.0
  %5437 = vmatpush2.msra.mxu0 0.0
  %5438 = vmatprep.subr.mxu0 0.0
  %5439 = vmatpush2.msra.mxu0 0.0
  %5440 = vmatprep.subr.mxu0 0.0
  %5441 = vmatpush2.msra.mxu0 0.0
  %5442 = vmatprep.subr.mxu0 0.0
  %5443 = vmatpush2.msra.mxu0 0.0
  %5444 = vmatprep.subr.mxu0 0.0
  %5445 = vmatpush2.msra.mxu0 0.0
  %5446 = vmatprep.subr.mxu0 0.0
  %5447 = vmatpush2.msra.mxu0 0.0
  %5448 = vmatprep.subr.mxu0 0.0
  %5449 = vmatpush2.msra.mxu0 0.0
  %5450 = vmatprep.subr.mxu0 0.0
  %5451 = vmatpush2.msra.mxu0 0.0
  %5452 = vmatprep.subr.mxu0 0.0
  %5453 = vmatpush2.msra.mxu0 0.0
  %5454 = vmatprep.subr.mxu0 0.0
  %5455 = vmatpush2.msra.mxu0 0.0
  %5456 = vmatprep.subr.mxu0 0.0
  %5457 = vmatpush2.msra.mxu0 0.0
  %5458 = vmatprep.mubr.f32.mxu0 0.0
  %5459 = vmatmul.mubr.f32.gmra.mxu0 %v5392
  %v5460 = vpop.f32.mrf.mxu0
  %v5461 = vadd.f32 0.0, %v5460
  %v5462 = vpop.f32.mrf.mxu0
  %5463 = vdwg.mxu0
  %5465 = vrot.lane.b32.xlu0 %v4439, 64
  %v5466 = vpop.permute.xlu0 %5465
  %5469 = vrot.lane.b32.xlu0 %v4585, 64
  %v5470 = vpop.permute.xlu0 %5469
  %5473 = vrot.lane.b32.xlu0 %v4731, 64
  %v5474 = vpop.permute.xlu0 %5473
  %5477 = vrot.lane.b32.xlu0 %v4877, 64
  %v5478 = vpop.permute.xlu0 %5477
  %5481 = vrot.lane.b32.xlu0 %v5023, 64
  %v5482 = vpop.permute.xlu0 %5481
  %5485 = vrot.lane.b32.xlu0 %v5169, 64
  %v5486 = vpop.permute.xlu0 %5485
  %5489 = vrot.lane.b32.xlu0 %v5315, 64
  %v5490 = vpop.permute.xlu0 %5489
  %5493 = vrot.lane.b32.xlu0 %v5461, 64
  %v5494 = vpop.permute.xlu0 %5493
  %v5496 = vsel %vm287, %v4366, %v5466
  %v5497 = vsel %vm287, %v4512, %v5470
  %v5498 = vsel %vm287, %v4658, %v5474
  %v5499 = vsel %vm287, %v4804, %v5478
  %v5500 = vsel %vm287, %v4950, %v5482
  %v5501 = vsel %vm287, %v5096, %v5486
  %v5502 = vsel %vm287, %v5242, %v5490
  %v5503 = vsel %vm287, %v5388, %v5494
  %v5504 = vld [vmem:[%s8] sm:$0xf]
  %v5505 = vld [vmem:[%s8 + $0x4] sm:$0xf]
  %v5506 = vld [vmem:[%s8 + $0x8] sm:$0xf]
  %v5507 = vld [vmem:[%s8 + $0xc] sm:$0xf]
  %v5508 = vld [vmem:[%s8 + $0x10] sm:$0xf]
  %v5509 = vld [vmem:[%s8 + $0x14] sm:$0xf]
  %v5510 = vld [vmem:[%s8 + $0x18] sm:$0xf]
  %v5511 = vld [vmem:[%s8 + $0x1c] sm:$0xf]
  %v5512 = vld [vmem:[%s8 + $0x20] sm:$0xf]
  %v5513 = vld [vmem:[%s8 + $0x24] sm:$0xf]
  %v5514 = vld [vmem:[%s8 + $0x28] sm:$0xf]
  %v5515 = vld [vmem:[%s8 + $0x2c] sm:$0xf]
  %v5516 = vld [vmem:[%s8 + $0x30] sm:$0xf]
  %v5517 = vld [vmem:[%s8 + $0x34] sm:$0xf]
  %v5518 = vld [vmem:[%s8 + $0x38] sm:$0xf]
  %v5519 = vld [vmem:[%s8 + $0x3c] sm:$0xf]
  %v5520 = vld [vmem:[%s8 + $0x40] sm:$0xf]
  %v5521 = vld [vmem:[%s8 + $0x44] sm:$0xf]
  %v5522 = vld [vmem:[%s8 + $0x48] sm:$0xf]
  %v5523 = vld [vmem:[%s8 + $0x4c] sm:$0xf]
  %v5524 = vld [vmem:[%s8 + $0x50] sm:$0xf]
  %v5525 = vld [vmem:[%s8 + $0x54] sm:$0xf]
  %v5526 = vld [vmem:[%s8 + $0x58] sm:$0xf]
  %v5527 = vld [vmem:[%s8 + $0x5c] sm:$0xf]
  %v5528 = vld [vmem:[%s8 + $0x60] sm:$0xf]
  %v5529 = vld [vmem:[%s8 + $0x64] sm:$0xf]
  %v5530 = vld [vmem:[%s8 + $0x68] sm:$0xf]
  %v5531 = vld [vmem:[%s8 + $0x6c] sm:$0xf]
  %v5532 = vld [vmem:[%s8 + $0x70] sm:$0xf]
  %v5533 = vld [vmem:[%s8 + $0x74] sm:$0xf]
  %v5534 = vld [vmem:[%s8 + $0x78] sm:$0xf]
  %v5535 = vld [vmem:[%s8 + $0x7c] sm:$0xf]
  %v5536 = vld [vmem:[%s8 + $0x80] sm:$0xf]
  %v5537 = vld [vmem:[%s8 + $0x84] sm:$0xf]
  %v5538 = vld [vmem:[%s8 + $0x88] sm:$0xf]
  %v5539 = vld [vmem:[%s8 + $0x8c] sm:$0xf]
  %v5540 = vld [vmem:[%s8 + $0x90] sm:$0xf]
  %v5541 = vld [vmem:[%s8 + $0x94] sm:$0xf]
  %v5542 = vld [vmem:[%s8 + $0x98] sm:$0xf]
  %v5543 = vld [vmem:[%s8 + $0x9c] sm:$0xf]
  %v5544 = vld [vmem:[%s8 + $0xa0] sm:$0xf]
  %v5545 = vld [vmem:[%s8 + $0xa4] sm:$0xf]
  %v5546 = vld [vmem:[%s8 + $0xa8] sm:$0xf]
  %v5547 = vld [vmem:[%s8 + $0xac] sm:$0xf]
  %v5548 = vld [vmem:[%s8 + $0xb0] sm:$0xf]
  %v5549 = vld [vmem:[%s8 + $0xb4] sm:$0xf]
  %v5550 = vld [vmem:[%s8 + $0xb8] sm:$0xf]
  %v5551 = vld [vmem:[%s8 + $0xbc] sm:$0xf]
  %v5552 = vld [vmem:[%s8 + $0xc0] sm:$0xf]
  %v5553 = vld [vmem:[%s8 + $0xc4] sm:$0xf]
  %v5554 = vld [vmem:[%s8 + $0xc8] sm:$0xf]
  %v5555 = vld [vmem:[%s8 + $0xcc] sm:$0xf]
  %v5556 = vld [vmem:[%s8 + $0xd0] sm:$0xf]
  %v5557 = vld [vmem:[%s8 + $0xd4] sm:$0xf]
  %v5558 = vld [vmem:[%s8 + $0xd8] sm:$0xf]
  %v5559 = vld [vmem:[%s8 + $0xdc] sm:$0xf]
  %v5560 = vld [vmem:[%s8 + $0xe0] sm:$0xf]
  %v5561 = vld [vmem:[%s8 + $0xe4] sm:$0xf]
  %v5562 = vld [vmem:[%s8 + $0xe8] sm:$0xf]
  %v5563 = vld [vmem:[%s8 + $0xec] sm:$0xf]
  %v5564 = vld [vmem:[%s8 + $0xf0] sm:$0xf]
  %v5565 = vld [vmem:[%s8 + $0xf4] sm:$0xf]
  %v5566 = vld [vmem:[%s8 + $0xf8] sm:$0xf]
  %v5567 = vld [vmem:[%s8 + $0xfc] sm:$0xf]
  %v5568 = vld [vmem:[%s8 + $0x100] sm:$0xf]
  %v5569 = vld [vmem:[%s8 + $0x104] sm:$0xf]
  %v5570 = vld [vmem:[%s8 + $0x108] sm:$0xf]
  %v5571 = vld [vmem:[%s8 + $0x10c] sm:$0xf]
  %v5572 = vld [vmem:[%s8 + $0x110] sm:$0xf]
  %v5573 = vld [vmem:[%s8 + $0x114] sm:$0xf]
  %v5574 = vld [vmem:[%s8 + $0x118] sm:$0xf]
  %v5575 = vld [vmem:[%s8 + $0x11c] sm:$0xf]
  %v5576 = vld [vmem:[%s8 + $0x120] sm:$0xf]
  %v5577 = vld [vmem:[%s8 + $0x124] sm:$0xf]
  %v5578 = vld [vmem:[%s8 + $0x128] sm:$0xf]
  %v5579 = vld [vmem:[%s8 + $0x12c] sm:$0xf]
  %v5580 = vld [vmem:[%s8 + $0x130] sm:$0xf]
  %v5581 = vld [vmem:[%s8 + $0x134] sm:$0xf]
  %v5582 = vld [vmem:[%s8 + $0x138] sm:$0xf]
  %v5583 = vld [vmem:[%s8 + $0x13c] sm:$0xf]
  %v5584 = vld [vmem:[%s8 + $0x140] sm:$0xf]
  %v5585 = vld [vmem:[%s8 + $0x144] sm:$0xf]
  %v5586 = vld [vmem:[%s8 + $0x148] sm:$0xf]
  %v5587 = vld [vmem:[%s8 + $0x14c] sm:$0xf]
  %v5588 = vld [vmem:[%s8 + $0x150] sm:$0xf]
  %v5589 = vld [vmem:[%s8 + $0x154] sm:$0xf]
  %v5590 = vld [vmem:[%s8 + $0x158] sm:$0xf]
  %v5591 = vld [vmem:[%s8 + $0x15c] sm:$0xf]
  %v5592 = vld [vmem:[%s8 + $0x160] sm:$0xf]
  %v5593 = vld [vmem:[%s8 + $0x164] sm:$0xf]
  %v5594 = vld [vmem:[%s8 + $0x168] sm:$0xf]
  %v5595 = vld [vmem:[%s8 + $0x16c] sm:$0xf]
  %v5596 = vld [vmem:[%s8 + $0x170] sm:$0xf]
  %v5597 = vld [vmem:[%s8 + $0x174] sm:$0xf]
  %v5598 = vld [vmem:[%s8 + $0x178] sm:$0xf]
  %v5599 = vld [vmem:[%s8 + $0x17c] sm:$0xf]
  %v5600 = vld [vmem:[%s8 + $0x180] sm:$0xf]
  %v5601 = vld [vmem:[%s8 + $0x184] sm:$0xf]
  %v5602 = vld [vmem:[%s8 + $0x188] sm:$0xf]
  %v5603 = vld [vmem:[%s8 + $0x18c] sm:$0xf]
  %v5604 = vld [vmem:[%s8 + $0x190] sm:$0xf]
  %v5605 = vld [vmem:[%s8 + $0x194] sm:$0xf]
  %v5606 = vld [vmem:[%s8 + $0x198] sm:$0xf]
  %v5607 = vld [vmem:[%s8 + $0x19c] sm:$0xf]
  %v5608 = vld [vmem:[%s8 + $0x1a0] sm:$0xf]
  %v5609 = vld [vmem:[%s8 + $0x1a4] sm:$0xf]
  %v5610 = vld [vmem:[%s8 + $0x1a8] sm:$0xf]
  %v5611 = vld [vmem:[%s8 + $0x1ac] sm:$0xf]
  %v5612 = vld [vmem:[%s8 + $0x1b0] sm:$0xf]
  %v5613 = vld [vmem:[%s8 + $0x1b4] sm:$0xf]
  %v5614 = vld [vmem:[%s8 + $0x1b8] sm:$0xf]
  %v5615 = vld [vmem:[%s8 + $0x1bc] sm:$0xf]
  %v5616 = vld [vmem:[%s8 + $0x1c0] sm:$0xf]
  %v5617 = vld [vmem:[%s8 + $0x1c4] sm:$0xf]
  %v5618 = vld [vmem:[%s8 + $0x1c8] sm:$0xf]
  %v5619 = vld [vmem:[%s8 + $0x1cc] sm:$0xf]
  %v5620 = vld [vmem:[%s8 + $0x1d0] sm:$0xf]
  %v5621 = vld [vmem:[%s8 + $0x1d4] sm:$0xf]
  %v5622 = vld [vmem:[%s8 + $0x1d8] sm:$0xf]
  %v5623 = vld [vmem:[%s8 + $0x1dc] sm:$0xf]
  %v5624 = vld [vmem:[%s8 + $0x1e0] sm:$0xf]
  %v5625 = vld [vmem:[%s8 + $0x1e4] sm:$0xf]
  %v5626 = vld [vmem:[%s8 + $0x1e8] sm:$0xf]
  %v5627 = vld [vmem:[%s8 + $0x1ec] sm:$0xf]
  %v5628 = vld [vmem:[%s8 + $0x1f0] sm:$0xf]
  %v5629 = vld [vmem:[%s8 + $0x1f4] sm:$0xf]
  %v5630 = vld [vmem:[%s8 + $0x1f8] sm:$0xf]
  %v5631 = vld [vmem:[%s8 + $0x1fc] sm:$0xf]
  %v5632 = vunpack.c.l.bf16 %v5504
  %v5633 = vunpack.c.l.bf16 %v5505
  %v5634 = vunpack.c.l.bf16 %v5506
  %v5635 = vunpack.c.l.bf16 %v5507
  %v5636 = vunpack.c.l.bf16 %v5508
  %v5637 = vunpack.c.l.bf16 %v5509
  %v5638 = vunpack.c.l.bf16 %v5510
  %v5639 = vunpack.c.l.bf16 %v5511
  %v5640 = vunpack.c.l.bf16 %v5512
  %v5641 = vunpack.c.l.bf16 %v5513
  %v5642 = vunpack.c.l.bf16 %v5514
  %v5643 = vunpack.c.l.bf16 %v5515
  %v5644 = vunpack.c.l.bf16 %v5516
  %v5645 = vunpack.c.l.bf16 %v5517
  %v5646 = vunpack.c.l.bf16 %v5518
  %v5647 = vunpack.c.l.bf16 %v5519
  %v5648 = vunpack.c.l.bf16 %v5520
  %v5649 = vunpack.c.l.bf16 %v5521
  %v5650 = vunpack.c.l.bf16 %v5522
  %v5651 = vunpack.c.l.bf16 %v5523
  %v5652 = vunpack.c.l.bf16 %v5524
  %v5653 = vunpack.c.l.bf16 %v5525
  %v5654 = vunpack.c.l.bf16 %v5526
  %v5655 = vunpack.c.l.bf16 %v5527
  %v5656 = vunpack.c.l.bf16 %v5528
  %v5657 = vunpack.c.l.bf16 %v5529
  %v5658 = vunpack.c.l.bf16 %v5530
  %v5659 = vunpack.c.l.bf16 %v5531
  %v5660 = vunpack.c.l.bf16 %v5532
  %v5661 = vunpack.c.l.bf16 %v5533
  %v5662 = vunpack.c.l.bf16 %v5534
  %v5663 = vunpack.c.l.bf16 %v5535
  %v5664 = vunpack.c.l.bf16 %v5536
  %v5665 = vunpack.c.l.bf16 %v5537
  %v5666 = vunpack.c.l.bf16 %v5538
  %v5667 = vunpack.c.l.bf16 %v5539
  %v5668 = vunpack.c.l.bf16 %v5540
  %v5669 = vunpack.c.l.bf16 %v5541
  %v5670 = vunpack.c.l.bf16 %v5542
  %v5671 = vunpack.c.l.bf16 %v5543
  %v5672 = vunpack.c.l.bf16 %v5544
  %v5673 = vunpack.c.l.bf16 %v5545
  %v5674 = vunpack.c.l.bf16 %v5546
  %v5675 = vunpack.c.l.bf16 %v5547
  %v5676 = vunpack.c.l.bf16 %v5548
  %v5677 = vunpack.c.l.bf16 %v5549
  %v5678 = vunpack.c.l.bf16 %v5550
  %v5679 = vunpack.c.l.bf16 %v5551
  %v5680 = vunpack.c.l.bf16 %v5552
  %v5681 = vunpack.c.l.bf16 %v5553
  %v5682 = vunpack.c.l.bf16 %v5554
  %v5683 = vunpack.c.l.bf16 %v5555
  %v5684 = vunpack.c.l.bf16 %v5556
  %v5685 = vunpack.c.l.bf16 %v5557
  %v5686 = vunpack.c.l.bf16 %v5558
  %v5687 = vunpack.c.l.bf16 %v5559
  %v5688 = vunpack.c.l.bf16 %v5560
  %v5689 = vunpack.c.l.bf16 %v5561
  %v5690 = vunpack.c.l.bf16 %v5562
  %v5691 = vunpack.c.l.bf16 %v5563
  %v5692 = vunpack.c.l.bf16 %v5564
  %v5693 = vunpack.c.l.bf16 %v5565
  %v5694 = vunpack.c.l.bf16 %v5566
  %v5695 = vunpack.c.l.bf16 %v5567
  %v5696 = vunpack.c.l.bf16 %v5568
  %v5697 = vunpack.c.l.bf16 %v5569
  %v5698 = vunpack.c.l.bf16 %v5570
  %v5699 = vunpack.c.l.bf16 %v5571
  %v5700 = vunpack.c.l.bf16 %v5572
  %v5701 = vunpack.c.l.bf16 %v5573
  %v5702 = vunpack.c.l.bf16 %v5574
  %v5703 = vunpack.c.l.bf16 %v5575
  %v5704 = vunpack.c.l.bf16 %v5576
  %v5705 = vunpack.c.l.bf16 %v5577
  %v5706 = vunpack.c.l.bf16 %v5578
  %v5707 = vunpack.c.l.bf16 %v5579
  %v5708 = vunpack.c.l.bf16 %v5580
  %v5709 = vunpack.c.l.bf16 %v5581
  %v5710 = vunpack.c.l.bf16 %v5582
  %v5711 = vunpack.c.l.bf16 %v5583
  %v5712 = vunpack.c.l.bf16 %v5584
  %v5713 = vunpack.c.l.bf16 %v5585
  %v5714 = vunpack.c.l.bf16 %v5586
  %v5715 = vunpack.c.l.bf16 %v5587
  %v5716 = vunpack.c.l.bf16 %v5588
  %v5717 = vunpack.c.l.bf16 %v5589
  %v5718 = vunpack.c.l.bf16 %v5590
  %v5719 = vunpack.c.l.bf16 %v5591
  %v5720 = vunpack.c.l.bf16 %v5592
  %v5721 = vunpack.c.l.bf16 %v5593
  %v5722 = vunpack.c.l.bf16 %v5594
  %v5723 = vunpack.c.l.bf16 %v5595
  %v5724 = vunpack.c.l.bf16 %v5596
  %v5725 = vunpack.c.l.bf16 %v5597
  %v5726 = vunpack.c.l.bf16 %v5598
  %v5727 = vunpack.c.l.bf16 %v5599
  %v5728 = vunpack.c.l.bf16 %v5600
  %v5729 = vunpack.c.l.bf16 %v5601
  %v5730 = vunpack.c.l.bf16 %v5602
  %v5731 = vunpack.c.l.bf16 %v5603
  %v5732 = vunpack.c.l.bf16 %v5604
  %v5733 = vunpack.c.l.bf16 %v5605
  %v5734 = vunpack.c.l.bf16 %v5606
  %v5735 = vunpack.c.l.bf16 %v5607
  %v5736 = vunpack.c.l.bf16 %v5608
  %v5737 = vunpack.c.l.bf16 %v5609
  %v5738 = vunpack.c.l.bf16 %v5610
  %v5739 = vunpack.c.l.bf16 %v5611
  %v5740 = vunpack.c.l.bf16 %v5612
  %v5741 = vunpack.c.l.bf16 %v5613
  %v5742 = vunpack.c.l.bf16 %v5614
  %v5743 = vunpack.c.l.bf16 %v5615
  %v5744 = vunpack.c.l.bf16 %v5616
  %v5745 = vunpack.c.l.bf16 %v5617
  %v5746 = vunpack.c.l.bf16 %v5618
  %v5747 = vunpack.c.l.bf16 %v5619
  %v5748 = vunpack.c.l.bf16 %v5620
  %v5749 = vunpack.c.l.bf16 %v5621
  %v5750 = vunpack.c.l.bf16 %v5622
  %v5751 = vunpack.c.l.bf16 %v5623
  %v5752 = vunpack.c.l.bf16 %v5624
  %v5753 = vunpack.c.l.bf16 %v5625
  %v5754 = vunpack.c.l.bf16 %v5626
  %v5755 = vunpack.c.l.bf16 %v5627
  %v5756 = vunpack.c.l.bf16 %v5628
  %v5757 = vunpack.c.l.bf16 %v5629
  %v5758 = vunpack.c.l.bf16 %v5630
  %v5759 = vunpack.c.l.bf16 %v5631
  %5760 = vmatprep.subr.mxu0 0.0
  %5761 = vmatpush1.msra.mxu0 %v5647
  %5762 = vmatprep.subr.mxu0 0.0
  %5763 = vmatpush1.msra.mxu0 %v5646
  %5764 = vmatprep.subr.mxu0 0.0
  %5765 = vmatpush1.msra.mxu0 %v5645
  %5766 = vmatprep.subr.mxu0 0.0
  %5767 = vmatpush1.msra.mxu0 %v5644
  %5768 = vmatprep.subr.mxu0 0.0
  %5769 = vmatpush1.msra.mxu0 %v5643
  %5770 = vmatprep.subr.mxu0 0.0
  %5771 = vmatpush1.msra.mxu0 %v5642
  %5772 = vmatprep.subr.mxu0 0.0
  %5773 = vmatpush1.msra.mxu0 %v5641
  %5774 = vmatprep.subr.mxu0 0.0
  %5775 = vmatpush1.msra.mxu0 %v5640
  %5776 = vmatprep.subr.mxu0 0.0
  %5777 = vmatpush1.msra.mxu0 %v5639
  %5778 = vmatprep.subr.mxu0 0.0
  %5779 = vmatpush1.msra.mxu0 %v5638
  %5780 = vmatprep.subr.mxu0 0.0
  %5781 = vmatpush1.msra.mxu0 %v5637
  %5782 = vmatprep.subr.mxu0 0.0
  %5783 = vmatpush1.msra.mxu0 %v5636
  %5784 = vmatprep.subr.mxu0 0.0
  %5785 = vmatpush1.msra.mxu0 %v5635
  %5786 = vmatprep.subr.mxu0 0.0
  %5787 = vmatpush1.msra.mxu0 %v5634
  %5788 = vmatprep.subr.mxu0 0.0
  %5789 = vmatpush1.msra.mxu0 %v5633
  %5790 = vmatprep.subr.mxu0 0.0
  %5791 = vmatpush1.msra.mxu0 %v5632
  %5792 = vmatprep.subr.mxu0 0.0
  %5793 = vmatpush2.msra.mxu0 %v5663
  %5794 = vmatprep.subr.mxu0 0.0
  %5795 = vmatpush2.msra.mxu0 %v5662
  %5796 = vmatprep.subr.mxu0 0.0
  %5797 = vmatpush2.msra.mxu0 %v5661
  %5798 = vmatprep.subr.mxu0 0.0
  %5799 = vmatpush2.msra.mxu0 %v5660
  %5800 = vmatprep.subr.mxu0 0.0
  %5801 = vmatpush2.msra.mxu0 %v5659
  %5802 = vmatprep.subr.mxu0 0.0
  %5803 = vmatpush2.msra.mxu0 %v5658
  %5804 = vmatprep.subr.mxu0 0.0
  %5805 = vmatpush2.msra.mxu0 %v5657
  %5806 = vmatprep.subr.mxu0 0.0
  %5807 = vmatpush2.msra.mxu0 %v5656
  %5808 = vmatprep.subr.mxu0 0.0
  %5809 = vmatpush2.msra.mxu0 %v5655
  %5810 = vmatprep.subr.mxu0 0.0
  %5811 = vmatpush2.msra.mxu0 %v5654
  %5812 = vmatprep.subr.mxu0 0.0
  %5813 = vmatpush2.msra.mxu0 %v5653
  %5814 = vmatprep.subr.mxu0 0.0
  %5815 = vmatpush2.msra.mxu0 %v5652
  %5816 = vmatprep.subr.mxu0 0.0
  %5817 = vmatpush2.msra.mxu0 %v5651
  %5818 = vmatprep.subr.mxu0 0.0
  %5819 = vmatpush2.msra.mxu0 %v5650
  %5820 = vmatprep.subr.mxu0 0.0
  %5821 = vmatpush2.msra.mxu0 %v5649
  %5822 = vmatprep.subr.mxu0 0.0
  %5823 = vmatpush2.msra.mxu0 %v5648
  %5824 = vmatprep.mubr.f32.mxu0 %v5497
  %5825 = vmatmul.mubr.f32.gmra.mxu0 %v5496
  %v5826 = vpop.f32.mrf.mxu0
  %v5827 = vadd.f32 0.0, %v5826
  %v5828 = vpop.f32.mrf.mxu0
  %5829 = vdwg.mxu0
  %5830 = vmatprep.subr.mxu0 0.0
  %5831 = vmatpush1.msra.mxu0 %v5679
  %5832 = vmatprep.subr.mxu0 0.0
  %5833 = vmatpush1.msra.mxu0 %v5678
  %5834 = vmatprep.subr.mxu0 0.0
  %5835 = vmatpush1.msra.mxu0 %v5677
  %5836 = vmatprep.subr.mxu0 0.0
  %5837 = vmatpush1.msra.mxu0 %v5676
  %5838 = vmatprep.subr.mxu0 0.0
  %5839 = vmatpush1.msra.mxu0 %v5675
  %5840 = vmatprep.subr.mxu0 0.0
  %5841 = vmatpush1.msra.mxu0 %v5674
  %5842 = vmatprep.subr.mxu0 0.0
  %5843 = vmatpush1.msra.mxu0 %v5673
  %5844 = vmatprep.subr.mxu0 0.0
  %5845 = vmatpush1.msra.mxu0 %v5672
  %5846 = vmatprep.subr.mxu0 0.0
  %5847 = vmatpush1.msra.mxu0 %v5671
  %5848 = vmatprep.subr.mxu0 0.0
  %5849 = vmatpush1.msra.mxu0 %v5670
  %5850 = vmatprep.subr.mxu0 0.0
  %5851 = vmatpush1.msra.mxu0 %v5669
  %5852 = vmatprep.subr.mxu0 0.0
  %5853 = vmatpush1.msra.mxu0 %v5668
  %5854 = vmatprep.subr.mxu0 0.0
  %5855 = vmatpush1.msra.mxu0 %v5667
  %5856 = vmatprep.subr.mxu0 0.0
  %5857 = vmatpush1.msra.mxu0 %v5666
  %5858 = vmatprep.subr.mxu0 0.0
  %5859 = vmatpush1.msra.mxu0 %v5665
  %5860 = vmatprep.subr.mxu0 0.0
  %5861 = vmatpush1.msra.mxu0 %v5664
  %5862 = vmatprep.subr.mxu0 0.0
  %5863 = vmatpush2.msra.mxu0 %v5695
  %5864 = vmatprep.subr.mxu0 0.0
  %5865 = vmatpush2.msra.mxu0 %v5694
  %5866 = vmatprep.subr.mxu0 0.0
  %5867 = vmatpush2.msra.mxu0 %v5693
  %5868 = vmatprep.subr.mxu0 0.0
  %5869 = vmatpush2.msra.mxu0 %v5692
  %5870 = vmatprep.subr.mxu0 0.0
  %5871 = vmatpush2.msra.mxu0 %v5691
  %5872 = vmatprep.subr.mxu0 0.0
  %5873 = vmatpush2.msra.mxu0 %v5690
  %5874 = vmatprep.subr.mxu0 0.0
  %5875 = vmatpush2.msra.mxu0 %v5689
  %5876 = vmatprep.subr.mxu0 0.0
  %5877 = vmatpush2.msra.mxu0 %v5688
  %5878 = vmatprep.subr.mxu0 0.0
  %5879 = vmatpush2.msra.mxu0 %v5687
  %5880 = vmatprep.subr.mxu0 0.0
  %5881 = vmatpush2.msra.mxu0 %v5686
  %5882 = vmatprep.subr.mxu0 0.0
  %5883 = vmatpush2.msra.mxu0 %v5685
  %5884 = vmatprep.subr.mxu0 0.0
  %5885 = vmatpush2.msra.mxu0 %v5684
  %5886 = vmatprep.subr.mxu0 0.0
  %5887 = vmatpush2.msra.mxu0 %v5683
  %5888 = vmatprep.subr.mxu0 0.0
  %5889 = vmatpush2.msra.mxu0 %v5682
  %5890 = vmatprep.subr.mxu0 0.0
  %5891 = vmatpush2.msra.mxu0 %v5681
  %5892 = vmatprep.subr.mxu0 0.0
  %5893 = vmatpush2.msra.mxu0 %v5680
  %5894 = vmatprep.mubr.f32.mxu0 %v5499
  %5895 = vmatmul.mubr.f32.gmra.mxu0 %v5498
  %v5896 = vpop.f32.mrf.mxu0
  %v5897 = vadd.f32 %v5827, %v5896
  %v5898 = vpop.f32.mrf.mxu0
  %5899 = vdwg.mxu0
  %5900 = vmatprep.subr.mxu0 0.0
  %5901 = vmatpush1.msra.mxu0 %v5711
  %5902 = vmatprep.subr.mxu0 0.0
  %5903 = vmatpush1.msra.mxu0 %v5710
  %5904 = vmatprep.subr.mxu0 0.0
  %5905 = vmatpush1.msra.mxu0 %v5709
  %5906 = vmatprep.subr.mxu0 0.0
  %5907 = vmatpush1.msra.mxu0 %v5708
  %5908 = vmatprep.subr.mxu0 0.0
  %5909 = vmatpush1.msra.mxu0 %v5707
  %5910 = vmatprep.subr.mxu0 0.0
  %5911 = vmatpush1.msra.mxu0 %v5706
  %5912 = vmatprep.subr.mxu0 0.0
  %5913 = vmatpush1.msra.mxu0 %v5705
  %5914 = vmatprep.subr.mxu0 0.0
  %5915 = vmatpush1.msra.mxu0 %v5704
  %5916 = vmatprep.subr.mxu0 0.0
  %5917 = vmatpush1.msra.mxu0 %v5703
  %5918 = vmatprep.subr.mxu0 0.0
  %5919 = vmatpush1.msra.mxu0 %v5702
  %5920 = vmatprep.subr.mxu0 0.0
  %5921 = vmatpush1.msra.mxu0 %v5701
  %5922 = vmatprep.subr.mxu0 0.0
  %5923 = vmatpush1.msra.mxu0 %v5700
  %5924 = vmatprep.subr.mxu0 0.0
  %5925 = vmatpush1.msra.mxu0 %v5699
  %5926 = vmatprep.subr.mxu0 0.0
  %5927 = vmatpush1.msra.mxu0 %v5698
  %5928 = vmatprep.subr.mxu0 0.0
  %5929 = vmatpush1.msra.mxu0 %v5697
  %5930 = vmatprep.subr.mxu0 0.0
  %5931 = vmatpush1.msra.mxu0 %v5696
  %5932 = vmatprep.subr.mxu0 0.0
  %5933 = vmatpush2.msra.mxu0 %v5727
  %5934 = vmatprep.subr.mxu0 0.0
  %5935 = vmatpush2.msra.mxu0 %v5726
  %5936 = vmatprep.subr.mxu0 0.0
  %5937 = vmatpush2.msra.mxu0 %v5725
  %5938 = vmatprep.subr.mxu0 0.0
  %5939 = vmatpush2.msra.mxu0 %v5724
  %5940 = vmatprep.subr.mxu0 0.0
  %5941 = vmatpush2.msra.mxu0 %v5723
  %5942 = vmatprep.subr.mxu0 0.0
  %5943 = vmatpush2.msra.mxu0 %v5722
  %5944 = vmatprep.subr.mxu0 0.0
  %5945 = vmatpush2.msra.mxu0 %v5721
  %5946 = vmatprep.subr.mxu0 0.0
  %5947 = vmatpush2.msra.mxu0 %v5720
  %5948 = vmatprep.subr.mxu0 0.0
  %5949 = vmatpush2.msra.mxu0 %v5719
  %5950 = vmatprep.subr.mxu0 0.0
  %5951 = vmatpush2.msra.mxu0 %v5718
  %5952 = vmatprep.subr.mxu0 0.0
  %5953 = vmatpush2.msra.mxu0 %v5717
  %5954 = vmatprep.subr.mxu0 0.0
  %5955 = vmatpush2.msra.mxu0 %v5716
  %5956 = vmatprep.subr.mxu0 0.0
  %5957 = vmatpush2.msra.mxu0 %v5715
  %5958 = vmatprep.subr.mxu0 0.0
  %5959 = vmatpush2.msra.mxu0 %v5714
  %5960 = vmatprep.subr.mxu0 0.0
  %5961 = vmatpush2.msra.mxu0 %v5713
  %5962 = vmatprep.subr.mxu0 0.0
  %5963 = vmatpush2.msra.mxu0 %v5712
  %5964 = vmatprep.mubr.f32.mxu0 %v5501
  %5965 = vmatmul.mubr.f32.gmra.mxu0 %v5500
  %v5966 = vpop.f32.mrf.mxu0
  %v5967 = vadd.f32 %v5897, %v5966
  %v5968 = vpop.f32.mrf.mxu0
  %5969 = vdwg.mxu0
  %5970 = vmatprep.subr.mxu0 0.0
  %5971 = vmatpush1.msra.mxu0 %v5743
  %5972 = vmatprep.subr.mxu0 0.0
  %5973 = vmatpush1.msra.mxu0 %v5742
  %5974 = vmatprep.subr.mxu0 0.0
  %5975 = vmatpush1.msra.mxu0 %v5741
  %5976 = vmatprep.subr.mxu0 0.0
  %5977 = vmatpush1.msra.mxu0 %v5740
  %5978 = vmatprep.subr.mxu0 0.0
  %5979 = vmatpush1.msra.mxu0 %v5739
  %5980 = vmatprep.subr.mxu0 0.0
  %5981 = vmatpush1.msra.mxu0 %v5738
  %5982 = vmatprep.subr.mxu0 0.0
  %5983 = vmatpush1.msra.mxu0 %v5737
  %5984 = vmatprep.subr.mxu0 0.0
  %5985 = vmatpush1.msra.mxu0 %v5736
  %5986 = vmatprep.subr.mxu0 0.0
  %5987 = vmatpush1.msra.mxu0 %v5735
  %5988 = vmatprep.subr.mxu0 0.0
  %5989 = vmatpush1.msra.mxu0 %v5734
  %5990 = vmatprep.subr.mxu0 0.0
  %5991 = vmatpush1.msra.mxu0 %v5733
  %5992 = vmatprep.subr.mxu0 0.0
  %5993 = vmatpush1.msra.mxu0 %v5732
  %5994 = vmatprep.subr.mxu0 0.0
  %5995 = vmatpush1.msra.mxu0 %v5731
  %5996 = vmatprep.subr.mxu0 0.0
  %5997 = vmatpush1.msra.mxu0 %v5730
  %5998 = vmatprep.subr.mxu0 0.0
  %5999 = vmatpush1.msra.mxu0 %v5729
  %6000 = vmatprep.subr.mxu0 0.0
  %6001 = vmatpush1.msra.mxu0 %v5728
  %6002 = vmatprep.subr.mxu0 0.0
  %6003 = vmatpush2.msra.mxu0 %v5759
  %6004 = vmatprep.subr.mxu0 0.0
  %6005 = vmatpush2.msra.mxu0 %v5758
  %6006 = vmatprep.subr.mxu0 0.0
  %6007 = vmatpush2.msra.mxu0 %v5757
  %6008 = vmatprep.subr.mxu0 0.0
  %6009 = vmatpush2.msra.mxu0 %v5756
  %6010 = vmatprep.subr.mxu0 0.0
  %6011 = vmatpush2.msra.mxu0 %v5755
  %6012 = vmatprep.subr.mxu0 0.0
  %6013 = vmatpush2.msra.mxu0 %v5754
  %6014 = vmatprep.subr.mxu0 0.0
  %6015 = vmatpush2.msra.mxu0 %v5753
  %6016 = vmatprep.subr.mxu0 0.0
  %6017 = vmatpush2.msra.mxu0 %v5752
  %6018 = vmatprep.subr.mxu0 0.0
  %6019 = vmatpush2.msra.mxu0 %v5751
  %6020 = vmatprep.subr.mxu0 0.0
  %6021 = vmatpush2.msra.mxu0 %v5750
  %6022 = vmatprep.subr.mxu0 0.0
  %6023 = vmatpush2.msra.mxu0 %v5749
  %6024 = vmatprep.subr.mxu0 0.0
  %6025 = vmatpush2.msra.mxu0 %v5748
  %6026 = vmatprep.subr.mxu0 0.0
  %6027 = vmatpush2.msra.mxu0 %v5747
  %6028 = vmatprep.subr.mxu0 0.0
  %6029 = vmatpush2.msra.mxu0 %v5746
  %6030 = vmatprep.subr.mxu0 0.0
  %6031 = vmatpush2.msra.mxu0 %v5745
  %6032 = vmatprep.subr.mxu0 0.0
  %6033 = vmatpush2.msra.mxu0 %v5744
  %6034 = vmatprep.mubr.f32.mxu0 %v5503
  %6035 = vmatmul.mubr.f32.gmra.mxu0 %v5502
  %v6036 = vpop.f32.mrf.mxu0
  %v6037 = vadd.f32 %v5967, %v6036
  %v6038 = vpop.f32.mrf.mxu0
  %6039 = vdwg.mxu0
  %v6040 = vadd.f32 %v6037, 0.0
  %v6041 = vmul.f32 %v6037, %v6037
  %v6042 = vadd.f32 %v6041, 0.0
  %v6044 = vrot.slane %v6042, 7
  %v6046 = vsel %vm2240, %v6040, %v6044
  %v6048 = vsel %vm287, %v6046, 0
  %6050 = vmatprep.subr.mxu0 0.0
  %6051 = vmatpush1.msra.mxu0 0.0
  %6052 = vmatprep.subr.mxu0 0.0
  %6053 = vmatpush1.msra.mxu0 0.0
  %6054 = vmatprep.subr.mxu0 0.0
  %6055 = vmatpush1.msra.mxu0 0.0
  %6056 = vmatprep.subr.mxu0 0.0
  %6057 = vmatpush1.msra.mxu0 0.0
  %6058 = vmatprep.subr.mxu0 0.0
  %6059 = vmatpush1.msra.mxu0 0.0
  %6060 = vmatprep.subr.mxu0 0.0
  %6061 = vmatpush1.msra.mxu0 0.0
  %6062 = vmatprep.subr.mxu0 0.0
  %6063 = vmatpush1.msra.mxu0 0.0
  %6064 = vmatprep.subr.mxu0 0.0
  %6065 = vmatpush1.msra.mxu0 0.0
  %6066 = vmatprep.subr.mxu0 0.0
  %6067 = vmatpush1.msra.mxu0 %v222
  %6068 = vmatprep.subr.mxu0 0.0
  %6069 = vmatpush1.msra.mxu0 %v221
  %6070 = vmatprep.subr.mxu0 0.0
  %6071 = vmatpush1.msra.mxu0 %v220
  %6072 = vmatprep.subr.mxu0 0.0
  %6073 = vmatpush1.msra.mxu0 %v219
  %6074 = vmatprep.subr.mxu0 0.0
  %6075 = vmatpush1.msra.mxu0 %v218
  %6076 = vmatprep.subr.mxu0 0.0
  %6077 = vmatpush1.msra.mxu0 %v217
  %6078 = vmatprep.subr.mxu0 0.0
  %6079 = vmatpush1.msra.mxu0 %v216
  %6080 = vmatprep.subr.mxu0 0.0
  %6081 = vmatpush1.msra.mxu0 %v215
  %6082 = vmatprep.subr.mxu0 0.0
  %6083 = vmatpush2.msra.mxu0 0.0
  %6084 = vmatprep.subr.mxu0 0.0
  %6085 = vmatpush2.msra.mxu0 0.0
  %6086 = vmatprep.subr.mxu0 0.0
  %6087 = vmatpush2.msra.mxu0 0.0
  %6088 = vmatprep.subr.mxu0 0.0
  %6089 = vmatpush2.msra.mxu0 0.0
  %6090 = vmatprep.subr.mxu0 0.0
  %6091 = vmatpush2.msra.mxu0 0.0
  %6092 = vmatprep.subr.mxu0 0.0
  %6093 = vmatpush2.msra.mxu0 0.0
  %6094 = vmatprep.subr.mxu0 0.0
  %6095 = vmatpush2.msra.mxu0 0.0
  %6096 = vmatprep.subr.mxu0 0.0
  %6097 = vmatpush2.msra.mxu0 0.0
  %6098 = vmatprep.subr.mxu0 0.0
  %6099 = vmatpush2.msra.mxu0 0.0
  %6100 = vmatprep.subr.mxu0 0.0
  %6101 = vmatpush2.msra.mxu0 0.0
  %6102 = vmatprep.subr.mxu0 0.0
  %6103 = vmatpush2.msra.mxu0 0.0
  %6104 = vmatprep.subr.mxu0 0.0
  %6105 = vmatpush2.msra.mxu0 0.0
  %6106 = vmatprep.subr.mxu0 0.0
  %6107 = vmatpush2.msra.mxu0 0.0
  %6108 = vmatprep.subr.mxu0 0.0
  %6109 = vmatpush2.msra.mxu0 0.0
  %6110 = vmatprep.subr.mxu0 0.0
  %6111 = vmatpush2.msra.mxu0 0.0
  %6112 = vmatprep.subr.mxu0 0.0
  %6113 = vmatpush2.msra.mxu0 0.0
  %6114 = vmatprep.mubr.f32.mxu0 0.0
  %6115 = vmatmul.mubr.f32.gmra.mxu0 %v6048
  %v6116 = vpop.f32.mrf.mxu0
  %v6117 = vadd.f32 0.0, %v6116
  %v6118 = vpop.f32.mrf.mxu0
  %6119 = vdwg.mxu0
  %v6120 = vrcp.pop 8.0
  %v6121 = vmul.f32 %v6117, %v6120
  %v6122 = vmul.f32 %v6121, %v6121
  %v6124 = vrot.slane %v6122, 7
  %v6126 = vsub.f32 %v6121, %v6124
  %v6127 = vmax.f32 %v6126, 0.0
  %v6128 = vld [vmem:[%s10 + $0x2] sm:$0x1]
  %v6129 = vld [vmem:[%s11 + $0x2] sm:$0x1]
  %v6130 = vsub.f32 %v6037, %v6121
  %v6131 = vadd.f32 %v6127, 1e-05
  %v6132 = vrsqrt.pop %v6131
  %v6134 = vrot.slane %v6132, 1
  %v6136 = vmul.f32 %v6130, %v6134
  %v6137 = vmul.f32 %v6136, %v6128
  %v6138 = vadd.f32 %v6137, %v6129
  %vm6139 = vcmp.ge.f32.partialorder %v6138, 0.0
  %v6140 = vmul.f32 %v6138, 0.2
  %v6141 = vsel %vm6139, %v6138, %v6140
  %v6142 = vld [vmem:[%s12] sm:$0xff]
  %v6143 = vld [vmem:[%s12 + $0x8] sm:$0xff]
  %v6144 = vld [vmem:[%s12 + $0x10] sm:$0xff]
  %v6145 = vld [vmem:[%s12 + $0x18] sm:$0xff]
  %v6146 = vld [vmem:[%s12 + $0x20] sm:$0xff]
  %v6147 = vld [vmem:[%s12 + $0x28] sm:$0xff]
  %v6148 = vld [vmem:[%s12 + $0x30] sm:$0xff]
  %v6149 = vld [vmem:[%s12 + $0x38] sm:$0xff]
  %v6150 = vld [vmem:[%s13] sm:$0x1]
  %v6152 = vsel %vm287, %v6141, 0
  %6154 = vmatprep.subr.mxu0 0.0
  %6155 = vmatpush1.msra.mxu0 0.0
  %6156 = vmatprep.subr.mxu0 0.0
  %6157 = vmatpush1.msra.mxu0 0.0
  %6158 = vmatprep.subr.mxu0 0.0
  %6159 = vmatpush1.msra.mxu0 0.0
  %6160 = vmatprep.subr.mxu0 0.0
  %6161 = vmatpush1.msra.mxu0 0.0
  %6162 = vmatprep.subr.mxu0 0.0
  %6163 = vmatpush1.msra.mxu0 0.0
  %6164 = vmatprep.subr.mxu0 0.0
  %6165 = vmatpush1.msra.mxu0 0.0
  %6166 = vmatprep.subr.mxu0 0.0
  %6167 = vmatpush1.msra.mxu0 0.0
  %6168 = vmatprep.subr.mxu0 0.0
  %6169 = vmatpush1.msra.mxu0 0.0
  %6170 = vmatprep.subr.mxu0 0.0
  %6171 = vmatpush1.msra.mxu0 %v6149
  %6172 = vmatprep.subr.mxu0 0.0
  %6173 = vmatpush1.msra.mxu0 %v6148
  %6174 = vmatprep.subr.mxu0 0.0
  %6175 = vmatpush1.msra.mxu0 %v6147
  %6176 = vmatprep.subr.mxu0 0.0
  %6177 = vmatpush1.msra.mxu0 %v6146
  %6178 = vmatprep.subr.mxu0 0.0
  %6179 = vmatpush1.msra.mxu0 %v6145
  %6180 = vmatprep.subr.mxu0 0.0
  %6181 = vmatpush1.msra.mxu0 %v6144
  %6182 = vmatprep.subr.mxu0 0.0
  %6183 = vmatpush1.msra.mxu0 %v6143
  %6184 = vmatprep.subr.mxu0 0.0
  %6185 = vmatpush1.msra.mxu0 %v6142
  %6186 = vmatprep.subr.mxu0 0.0
  %6187 = vmatpush2.msra.mxu0 0.0
  %6188 = vmatprep.subr.mxu0 0.0
  %6189 = vmatpush2.msra.mxu0 0.0
  %6190 = vmatprep.subr.mxu0 0.0
  %6191 = vmatpush2.msra.mxu0 0.0
  %6192 = vmatprep.subr.mxu0 0.0
  %6193 = vmatpush2.msra.mxu0 0.0
  %6194 = vmatprep.subr.mxu0 0.0
  %6195 = vmatpush2.msra.mxu0 0.0
  %6196 = vmatprep.subr.mxu0 0.0
  %6197 = vmatpush2.msra.mxu0 0.0
  %6198 = vmatprep.subr.mxu0 0.0
  %6199 = vmatpush2.msra.mxu0 0.0
  %6200 = vmatprep.subr.mxu0 0.0
  %6201 = vmatpush2.msra.mxu0 0.0
  %6202 = vmatprep.subr.mxu0 0.0
  %6203 = vmatpush2.msra.mxu0 0.0
  %6204 = vmatprep.subr.mxu0 0.0
  %6205 = vmatpush2.msra.mxu0 0.0
  %6206 = vmatprep.subr.mxu0 0.0
  %6207 = vmatpush2.msra.mxu0 0.0
  %6208 = vmatprep.subr.mxu0 0.0
  %6209 = vmatpush2.msra.mxu0 0.0
  %6210 = vmatprep.subr.mxu0 0.0
  %6211 = vmatpush2.msra.mxu0 0.0
  %6212 = vmatprep.subr.mxu0 0.0
  %6213 = vmatpush2.msra.mxu0 0.0
  %6214 = vmatprep.subr.mxu0 0.0
  %6215 = vmatpush2.msra.mxu0 0.0
  %6216 = vmatprep.subr.mxu0 0.0
  %6217 = vmatpush2.msra.mxu0 0.0
  %6218 = vmatprep.mubr.f32.mxu0 0.0
  %6219 = vmatmul.mubr.f32.gmra.mxu0 %v6152
  %v6220 = vpop.f32.mrf.mxu0
  %v6221 = vadd.f32 %v6150, %v6220
  %v6222 = vpop.f32.mrf.mxu0
  %6223 = vdwg.mxu0
  %vm6224 = vcmask 57344
  %6225 = vst.msk [vmem:[%s14] sm:$0x1] %vm6224, %v6221
  // Predicated region
  $region58: #{_patchgan_forward_impl.1} parent=0 // pred_check
    _
  $region59: #{_patchgan_forward_impl.1} parent=0 // pred_check_branch
    %6227 = sbr.rel (0) target = $region61
  $region60: #{_patchgan_forward_impl.1} parent=0 // pred_region
    _
  $region61: #{_patchgan_forward_impl.1} parent=0 // pred_fallthru
    _
  // Predicated region
  $region62: #{_patchgan_forward_impl.1} parent=0 // pred_check
    _
  $region63: #{_patchgan_forward_impl.1} parent=0 // pred_check_branch
    %6229 = sbr.rel (0) target = $region65
  $region64: #{_patchgan_forward_impl.1} parent=0 // pred_region
    _
  $region65: #{_patchgan_forward_impl.1} parent=0 // pred_fallthru
    _

</llo_original>
